<compile_context>
chip_gen: v7x
topology: tpu7x:2x2x1
jax: 0.10.0
libtpu: 0.0.40
codegen_flags: <defaults>
</compile_context>

<pallas_src>
from functools import partial

import jax
import jax.numpy as jnp
from jax import lax
from jax.experimental import pallas as pl
from jax.experimental.pallas import tpu as pltpu

HIDDEN = 512  # fixed by the module (nn.LSTM hidden_size=512)


def _actor_kernel(x_ref, wih_ref, bias_ref, wpol_ref, bpol_ref, whh_hbm_ref,
                  logits_ref, whh_vmem, gates_vmem, sem):
    """Fused Actor forward (minus final slice + softmax, done in XLA).

    x_ref:       (T*B, F)  f32  VMEM  -- time-major, batch-padded features
    wih_ref:     (F, 4H)   f32  VMEM  -- W_ih^T
    bias_ref:    (1, 4H)   f32  VMEM  -- b_ih + b_hh
    wpol_ref:    (H, Apad) f32  VMEM  -- policy head W^T padded to 128 lanes
    bpol_ref:    (1, Apad) f32  VMEM  -- policy head bias padded
    whh_hbm_ref: (H, 4H)   bf16 ANY   -- W_hh^T, DMA'd manually
    logits_ref:  (B, Apad) f32  VMEM  -- lane-dense padded logits (output)
    whh_vmem:    (H, 4H)   bf16 VMEM scratch
    gates_vmem:  (T*B, 4H) f32  VMEM scratch (precomputed input gates)
    sem:         DMA semaphore
    """
    B = logits_ref.shape[0]          # padded batch (sublane multiple)
    H = whh_vmem.shape[0]
    T = gates_vmem.shape[0] // B

    # 1) Start the recurrent-weight DMA immediately; it overlaps the
    #    input-projection matmuls below.
    whh_cp = pltpu.make_async_copy(whh_hbm_ref, whh_vmem, sem)
    whh_cp.start()

    # 2) Input projection for ALL timesteps, gate-chunked to keep the live
    #    MXU output at (T*B, H) instead of (T*B, 4H).
    x_all = x_ref[...]                                           # (T*B, F)
    for g in range(4):
        col = slice(g * H, (g + 1) * H)
        gates_vmem[:, col] = (
            jnp.dot(x_all, wih_ref[:, col],
                    preferred_element_type=jnp.float32)
            + bias_ref[:, col])

    # 3) Recurrent weights must be resident before the first recurrent step.
    whh_cp.wait()

    # 4) Sequential LSTM recurrence (T is small and static -> full unroll).
    #    torch.nn.LSTM gate order: i, f, g, o.
    h = jnp.zeros((B, H), jnp.float32)
    c = jnp.zeros((B, H), jnp.float32)
    for t in range(T):
        h_bf = h.astype(jnp.bfloat16)
        row = slice(t * B, (t + 1) * B)

        def gate(g, _row=row, _h=h_bf):
            col = slice(g * H, (g + 1) * H)
            rec = jnp.dot(_h, whh_vmem[:, col],
                          preferred_element_type=jnp.float32)    # (B, H) f32
            return gates_vmem[_row, col] + rec

        i_g = jax.nn.sigmoid(gate(0))
        f_g = jax.nn.sigmoid(gate(1))
        g_g = jnp.tanh(gate(2))
        o_g = jax.nn.sigmoid(gate(3))
        c = f_g * c + i_g * g_g
        h = o_g * jnp.tanh(c)

    # 5) Fused, lane-dense policy head.  Pad columns (weights/bias zero) give
    #    logits of exactly 0 and are sliced away in XLA before softmax.
    logits_ref[...] = (jnp.dot(h, wpol_ref[...],
                               preferred_element_type=jnp.float32)
                       + bpol_ref[...])


def prepare_params(w_ih, w_hh, b_ih, b_hh, w_pol, b_pol):
    """One-time weight-layout preparation (do NOT run per forward call)."""
    H = HIDDEN
    A = w_pol.shape[0]
    a_pad = ((A + 127) // 128) * 128
    wih_t = jnp.asarray(w_ih, jnp.float32).T                          # (F, 4H)
    whh_t = jnp.asarray(w_hh, jnp.float32).T.astype(jnp.bfloat16)     # (H, 4H)
    bias_g = (jnp.asarray(b_ih, jnp.float32)
              + jnp.asarray(b_hh, jnp.float32)).reshape(1, 4 * H)     # (1, 4H)
    wpol_pad = jnp.zeros((H, a_pad), jnp.float32).at[:, :A].set(
        jnp.asarray(w_pol, jnp.float32).T)                            # (H, Apad)
    bpol_pad = jnp.zeros((1, a_pad), jnp.float32).at[0, :A].set(
        jnp.asarray(b_pol, jnp.float32))                              # (1, Apad)
    return wih_t, bias_g, whh_t, wpol_pad, bpol_pad


@partial(jax.jit, static_argnames=("num_actions",))
def actor_forward(features, wih_t, bias_g, whh_t, wpol_pad, bpol_pad, *,
                  num_actions):
    """features: (B, T, F) float32 (PyTorch batch_first convention).

    Returns softmax action probabilities (B, num_actions), float32.
    """
    B, T, F = features.shape
    H = HIDDEN
    B_pad = max(8, ((B + 7) // 8) * 8)
    a_pad = wpol_pad.shape[1]

    # Time-major, batch padded to a dense sublane multiple, flattened for the
    # fused in-kernel input projection.  (Tiny: a few KiB of XLA work.)
    x = jnp.transpose(features.astype(jnp.float32), (1, 0, 2))        # (T, B, F)
    if B_pad != B:
        x = jnp.pad(x, ((0, 0), (0, B_pad - B), (0, 0)))
    x2d = x.reshape(T * B_pad, F)

    logits_pad = pl.pallas_call(
        _actor_kernel,
        out_shape=jax.ShapeDtypeStruct((B_pad, a_pad), jnp.float32),
        in_specs=[
            pl.BlockSpec(memory_space=pltpu.MemorySpace.VMEM),   # x2d
            pl.BlockSpec(memory_space=pltpu.MemorySpace.VMEM),   # W_ih^T
            pl.BlockSpec(memory_space=pltpu.MemorySpace.VMEM),   # fused bias
            pl.BlockSpec(memory_space=pltpu.MemorySpace.VMEM),   # W_pol padded
            pl.BlockSpec(memory_space=pltpu.MemorySpace.VMEM),   # b_pol padded
            pl.BlockSpec(memory_space=pl.ANY),                   # W_hh^T (manual DMA)
        ],
        out_specs=pl.BlockSpec(memory_space=pltpu.MemorySpace.VMEM),
        scratch_shapes=[
            pltpu.VMEM((H, 4 * H), jnp.bfloat16),                # W_hh^T VMEM copy
            pltpu.VMEM((T * B_pad, 4 * H), jnp.float32),         # gate slab
            pltpu.SemaphoreType.DMA,
        ],
    )(x2d, wih_t, bias_g, wpol_pad, bpol_pad, whh_t)

    logits = logits_pad[:B, :num_actions]
    return jax.nn.softmax(logits, axis=-1)


def _actor_reference(features, w_ih, w_hh, b_ih, b_hh, w_pol, b_pol):
    """Pure-JAX f32 reference matching torch.nn.LSTM + Linear + softmax."""
    B, T, F = features.shape
    H = HIDDEN

    def cell(carry, x_t):
        h, c = carry
        gates = x_t @ w_ih.T + h @ w_hh.T + b_ih + b_hh
        i = jax.nn.sigmoid(gates[:, 0 * H:1 * H])
        f = jax.nn.sigmoid(gates[:, 1 * H:2 * H])
        g = jnp.tanh(gates[:, 2 * H:3 * H])
        o = jax.nn.sigmoid(gates[:, 3 * H:4 * H])
        c = f * c + i * g
        h = o * jnp.tanh(c)
        return (h, c), None

    h0 = jnp.zeros((B, H), jnp.float32)
    c0 = jnp.zeros((B, H), jnp.float32)
    (h, _), _ = lax.scan(cell, (h0, c0), jnp.transpose(features, (1, 0, 2)))
    return jax.nn.softmax(h @ w_pol.T + b_pol, axis=-1)


def init_params(key, feature_dim, num_actions):
    """Deterministic synthetic parameters matching torch.nn.LSTM/Linear shapes."""
    H = HIDDEN
    ks = jax.random.split(key, 6)
    scale = 1.0 / jnp.sqrt(H)
    w_ih = jax.random.uniform(ks[0], (4 * H, feature_dim), jnp.float32, -scale, scale)
    w_hh = jax.random.uniform(ks[1], (4 * H, H), jnp.float32, -scale, scale)
    b_ih = jax.random.uniform(ks[2], (4 * H,), jnp.float32, -scale, scale)
    b_hh = jax.random.uniform(ks[3], (4 * H,), jnp.float32, -scale, scale)
    w_pol = jax.random.uniform(ks[4], (num_actions, H), jnp.float32, -scale, scale)
    b_pol = jax.random.uniform(ks[5], (num_actions,), jnp.float32, -scale, scale)
    return w_ih, w_hh, b_ih, b_hh, w_pol, b_pol


if __name__ == "__main__":
    B, T, FEAT, ACT = 2, 8, 32, 8
    key = jax.random.PRNGKey(0)
    k_x, k_p = jax.random.split(key)
    features = jax.random.normal(k_x, (B, T, FEAT), jnp.float32)

    raw_params = init_params(k_p, FEAT, ACT)
    prepared = prepare_params(*raw_params)   # one-time layout prep

    probs = jax.block_until_ready(
        actor_forward(features, *prepared, num_actions=ACT))

    assert probs.shape == (B, ACT), probs.shape
    row_sums = jnp.sum(probs, axis=-1)
    assert jnp.allclose(row_sums, jnp.ones((B,)), atol=1e-4), row_sums

    # Numerical check vs pure-JAX f32 reference (tolerance covers the bf16
    # recurrent-matmul operands used in the kernel).
    ref = jax.block_until_ready(_actor_reference(features, *raw_params))
    assert jnp.allclose(probs, ref, atol=5e-2), float(jnp.max(jnp.abs(probs - ref)))

    print("KERNEL_OK")
</pallas_src>

<mosaic_0001>
module attributes {stable_mosaic.version = 11 : i64} {
  func.func @_actor_kernel(%arg0: memref<64x32xf32, #tpu.memory_space<vmem>>, %arg1: memref<32x2048xf32, #tpu.memory_space<vmem>>, %arg2: memref<1x2048xf32, #tpu.memory_space<vmem>>, %arg3: memref<512x128xf32, #tpu.memory_space<vmem>>, %arg4: memref<1x128xf32, #tpu.memory_space<vmem>>, %arg5: memref<512x2048xbf16, #tpu.memory_space<any>>, %arg6: memref<8x128xf32, #tpu.memory_space<vmem>>, %arg7: memref<512x2048xbf16, #tpu.memory_space<vmem>>, %arg8: memref<64x2048xf32, #tpu.memory_space<vmem>>, %arg9: memref<!tpu.dma_semaphore, #tpu.memory_space<semaphore_mem>>) attributes {dimension_semantics = [], scalar_prefetch = 0 : i64, scratch_operands = 3 : i64, tpu.core_type = #tpu.core_type<tc>} {
    tpu.enqueue_dma source(%arg5 : memref<512x2048xbf16, #tpu.memory_space<any>>) target(%arg7 : memref<512x2048xbf16, #tpu.memory_space<vmem>>) target_semaphore(%arg9 : memref<!tpu.dma_semaphore, #tpu.memory_space<semaphore_mem>>)
    %c0 = arith.constant 0 : index
    %c0_0 = arith.constant 0 : index
    %0 = vector.load %arg0[%c0, %c0_0] : memref<64x32xf32, #tpu.memory_space<vmem>>, vector<64x32xf32>
    %c0_1 = arith.constant 0 : index
    %c0_2 = arith.constant 0 : index
    %1 = vector.load %arg1[%c0_1, %c0_2] : memref<32x2048xf32, #tpu.memory_space<vmem>>, vector<32x512xf32>
    %cst = arith.constant dense<0.000000e+00> : vector<64x512xf32>
    %2 = tpu.matmul %0, %1, %cst {dimension_numbers = #tpu.dot_dimension_numbers<[1], [0], [0], [1], [0, 0, 1, 1], [], []>} : vector<64x32xf32>, vector<32x512xf32>, vector<64x512xf32> -> vector<64x512xf32>
    %c0_3 = arith.constant 0 : index
    %c0_4 = arith.constant 0 : index
    %3 = vector.load %arg2[%c0_3, %c0_4] : memref<1x2048xf32, #tpu.memory_space<vmem>>, vector<1x512xf32>
    %4 = vector.broadcast %3 : vector<1x512xf32> to vector<64x512xf32>
    %5 = arith.addf %2, %4 : vector<64x512xf32>
    %c0_5 = arith.constant 0 : index
    %c0_6 = arith.constant 0 : index
    %6 = vector.load %arg8[%c0_5, %c0_6] : memref<64x2048xf32, #tpu.memory_space<vmem>>, vector<64x512xf32>
    tpu.vector_store %arg8[%c0_5, %c0_6], %5 {strides = array<i32>} : memref<64x2048xf32, #tpu.memory_space<vmem>>, vector<64x512xf32>,
    %c0_7 = arith.constant 0 : index
    %c512 = arith.constant 512 : index
    %7 = vector.load %arg1[%c0_7, %c512] : memref<32x2048xf32, #tpu.memory_space<vmem>>, vector<32x512xf32>
    %cst_8 = arith.constant dense<0.000000e+00> : vector<64x512xf32>
    %8 = tpu.matmul %0, %7, %cst_8 {dimension_numbers = #tpu.dot_dimension_numbers<[1], [0], [0], [1], [0, 0, 1, 1], [], []>} : vector<64x32xf32>, vector<32x512xf32>, vector<64x512xf32> -> vector<64x512xf32>
    %c0_9 = arith.constant 0 : index
    %c512_10 = arith.constant 512 : index
    %9 = vector.load %arg2[%c0_9, %c512_10] : memref<1x2048xf32, #tpu.memory_space<vmem>>, vector<1x512xf32>
    %10 = vector.broadcast %9 : vector<1x512xf32> to vector<64x512xf32>
    %11 = arith.addf %8, %10 : vector<64x512xf32>
    %c0_11 = arith.constant 0 : index
    %c512_12 = arith.constant 512 : index
    %12 = vector.load %arg8[%c0_11, %c512_12] : memref<64x2048xf32, #tpu.memory_space<vmem>>, vector<64x512xf32>
    tpu.vector_store %arg8[%c0_11, %c512_12], %11 {strides = array<i32>} : memref<64x2048xf32, #tpu.memory_space<vmem>>, vector<64x512xf32>,
    %c0_13 = arith.constant 0 : index
    %c1024 = arith.constant 1024 : index
    %13 = vector.load %arg1[%c0_13, %c1024] : memref<32x2048xf32, #tpu.memory_space<vmem>>, vector<32x512xf32>
    %cst_14 = arith.constant dense<0.000000e+00> : vector<64x512xf32>
    %14 = tpu.matmul %0, %13, %cst_14 {dimension_numbers = #tpu.dot_dimension_numbers<[1], [0], [0], [1], [0, 0, 1, 1], [], []>} : vector<64x32xf32>, vector<32x512xf32>, vector<64x512xf32> -> vector<64x512xf32>
    %c0_15 = arith.constant 0 : index
    %c1024_16 = arith.constant 1024 : index
    %15 = vector.load %arg2[%c0_15, %c1024_16] : memref<1x2048xf32, #tpu.memory_space<vmem>>, vector<1x512xf32>
    %16 = vector.broadcast %15 : vector<1x512xf32> to vector<64x512xf32>
    %17 = arith.addf %14, %16 : vector<64x512xf32>
    %c0_17 = arith.constant 0 : index
    %c1024_18 = arith.constant 1024 : index
    %18 = vector.load %arg8[%c0_17, %c1024_18] : memref<64x2048xf32, #tpu.memory_space<vmem>>, vector<64x512xf32>
    tpu.vector_store %arg8[%c0_17, %c1024_18], %17 {strides = array<i32>} : memref<64x2048xf32, #tpu.memory_space<vmem>>, vector<64x512xf32>,
    %c0_19 = arith.constant 0 : index
    %c1536 = arith.constant 1536 : index
    %19 = vector.load %arg1[%c0_19, %c1536] : memref<32x2048xf32, #tpu.memory_space<vmem>>, vector<32x512xf32>
    %cst_20 = arith.constant dense<0.000000e+00> : vector<64x512xf32>
    %20 = tpu.matmul %0, %19, %cst_20 {dimension_numbers = #tpu.dot_dimension_numbers<[1], [0], [0], [1], [0, 0, 1, 1], [], []>} : vector<64x32xf32>, vector<32x512xf32>, vector<64x512xf32> -> vector<64x512xf32>
    %c0_21 = arith.constant 0 : index
    %c1536_22 = arith.constant 1536 : index
    %21 = vector.load %arg2[%c0_21, %c1536_22] : memref<1x2048xf32, #tpu.memory_space<vmem>>, vector<1x512xf32>
    %22 = vector.broadcast %21 : vector<1x512xf32> to vector<64x512xf32>
    %23 = arith.addf %20, %22 : vector<64x512xf32>
    %c0_23 = arith.constant 0 : index
    %c1536_24 = arith.constant 1536 : index
    %24 = vector.load %arg8[%c0_23, %c1536_24] : memref<64x2048xf32, #tpu.memory_space<vmem>>, vector<64x512xf32>
    tpu.vector_store %arg8[%c0_23, %c1536_24], %23 {strides = array<i32>} : memref<64x2048xf32, #tpu.memory_space<vmem>>, vector<64x512xf32>,
    tpu.wait_dma2 semaphore(%arg9 : memref<!tpu.dma_semaphore, #tpu.memory_space<semaphore_mem>>) src(%arg5 : memref<512x2048xbf16, #tpu.memory_space<any>>) dst(%arg7 : memref<512x2048xbf16, #tpu.memory_space<vmem>>)
    %cst_25 = arith.constant 0.000000e+00 : f32
    %25 = vector.broadcast %cst_25 : f32 to vector<8x512xf32>
    %cst_26 = arith.constant 0.000000e+00 : f32
    %26 = vector.broadcast %cst_26 : f32 to vector<8x512xf32>
    %27 = arith.truncf %25 : vector<8x512xf32> to vector<8x512xbf16>
    %c0_27 = arith.constant 0 : index
    %c0_28 = arith.constant 0 : index
    %28 = vector.load %arg7[%c0_27, %c0_28] : memref<512x2048xbf16, #tpu.memory_space<vmem>>, vector<512x512xbf16>
    %cst_29 = arith.constant dense<0.000000e+00> : vector<8x512xf32>
    %29 = tpu.matmul %27, %28, %cst_29 {dimension_numbers = #tpu.dot_dimension_numbers<[1], [0], [0], [1], [0, 0, 1, 1], [], []>} : vector<8x512xbf16>, vector<512x512xbf16>, vector<8x512xf32> -> vector<8x512xf32>
    %c0_30 = arith.constant 0 : index
    %c0_31 = arith.constant 0 : index
    %30 = vector.load %arg8[%c0_30, %c0_31] : memref<64x2048xf32, #tpu.memory_space<vmem>>, vector<8x512xf32>
    %31 = arith.addf %30, %29 : vector<8x512xf32>
    %32 = arith.negf %31 : vector<8x512xf32>
    %33 = math.exp %32 : vector<8x512xf32>
    %cst_32 = arith.constant 1.000000e+00 : f32
    %34 = vector.broadcast %cst_32 : f32 to vector<8x512xf32>
    %35 = arith.addf %34, %33 : vector<8x512xf32>
    %36 = arith.divf %34, %35 : vector<8x512xf32>
    %c0_33 = arith.constant 0 : index
    %c512_34 = arith.constant 512 : index
    %37 = vector.load %arg7[%c0_33, %c512_34] : memref<512x2048xbf16, #tpu.memory_space<vmem>>, vector<512x512xbf16>
    %cst_35 = arith.constant dense<0.000000e+00> : vector<8x512xf32>
    %38 = tpu.matmul %27, %37, %cst_35 {dimension_numbers = #tpu.dot_dimension_numbers<[1], [0], [0], [1], [0, 0, 1, 1], [], []>} : vector<8x512xbf16>, vector<512x512xbf16>, vector<8x512xf32> -> vector<8x512xf32>
    %c0_36 = arith.constant 0 : index
    %c512_37 = arith.constant 512 : index
    %39 = vector.load %arg8[%c0_36, %c512_37] : memref<64x2048xf32, #tpu.memory_space<vmem>>, vector<8x512xf32>
    %40 = arith.addf %39, %38 : vector<8x512xf32>
    %41 = arith.negf %40 : vector<8x512xf32>
    %42 = math.exp %41 : vector<8x512xf32>
    %cst_38 = arith.constant 1.000000e+00 : f32
    %43 = vector.broadcast %cst_38 : f32 to vector<8x512xf32>
    %44 = arith.addf %43, %42 : vector<8x512xf32>
    %45 = arith.divf %43, %44 : vector<8x512xf32>
    %c0_39 = arith.constant 0 : index
    %c1024_40 = arith.constant 1024 : index
    %46 = vector.load %arg7[%c0_39, %c1024_40] : memref<512x2048xbf16, #tpu.memory_space<vmem>>, vector<512x512xbf16>
    %cst_41 = arith.constant dense<0.000000e+00> : vector<8x512xf32>
    %47 = tpu.matmul %27, %46, %cst_41 {dimension_numbers = #tpu.dot_dimension_numbers<[1], [0], [0], [1], [0, 0, 1, 1], [], []>} : vector<8x512xbf16>, vector<512x512xbf16>, vector<8x512xf32> -> vector<8x512xf32>
    %c0_42 = arith.constant 0 : index
    %c1024_43 = arith.constant 1024 : index
    %48 = vector.load %arg8[%c0_42, %c1024_43] : memref<64x2048xf32, #tpu.memory_space<vmem>>, vector<8x512xf32>
    %49 = arith.addf %48, %47 : vector<8x512xf32>
    %50 = math.tanh %49 : vector<8x512xf32>
    %c0_44 = arith.constant 0 : index
    %c1536_45 = arith.constant 1536 : index
    %51 = vector.load %arg7[%c0_44, %c1536_45] : memref<512x2048xbf16, #tpu.memory_space<vmem>>, vector<512x512xbf16>
    %cst_46 = arith.constant dense<0.000000e+00> : vector<8x512xf32>
    %52 = tpu.matmul %27, %51, %cst_46 {dimension_numbers = #tpu.dot_dimension_numbers<[1], [0], [0], [1], [0, 0, 1, 1], [], []>} : vector<8x512xbf16>, vector<512x512xbf16>, vector<8x512xf32> -> vector<8x512xf32>
    %c0_47 = arith.constant 0 : index
    %c1536_48 = arith.constant 1536 : index
    %53 = vector.load %arg8[%c0_47, %c1536_48] : memref<64x2048xf32, #tpu.memory_space<vmem>>, vector<8x512xf32>
    %54 = arith.addf %53, %52 : vector<8x512xf32>
    %55 = arith.negf %54 : vector<8x512xf32>
    %56 = math.exp %55 : vector<8x512xf32>
    %cst_49 = arith.constant 1.000000e+00 : f32
    %57 = vector.broadcast %cst_49 : f32 to vector<8x512xf32>
    %58 = arith.addf %57, %56 : vector<8x512xf32>
    %59 = arith.divf %57, %58 : vector<8x512xf32>
    %60 = arith.mulf %45, %26 : vector<8x512xf32>
    %61 = arith.mulf %36, %50 : vector<8x512xf32>
    %62 = arith.addf %60, %61 : vector<8x512xf32>
    %63 = math.tanh %62 : vector<8x512xf32>
    %64 = arith.mulf %59, %63 : vector<8x512xf32>
    %65 = arith.truncf %64 : vector<8x512xf32> to vector<8x512xbf16>
    %c0_50 = arith.constant 0 : index
    %c0_51 = arith.constant 0 : index
    %66 = vector.load %arg7[%c0_50, %c0_51] : memref<512x2048xbf16, #tpu.memory_space<vmem>>, vector<512x512xbf16>
    %cst_52 = arith.constant dense<0.000000e+00> : vector<8x512xf32>
    %67 = tpu.matmul %65, %66, %cst_52 {dimension_numbers = #tpu.dot_dimension_numbers<[1], [0], [0], [1], [0, 0, 1, 1], [], []>} : vector<8x512xbf16>, vector<512x512xbf16>, vector<8x512xf32> -> vector<8x512xf32>
    %c8 = arith.constant 8 : index
    %c0_53 = arith.constant 0 : index
    %68 = vector.load %arg8[%c8, %c0_53] : memref<64x2048xf32, #tpu.memory_space<vmem>>, vector<8x512xf32>
    %69 = arith.addf %68, %67 : vector<8x512xf32>
    %70 = arith.negf %69 : vector<8x512xf32>
    %71 = math.exp %70 : vector<8x512xf32>
    %cst_54 = arith.constant 1.000000e+00 : f32
    %72 = vector.broadcast %cst_54 : f32 to vector<8x512xf32>
    %73 = arith.addf %72, %71 : vector<8x512xf32>
    %74 = arith.divf %72, %73 : vector<8x512xf32>
    %c0_55 = arith.constant 0 : index
    %c512_56 = arith.constant 512 : index
    %75 = vector.load %arg7[%c0_55, %c512_56] : memref<512x2048xbf16, #tpu.memory_space<vmem>>, vector<512x512xbf16>
    %cst_57 = arith.constant dense<0.000000e+00> : vector<8x512xf32>
    %76 = tpu.matmul %65, %75, %cst_57 {dimension_numbers = #tpu.dot_dimension_numbers<[1], [0], [0], [1], [0, 0, 1, 1], [], []>} : vector<8x512xbf16>, vector<512x512xbf16>, vector<8x512xf32> -> vector<8x512xf32>
    %c8_58 = arith.constant 8 : index
    %c512_59 = arith.constant 512 : index
    %77 = vector.load %arg8[%c8_58, %c512_59] : memref<64x2048xf32, #tpu.memory_space<vmem>>, vector<8x512xf32>
    %78 = arith.addf %77, %76 : vector<8x512xf32>
    %79 = arith.negf %78 : vector<8x512xf32>
    %80 = math.exp %79 : vector<8x512xf32>
    %cst_60 = arith.constant 1.000000e+00 : f32
    %81 = vector.broadcast %cst_60 : f32 to vector<8x512xf32>
    %82 = arith.addf %81, %80 : vector<8x512xf32>
    %83 = arith.divf %81, %82 : vector<8x512xf32>
    %c0_61 = arith.constant 0 : index
    %c1024_62 = arith.constant 1024 : index
    %84 = vector.load %arg7[%c0_61, %c1024_62] : memref<512x2048xbf16, #tpu.memory_space<vmem>>, vector<512x512xbf16>
    %cst_63 = arith.constant dense<0.000000e+00> : vector<8x512xf32>
    %85 = tpu.matmul %65, %84, %cst_63 {dimension_numbers = #tpu.dot_dimension_numbers<[1], [0], [0], [1], [0, 0, 1, 1], [], []>} : vector<8x512xbf16>, vector<512x512xbf16>, vector<8x512xf32> -> vector<8x512xf32>
    %c8_64 = arith.constant 8 : index
    %c1024_65 = arith.constant 1024 : index
    %86 = vector.load %arg8[%c8_64, %c1024_65] : memref<64x2048xf32, #tpu.memory_space<vmem>>, vector<8x512xf32>
    %87 = arith.addf %86, %85 : vector<8x512xf32>
    %88 = math.tanh %87 : vector<8x512xf32>
    %c0_66 = arith.constant 0 : index
    %c1536_67 = arith.constant 1536 : index
    %89 = vector.load %arg7[%c0_66, %c1536_67] : memref<512x2048xbf16, #tpu.memory_space<vmem>>, vector<512x512xbf16>
    %cst_68 = arith.constant dense<0.000000e+00> : vector<8x512xf32>
    %90 = tpu.matmul %65, %89, %cst_68 {dimension_numbers = #tpu.dot_dimension_numbers<[1], [0], [0], [1], [0, 0, 1, 1], [], []>} : vector<8x512xbf16>, vector<512x512xbf16>, vector<8x512xf32> -> vector<8x512xf32>
    %c8_69 = arith.constant 8 : index
    %c1536_70 = arith.constant 1536 : index
    %91 = vector.load %arg8[%c8_69, %c1536_70] : memref<64x2048xf32, #tpu.memory_space<vmem>>, vector<8x512xf32>
    %92 = arith.addf %91, %90 : vector<8x512xf32>
    %93 = arith.negf %92 : vector<8x512xf32>
    %94 = math.exp %93 : vector<8x512xf32>
    %cst_71 = arith.constant 1.000000e+00 : f32
    %95 = vector.broadcast %cst_71 : f32 to vector<8x512xf32>
    %96 = arith.addf %95, %94 : vector<8x512xf32>
    %97 = arith.divf %95, %96 : vector<8x512xf32>
    %98 = arith.mulf %83, %62 : vector<8x512xf32>
    %99 = arith.mulf %74, %88 : vector<8x512xf32>
    %100 = arith.addf %98, %99 : vector<8x512xf32>
    %101 = math.tanh %100 : vector<8x512xf32>
    %102 = arith.mulf %97, %101 : vector<8x512xf32>
    %103 = arith.truncf %102 : vector<8x512xf32> to vector<8x512xbf16>
    %c0_72 = arith.constant 0 : index
    %c0_73 = arith.constant 0 : index
    %104 = vector.load %arg7[%c0_72, %c0_73] : memref<512x2048xbf16, #tpu.memory_space<vmem>>, vector<512x512xbf16>
    %cst_74 = arith.constant dense<0.000000e+00> : vector<8x512xf32>
    %105 = tpu.matmul %103, %104, %cst_74 {dimension_numbers = #tpu.dot_dimension_numbers<[1], [0], [0], [1], [0, 0, 1, 1], [], []>} : vector<8x512xbf16>, vector<512x512xbf16>, vector<8x512xf32> -> vector<8x512xf32>
    %c16 = arith.constant 16 : index
    %c0_75 = arith.constant 0 : index
    %106 = vector.load %arg8[%c16, %c0_75] : memref<64x2048xf32, #tpu.memory_space<vmem>>, vector<8x512xf32>
    %107 = arith.addf %106, %105 : vector<8x512xf32>
    %108 = arith.negf %107 : vector<8x512xf32>
    %109 = math.exp %108 : vector<8x512xf32>
    %cst_76 = arith.constant 1.000000e+00 : f32
    %110 = vector.broadcast %cst_76 : f32 to vector<8x512xf32>
    %111 = arith.addf %110, %109 : vector<8x512xf32>
    %112 = arith.divf %110, %111 : vector<8x512xf32>
    %c0_77 = arith.constant 0 : index
    %c512_78 = arith.constant 512 : index
    %113 = vector.load %arg7[%c0_77, %c512_78] : memref<512x2048xbf16, #tpu.memory_space<vmem>>, vector<512x512xbf16>
    %cst_79 = arith.constant dense<0.000000e+00> : vector<8x512xf32>
    %114 = tpu.matmul %103, %113, %cst_79 {dimension_numbers = #tpu.dot_dimension_numbers<[1], [0], [0], [1], [0, 0, 1, 1], [], []>} : vector<8x512xbf16>, vector<512x512xbf16>, vector<8x512xf32> -> vector<8x512xf32>
    %c16_80 = arith.constant 16 : index
    %c512_81 = arith.constant 512 : index
    %115 = vector.load %arg8[%c16_80, %c512_81] : memref<64x2048xf32, #tpu.memory_space<vmem>>, vector<8x512xf32>
    %116 = arith.addf %115, %114 : vector<8x512xf32>
    %117 = arith.negf %116 : vector<8x512xf32>
    %118 = math.exp %117 : vector<8x512xf32>
    %cst_82 = arith.constant 1.000000e+00 : f32
    %119 = vector.broadcast %cst_82 : f32 to vector<8x512xf32>
    %120 = arith.addf %119, %118 : vector<8x512xf32>
    %121 = arith.divf %119, %120 : vector<8x512xf32>
    %c0_83 = arith.constant 0 : index
    %c1024_84 = arith.constant 1024 : index
    %122 = vector.load %arg7[%c0_83, %c1024_84] : memref<512x2048xbf16, #tpu.memory_space<vmem>>, vector<512x512xbf16>
    %cst_85 = arith.constant dense<0.000000e+00> : vector<8x512xf32>
    %123 = tpu.matmul %103, %122, %cst_85 {dimension_numbers = #tpu.dot_dimension_numbers<[1], [0], [0], [1], [0, 0, 1, 1], [], []>} : vector<8x512xbf16>, vector<512x512xbf16>, vector<8x512xf32> -> vector<8x512xf32>
    %c16_86 = arith.constant 16 : index
    %c1024_87 = arith.constant 1024 : index
    %124 = vector.load %arg8[%c16_86, %c1024_87] : memref<64x2048xf32, #tpu.memory_space<vmem>>, vector<8x512xf32>
    %125 = arith.addf %124, %123 : vector<8x512xf32>
    %126 = math.tanh %125 : vector<8x512xf32>
    %c0_88 = arith.constant 0 : index
    %c1536_89 = arith.constant 1536 : index
    %127 = vector.load %arg7[%c0_88, %c1536_89] : memref<512x2048xbf16, #tpu.memory_space<vmem>>, vector<512x512xbf16>
    %cst_90 = arith.constant dense<0.000000e+00> : vector<8x512xf32>
    %128 = tpu.matmul %103, %127, %cst_90 {dimension_numbers = #tpu.dot_dimension_numbers<[1], [0], [0], [1], [0, 0, 1, 1], [], []>} : vector<8x512xbf16>, vector<512x512xbf16>, vector<8x512xf32> -> vector<8x512xf32>
    %c16_91 = arith.constant 16 : index
    %c1536_92 = arith.constant 1536 : index
    %129 = vector.load %arg8[%c16_91, %c1536_92] : memref<64x2048xf32, #tpu.memory_space<vmem>>, vector<8x512xf32>
    %130 = arith.addf %129, %128 : vector<8x512xf32>
    %131 = arith.negf %130 : vector<8x512xf32>
    %132 = math.exp %131 : vector<8x512xf32>
    %cst_93 = arith.constant 1.000000e+00 : f32
    %133 = vector.broadcast %cst_93 : f32 to vector<8x512xf32>
    %134 = arith.addf %133, %132 : vector<8x512xf32>
    %135 = arith.divf %133, %134 : vector<8x512xf32>
    %136 = arith.mulf %121, %100 : vector<8x512xf32>
    %137 = arith.mulf %112, %126 : vector<8x512xf32>
    %138 = arith.addf %136, %137 : vector<8x512xf32>
    %139 = math.tanh %138 : vector<8x512xf32>
    %140 = arith.mulf %135, %139 : vector<8x512xf32>
    %141 = arith.truncf %140 : vector<8x512xf32> to vector<8x512xbf16>
    %c0_94 = arith.constant 0 : index
    %c0_95 = arith.constant 0 : index
    %142 = vector.load %arg7[%c0_94, %c0_95] : memref<512x2048xbf16, #tpu.memory_space<vmem>>, vector<512x512xbf16>
    %cst_96 = arith.constant dense<0.000000e+00> : vector<8x512xf32>
    %143 = tpu.matmul %141, %142, %cst_96 {dimension_numbers = #tpu.dot_dimension_numbers<[1], [0], [0], [1], [0, 0, 1, 1], [], []>} : vector<8x512xbf16>, vector<512x512xbf16>, vector<8x512xf32> -> vector<8x512xf32>
    %c24 = arith.constant 24 : index
    %c0_97 = arith.constant 0 : index
    %144 = vector.load %arg8[%c24, %c0_97] : memref<64x2048xf32, #tpu.memory_space<vmem>>, vector<8x512xf32>
    %145 = arith.addf %144, %143 : vector<8x512xf32>
    %146 = arith.negf %145 : vector<8x512xf32>
    %147 = math.exp %146 : vector<8x512xf32>
    %cst_98 = arith.constant 1.000000e+00 : f32
    %148 = vector.broadcast %cst_98 : f32 to vector<8x512xf32>
    %149 = arith.addf %148, %147 : vector<8x512xf32>
    %150 = arith.divf %148, %149 : vector<8x512xf32>
    %c0_99 = arith.constant 0 : index
    %c512_100 = arith.constant 512 : index
    %151 = vector.load %arg7[%c0_99, %c512_100] : memref<512x2048xbf16, #tpu.memory_space<vmem>>, vector<512x512xbf16>
    %cst_101 = arith.constant dense<0.000000e+00> : vector<8x512xf32>
    %152 = tpu.matmul %141, %151, %cst_101 {dimension_numbers = #tpu.dot_dimension_numbers<[1], [0], [0], [1], [0, 0, 1, 1], [], []>} : vector<8x512xbf16>, vector<512x512xbf16>, vector<8x512xf32> -> vector<8x512xf32>
    %c24_102 = arith.constant 24 : index
    %c512_103 = arith.constant 512 : index
    %153 = vector.load %arg8[%c24_102, %c512_103] : memref<64x2048xf32, #tpu.memory_space<vmem>>, vector<8x512xf32>
    %154 = arith.addf %153, %152 : vector<8x512xf32>
    %155 = arith.negf %154 : vector<8x512xf32>
    %156 = math.exp %155 : vector<8x512xf32>
    %cst_104 = arith.constant 1.000000e+00 : f32
    %157 = vector.broadcast %cst_104 : f32 to vector<8x512xf32>
    %158 = arith.addf %157, %156 : vector<8x512xf32>
    %159 = arith.divf %157, %158 : vector<8x512xf32>
    %c0_105 = arith.constant 0 : index
    %c1024_106 = arith.constant 1024 : index
    %160 = vector.load %arg7[%c0_105, %c1024_106] : memref<512x2048xbf16, #tpu.memory_space<vmem>>, vector<512x512xbf16>
    %cst_107 = arith.constant dense<0.000000e+00> : vector<8x512xf32>
    %161 = tpu.matmul %141, %160, %cst_107 {dimension_numbers = #tpu.dot_dimension_numbers<[1], [0], [0], [1], [0, 0, 1, 1], [], []>} : vector<8x512xbf16>, vector<512x512xbf16>, vector<8x512xf32> -> vector<8x512xf32>
    %c24_108 = arith.constant 24 : index
    %c1024_109 = arith.constant 1024 : index
    %162 = vector.load %arg8[%c24_108, %c1024_109] : memref<64x2048xf32, #tpu.memory_space<vmem>>, vector<8x512xf32>
    %163 = arith.addf %162, %161 : vector<8x512xf32>
    %164 = math.tanh %163 : vector<8x512xf32>
    %c0_110 = arith.constant 0 : index
    %c1536_111 = arith.constant 1536 : index
    %165 = vector.load %arg7[%c0_110, %c1536_111] : memref<512x2048xbf16, #tpu.memory_space<vmem>>, vector<512x512xbf16>
    %cst_112 = arith.constant dense<0.000000e+00> : vector<8x512xf32>
    %166 = tpu.matmul %141, %165, %cst_112 {dimension_numbers = #tpu.dot_dimension_numbers<[1], [0], [0], [1], [0, 0, 1, 1], [], []>} : vector<8x512xbf16>, vector<512x512xbf16>, vector<8x512xf32> -> vector<8x512xf32>
    %c24_113 = arith.constant 24 : index
    %c1536_114 = arith.constant 1536 : index
    %167 = vector.load %arg8[%c24_113, %c1536_114] : memref<64x2048xf32, #tpu.memory_space<vmem>>, vector<8x512xf32>
    %168 = arith.addf %167, %166 : vector<8x512xf32>
    %169 = arith.negf %168 : vector<8x512xf32>
    %170 = math.exp %169 : vector<8x512xf32>
    %cst_115 = arith.constant 1.000000e+00 : f32
    %171 = vector.broadcast %cst_115 : f32 to vector<8x512xf32>
    %172 = arith.addf %171, %170 : vector<8x512xf32>
    %173 = arith.divf %171, %172 : vector<8x512xf32>
    %174 = arith.mulf %159, %138 : vector<8x512xf32>
    %175 = arith.mulf %150, %164 : vector<8x512xf32>
    %176 = arith.addf %174, %175 : vector<8x512xf32>
    %177 = math.tanh %176 : vector<8x512xf32>
    %178 = arith.mulf %173, %177 : vector<8x512xf32>
    %179 = arith.truncf %178 : vector<8x512xf32> to vector<8x512xbf16>
    %c0_116 = arith.constant 0 : index
    %c0_117 = arith.constant 0 : index
    %180 = vector.load %arg7[%c0_116, %c0_117] : memref<512x2048xbf16, #tpu.memory_space<vmem>>, vector<512x512xbf16>
    %cst_118 = arith.constant dense<0.000000e+00> : vector<8x512xf32>
    %181 = tpu.matmul %179, %180, %cst_118 {dimension_numbers = #tpu.dot_dimension_numbers<[1], [0], [0], [1], [0, 0, 1, 1], [], []>} : vector<8x512xbf16>, vector<512x512xbf16>, vector<8x512xf32> -> vector<8x512xf32>
    %c32 = arith.constant 32 : index
    %c0_119 = arith.constant 0 : index
    %182 = vector.load %arg8[%c32, %c0_119] : memref<64x2048xf32, #tpu.memory_space<vmem>>, vector<8x512xf32>
    %183 = arith.addf %182, %181 : vector<8x512xf32>
    %184 = arith.negf %183 : vector<8x512xf32>
    %185 = math.exp %184 : vector<8x512xf32>
    %cst_120 = arith.constant 1.000000e+00 : f32
    %186 = vector.broadcast %cst_120 : f32 to vector<8x512xf32>
    %187 = arith.addf %186, %185 : vector<8x512xf32>
    %188 = arith.divf %186, %187 : vector<8x512xf32>
    %c0_121 = arith.constant 0 : index
    %c512_122 = arith.constant 512 : index
    %189 = vector.load %arg7[%c0_121, %c512_122] : memref<512x2048xbf16, #tpu.memory_space<vmem>>, vector<512x512xbf16>
    %cst_123 = arith.constant dense<0.000000e+00> : vector<8x512xf32>
    %190 = tpu.matmul %179, %189, %cst_123 {dimension_numbers = #tpu.dot_dimension_numbers<[1], [0], [0], [1], [0, 0, 1, 1], [], []>} : vector<8x512xbf16>, vector<512x512xbf16>, vector<8x512xf32> -> vector<8x512xf32>
    %c32_124 = arith.constant 32 : index
    %c512_125 = arith.constant 512 : index
    %191 = vector.load %arg8[%c32_124, %c512_125] : memref<64x2048xf32, #tpu.memory_space<vmem>>, vector<8x512xf32>
    %192 = arith.addf %191, %190 : vector<8x512xf32>
    %193 = arith.negf %192 : vector<8x512xf32>
    %194 = math.exp %193 : vector<8x512xf32>
    %cst_126 = arith.constant 1.000000e+00 : f32
    %195 = vector.broadcast %cst_126 : f32 to vector<8x512xf32>
    %196 = arith.addf %195, %194 : vector<8x512xf32>
    %197 = arith.divf %195, %196 : vector<8x512xf32>
    %c0_127 = arith.constant 0 : index
    %c1024_128 = arith.constant 1024 : index
    %198 = vector.load %arg7[%c0_127, %c1024_128] : memref<512x2048xbf16, #tpu.memory_space<vmem>>, vector<512x512xbf16>
    %cst_129 = arith.constant dense<0.000000e+00> : vector<8x512xf32>
    %199 = tpu.matmul %179, %198, %cst_129 {dimension_numbers = #tpu.dot_dimension_numbers<[1], [0], [0], [1], [0, 0, 1, 1], [], []>} : vector<8x512xbf16>, vector<512x512xbf16>, vector<8x512xf32> -> vector<8x512xf32>
    %c32_130 = arith.constant 32 : index
    %c1024_131 = arith.constant 1024 : index
    %200 = vector.load %arg8[%c32_130, %c1024_131] : memref<64x2048xf32, #tpu.memory_space<vmem>>, vector<8x512xf32>
    %201 = arith.addf %200, %199 : vector<8x512xf32>
    %202 = math.tanh %201 : vector<8x512xf32>
    %c0_132 = arith.constant 0 : index
    %c1536_133 = arith.constant 1536 : index
    %203 = vector.load %arg7[%c0_132, %c1536_133] : memref<512x2048xbf16, #tpu.memory_space<vmem>>, vector<512x512xbf16>
    %cst_134 = arith.constant dense<0.000000e+00> : vector<8x512xf32>
    %204 = tpu.matmul %179, %203, %cst_134 {dimension_numbers = #tpu.dot_dimension_numbers<[1], [0], [0], [1], [0, 0, 1, 1], [], []>} : vector<8x512xbf16>, vector<512x512xbf16>, vector<8x512xf32> -> vector<8x512xf32>
    %c32_135 = arith.constant 32 : index
    %c1536_136 = arith.constant 1536 : index
    %205 = vector.load %arg8[%c32_135, %c1536_136] : memref<64x2048xf32, #tpu.memory_space<vmem>>, vector<8x512xf32>
    %206 = arith.addf %205, %204 : vector<8x512xf32>
    %207 = arith.negf %206 : vector<8x512xf32>
    %208 = math.exp %207 : vector<8x512xf32>
    %cst_137 = arith.constant 1.000000e+00 : f32
    %209 = vector.broadcast %cst_137 : f32 to vector<8x512xf32>
    %210 = arith.addf %209, %208 : vector<8x512xf32>
    %211 = arith.divf %209, %210 : vector<8x512xf32>
    %212 = arith.mulf %197, %176 : vector<8x512xf32>
    %213 = arith.mulf %188, %202 : vector<8x512xf32>
    %214 = arith.addf %212, %213 : vector<8x512xf32>
    %215 = math.tanh %214 : vector<8x512xf32>
    %216 = arith.mulf %211, %215 : vector<8x512xf32>
    %217 = arith.truncf %216 : vector<8x512xf32> to vector<8x512xbf16>
    %c0_138 = arith.constant 0 : index
    %c0_139 = arith.constant 0 : index
    %218 = vector.load %arg7[%c0_138, %c0_139] : memref<512x2048xbf16, #tpu.memory_space<vmem>>, vector<512x512xbf16>
    %cst_140 = arith.constant dense<0.000000e+00> : vector<8x512xf32>
    %219 = tpu.matmul %217, %218, %cst_140 {dimension_numbers = #tpu.dot_dimension_numbers<[1], [0], [0], [1], [0, 0, 1, 1], [], []>} : vector<8x512xbf16>, vector<512x512xbf16>, vector<8x512xf32> -> vector<8x512xf32>
    %c40 = arith.constant 40 : index
    %c0_141 = arith.constant 0 : index
    %220 = vector.load %arg8[%c40, %c0_141] : memref<64x2048xf32, #tpu.memory_space<vmem>>, vector<8x512xf32>
    %221 = arith.addf %220, %219 : vector<8x512xf32>
    %222 = arith.negf %221 : vector<8x512xf32>
    %223 = math.exp %222 : vector<8x512xf32>
    %cst_142 = arith.constant 1.000000e+00 : f32
    %224 = vector.broadcast %cst_142 : f32 to vector<8x512xf32>
    %225 = arith.addf %224, %223 : vector<8x512xf32>
    %226 = arith.divf %224, %225 : vector<8x512xf32>
    %c0_143 = arith.constant 0 : index
    %c512_144 = arith.constant 512 : index
    %227 = vector.load %arg7[%c0_143, %c512_144] : memref<512x2048xbf16, #tpu.memory_space<vmem>>, vector<512x512xbf16>
    %cst_145 = arith.constant dense<0.000000e+00> : vector<8x512xf32>
    %228 = tpu.matmul %217, %227, %cst_145 {dimension_numbers = #tpu.dot_dimension_numbers<[1], [0], [0], [1], [0, 0, 1, 1], [], []>} : vector<8x512xbf16>, vector<512x512xbf16>, vector<8x512xf32> -> vector<8x512xf32>
    %c40_146 = arith.constant 40 : index
    %c512_147 = arith.constant 512 : index
    %229 = vector.load %arg8[%c40_146, %c512_147] : memref<64x2048xf32, #tpu.memory_space<vmem>>, vector<8x512xf32>
    %230 = arith.addf %229, %228 : vector<8x512xf32>
    %231 = arith.negf %230 : vector<8x512xf32>
    %232 = math.exp %231 : vector<8x512xf32>
    %cst_148 = arith.constant 1.000000e+00 : f32
    %233 = vector.broadcast %cst_148 : f32 to vector<8x512xf32>
    %234 = arith.addf %233, %232 : vector<8x512xf32>
    %235 = arith.divf %233, %234 : vector<8x512xf32>
    %c0_149 = arith.constant 0 : index
    %c1024_150 = arith.constant 1024 : index
    %236 = vector.load %arg7[%c0_149, %c1024_150] : memref<512x2048xbf16, #tpu.memory_space<vmem>>, vector<512x512xbf16>
    %cst_151 = arith.constant dense<0.000000e+00> : vector<8x512xf32>
    %237 = tpu.matmul %217, %236, %cst_151 {dimension_numbers = #tpu.dot_dimension_numbers<[1], [0], [0], [1], [0, 0, 1, 1], [], []>} : vector<8x512xbf16>, vector<512x512xbf16>, vector<8x512xf32> -> vector<8x512xf32>
    %c40_152 = arith.constant 40 : index
    %c1024_153 = arith.constant 1024 : index
    %238 = vector.load %arg8[%c40_152, %c1024_153] : memref<64x2048xf32, #tpu.memory_space<vmem>>, vector<8x512xf32>
    %239 = arith.addf %238, %237 : vector<8x512xf32>
    %240 = math.tanh %239 : vector<8x512xf32>
    %c0_154 = arith.constant 0 : index
    %c1536_155 = arith.constant 1536 : index
    %241 = vector.load %arg7[%c0_154, %c1536_155] : memref<512x2048xbf16, #tpu.memory_space<vmem>>, vector<512x512xbf16>
    %cst_156 = arith.constant dense<0.000000e+00> : vector<8x512xf32>
    %242 = tpu.matmul %217, %241, %cst_156 {dimension_numbers = #tpu.dot_dimension_numbers<[1], [0], [0], [1], [0, 0, 1, 1], [], []>} : vector<8x512xbf16>, vector<512x512xbf16>, vector<8x512xf32> -> vector<8x512xf32>
    %c40_157 = arith.constant 40 : index
    %c1536_158 = arith.constant 1536 : index
    %243 = vector.load %arg8[%c40_157, %c1536_158] : memref<64x2048xf32, #tpu.memory_space<vmem>>, vector<8x512xf32>
    %244 = arith.addf %243, %242 : vector<8x512xf32>
    %245 = arith.negf %244 : vector<8x512xf32>
    %246 = math.exp %245 : vector<8x512xf32>
    %cst_159 = arith.constant 1.000000e+00 : f32
    %247 = vector.broadcast %cst_159 : f32 to vector<8x512xf32>
    %248 = arith.addf %247, %246 : vector<8x512xf32>
    %249 = arith.divf %247, %248 : vector<8x512xf32>
    %250 = arith.mulf %235, %214 : vector<8x512xf32>
    %251 = arith.mulf %226, %240 : vector<8x512xf32>
    %252 = arith.addf %250, %251 : vector<8x512xf32>
    %253 = math.tanh %252 : vector<8x512xf32>
    %254 = arith.mulf %249, %253 : vector<8x512xf32>
    %255 = arith.truncf %254 : vector<8x512xf32> to vector<8x512xbf16>
    %c0_160 = arith.constant 0 : index
    %c0_161 = arith.constant 0 : index
    %256 = vector.load %arg7[%c0_160, %c0_161] : memref<512x2048xbf16, #tpu.memory_space<vmem>>, vector<512x512xbf16>
    %cst_162 = arith.constant dense<0.000000e+00> : vector<8x512xf32>
    %257 = tpu.matmul %255, %256, %cst_162 {dimension_numbers = #tpu.dot_dimension_numbers<[1], [0], [0], [1], [0, 0, 1, 1], [], []>} : vector<8x512xbf16>, vector<512x512xbf16>, vector<8x512xf32> -> vector<8x512xf32>
    %c48 = arith.constant 48 : index
    %c0_163 = arith.constant 0 : index
    %258 = vector.load %arg8[%c48, %c0_163] : memref<64x2048xf32, #tpu.memory_space<vmem>>, vector<8x512xf32>
    %259 = arith.addf %258, %257 : vector<8x512xf32>
    %260 = arith.negf %259 : vector<8x512xf32>
    %261 = math.exp %260 : vector<8x512xf32>
    %cst_164 = arith.constant 1.000000e+00 : f32
    %262 = vector.broadcast %cst_164 : f32 to vector<8x512xf32>
    %263 = arith.addf %262, %261 : vector<8x512xf32>
    %264 = arith.divf %262, %263 : vector<8x512xf32>
    %c0_165 = arith.constant 0 : index
    %c512_166 = arith.constant 512 : index
    %265 = vector.load %arg7[%c0_165, %c512_166] : memref<512x2048xbf16, #tpu.memory_space<vmem>>, vector<512x512xbf16>
    %cst_167 = arith.constant dense<0.000000e+00> : vector<8x512xf32>
    %266 = tpu.matmul %255, %265, %cst_167 {dimension_numbers = #tpu.dot_dimension_numbers<[1], [0], [0], [1], [0, 0, 1, 1], [], []>} : vector<8x512xbf16>, vector<512x512xbf16>, vector<8x512xf32> -> vector<8x512xf32>
    %c48_168 = arith.constant 48 : index
    %c512_169 = arith.constant 512 : index
    %267 = vector.load %arg8[%c48_168, %c512_169] : memref<64x2048xf32, #tpu.memory_space<vmem>>, vector<8x512xf32>
    %268 = arith.addf %267, %266 : vector<8x512xf32>
    %269 = arith.negf %268 : vector<8x512xf32>
    %270 = math.exp %269 : vector<8x512xf32>
    %cst_170 = arith.constant 1.000000e+00 : f32
    %271 = vector.broadcast %cst_170 : f32 to vector<8x512xf32>
    %272 = arith.addf %271, %270 : vector<8x512xf32>
    %273 = arith.divf %271, %272 : vector<8x512xf32>
    %c0_171 = arith.constant 0 : index
    %c1024_172 = arith.constant 1024 : index
    %274 = vector.load %arg7[%c0_171, %c1024_172] : memref<512x2048xbf16, #tpu.memory_space<vmem>>, vector<512x512xbf16>
    %cst_173 = arith.constant dense<0.000000e+00> : vector<8x512xf32>
    %275 = tpu.matmul %255, %274, %cst_173 {dimension_numbers = #tpu.dot_dimension_numbers<[1], [0], [0], [1], [0, 0, 1, 1], [], []>} : vector<8x512xbf16>, vector<512x512xbf16>, vector<8x512xf32> -> vector<8x512xf32>
    %c48_174 = arith.constant 48 : index
    %c1024_175 = arith.constant 1024 : index
    %276 = vector.load %arg8[%c48_174, %c1024_175] : memref<64x2048xf32, #tpu.memory_space<vmem>>, vector<8x512xf32>
    %277 = arith.addf %276, %275 : vector<8x512xf32>
    %278 = math.tanh %277 : vector<8x512xf32>
    %c0_176 = arith.constant 0 : index
    %c1536_177 = arith.constant 1536 : index
    %279 = vector.load %arg7[%c0_176, %c1536_177] : memref<512x2048xbf16, #tpu.memory_space<vmem>>, vector<512x512xbf16>
    %cst_178 = arith.constant dense<0.000000e+00> : vector<8x512xf32>
    %280 = tpu.matmul %255, %279, %cst_178 {dimension_numbers = #tpu.dot_dimension_numbers<[1], [0], [0], [1], [0, 0, 1, 1], [], []>} : vector<8x512xbf16>, vector<512x512xbf16>, vector<8x512xf32> -> vector<8x512xf32>
    %c48_179 = arith.constant 48 : index
    %c1536_180 = arith.constant 1536 : index
    %281 = vector.load %arg8[%c48_179, %c1536_180] : memref<64x2048xf32, #tpu.memory_space<vmem>>, vector<8x512xf32>
    %282 = arith.addf %281, %280 : vector<8x512xf32>
    %283 = arith.negf %282 : vector<8x512xf32>
    %284 = math.exp %283 : vector<8x512xf32>
    %cst_181 = arith.constant 1.000000e+00 : f32
    %285 = vector.broadcast %cst_181 : f32 to vector<8x512xf32>
    %286 = arith.addf %285, %284 : vector<8x512xf32>
    %287 = arith.divf %285, %286 : vector<8x512xf32>
    %288 = arith.mulf %273, %252 : vector<8x512xf32>
    %289 = arith.mulf %264, %278 : vector<8x512xf32>
    %290 = arith.addf %288, %289 : vector<8x512xf32>
    %291 = math.tanh %290 : vector<8x512xf32>
    %292 = arith.mulf %287, %291 : vector<8x512xf32>
    %293 = arith.truncf %292 : vector<8x512xf32> to vector<8x512xbf16>
    %c0_182 = arith.constant 0 : index
    %c0_183 = arith.constant 0 : index
    %294 = vector.load %arg7[%c0_182, %c0_183] : memref<512x2048xbf16, #tpu.memory_space<vmem>>, vector<512x512xbf16>
    %cst_184 = arith.constant dense<0.000000e+00> : vector<8x512xf32>
    %295 = tpu.matmul %293, %294, %cst_184 {dimension_numbers = #tpu.dot_dimension_numbers<[1], [0], [0], [1], [0, 0, 1, 1], [], []>} : vector<8x512xbf16>, vector<512x512xbf16>, vector<8x512xf32> -> vector<8x512xf32>
    %c56 = arith.constant 56 : index
    %c0_185 = arith.constant 0 : index
    %296 = vector.load %arg8[%c56, %c0_185] : memref<64x2048xf32, #tpu.memory_space<vmem>>, vector<8x512xf32>
    %297 = arith.addf %296, %295 : vector<8x512xf32>
    %298 = arith.negf %297 : vector<8x512xf32>
    %299 = math.exp %298 : vector<8x512xf32>
    %cst_186 = arith.constant 1.000000e+00 : f32
    %300 = vector.broadcast %cst_186 : f32 to vector<8x512xf32>
    %301 = arith.addf %300, %299 : vector<8x512xf32>
    %302 = arith.divf %300, %301 : vector<8x512xf32>
    %c0_187 = arith.constant 0 : index
    %c512_188 = arith.constant 512 : index
    %303 = vector.load %arg7[%c0_187, %c512_188] : memref<512x2048xbf16, #tpu.memory_space<vmem>>, vector<512x512xbf16>
    %cst_189 = arith.constant dense<0.000000e+00> : vector<8x512xf32>
    %304 = tpu.matmul %293, %303, %cst_189 {dimension_numbers = #tpu.dot_dimension_numbers<[1], [0], [0], [1], [0, 0, 1, 1], [], []>} : vector<8x512xbf16>, vector<512x512xbf16>, vector<8x512xf32> -> vector<8x512xf32>
    %c56_190 = arith.constant 56 : index
    %c512_191 = arith.constant 512 : index
    %305 = vector.load %arg8[%c56_190, %c512_191] : memref<64x2048xf32, #tpu.memory_space<vmem>>, vector<8x512xf32>
    %306 = arith.addf %305, %304 : vector<8x512xf32>
    %307 = arith.negf %306 : vector<8x512xf32>
    %308 = math.exp %307 : vector<8x512xf32>
    %cst_192 = arith.constant 1.000000e+00 : f32
    %309 = vector.broadcast %cst_192 : f32 to vector<8x512xf32>
    %310 = arith.addf %309, %308 : vector<8x512xf32>
    %311 = arith.divf %309, %310 : vector<8x512xf32>
    %c0_193 = arith.constant 0 : index
    %c1024_194 = arith.constant 1024 : index
    %312 = vector.load %arg7[%c0_193, %c1024_194] : memref<512x2048xbf16, #tpu.memory_space<vmem>>, vector<512x512xbf16>
    %cst_195 = arith.constant dense<0.000000e+00> : vector<8x512xf32>
    %313 = tpu.matmul %293, %312, %cst_195 {dimension_numbers = #tpu.dot_dimension_numbers<[1], [0], [0], [1], [0, 0, 1, 1], [], []>} : vector<8x512xbf16>, vector<512x512xbf16>, vector<8x512xf32> -> vector<8x512xf32>
    %c56_196 = arith.constant 56 : index
    %c1024_197 = arith.constant 1024 : index
    %314 = vector.load %arg8[%c56_196, %c1024_197] : memref<64x2048xf32, #tpu.memory_space<vmem>>, vector<8x512xf32>
    %315 = arith.addf %314, %313 : vector<8x512xf32>
    %316 = math.tanh %315 : vector<8x512xf32>
    %c0_198 = arith.constant 0 : index
    %c1536_199 = arith.constant 1536 : index
    %317 = vector.load %arg7[%c0_198, %c1536_199] : memref<512x2048xbf16, #tpu.memory_space<vmem>>, vector<512x512xbf16>
    %cst_200 = arith.constant dense<0.000000e+00> : vector<8x512xf32>
    %318 = tpu.matmul %293, %317, %cst_200 {dimension_numbers = #tpu.dot_dimension_numbers<[1], [0], [0], [1], [0, 0, 1, 1], [], []>} : vector<8x512xbf16>, vector<512x512xbf16>, vector<8x512xf32> -> vector<8x512xf32>
    %c56_201 = arith.constant 56 : index
    %c1536_202 = arith.constant 1536 : index
    %319 = vector.load %arg8[%c56_201, %c1536_202] : memref<64x2048xf32, #tpu.memory_space<vmem>>, vector<8x512xf32>
    %320 = arith.addf %319, %318 : vector<8x512xf32>
    %321 = arith.negf %320 : vector<8x512xf32>
    %322 = math.exp %321 : vector<8x512xf32>
    %cst_203 = arith.constant 1.000000e+00 : f32
    %323 = vector.broadcast %cst_203 : f32 to vector<8x512xf32>
    %324 = arith.addf %323, %322 : vector<8x512xf32>
    %325 = arith.divf %323, %324 : vector<8x512xf32>
    %326 = arith.mulf %311, %290 : vector<8x512xf32>
    %327 = arith.mulf %302, %316 : vector<8x512xf32>
    %328 = arith.addf %326, %327 : vector<8x512xf32>
    %329 = math.tanh %328 : vector<8x512xf32>
    %330 = arith.mulf %325, %329 : vector<8x512xf32>
    %c0_204 = arith.constant 0 : index
    %c0_205 = arith.constant 0 : index
    %331 = vector.load %arg3[%c0_204, %c0_205] : memref<512x128xf32, #tpu.memory_space<vmem>>, vector<512x128xf32>
    %cst_206 = arith.constant dense<0.000000e+00> : vector<8x128xf32>
    %332 = tpu.matmul %330, %331, %cst_206 {dimension_numbers = #tpu.dot_dimension_numbers<[1], [0], [0], [1], [0, 0, 1, 1], [], []>} : vector<8x512xf32>, vector<512x128xf32>, vector<8x128xf32> -> vector<8x128xf32>
    %c0_207 = arith.constant 0 : index
    %c0_208 = arith.constant 0 : index
    %333 = vector.load %arg4[%c0_207, %c0_208] : memref<1x128xf32, #tpu.memory_space<vmem>>, vector<1x128xf32>
    %334 = vector.broadcast %333 : vector<1x128xf32> to vector<8x128xf32>
    %335 = arith.addf %332, %334 : vector<8x128xf32>
    %c0_209 = arith.constant 0 : index
    %c0_210 = arith.constant 0 : index
    %336 = vector.load %arg6[%c0_209, %c0_210] : memref<8x128xf32, #tpu.memory_space<vmem>>, vector<8x128xf32>
    tpu.vector_store %arg6[%c0_209, %c0_210], %335 {strides = array<i32>} : memref<8x128xf32, #tpu.memory_space<vmem>>, vector<8x128xf32>,
    return
  }
}

</mosaic_0001>

<llo_original>
// kernel: actor_forward.1
$region0: #{actor_forward.1}
  #allocation0 [shape = 'u32[]', space=smem, size = 0x4, offset = 0x4, fixed_abs, tag = 'smem constant byte address 0x4 - core index']
  #allocation1 [shape = 'u32[144,128]{1,0:T(1,128)}', space=vmem, size = 0x12000, scoped, tag = 'internal scratch']
  #allocation2 [shape = 'bf16[512,2048]{1,0:T(16,128)(2,1)}', space=vmem, size = 0x200000, scoped, tag = 'scratch operand']
  #allocation3 [shape = 'f32[64,2048]{1,0:T(8,128)}', space=vmem, size = 0x80000, scoped, tag = 'scratch operand']
  #allocation4 [shape = 's32[1]{0}', space=sflag, size = 0x4, scoped, tag = 'scratch operand']
  #allocation12 [shape = 's32[]', space=sflag, size = 0x4, offset = 0, fixed_abs, tag = 'sflag constant byte address 0x0 - dummy sync flag']
  %s0 = inlined_call_operand.vmem [shape: f32[64,32], index: 0, kind: input, shape index: {}]
  %s1 = inlined_call_operand.hbm [shape: f32[32,2048], index: 1, kind: input, shape index: {}]
  %s2 = inlined_call_operand.hbm [shape: f32[1,2048], index: 2, kind: input, shape index: {}]
  %s3 = inlined_call_operand.hbm [shape: f32[512,128], index: 3, kind: input, shape index: {}]
  %s4 = inlined_call_operand.hbm [shape: f32[1,128], index: 4, kind: input, shape index: {}]
  %s5 = inlined_call_operand.hbm [shape: bf16[512,2048], index: 5, kind: input, shape index: {}]
  %s6 = inlined_call_operand.vmem [shape: f32[8,128], index: 6, kind: output, shape index: {}]
  %s7 = sld [smem:[#allocation0]]
  $region46: #{actor_forward.1} parent=0
    _
  %s9 = ssub.s32 1, %s7
  %s10 = scalar_select 0, %s9, %s7
  $region1: #{actor_forward.1} parent=0
    #allocation5 [shape = 'u8[262144]{0}', space=vmem, size = 0x40000, scoped, tag = 'input window, operand 1, single buffered']
    #allocation6 [shape = 's32[1]{0}', space=sflag, size = 0x4, scoped, tag = 'scoped memory for actor_forward.1']
    #allocation7 [shape = 'u8[8192]{0}', space=vmem, size = 0x2000, scoped, tag = 'input window, operand 2, single buffered']
    #allocation8 [shape = 's32[1]{0}', space=sflag, size = 0x4, scoped, tag = 'scoped memory for actor_forward.1']
    #allocation9 [shape = 'u8[262144]{0}', space=vmem, size = 0x40000, scoped, tag = 'input window, operand 3, single buffered']
    #allocation10 [shape = 'u8[512]{0}', space=vmem, size = 0x400, scoped, tag = 'input window, operand 4, single buffered']
    #allocation11 [shape = 's32[1]{0}', space=sflag, size = 0x4, scoped, tag = 'scoped memory for actor_forward.1']
    #allocation13 [shape = 'u32[9]{0}', space=smem, size = 0x24, scoped, tag = 'DMA stride descriptor']
    %11 = vsyncpa [#allocation6], 0
    %12 = vsyncpa [#allocation8], 0
    %13 = vsyncpa [#allocation11], 0
    // Predicated region
    $region2: #{actor_forward.1} parent=1 // pred_check
      _
    $region3: #{actor_forward.1} parent=1 // pred_check_branch
      %15 = sbr.rel (0) target = $region5
    $region4: #{actor_forward.1} parent=1 // pred_region
      _
    $region5: #{actor_forward.1} parent=1 // pred_fallthru
      _
    // Predicated region
    $region6: #{actor_forward.1} parent=1 // pred_check
      _
    $region7: #{actor_forward.1} parent=1 // pred_check_branch
      %17 = sbr.rel (0) target = $region9
    $region8: #{actor_forward.1} parent=1 // pred_region
      %s19 = ssub.s32 8192, 8192
      %20 = vsyncadd [#allocation6], %s19
      %s21 = sshll.u32 [#allocation5], 4
      %s22 = int_to_ptr.vmem [resolvable:$true] %s21
      %27 = dma.hbm_to_vmem [thread:$0]  %s1, 8192, %s22, [#allocation6], 2048, 2048, 128
    $region9: #{actor_forward.1} parent=1 // pred_fallthru
      _
    // Predicated region
    $region10: #{actor_forward.1} parent=1 // pred_check
      _
    $region11: #{actor_forward.1} parent=1 // pred_check_branch
      %29 = sbr.rel (0) target = $region13
    $region12: #{actor_forward.1} parent=1 // pred_region
      %s31 = ssub.s32 256, 256
      %32 = vsyncadd [#allocation8], %s31
      %s34 = sshll.u32 [#allocation7], 4
      %s35 = int_to_ptr.vmem [resolvable:$true] %s34
      %37 = dma.hbm_to_vmem [thread:$0]  %s2, 256, %s35, [#allocation8]
    $region13: #{actor_forward.1} parent=1 // pred_fallthru
      _
    // Predicated region
    $region14: #{actor_forward.1} parent=1 // pred_check
      _
    $region15: #{actor_forward.1} parent=1 // pred_check_branch
      %39 = sbr.rel (0) target = $region17
    $region16: #{actor_forward.1} parent=1 // pred_region
      %s41 = ssub.s32 8192, 8192
      %42 = vsyncadd [#allocation8], %s41
      %s43 = sshll.u32 [#allocation9], 4
      %s44 = int_to_ptr.vmem [resolvable:$true] %s43
      %49 = dma.hbm_to_vmem [thread:$0]  %s3, 8192, %s44, [#allocation8], 128, 128, 8
    $region17: #{actor_forward.1} parent=1 // pred_fallthru
      _
    // Predicated region
    $region18: #{actor_forward.1} parent=1 // pred_check
      _
    $region19: #{actor_forward.1} parent=1 // pred_check_branch
      %51 = sbr.rel (0) target = $region21
    $region20: #{actor_forward.1} parent=1 // pred_region
      %s53 = ssub.s32 16, 16
      %54 = vsyncadd [#allocation11], %s53
      %s56 = sshll.u32 [#allocation10], 4
      %s57 = int_to_ptr.vmem [resolvable:$true] %s56
      %59 = dma.hbm_to_vmem [thread:$0]  %s4, 16, %s57, [#allocation11]
    $region21: #{actor_forward.1} parent=1 // pred_fallthru
      _
    // Predicated region
    $region22: #{actor_forward.1} parent=1 // pred_check
      _
    $region23: #{actor_forward.1} parent=1 // pred_check_branch
      %61 = sbr.rel (0) target = $region25
    $region24: #{actor_forward.1} parent=1 // pred_region
      %62 = dma.done [#allocation6], 8192
    $region25: #{actor_forward.1} parent=1 // pred_fallthru
      _
    // Predicated region
    $region26: #{actor_forward.1} parent=1 // pred_check
      _
    $region27: #{actor_forward.1} parent=1 // pred_check_branch
      %64 = sbr.rel (0) target = $region29
    $region28: #{actor_forward.1} parent=1 // pred_region
      %65 = dma.done [#allocation8], 256
    $region29: #{actor_forward.1} parent=1 // pred_fallthru
      _
    // Predicated region
    $region30: #{actor_forward.1} parent=1 // pred_check
      _
    $region31: #{actor_forward.1} parent=1 // pred_check_branch
      %67 = sbr.rel (0) target = $region33
    $region32: #{actor_forward.1} parent=1 // pred_region
      %68 = dma.done [#allocation8], 8192
    $region33: #{actor_forward.1} parent=1 // pred_fallthru
      _
    // Predicated region
    $region34: #{actor_forward.1} parent=1 // pred_check
      _
    $region35: #{actor_forward.1} parent=1 // pred_check_branch
      %70 = sbr.rel (0) target = $region37
    $region36: #{actor_forward.1} parent=1 // pred_region
      %71 = dma.done [#allocation11], 16
    $region37: #{actor_forward.1} parent=1 // pred_fallthru
      _
    %s74 = sshll.u32 1, 14
    %s75 = sxor.u32 4294967295, %s74
    %s77 = sld [smem:[#allocation0]]
    %s78 = sadd.s32 2, %s77
    %s80 = sshll.u32 7, 26
    %s81 = sxor.u32 4294967295, %s80
    %s82 = sand.u32 0, %s81
    %s83 = sshll.u32 %s78, 26
    %s84 = sor.u32 %s82, %s83
    %s85 = sshll.u32 [#allocation2], 4
    %s86 = int_to_ptr.vmem [resolvable:$true] %s85
    %89 = sst [smem:[#allocation13]] 2048
    %s90 = scalar_lea.smem [#allocation13], 1
    %91 = sst [smem:[%s90]] 2048
    %s92 = scalar_lea.smem [#allocation13], 2
    %93 = sst [smem:[%s92]] 16
    %s94 = scalar_lea.smem [#allocation13], 3
    %95 = sst [smem:[%s94]] 64
    %s96 = scalar_lea.smem [#allocation13], 4
    %97 = sst [smem:[%s96]] 128
    %s98 = scalar_lea.smem [#allocation13], 5
    %99 = sst [smem:[%s98]] 2
    %s100 = scalar_lea.smem [#allocation13], 6
    %101 = sst [smem:[%s100]] 1024
    %s102 = scalar_lea.smem [#allocation13], 7
    %103 = sst [smem:[%s102]] 64
    %s104 = scalar_lea.smem [#allocation13], 8
    %105 = sst [smem:[%s104]] 4
    %107 = dma.general %s5, 65536, %s86, [#allocation4], [#allocation12], [#allocation13], %s84, 0
    %v108 = vld [vmem:[%s0] sm:$0xff]
    %v109 = vld [vmem:[%s0 + $0x8] sm:$0xff]
    %v110 = vld [vmem:[%s0 + $0x10] sm:$0xff]
    %v111 = vld [vmem:[%s0 + $0x18] sm:$0xff]
    %v112 = vld [vmem:[%s0 + $0x20] sm:$0xff]
    %v113 = vld [vmem:[%s0 + $0x28] sm:$0xff]
    %v114 = vld [vmem:[%s0 + $0x30] sm:$0xff]
    %v115 = vld [vmem:[%s0 + $0x38] sm:$0xff]
    %v116 = vld [vmem:[#allocation5] sm:$0xff]
    %v117 = vld [vmem:[#allocation5 + $0x8] sm:$0xff]
    %v118 = vld [vmem:[#allocation5 + $0x10] sm:$0xff]
    %v119 = vld [vmem:[#allocation5 + $0x18] sm:$0xff]
    %v120 = vld [vmem:[#allocation5 + $0x80] sm:$0xff]
    %v121 = vld [vmem:[#allocation5 + $0x88] sm:$0xff]
    %v122 = vld [vmem:[#allocation5 + $0x90] sm:$0xff]
    %v123 = vld [vmem:[#allocation5 + $0x98] sm:$0xff]
    %v124 = vld [vmem:[#allocation5 + $0x100] sm:$0xff]
    %v125 = vld [vmem:[#allocation5 + $0x108] sm:$0xff]
    %v126 = vld [vmem:[#allocation5 + $0x110] sm:$0xff]
    %v127 = vld [vmem:[#allocation5 + $0x118] sm:$0xff]
    %v128 = vld [vmem:[#allocation5 + $0x180] sm:$0xff]
    %v129 = vld [vmem:[#allocation5 + $0x188] sm:$0xff]
    %v130 = vld [vmem:[#allocation5 + $0x190] sm:$0xff]
    %v131 = vld [vmem:[#allocation5 + $0x198] sm:$0xff]
    %v132 = vld [vmem:[#allocation7] sm:$0xf]
    %v134 = vlaneseq
    %v135 = vshrl.u32 %v134, 7
    %v136 = vsub.s32 0, %v135
    %v137 = vrot.slane %v132, %v136
    %v138 = vlaneseq
    %v139 = vshrl.u32 %v138, 7
    %v140 = vsub.s32 1, %v139
    %v141 = vrot.slane %v132, %v140
    %v142 = vlaneseq
    %v143 = vshrl.u32 %v142, 7
    %v144 = vsub.s32 2, %v143
    %v145 = vrot.slane %v132, %v144
    %v146 = vlaneseq
    %v147 = vshrl.u32 %v146, 7
    %v148 = vsub.s32 3, %v147
    %v149 = vrot.slane %v132, %v148
    %vm154 = vcmask 261120
    %v156 = vsel %vm154, %v108, 0
    %v159 = vsel %vm154, %v109, 0
    %v162 = vsel %vm154, %v110, 0
    %v165 = vsel %vm154, %v111, 0
    %v168 = vsel %vm154, %v112, 0
    %v171 = vsel %vm154, %v113, 0
    %v174 = vsel %vm154, %v114, 0
    %v177 = vsel %vm154, %v115, 0
    %179 = vmatprep.subr.mxu0 %v117
    %180 = vmatpush1.msra.mxu0 %v116
    %181 = vmatprep.subr.mxu0 %v121
    %182 = vmatpush1.msra.mxu0 %v120
    %183 = vmatprep.subr.mxu0 %v125
    %184 = vmatpush1.msra.mxu0 %v124
    %185 = vmatprep.subr.mxu0 %v129
    %186 = vmatpush1.msra.mxu0 %v128
    %187 = vmatprep.subr.mxu0 0.0
    %188 = vmatpush1.msra.mxu0 0.0
    %189 = vmatprep.subr.mxu0 0.0
    %190 = vmatpush1.msra.mxu0 0.0
    %191 = vmatprep.subr.mxu0 0.0
    %192 = vmatpush1.msra.mxu0 0.0
    %193 = vmatprep.subr.mxu0 0.0
    %194 = vmatpush1.msra.mxu0 0.0
    %195 = vmatprep.subr.mxu0 0.0
    %196 = vmatpush1.msra.mxu0 0.0
    %197 = vmatprep.subr.mxu0 0.0
    %198 = vmatpush1.msra.mxu0 0.0
    %199 = vmatprep.subr.mxu0 0.0
    %200 = vmatpush1.msra.mxu0 0.0
    %201 = vmatprep.subr.mxu0 0.0
    %202 = vmatpush1.msra.mxu0 0.0
    %203 = vmatprep.subr.mxu0 0.0
    %204 = vmatpush1.msra.mxu0 0.0
    %205 = vmatprep.subr.mxu0 0.0
    %206 = vmatpush1.msra.mxu0 0.0
    %207 = vmatprep.subr.mxu0 0.0
    %208 = vmatpush1.msra.mxu0 0.0
    %209 = vmatprep.subr.mxu0 0.0
    %210 = vmatpush1.msra.mxu0 0.0
    %211 = vmatprep.subr.mxu0 0.0
    %212 = vmatpush1.msra.mxu0 0.0
    %213 = vmatprep.subr.mxu0 0.0
    %214 = vmatpush1.msra.mxu0 0.0
    %215 = vmatprep.subr.mxu0 0.0
    %216 = vmatpush1.msra.mxu0 0.0
    %217 = vmatprep.subr.mxu0 0.0
    %218 = vmatpush1.msra.mxu0 0.0
    %219 = vmatprep.subr.mxu0 0.0
    %220 = vmatpush1.msra.mxu0 0.0
    %221 = vmatprep.subr.mxu0 0.0
    %222 = vmatpush1.msra.mxu0 0.0
    %223 = vmatprep.subr.mxu0 0.0
    %224 = vmatpush1.msra.mxu0 0.0
    %225 = vmatprep.subr.mxu0 0.0
    %226 = vmatpush1.msra.mxu0 0.0
    %227 = vmatprep.subr.mxu0 0.0
    %228 = vmatpush1.msra.mxu0 0.0
    %229 = vmatprep.subr.mxu0 0.0
    %230 = vmatpush1.msra.mxu0 0.0
    %231 = vmatprep.subr.mxu0 0.0
    %232 = vmatpush1.msra.mxu0 0.0
    %233 = vmatprep.subr.mxu0 0.0
    %234 = vmatpush1.msra.mxu0 0.0
    %235 = vmatprep.subr.mxu0 0.0
    %236 = vmatpush1.msra.mxu0 0.0
    %237 = vmatprep.subr.mxu0 0.0
    %238 = vmatpush1.msra.mxu0 0.0
    %239 = vmatprep.subr.mxu0 0.0
    %240 = vmatpush1.msra.mxu0 0.0
    %241 = vmatprep.subr.mxu0 0.0
    %242 = vmatpush1.msra.mxu0 0.0
    %243 = vmatprep.mubr.f32.mxu0 0.0
    %244 = vmatmul.mubr.f32.gmra.mrb[0].mxu0 %v156
    %v245 = vpop.f32.mrb[0].mxu0
    %v246 = vadd.f32 %v137, %v245
    %v247 = vpop.f32.mrb[0].mxu0
    %v248 = vadd.f32 %v141, %v247
    %249 = vmatprep.mubr.f32.mxu0 0.0
    %250 = vmatmul.mubr.f32.gmra.mrb[0].mxu0 %v159
    %v251 = vpop.f32.mrb[0].mxu0
    %v252 = vadd.f32 %v137, %v251
    %v253 = vpop.f32.mrb[0].mxu0
    %v254 = vadd.f32 %v141, %v253
    %255 = vmatprep.mubr.f32.mxu0 0.0
    %256 = vmatmul.mubr.f32.gmra.mrb[0].mxu0 %v162
    %v257 = vpop.f32.mrb[0].mxu0
    %v258 = vadd.f32 %v137, %v257
    %v259 = vpop.f32.mrb[0].mxu0
    %v260 = vadd.f32 %v141, %v259
    %261 = vmatprep.mubr.f32.mxu0 0.0
    %262 = vmatmul.mubr.f32.gmra.mrb[0].mxu0 %v165
    %v263 = vpop.f32.mrb[0].mxu0
    %v264 = vadd.f32 %v137, %v263
    %v265 = vpop.f32.mrb[0].mxu0
    %v266 = vadd.f32 %v141, %v265
    %267 = vmatprep.mubr.f32.mxu0 0.0
    %268 = vmatmul.mubr.f32.gmra.mrb[0].mxu0 %v168
    %v269 = vpop.f32.mrb[0].mxu0
    %v270 = vadd.f32 %v137, %v269
    %v271 = vpop.f32.mrb[0].mxu0
    %v272 = vadd.f32 %v141, %v271
    %273 = vmatprep.mubr.f32.mxu0 0.0
    %274 = vmatmul.mubr.f32.gmra.mrb[0].mxu0 %v171
    %v275 = vpop.f32.mrb[0].mxu0
    %v276 = vadd.f32 %v137, %v275
    %v277 = vpop.f32.mrb[0].mxu0
    %v278 = vadd.f32 %v141, %v277
    %279 = vmatprep.mubr.f32.mxu0 0.0
    %280 = vmatmul.mubr.f32.gmra.mrb[0].mxu0 %v174
    %v281 = vpop.f32.mrb[0].mxu0
    %v282 = vadd.f32 %v137, %v281
    %v283 = vpop.f32.mrb[0].mxu0
    %v284 = vadd.f32 %v141, %v283
    %285 = vmatprep.mubr.f32.mxu0 0.0
    %286 = vmatmul.mubr.f32.gmra.mrb[0].mxu0 %v177
    %v287 = vpop.f32.mrb[0].mxu0
    %v288 = vadd.f32 %v137, %v287
    %v289 = vpop.f32.mrb[0].mxu0
    %v290 = vadd.f32 %v141, %v289
    %291 = vdwg.mxu0
    %292 = vmatprep.subr.mxu0 %v119
    %293 = vmatpush1.msra.mxu0 %v118
    %294 = vmatprep.subr.mxu0 %v123
    %295 = vmatpush1.msra.mxu0 %v122
    %296 = vmatprep.subr.mxu0 %v127
    %297 = vmatpush1.msra.mxu0 %v126
    %298 = vmatprep.subr.mxu0 %v131
    %299 = vmatpush1.msra.mxu0 %v130
    %300 = vmatprep.subr.mxu0 0.0
    %301 = vmatpush1.msra.mxu0 0.0
    %302 = vmatprep.subr.mxu0 0.0
    %303 = vmatpush1.msra.mxu0 0.0
    %304 = vmatprep.subr.mxu0 0.0
    %305 = vmatpush1.msra.mxu0 0.0
    %306 = vmatprep.subr.mxu0 0.0
    %307 = vmatpush1.msra.mxu0 0.0
    %308 = vmatprep.subr.mxu0 0.0
    %309 = vmatpush1.msra.mxu0 0.0
    %310 = vmatprep.subr.mxu0 0.0
    %311 = vmatpush1.msra.mxu0 0.0
    %312 = vmatprep.subr.mxu0 0.0
    %313 = vmatpush1.msra.mxu0 0.0
    %314 = vmatprep.subr.mxu0 0.0
    %315 = vmatpush1.msra.mxu0 0.0
    %316 = vmatprep.subr.mxu0 0.0
    %317 = vmatpush1.msra.mxu0 0.0
    %318 = vmatprep.subr.mxu0 0.0
    %319 = vmatpush1.msra.mxu0 0.0
    %320 = vmatprep.subr.mxu0 0.0
    %321 = vmatpush1.msra.mxu0 0.0
    %322 = vmatprep.subr.mxu0 0.0
    %323 = vmatpush1.msra.mxu0 0.0
    %324 = vmatprep.subr.mxu0 0.0
    %325 = vmatpush1.msra.mxu0 0.0
    %326 = vmatprep.subr.mxu0 0.0
    %327 = vmatpush1.msra.mxu0 0.0
    %328 = vmatprep.subr.mxu0 0.0
    %329 = vmatpush1.msra.mxu0 0.0
    %330 = vmatprep.subr.mxu0 0.0
    %331 = vmatpush1.msra.mxu0 0.0
    %332 = vmatprep.subr.mxu0 0.0
    %333 = vmatpush1.msra.mxu0 0.0
    %334 = vmatprep.subr.mxu0 0.0
    %335 = vmatpush1.msra.mxu0 0.0
    %336 = vmatprep.subr.mxu0 0.0
    %337 = vmatpush1.msra.mxu0 0.0
    %338 = vmatprep.subr.mxu0 0.0
    %339 = vmatpush1.msra.mxu0 0.0
    %340 = vmatprep.subr.mxu0 0.0
    %341 = vmatpush1.msra.mxu0 0.0
    %342 = vmatprep.subr.mxu0 0.0
    %343 = vmatpush1.msra.mxu0 0.0
    %344 = vmatprep.subr.mxu0 0.0
    %345 = vmatpush1.msra.mxu0 0.0
    %346 = vmatprep.subr.mxu0 0.0
    %347 = vmatpush1.msra.mxu0 0.0
    %348 = vmatprep.subr.mxu0 0.0
    %349 = vmatpush1.msra.mxu0 0.0
    %350 = vmatprep.subr.mxu0 0.0
    %351 = vmatpush1.msra.mxu0 0.0
    %352 = vmatprep.subr.mxu0 0.0
    %353 = vmatpush1.msra.mxu0 0.0
    %354 = vmatprep.subr.mxu0 0.0
    %355 = vmatpush1.msra.mxu0 0.0
    %356 = vmatprep.mubr.f32.mxu0 0.0
    %357 = vmatmul.mubr.f32.gmra.mrb[0].mxu0 %v156
    %v358 = vpop.f32.mrb[0].mxu0
    %v359 = vadd.f32 %v145, %v358
    %v360 = vpop.f32.mrb[0].mxu0
    %v361 = vadd.f32 %v149, %v360
    %362 = vmatprep.mubr.f32.mxu0 0.0
    %363 = vmatmul.mubr.f32.gmra.mrb[0].mxu0 %v159
    %v364 = vpop.f32.mrb[0].mxu0
    %v365 = vadd.f32 %v145, %v364
    %v366 = vpop.f32.mrb[0].mxu0
    %v367 = vadd.f32 %v149, %v366
    %368 = vmatprep.mubr.f32.mxu0 0.0
    %369 = vmatmul.mubr.f32.gmra.mrb[0].mxu0 %v162
    %v370 = vpop.f32.mrb[0].mxu0
    %v371 = vadd.f32 %v145, %v370
    %v372 = vpop.f32.mrb[0].mxu0
    %v373 = vadd.f32 %v149, %v372
    %374 = vmatprep.mubr.f32.mxu0 0.0
    %375 = vmatmul.mubr.f32.gmra.mrb[0].mxu0 %v165
    %v376 = vpop.f32.mrb[0].mxu0
    %v377 = vadd.f32 %v145, %v376
    %v378 = vpop.f32.mrb[0].mxu0
    %v379 = vadd.f32 %v149, %v378
    %380 = vmatprep.mubr.f32.mxu0 0.0
    %381 = vmatmul.mubr.f32.gmra.mrb[0].mxu0 %v168
    %v382 = vpop.f32.mrb[0].mxu0
    %v383 = vadd.f32 %v145, %v382
    %v384 = vpop.f32.mrb[0].mxu0
    %v385 = vadd.f32 %v149, %v384
    %386 = vmatprep.mubr.f32.mxu0 0.0
    %387 = vmatmul.mubr.f32.gmra.mrb[0].mxu0 %v171
    %v388 = vpop.f32.mrb[0].mxu0
    %v389 = vadd.f32 %v145, %v388
    %v390 = vpop.f32.mrb[0].mxu0
    %v391 = vadd.f32 %v149, %v390
    %392 = vmatprep.mubr.f32.mxu0 0.0
    %393 = vmatmul.mubr.f32.gmra.mrb[0].mxu0 %v174
    %v394 = vpop.f32.mrb[0].mxu0
    %v395 = vadd.f32 %v145, %v394
    %v396 = vpop.f32.mrb[0].mxu0
    %v397 = vadd.f32 %v149, %v396
    %398 = vmatprep.mubr.f32.mxu0 0.0
    %399 = vmatmul.mubr.f32.gmra.mrb[0].mxu0 %v177
    %v400 = vpop.f32.mrb[0].mxu0
    %v401 = vadd.f32 %v145, %v400
    %v402 = vpop.f32.mrb[0].mxu0
    %v403 = vadd.f32 %v149, %v402
    %404 = vdwg.mxu0
    %405 = vst [vmem:[#allocation3] sm:$0xff] %v246
    %406 = vst [vmem:[#allocation3 + $0x8] sm:$0xff] %v248
    %407 = vst [vmem:[#allocation3 + $0x10] sm:$0xff] %v359
    %408 = vst [vmem:[#allocation3 + $0x18] sm:$0xff] %v361
    %409 = vst [vmem:[#allocation3 + $0x80] sm:$0xff] %v252
    %410 = vst [vmem:[#allocation3 + $0x88] sm:$0xff] %v254
    %411 = vst [vmem:[#allocation3 + $0x90] sm:$0xff] %v365
    %412 = vst [vmem:[#allocation3 + $0x98] sm:$0xff] %v367
    %413 = vst [vmem:[#allocation3 + $0x100] sm:$0xff] %v258
    %414 = vst [vmem:[#allocation3 + $0x108] sm:$0xff] %v260
    %415 = vst [vmem:[#allocation3 + $0x110] sm:$0xff] %v371
    %416 = vst [vmem:[#allocation3 + $0x118] sm:$0xff] %v373
    %417 = vst [vmem:[#allocation3 + $0x180] sm:$0xff] %v264
    %418 = vst [vmem:[#allocation3 + $0x188] sm:$0xff] %v266
    %419 = vst [vmem:[#allocation3 + $0x190] sm:$0xff] %v377
    %420 = vst [vmem:[#allocation3 + $0x198] sm:$0xff] %v379
    %421 = vst [vmem:[#allocation3 + $0x200] sm:$0xff] %v270
    %422 = vst [vmem:[#allocation3 + $0x208] sm:$0xff] %v272
    %423 = vst [vmem:[#allocation3 + $0x210] sm:$0xff] %v383
    %424 = vst [vmem:[#allocation3 + $0x218] sm:$0xff] %v385
    %425 = vst [vmem:[#allocation3 + $0x280] sm:$0xff] %v276
    %426 = vst [vmem:[#allocation3 + $0x288] sm:$0xff] %v278
    %427 = vst [vmem:[#allocation3 + $0x290] sm:$0xff] %v389
    %428 = vst [vmem:[#allocation3 + $0x298] sm:$0xff] %v391
    %429 = vst [vmem:[#allocation3 + $0x300] sm:$0xff] %v282
    %430 = vst [vmem:[#allocation3 + $0x308] sm:$0xff] %v284
    %431 = vst [vmem:[#allocation3 + $0x310] sm:$0xff] %v395
    %432 = vst [vmem:[#allocation3 + $0x318] sm:$0xff] %v397
    %433 = vst [vmem:[#allocation3 + $0x380] sm:$0xff] %v288
    %434 = vst [vmem:[#allocation3 + $0x388] sm:$0xff] %v290
    %435 = vst [vmem:[#allocation3 + $0x390] sm:$0xff] %v401
    %436 = vst [vmem:[#allocation3 + $0x398] sm:$0xff] %v403
    %v437 = vld [vmem:[#allocation5 + $0x20] sm:$0xff]
    %v438 = vld [vmem:[#allocation5 + $0x28] sm:$0xff]
    %v439 = vld [vmem:[#allocation5 + $0x30] sm:$0xff]
    %v440 = vld [vmem:[#allocation5 + $0x38] sm:$0xff]
    %v441 = vld [vmem:[#allocation5 + $0xa0] sm:$0xff]
    %v442 = vld [vmem:[#allocation5 + $0xa8] sm:$0xff]
    %v443 = vld [vmem:[#allocation5 + $0xb0] sm:$0xff]
    %v444 = vld [vmem:[#allocation5 + $0xb8] sm:$0xff]
    %v445 = vld [vmem:[#allocation5 + $0x120] sm:$0xff]
    %v446 = vld [vmem:[#allocation5 + $0x128] sm:$0xff]
    %v447 = vld [vmem:[#allocation5 + $0x130] sm:$0xff]
    %v448 = vld [vmem:[#allocation5 + $0x138] sm:$0xff]
    %v449 = vld [vmem:[#allocation5 + $0x1a0] sm:$0xff]
    %v450 = vld [vmem:[#allocation5 + $0x1a8] sm:$0xff]
    %v451 = vld [vmem:[#allocation5 + $0x1b0] sm:$0xff]
    %v452 = vld [vmem:[#allocation5 + $0x1b8] sm:$0xff]
    %v453 = vld [vmem:[#allocation7 + $0x4] sm:$0xf]
    %v455 = vlaneseq
    %v456 = vshrl.u32 %v455, 7
    %v457 = vsub.s32 0, %v456
    %v458 = vrot.slane %v453, %v457
    %v459 = vlaneseq
    %v460 = vshrl.u32 %v459, 7
    %v461 = vsub.s32 1, %v460
    %v462 = vrot.slane %v453, %v461
    %v463 = vlaneseq
    %v464 = vshrl.u32 %v463, 7
    %v465 = vsub.s32 2, %v464
    %v466 = vrot.slane %v453, %v465
    %v467 = vlaneseq
    %v468 = vshrl.u32 %v467, 7
    %v469 = vsub.s32 3, %v468
    %v470 = vrot.slane %v453, %v469
    %475 = vmatprep.subr.mxu0 %v438
    %476 = vmatpush1.msra.mxu0 %v437
    %477 = vmatprep.subr.mxu0 %v442
    %478 = vmatpush1.msra.mxu0 %v441
    %479 = vmatprep.subr.mxu0 %v446
    %480 = vmatpush1.msra.mxu0 %v445
    %481 = vmatprep.subr.mxu0 %v450
    %482 = vmatpush1.msra.mxu0 %v449
    %483 = vmatprep.subr.mxu0 0.0
    %484 = vmatpush1.msra.mxu0 0.0
    %485 = vmatprep.subr.mxu0 0.0
    %486 = vmatpush1.msra.mxu0 0.0
    %487 = vmatprep.subr.mxu0 0.0
    %488 = vmatpush1.msra.mxu0 0.0
    %489 = vmatprep.subr.mxu0 0.0
    %490 = vmatpush1.msra.mxu0 0.0
    %491 = vmatprep.subr.mxu0 0.0
    %492 = vmatpush1.msra.mxu0 0.0
    %493 = vmatprep.subr.mxu0 0.0
    %494 = vmatpush1.msra.mxu0 0.0
    %495 = vmatprep.subr.mxu0 0.0
    %496 = vmatpush1.msra.mxu0 0.0
    %497 = vmatprep.subr.mxu0 0.0
    %498 = vmatpush1.msra.mxu0 0.0
    %499 = vmatprep.subr.mxu0 0.0
    %500 = vmatpush1.msra.mxu0 0.0
    %501 = vmatprep.subr.mxu0 0.0
    %502 = vmatpush1.msra.mxu0 0.0
    %503 = vmatprep.subr.mxu0 0.0
    %504 = vmatpush1.msra.mxu0 0.0
    %505 = vmatprep.subr.mxu0 0.0
    %506 = vmatpush1.msra.mxu0 0.0
    %507 = vmatprep.subr.mxu0 0.0
    %508 = vmatpush1.msra.mxu0 0.0
    %509 = vmatprep.subr.mxu0 0.0
    %510 = vmatpush1.msra.mxu0 0.0
    %511 = vmatprep.subr.mxu0 0.0
    %512 = vmatpush1.msra.mxu0 0.0
    %513 = vmatprep.subr.mxu0 0.0
    %514 = vmatpush1.msra.mxu0 0.0
    %515 = vmatprep.subr.mxu0 0.0
    %516 = vmatpush1.msra.mxu0 0.0
    %517 = vmatprep.subr.mxu0 0.0
    %518 = vmatpush1.msra.mxu0 0.0
    %519 = vmatprep.subr.mxu0 0.0
    %520 = vmatpush1.msra.mxu0 0.0
    %521 = vmatprep.subr.mxu0 0.0
    %522 = vmatpush1.msra.mxu0 0.0
    %523 = vmatprep.subr.mxu0 0.0
    %524 = vmatpush1.msra.mxu0 0.0
    %525 = vmatprep.subr.mxu0 0.0
    %526 = vmatpush1.msra.mxu0 0.0
    %527 = vmatprep.subr.mxu0 0.0
    %528 = vmatpush1.msra.mxu0 0.0
    %529 = vmatprep.subr.mxu0 0.0
    %530 = vmatpush1.msra.mxu0 0.0
    %531 = vmatprep.subr.mxu0 0.0
    %532 = vmatpush1.msra.mxu0 0.0
    %533 = vmatprep.subr.mxu0 0.0
    %534 = vmatpush1.msra.mxu0 0.0
    %535 = vmatprep.subr.mxu0 0.0
    %536 = vmatpush1.msra.mxu0 0.0
    %537 = vmatprep.subr.mxu0 0.0
    %538 = vmatpush1.msra.mxu0 0.0
    %539 = vmatprep.mubr.f32.mxu0 0.0
    %540 = vmatmul.mubr.f32.gmra.mrb[0].mxu0 %v156
    %v541 = vpop.f32.mrb[0].mxu0
    %v542 = vadd.f32 %v458, %v541
    %v543 = vpop.f32.mrb[0].mxu0
    %v544 = vadd.f32 %v462, %v543
    %545 = vmatprep.mubr.f32.mxu0 0.0
    %546 = vmatmul.mubr.f32.gmra.mrb[0].mxu0 %v159
    %v547 = vpop.f32.mrb[0].mxu0
    %v548 = vadd.f32 %v458, %v547
    %v549 = vpop.f32.mrb[0].mxu0
    %v550 = vadd.f32 %v462, %v549
    %551 = vmatprep.mubr.f32.mxu0 0.0
    %552 = vmatmul.mubr.f32.gmra.mrb[0].mxu0 %v162
    %v553 = vpop.f32.mrb[0].mxu0
    %v554 = vadd.f32 %v458, %v553
    %v555 = vpop.f32.mrb[0].mxu0
    %v556 = vadd.f32 %v462, %v555
    %557 = vmatprep.mubr.f32.mxu0 0.0
    %558 = vmatmul.mubr.f32.gmra.mrb[0].mxu0 %v165
    %v559 = vpop.f32.mrb[0].mxu0
    %v560 = vadd.f32 %v458, %v559
    %v561 = vpop.f32.mrb[0].mxu0
    %v562 = vadd.f32 %v462, %v561
    %563 = vmatprep.mubr.f32.mxu0 0.0
    %564 = vmatmul.mubr.f32.gmra.mrb[0].mxu0 %v168
    %v565 = vpop.f32.mrb[0].mxu0
    %v566 = vadd.f32 %v458, %v565
    %v567 = vpop.f32.mrb[0].mxu0
    %v568 = vadd.f32 %v462, %v567
    %569 = vmatprep.mubr.f32.mxu0 0.0
    %570 = vmatmul.mubr.f32.gmra.mrb[0].mxu0 %v171
    %v571 = vpop.f32.mrb[0].mxu0
    %v572 = vadd.f32 %v458, %v571
    %v573 = vpop.f32.mrb[0].mxu0
    %v574 = vadd.f32 %v462, %v573
    %575 = vmatprep.mubr.f32.mxu0 0.0
    %576 = vmatmul.mubr.f32.gmra.mrb[0].mxu0 %v174
    %v577 = vpop.f32.mrb[0].mxu0
    %v578 = vadd.f32 %v458, %v577
    %v579 = vpop.f32.mrb[0].mxu0
    %v580 = vadd.f32 %v462, %v579
    %581 = vmatprep.mubr.f32.mxu0 0.0
    %582 = vmatmul.mubr.f32.gmra.mrb[0].mxu0 %v177
    %v583 = vpop.f32.mrb[0].mxu0
    %v584 = vadd.f32 %v458, %v583
    %v585 = vpop.f32.mrb[0].mxu0
    %v586 = vadd.f32 %v462, %v585
    %587 = vdwg.mxu0
    %588 = vmatprep.subr.mxu0 %v440
    %589 = vmatpush1.msra.mxu0 %v439
    %590 = vmatprep.subr.mxu0 %v444
    %591 = vmatpush1.msra.mxu0 %v443
    %592 = vmatprep.subr.mxu0 %v448
    %593 = vmatpush1.msra.mxu0 %v447
    %594 = vmatprep.subr.mxu0 %v452
    %595 = vmatpush1.msra.mxu0 %v451
    %596 = vmatprep.subr.mxu0 0.0
    %597 = vmatpush1.msra.mxu0 0.0
    %598 = vmatprep.subr.mxu0 0.0
    %599 = vmatpush1.msra.mxu0 0.0
    %600 = vmatprep.subr.mxu0 0.0
    %601 = vmatpush1.msra.mxu0 0.0
    %602 = vmatprep.subr.mxu0 0.0
    %603 = vmatpush1.msra.mxu0 0.0
    %604 = vmatprep.subr.mxu0 0.0
    %605 = vmatpush1.msra.mxu0 0.0
    %606 = vmatprep.subr.mxu0 0.0
    %607 = vmatpush1.msra.mxu0 0.0
    %608 = vmatprep.subr.mxu0 0.0
    %609 = vmatpush1.msra.mxu0 0.0
    %610 = vmatprep.subr.mxu0 0.0
    %611 = vmatpush1.msra.mxu0 0.0
    %612 = vmatprep.subr.mxu0 0.0
    %613 = vmatpush1.msra.mxu0 0.0
    %614 = vmatprep.subr.mxu0 0.0
    %615 = vmatpush1.msra.mxu0 0.0
    %616 = vmatprep.subr.mxu0 0.0
    %617 = vmatpush1.msra.mxu0 0.0
    %618 = vmatprep.subr.mxu0 0.0
    %619 = vmatpush1.msra.mxu0 0.0
    %620 = vmatprep.subr.mxu0 0.0
    %621 = vmatpush1.msra.mxu0 0.0
    %622 = vmatprep.subr.mxu0 0.0
    %623 = vmatpush1.msra.mxu0 0.0
    %624 = vmatprep.subr.mxu0 0.0
    %625 = vmatpush1.msra.mxu0 0.0
    %626 = vmatprep.subr.mxu0 0.0
    %627 = vmatpush1.msra.mxu0 0.0
    %628 = vmatprep.subr.mxu0 0.0
    %629 = vmatpush1.msra.mxu0 0.0
    %630 = vmatprep.subr.mxu0 0.0
    %631 = vmatpush1.msra.mxu0 0.0
    %632 = vmatprep.subr.mxu0 0.0
    %633 = vmatpush1.msra.mxu0 0.0
    %634 = vmatprep.subr.mxu0 0.0
    %635 = vmatpush1.msra.mxu0 0.0
    %636 = vmatprep.subr.mxu0 0.0
    %637 = vmatpush1.msra.mxu0 0.0
    %638 = vmatprep.subr.mxu0 0.0
    %639 = vmatpush1.msra.mxu0 0.0
    %640 = vmatprep.subr.mxu0 0.0
    %641 = vmatpush1.msra.mxu0 0.0
    %642 = vmatprep.subr.mxu0 0.0
    %643 = vmatpush1.msra.mxu0 0.0
    %644 = vmatprep.subr.mxu0 0.0
    %645 = vmatpush1.msra.mxu0 0.0
    %646 = vmatprep.subr.mxu0 0.0
    %647 = vmatpush1.msra.mxu0 0.0
    %648 = vmatprep.subr.mxu0 0.0
    %649 = vmatpush1.msra.mxu0 0.0
    %650 = vmatprep.subr.mxu0 0.0
    %651 = vmatpush1.msra.mxu0 0.0
    %652 = vmatprep.mubr.f32.mxu0 0.0
    %653 = vmatmul.mubr.f32.gmra.mrb[0].mxu0 %v156
    %v654 = vpop.f32.mrb[0].mxu0
    %v655 = vadd.f32 %v466, %v654
    %v656 = vpop.f32.mrb[0].mxu0
    %v657 = vadd.f32 %v470, %v656
    %658 = vmatprep.mubr.f32.mxu0 0.0
    %659 = vmatmul.mubr.f32.gmra.mrb[0].mxu0 %v159
    %v660 = vpop.f32.mrb[0].mxu0
    %v661 = vadd.f32 %v466, %v660
    %v662 = vpop.f32.mrb[0].mxu0
    %v663 = vadd.f32 %v470, %v662
    %664 = vmatprep.mubr.f32.mxu0 0.0
    %665 = vmatmul.mubr.f32.gmra.mrb[0].mxu0 %v162
    %v666 = vpop.f32.mrb[0].mxu0
    %v667 = vadd.f32 %v466, %v666
    %v668 = vpop.f32.mrb[0].mxu0
    %v669 = vadd.f32 %v470, %v668
    %670 = vmatprep.mubr.f32.mxu0 0.0
    %671 = vmatmul.mubr.f32.gmra.mrb[0].mxu0 %v165
    %v672 = vpop.f32.mrb[0].mxu0
    %v673 = vadd.f32 %v466, %v672
    %v674 = vpop.f32.mrb[0].mxu0
    %v675 = vadd.f32 %v470, %v674
    %676 = vmatprep.mubr.f32.mxu0 0.0
    %677 = vmatmul.mubr.f32.gmra.mrb[0].mxu0 %v168
    %v678 = vpop.f32.mrb[0].mxu0
    %v679 = vadd.f32 %v466, %v678
    %v680 = vpop.f32.mrb[0].mxu0
    %v681 = vadd.f32 %v470, %v680
    %682 = vmatprep.mubr.f32.mxu0 0.0
    %683 = vmatmul.mubr.f32.gmra.mrb[0].mxu0 %v171
    %v684 = vpop.f32.mrb[0].mxu0
    %v685 = vadd.f32 %v466, %v684
    %v686 = vpop.f32.mrb[0].mxu0
    %v687 = vadd.f32 %v470, %v686
    %688 = vmatprep.mubr.f32.mxu0 0.0
    %689 = vmatmul.mubr.f32.gmra.mrb[0].mxu0 %v174
    %v690 = vpop.f32.mrb[0].mxu0
    %v691 = vadd.f32 %v466, %v690
    %v692 = vpop.f32.mrb[0].mxu0
    %v693 = vadd.f32 %v470, %v692
    %694 = vmatprep.mubr.f32.mxu0 0.0
    %695 = vmatmul.mubr.f32.gmra.mrb[0].mxu0 %v177
    %v696 = vpop.f32.mrb[0].mxu0
    %v697 = vadd.f32 %v466, %v696
    %v698 = vpop.f32.mrb[0].mxu0
    %v699 = vadd.f32 %v470, %v698
    %700 = vdwg.mxu0
    %701 = vst [vmem:[#allocation3 + $0x20] sm:$0xff] %v542
    %702 = vst [vmem:[#allocation3 + $0x28] sm:$0xff] %v544
    %703 = vst [vmem:[#allocation3 + $0x30] sm:$0xff] %v655
    %704 = vst [vmem:[#allocation3 + $0x38] sm:$0xff] %v657
    %705 = vst [vmem:[#allocation3 + $0xa0] sm:$0xff] %v548
    %706 = vst [vmem:[#allocation3 + $0xa8] sm:$0xff] %v550
    %707 = vst [vmem:[#allocation3 + $0xb0] sm:$0xff] %v661
    %708 = vst [vmem:[#allocation3 + $0xb8] sm:$0xff] %v663
    %709 = vst [vmem:[#allocation3 + $0x120] sm:$0xff] %v554
    %710 = vst [vmem:[#allocation3 + $0x128] sm:$0xff] %v556
    %711 = vst [vmem:[#allocation3 + $0x130] sm:$0xff] %v667
    %712 = vst [vmem:[#allocation3 + $0x138] sm:$0xff] %v669
    %713 = vst [vmem:[#allocation3 + $0x1a0] sm:$0xff] %v560
    %714 = vst [vmem:[#allocation3 + $0x1a8] sm:$0xff] %v562
    %715 = vst [vmem:[#allocation3 + $0x1b0] sm:$0xff] %v673
    %716 = vst [vmem:[#allocation3 + $0x1b8] sm:$0xff] %v675
    %717 = vst [vmem:[#allocation3 + $0x220] sm:$0xff] %v566
    %718 = vst [vmem:[#allocation3 + $0x228] sm:$0xff] %v568
    %719 = vst [vmem:[#allocation3 + $0x230] sm:$0xff] %v679
    %720 = vst [vmem:[#allocation3 + $0x238] sm:$0xff] %v681
    %721 = vst [vmem:[#allocation3 + $0x2a0] sm:$0xff] %v572
    %722 = vst [vmem:[#allocation3 + $0x2a8] sm:$0xff] %v574
    %723 = vst [vmem:[#allocation3 + $0x2b0] sm:$0xff] %v685
    %724 = vst [vmem:[#allocation3 + $0x2b8] sm:$0xff] %v687
    %725 = vst [vmem:[#allocation3 + $0x320] sm:$0xff] %v578
    %726 = vst [vmem:[#allocation3 + $0x328] sm:$0xff] %v580
    %727 = vst [vmem:[#allocation3 + $0x330] sm:$0xff] %v691
    %728 = vst [vmem:[#allocation3 + $0x338] sm:$0xff] %v693
    %729 = vst [vmem:[#allocation3 + $0x3a0] sm:$0xff] %v584
    %730 = vst [vmem:[#allocation3 + $0x3a8] sm:$0xff] %v586
    %731 = vst [vmem:[#allocation3 + $0x3b0] sm:$0xff] %v697
    %732 = vst [vmem:[#allocation3 + $0x3b8] sm:$0xff] %v699
    %v733 = vld [vmem:[#allocation5 + $0x40] sm:$0xff]
    %v734 = vld [vmem:[#allocation5 + $0x48] sm:$0xff]
    %v735 = vld [vmem:[#allocation5 + $0x50] sm:$0xff]
    %v736 = vld [vmem:[#allocation5 + $0x58] sm:$0xff]
    %v737 = vld [vmem:[#allocation5 + $0xc0] sm:$0xff]
    %v738 = vld [vmem:[#allocation5 + $0xc8] sm:$0xff]
    %v739 = vld [vmem:[#allocation5 + $0xd0] sm:$0xff]
    %v740 = vld [vmem:[#allocation5 + $0xd8] sm:$0xff]
    %v741 = vld [vmem:[#allocation5 + $0x140] sm:$0xff]
    %v742 = vld [vmem:[#allocation5 + $0x148] sm:$0xff]
    %v743 = vld [vmem:[#allocation5 + $0x150] sm:$0xff]
    %v744 = vld [vmem:[#allocation5 + $0x158] sm:$0xff]
    %v745 = vld [vmem:[#allocation5 + $0x1c0] sm:$0xff]
    %v746 = vld [vmem:[#allocation5 + $0x1c8] sm:$0xff]
    %v747 = vld [vmem:[#allocation5 + $0x1d0] sm:$0xff]
    %v748 = vld [vmem:[#allocation5 + $0x1d8] sm:$0xff]
    %v749 = vld [vmem:[#allocation7 + $0x8] sm:$0xf]
    %v751 = vlaneseq
    %v752 = vshrl.u32 %v751, 7
    %v753 = vsub.s32 0, %v752
    %v754 = vrot.slane %v749, %v753
    %v755 = vlaneseq
    %v756 = vshrl.u32 %v755, 7
    %v757 = vsub.s32 1, %v756
    %v758 = vrot.slane %v749, %v757
    %v759 = vlaneseq
    %v760 = vshrl.u32 %v759, 7
    %v761 = vsub.s32 2, %v760
    %v762 = vrot.slane %v749, %v761
    %v763 = vlaneseq
    %v764 = vshrl.u32 %v763, 7
    %v765 = vsub.s32 3, %v764
    %v766 = vrot.slane %v749, %v765
    %771 = vmatprep.subr.mxu0 %v734
    %772 = vmatpush1.msra.mxu0 %v733
    %773 = vmatprep.subr.mxu0 %v738
    %774 = vmatpush1.msra.mxu0 %v737
    %775 = vmatprep.subr.mxu0 %v742
    %776 = vmatpush1.msra.mxu0 %v741
    %777 = vmatprep.subr.mxu0 %v746
    %778 = vmatpush1.msra.mxu0 %v745
    %779 = vmatprep.subr.mxu0 0.0
    %780 = vmatpush1.msra.mxu0 0.0
    %781 = vmatprep.subr.mxu0 0.0
    %782 = vmatpush1.msra.mxu0 0.0
    %783 = vmatprep.subr.mxu0 0.0
    %784 = vmatpush1.msra.mxu0 0.0
    %785 = vmatprep.subr.mxu0 0.0
    %786 = vmatpush1.msra.mxu0 0.0
    %787 = vmatprep.subr.mxu0 0.0
    %788 = vmatpush1.msra.mxu0 0.0
    %789 = vmatprep.subr.mxu0 0.0
    %790 = vmatpush1.msra.mxu0 0.0
    %791 = vmatprep.subr.mxu0 0.0
    %792 = vmatpush1.msra.mxu0 0.0
    %793 = vmatprep.subr.mxu0 0.0
    %794 = vmatpush1.msra.mxu0 0.0
    %795 = vmatprep.subr.mxu0 0.0
    %796 = vmatpush1.msra.mxu0 0.0
    %797 = vmatprep.subr.mxu0 0.0
    %798 = vmatpush1.msra.mxu0 0.0
    %799 = vmatprep.subr.mxu0 0.0
    %800 = vmatpush1.msra.mxu0 0.0
    %801 = vmatprep.subr.mxu0 0.0
    %802 = vmatpush1.msra.mxu0 0.0
    %803 = vmatprep.subr.mxu0 0.0
    %804 = vmatpush1.msra.mxu0 0.0
    %805 = vmatprep.subr.mxu0 0.0
    %806 = vmatpush1.msra.mxu0 0.0
    %807 = vmatprep.subr.mxu0 0.0
    %808 = vmatpush1.msra.mxu0 0.0
    %809 = vmatprep.subr.mxu0 0.0
    %810 = vmatpush1.msra.mxu0 0.0
    %811 = vmatprep.subr.mxu0 0.0
    %812 = vmatpush1.msra.mxu0 0.0
    %813 = vmatprep.subr.mxu0 0.0
    %814 = vmatpush1.msra.mxu0 0.0
    %815 = vmatprep.subr.mxu0 0.0
    %816 = vmatpush1.msra.mxu0 0.0
    %817 = vmatprep.subr.mxu0 0.0
    %818 = vmatpush1.msra.mxu0 0.0
    %819 = vmatprep.subr.mxu0 0.0
    %820 = vmatpush1.msra.mxu0 0.0
    %821 = vmatprep.subr.mxu0 0.0
    %822 = vmatpush1.msra.mxu0 0.0
    %823 = vmatprep.subr.mxu0 0.0
    %824 = vmatpush1.msra.mxu0 0.0
    %825 = vmatprep.subr.mxu0 0.0
    %826 = vmatpush1.msra.mxu0 0.0
    %827 = vmatprep.subr.mxu0 0.0
    %828 = vmatpush1.msra.mxu0 0.0
    %829 = vmatprep.subr.mxu0 0.0
    %830 = vmatpush1.msra.mxu0 0.0
    %831 = vmatprep.subr.mxu0 0.0
    %832 = vmatpush1.msra.mxu0 0.0
    %833 = vmatprep.subr.mxu0 0.0
    %834 = vmatpush1.msra.mxu0 0.0
    %835 = vmatprep.mubr.f32.mxu0 0.0
    %836 = vmatmul.mubr.f32.gmra.mrb[0].mxu0 %v156
    %v837 = vpop.f32.mrb[0].mxu0
    %v838 = vadd.f32 %v754, %v837
    %v839 = vpop.f32.mrb[0].mxu0
    %v840 = vadd.f32 %v758, %v839
    %841 = vmatprep.mubr.f32.mxu0 0.0
    %842 = vmatmul.mubr.f32.gmra.mrb[0].mxu0 %v159
    %v843 = vpop.f32.mrb[0].mxu0
    %v844 = vadd.f32 %v754, %v843
    %v845 = vpop.f32.mrb[0].mxu0
    %v846 = vadd.f32 %v758, %v845
    %847 = vmatprep.mubr.f32.mxu0 0.0
    %848 = vmatmul.mubr.f32.gmra.mrb[0].mxu0 %v162
    %v849 = vpop.f32.mrb[0].mxu0
    %v850 = vadd.f32 %v754, %v849
    %v851 = vpop.f32.mrb[0].mxu0
    %v852 = vadd.f32 %v758, %v851
    %853 = vmatprep.mubr.f32.mxu0 0.0
    %854 = vmatmul.mubr.f32.gmra.mrb[0].mxu0 %v165
    %v855 = vpop.f32.mrb[0].mxu0
    %v856 = vadd.f32 %v754, %v855
    %v857 = vpop.f32.mrb[0].mxu0
    %v858 = vadd.f32 %v758, %v857
    %859 = vmatprep.mubr.f32.mxu0 0.0
    %860 = vmatmul.mubr.f32.gmra.mrb[0].mxu0 %v168
    %v861 = vpop.f32.mrb[0].mxu0
    %v862 = vadd.f32 %v754, %v861
    %v863 = vpop.f32.mrb[0].mxu0
    %v864 = vadd.f32 %v758, %v863
    %865 = vmatprep.mubr.f32.mxu0 0.0
    %866 = vmatmul.mubr.f32.gmra.mrb[0].mxu0 %v171
    %v867 = vpop.f32.mrb[0].mxu0
    %v868 = vadd.f32 %v754, %v867
    %v869 = vpop.f32.mrb[0].mxu0
    %v870 = vadd.f32 %v758, %v869
    %871 = vmatprep.mubr.f32.mxu0 0.0
    %872 = vmatmul.mubr.f32.gmra.mrb[0].mxu0 %v174
    %v873 = vpop.f32.mrb[0].mxu0
    %v874 = vadd.f32 %v754, %v873
    %v875 = vpop.f32.mrb[0].mxu0
    %v876 = vadd.f32 %v758, %v875
    %877 = vmatprep.mubr.f32.mxu0 0.0
    %878 = vmatmul.mubr.f32.gmra.mrb[0].mxu0 %v177
    %v879 = vpop.f32.mrb[0].mxu0
    %v880 = vadd.f32 %v754, %v879
    %v881 = vpop.f32.mrb[0].mxu0
    %v882 = vadd.f32 %v758, %v881
    %883 = vdwg.mxu0
    %884 = vmatprep.subr.mxu0 %v736
    %885 = vmatpush1.msra.mxu0 %v735
    %886 = vmatprep.subr.mxu0 %v740
    %887 = vmatpush1.msra.mxu0 %v739
    %888 = vmatprep.subr.mxu0 %v744
    %889 = vmatpush1.msra.mxu0 %v743
    %890 = vmatprep.subr.mxu0 %v748
    %891 = vmatpush1.msra.mxu0 %v747
    %892 = vmatprep.subr.mxu0 0.0
    %893 = vmatpush1.msra.mxu0 0.0
    %894 = vmatprep.subr.mxu0 0.0
    %895 = vmatpush1.msra.mxu0 0.0
    %896 = vmatprep.subr.mxu0 0.0
    %897 = vmatpush1.msra.mxu0 0.0
    %898 = vmatprep.subr.mxu0 0.0
    %899 = vmatpush1.msra.mxu0 0.0
    %900 = vmatprep.subr.mxu0 0.0
    %901 = vmatpush1.msra.mxu0 0.0
    %902 = vmatprep.subr.mxu0 0.0
    %903 = vmatpush1.msra.mxu0 0.0
    %904 = vmatprep.subr.mxu0 0.0
    %905 = vmatpush1.msra.mxu0 0.0
    %906 = vmatprep.subr.mxu0 0.0
    %907 = vmatpush1.msra.mxu0 0.0
    %908 = vmatprep.subr.mxu0 0.0
    %909 = vmatpush1.msra.mxu0 0.0
    %910 = vmatprep.subr.mxu0 0.0
    %911 = vmatpush1.msra.mxu0 0.0
    %912 = vmatprep.subr.mxu0 0.0
    %913 = vmatpush1.msra.mxu0 0.0
    %914 = vmatprep.subr.mxu0 0.0
    %915 = vmatpush1.msra.mxu0 0.0
    %916 = vmatprep.subr.mxu0 0.0
    %917 = vmatpush1.msra.mxu0 0.0
    %918 = vmatprep.subr.mxu0 0.0
    %919 = vmatpush1.msra.mxu0 0.0
    %920 = vmatprep.subr.mxu0 0.0
    %921 = vmatpush1.msra.mxu0 0.0
    %922 = vmatprep.subr.mxu0 0.0
    %923 = vmatpush1.msra.mxu0 0.0
    %924 = vmatprep.subr.mxu0 0.0
    %925 = vmatpush1.msra.mxu0 0.0
    %926 = vmatprep.subr.mxu0 0.0
    %927 = vmatpush1.msra.mxu0 0.0
    %928 = vmatprep.subr.mxu0 0.0
    %929 = vmatpush1.msra.mxu0 0.0
    %930 = vmatprep.subr.mxu0 0.0
    %931 = vmatpush1.msra.mxu0 0.0
    %932 = vmatprep.subr.mxu0 0.0
    %933 = vmatpush1.msra.mxu0 0.0
    %934 = vmatprep.subr.mxu0 0.0
    %935 = vmatpush1.msra.mxu0 0.0
    %936 = vmatprep.subr.mxu0 0.0
    %937 = vmatpush1.msra.mxu0 0.0
    %938 = vmatprep.subr.mxu0 0.0
    %939 = vmatpush1.msra.mxu0 0.0
    %940 = vmatprep.subr.mxu0 0.0
    %941 = vmatpush1.msra.mxu0 0.0
    %942 = vmatprep.subr.mxu0 0.0
    %943 = vmatpush1.msra.mxu0 0.0
    %944 = vmatprep.subr.mxu0 0.0
    %945 = vmatpush1.msra.mxu0 0.0
    %946 = vmatprep.subr.mxu0 0.0
    %947 = vmatpush1.msra.mxu0 0.0
    %948 = vmatprep.mubr.f32.mxu0 0.0
    %949 = vmatmul.mubr.f32.gmra.mrb[0].mxu0 %v156
    %v950 = vpop.f32.mrb[0].mxu0
    %v951 = vadd.f32 %v762, %v950
    %v952 = vpop.f32.mrb[0].mxu0
    %v953 = vadd.f32 %v766, %v952
    %954 = vmatprep.mubr.f32.mxu0 0.0
    %955 = vmatmul.mubr.f32.gmra.mrb[0].mxu0 %v159
    %v956 = vpop.f32.mrb[0].mxu0
    %v957 = vadd.f32 %v762, %v956
    %v958 = vpop.f32.mrb[0].mxu0
    %v959 = vadd.f32 %v766, %v958
    %960 = vmatprep.mubr.f32.mxu0 0.0
    %961 = vmatmul.mubr.f32.gmra.mrb[0].mxu0 %v162
    %v962 = vpop.f32.mrb[0].mxu0
    %v963 = vadd.f32 %v762, %v962
    %v964 = vpop.f32.mrb[0].mxu0
    %v965 = vadd.f32 %v766, %v964
    %966 = vmatprep.mubr.f32.mxu0 0.0
    %967 = vmatmul.mubr.f32.gmra.mrb[0].mxu0 %v165
    %v968 = vpop.f32.mrb[0].mxu0
    %v969 = vadd.f32 %v762, %v968
    %v970 = vpop.f32.mrb[0].mxu0
    %v971 = vadd.f32 %v766, %v970
    %972 = vmatprep.mubr.f32.mxu0 0.0
    %973 = vmatmul.mubr.f32.gmra.mrb[0].mxu0 %v168
    %v974 = vpop.f32.mrb[0].mxu0
    %v975 = vadd.f32 %v762, %v974
    %v976 = vpop.f32.mrb[0].mxu0
    %v977 = vadd.f32 %v766, %v976
    %978 = vmatprep.mubr.f32.mxu0 0.0
    %979 = vmatmul.mubr.f32.gmra.mrb[0].mxu0 %v171
    %v980 = vpop.f32.mrb[0].mxu0
    %v981 = vadd.f32 %v762, %v980
    %v982 = vpop.f32.mrb[0].mxu0
    %v983 = vadd.f32 %v766, %v982
    %984 = vmatprep.mubr.f32.mxu0 0.0
    %985 = vmatmul.mubr.f32.gmra.mrb[0].mxu0 %v174
    %v986 = vpop.f32.mrb[0].mxu0
    %v987 = vadd.f32 %v762, %v986
    %v988 = vpop.f32.mrb[0].mxu0
    %v989 = vadd.f32 %v766, %v988
    %990 = vmatprep.mubr.f32.mxu0 0.0
    %991 = vmatmul.mubr.f32.gmra.mrb[0].mxu0 %v177
    %v992 = vpop.f32.mrb[0].mxu0
    %v993 = vadd.f32 %v762, %v992
    %v994 = vpop.f32.mrb[0].mxu0
    %v995 = vadd.f32 %v766, %v994
    %996 = vdwg.mxu0
    %997 = vst [vmem:[#allocation3 + $0x40] sm:$0xff] %v838
    %998 = vst [vmem:[#allocation3 + $0x48] sm:$0xff] %v840
    %999 = vst [vmem:[#allocation3 + $0x50] sm:$0xff] %v951
    %1000 = vst [vmem:[#allocation3 + $0x58] sm:$0xff] %v953
    %1001 = vst [vmem:[#allocation3 + $0xc0] sm:$0xff] %v844
    %1002 = vst [vmem:[#allocation3 + $0xc8] sm:$0xff] %v846
    %1003 = vst [vmem:[#allocation3 + $0xd0] sm:$0xff] %v957
    %1004 = vst [vmem:[#allocation3 + $0xd8] sm:$0xff] %v959
    %1005 = vst [vmem:[#allocation3 + $0x140] sm:$0xff] %v850
    %1006 = vst [vmem:[#allocation3 + $0x148] sm:$0xff] %v852
    %1007 = vst [vmem:[#allocation3 + $0x150] sm:$0xff] %v963
    %1008 = vst [vmem:[#allocation3 + $0x158] sm:$0xff] %v965
    %1009 = vst [vmem:[#allocation3 + $0x1c0] sm:$0xff] %v856
    %1010 = vst [vmem:[#allocation3 + $0x1c8] sm:$0xff] %v858
    %1011 = vst [vmem:[#allocation3 + $0x1d0] sm:$0xff] %v969
    %1012 = vst [vmem:[#allocation3 + $0x1d8] sm:$0xff] %v971
    %1013 = vst [vmem:[#allocation3 + $0x240] sm:$0xff] %v862
    %1014 = vst [vmem:[#allocation3 + $0x248] sm:$0xff] %v864
    %1015 = vst [vmem:[#allocation3 + $0x250] sm:$0xff] %v975
    %1016 = vst [vmem:[#allocation3 + $0x258] sm:$0xff] %v977
    %1017 = vst [vmem:[#allocation3 + $0x2c0] sm:$0xff] %v868
    %1018 = vst [vmem:[#allocation3 + $0x2c8] sm:$0xff] %v870
    %1019 = vst [vmem:[#allocation3 + $0x2d0] sm:$0xff] %v981
    %1020 = vst [vmem:[#allocation3 + $0x2d8] sm:$0xff] %v983
    %1021 = vst [vmem:[#allocation3 + $0x340] sm:$0xff] %v874
    %1022 = vst [vmem:[#allocation3 + $0x348] sm:$0xff] %v876
    %1023 = vst [vmem:[#allocation3 + $0x350] sm:$0xff] %v987
    %1024 = vst [vmem:[#allocation3 + $0x358] sm:$0xff] %v989
    %1025 = vst [vmem:[#allocation3 + $0x3c0] sm:$0xff] %v880
    %1026 = vst [vmem:[#allocation3 + $0x3c8] sm:$0xff] %v882
    %1027 = vst [vmem:[#allocation3 + $0x3d0] sm:$0xff] %v993
    %1028 = vst [vmem:[#allocation3 + $0x3d8] sm:$0xff] %v995
    %v1029 = vld [vmem:[#allocation5 + $0x60] sm:$0xff]
    %v1030 = vld [vmem:[#allocation5 + $0x68] sm:$0xff]
    %v1031 = vld [vmem:[#allocation5 + $0x70] sm:$0xff]
    %v1032 = vld [vmem:[#allocation5 + $0x78] sm:$0xff]
    %v1033 = vld [vmem:[#allocation5 + $0xe0] sm:$0xff]
    %v1034 = vld [vmem:[#allocation5 + $0xe8] sm:$0xff]
    %v1035 = vld [vmem:[#allocation5 + $0xf0] sm:$0xff]
    %v1036 = vld [vmem:[#allocation5 + $0xf8] sm:$0xff]
    %v1037 = vld [vmem:[#allocation5 + $0x160] sm:$0xff]
    %v1038 = vld [vmem:[#allocation5 + $0x168] sm:$0xff]
    %v1039 = vld [vmem:[#allocation5 + $0x170] sm:$0xff]
    %v1040 = vld [vmem:[#allocation5 + $0x178] sm:$0xff]
    %v1041 = vld [vmem:[#allocation5 + $0x1e0] sm:$0xff]
    %v1042 = vld [vmem:[#allocation5 + $0x1e8] sm:$0xff]
    %v1043 = vld [vmem:[#allocation5 + $0x1f0] sm:$0xff]
    %v1044 = vld [vmem:[#allocation5 + $0x1f8] sm:$0xff]
    %v1045 = vld [vmem:[#allocation7 + $0xc] sm:$0xf]
    %v1047 = vlaneseq
    %v1048 = vshrl.u32 %v1047, 7
    %v1049 = vsub.s32 0, %v1048
    %v1050 = vrot.slane %v1045, %v1049
    %v1051 = vlaneseq
    %v1052 = vshrl.u32 %v1051, 7
    %v1053 = vsub.s32 1, %v1052
    %v1054 = vrot.slane %v1045, %v1053
    %v1055 = vlaneseq
    %v1056 = vshrl.u32 %v1055, 7
    %v1057 = vsub.s32 2, %v1056
    %v1058 = vrot.slane %v1045, %v1057
    %v1059 = vlaneseq
    %v1060 = vshrl.u32 %v1059, 7
    %v1061 = vsub.s32 3, %v1060
    %v1062 = vrot.slane %v1045, %v1061
    %1067 = vmatprep.subr.mxu0 %v1030
    %1068 = vmatpush1.msra.mxu0 %v1029
    %1069 = vmatprep.subr.mxu0 %v1034
    %1070 = vmatpush1.msra.mxu0 %v1033
    %1071 = vmatprep.subr.mxu0 %v1038
    %1072 = vmatpush1.msra.mxu0 %v1037
    %1073 = vmatprep.subr.mxu0 %v1042
    %1074 = vmatpush1.msra.mxu0 %v1041
    %1075 = vmatprep.subr.mxu0 0.0
    %1076 = vmatpush1.msra.mxu0 0.0
    %1077 = vmatprep.subr.mxu0 0.0
    %1078 = vmatpush1.msra.mxu0 0.0
    %1079 = vmatprep.subr.mxu0 0.0
    %1080 = vmatpush1.msra.mxu0 0.0
    %1081 = vmatprep.subr.mxu0 0.0
    %1082 = vmatpush1.msra.mxu0 0.0
    %1083 = vmatprep.subr.mxu0 0.0
    %1084 = vmatpush1.msra.mxu0 0.0
    %1085 = vmatprep.subr.mxu0 0.0
    %1086 = vmatpush1.msra.mxu0 0.0
    %1087 = vmatprep.subr.mxu0 0.0
    %1088 = vmatpush1.msra.mxu0 0.0
    %1089 = vmatprep.subr.mxu0 0.0
    %1090 = vmatpush1.msra.mxu0 0.0
    %1091 = vmatprep.subr.mxu0 0.0
    %1092 = vmatpush1.msra.mxu0 0.0
    %1093 = vmatprep.subr.mxu0 0.0
    %1094 = vmatpush1.msra.mxu0 0.0
    %1095 = vmatprep.subr.mxu0 0.0
    %1096 = vmatpush1.msra.mxu0 0.0
    %1097 = vmatprep.subr.mxu0 0.0
    %1098 = vmatpush1.msra.mxu0 0.0
    %1099 = vmatprep.subr.mxu0 0.0
    %1100 = vmatpush1.msra.mxu0 0.0
    %1101 = vmatprep.subr.mxu0 0.0
    %1102 = vmatpush1.msra.mxu0 0.0
    %1103 = vmatprep.subr.mxu0 0.0
    %1104 = vmatpush1.msra.mxu0 0.0
    %1105 = vmatprep.subr.mxu0 0.0
    %1106 = vmatpush1.msra.mxu0 0.0
    %1107 = vmatprep.subr.mxu0 0.0
    %1108 = vmatpush1.msra.mxu0 0.0
    %1109 = vmatprep.subr.mxu0 0.0
    %1110 = vmatpush1.msra.mxu0 0.0
    %1111 = vmatprep.subr.mxu0 0.0
    %1112 = vmatpush1.msra.mxu0 0.0
    %1113 = vmatprep.subr.mxu0 0.0
    %1114 = vmatpush1.msra.mxu0 0.0
    %1115 = vmatprep.subr.mxu0 0.0
    %1116 = vmatpush1.msra.mxu0 0.0
    %1117 = vmatprep.subr.mxu0 0.0
    %1118 = vmatpush1.msra.mxu0 0.0
    %1119 = vmatprep.subr.mxu0 0.0
    %1120 = vmatpush1.msra.mxu0 0.0
    %1121 = vmatprep.subr.mxu0 0.0
    %1122 = vmatpush1.msra.mxu0 0.0
    %1123 = vmatprep.subr.mxu0 0.0
    %1124 = vmatpush1.msra.mxu0 0.0
    %1125 = vmatprep.subr.mxu0 0.0
    %1126 = vmatpush1.msra.mxu0 0.0
    %1127 = vmatprep.subr.mxu0 0.0
    %1128 = vmatpush1.msra.mxu0 0.0
    %1129 = vmatprep.subr.mxu0 0.0
    %1130 = vmatpush1.msra.mxu0 0.0
    %1131 = vmatprep.mubr.f32.mxu0 0.0
    %1132 = vmatmul.mubr.f32.gmra.mrb[0].mxu0 %v156
    %v1133 = vpop.f32.mrb[0].mxu0
    %v1134 = vadd.f32 %v1050, %v1133
    %v1135 = vpop.f32.mrb[0].mxu0
    %v1136 = vadd.f32 %v1054, %v1135
    %1137 = vmatprep.mubr.f32.mxu0 0.0
    %1138 = vmatmul.mubr.f32.gmra.mrb[0].mxu0 %v159
    %v1139 = vpop.f32.mrb[0].mxu0
    %v1140 = vadd.f32 %v1050, %v1139
    %v1141 = vpop.f32.mrb[0].mxu0
    %v1142 = vadd.f32 %v1054, %v1141
    %1143 = vmatprep.mubr.f32.mxu0 0.0
    %1144 = vmatmul.mubr.f32.gmra.mrb[0].mxu0 %v162
    %v1145 = vpop.f32.mrb[0].mxu0
    %v1146 = vadd.f32 %v1050, %v1145
    %v1147 = vpop.f32.mrb[0].mxu0
    %v1148 = vadd.f32 %v1054, %v1147
    %1149 = vmatprep.mubr.f32.mxu0 0.0
    %1150 = vmatmul.mubr.f32.gmra.mrb[0].mxu0 %v165
    %v1151 = vpop.f32.mrb[0].mxu0
    %v1152 = vadd.f32 %v1050, %v1151
    %v1153 = vpop.f32.mrb[0].mxu0
    %v1154 = vadd.f32 %v1054, %v1153
    %1155 = vmatprep.mubr.f32.mxu0 0.0
    %1156 = vmatmul.mubr.f32.gmra.mrb[0].mxu0 %v168
    %v1157 = vpop.f32.mrb[0].mxu0
    %v1158 = vadd.f32 %v1050, %v1157
    %v1159 = vpop.f32.mrb[0].mxu0
    %v1160 = vadd.f32 %v1054, %v1159
    %1161 = vmatprep.mubr.f32.mxu0 0.0
    %1162 = vmatmul.mubr.f32.gmra.mrb[0].mxu0 %v171
    %v1163 = vpop.f32.mrb[0].mxu0
    %v1164 = vadd.f32 %v1050, %v1163
    %v1165 = vpop.f32.mrb[0].mxu0
    %v1166 = vadd.f32 %v1054, %v1165
    %1167 = vmatprep.mubr.f32.mxu0 0.0
    %1168 = vmatmul.mubr.f32.gmra.mrb[0].mxu0 %v174
    %v1169 = vpop.f32.mrb[0].mxu0
    %v1170 = vadd.f32 %v1050, %v1169
    %v1171 = vpop.f32.mrb[0].mxu0
    %v1172 = vadd.f32 %v1054, %v1171
    %1173 = vmatprep.mubr.f32.mxu0 0.0
    %1174 = vmatmul.mubr.f32.gmra.mrb[0].mxu0 %v177
    %v1175 = vpop.f32.mrb[0].mxu0
    %v1176 = vadd.f32 %v1050, %v1175
    %v1177 = vpop.f32.mrb[0].mxu0
    %v1178 = vadd.f32 %v1054, %v1177
    %1179 = vdwg.mxu0
    %1180 = vmatprep.subr.mxu0 %v1032
    %1181 = vmatpush1.msra.mxu0 %v1031
    %1182 = vmatprep.subr.mxu0 %v1036
    %1183 = vmatpush1.msra.mxu0 %v1035
    %1184 = vmatprep.subr.mxu0 %v1040
    %1185 = vmatpush1.msra.mxu0 %v1039
    %1186 = vmatprep.subr.mxu0 %v1044
    %1187 = vmatpush1.msra.mxu0 %v1043
    %1188 = vmatprep.subr.mxu0 0.0
    %1189 = vmatpush1.msra.mxu0 0.0
    %1190 = vmatprep.subr.mxu0 0.0
    %1191 = vmatpush1.msra.mxu0 0.0
    %1192 = vmatprep.subr.mxu0 0.0
    %1193 = vmatpush1.msra.mxu0 0.0
    %1194 = vmatprep.subr.mxu0 0.0
    %1195 = vmatpush1.msra.mxu0 0.0
    %1196 = vmatprep.subr.mxu0 0.0
    %1197 = vmatpush1.msra.mxu0 0.0
    %1198 = vmatprep.subr.mxu0 0.0
    %1199 = vmatpush1.msra.mxu0 0.0
    %1200 = vmatprep.subr.mxu0 0.0
    %1201 = vmatpush1.msra.mxu0 0.0
    %1202 = vmatprep.subr.mxu0 0.0
    %1203 = vmatpush1.msra.mxu0 0.0
    %1204 = vmatprep.subr.mxu0 0.0
    %1205 = vmatpush1.msra.mxu0 0.0
    %1206 = vmatprep.subr.mxu0 0.0
    %1207 = vmatpush1.msra.mxu0 0.0
    %1208 = vmatprep.subr.mxu0 0.0
    %1209 = vmatpush1.msra.mxu0 0.0
    %1210 = vmatprep.subr.mxu0 0.0
    %1211 = vmatpush1.msra.mxu0 0.0
    %1212 = vmatprep.subr.mxu0 0.0
    %1213 = vmatpush1.msra.mxu0 0.0
    %1214 = vmatprep.subr.mxu0 0.0
    %1215 = vmatpush1.msra.mxu0 0.0
    %1216 = vmatprep.subr.mxu0 0.0
    %1217 = vmatpush1.msra.mxu0 0.0
    %1218 = vmatprep.subr.mxu0 0.0
    %1219 = vmatpush1.msra.mxu0 0.0
    %1220 = vmatprep.subr.mxu0 0.0
    %1221 = vmatpush1.msra.mxu0 0.0
    %1222 = vmatprep.subr.mxu0 0.0
    %1223 = vmatpush1.msra.mxu0 0.0
    %1224 = vmatprep.subr.mxu0 0.0
    %1225 = vmatpush1.msra.mxu0 0.0
    %1226 = vmatprep.subr.mxu0 0.0
    %1227 = vmatpush1.msra.mxu0 0.0
    %1228 = vmatprep.subr.mxu0 0.0
    %1229 = vmatpush1.msra.mxu0 0.0
    %1230 = vmatprep.subr.mxu0 0.0
    %1231 = vmatpush1.msra.mxu0 0.0
    %1232 = vmatprep.subr.mxu0 0.0
    %1233 = vmatpush1.msra.mxu0 0.0
    %1234 = vmatprep.subr.mxu0 0.0
    %1235 = vmatpush1.msra.mxu0 0.0
    %1236 = vmatprep.subr.mxu0 0.0
    %1237 = vmatpush1.msra.mxu0 0.0
    %1238 = vmatprep.subr.mxu0 0.0
    %1239 = vmatpush1.msra.mxu0 0.0
    %1240 = vmatprep.subr.mxu0 0.0
    %1241 = vmatpush1.msra.mxu0 0.0
    %1242 = vmatprep.subr.mxu0 0.0
    %1243 = vmatpush1.msra.mxu0 0.0
    %1244 = vmatprep.mubr.f32.mxu0 0.0
    %1245 = vmatmul.mubr.f32.gmra.mrb[0].mxu0 %v156
    %v1246 = vpop.f32.mrb[0].mxu0
    %v1247 = vadd.f32 %v1058, %v1246
    %v1248 = vpop.f32.mrb[0].mxu0
    %v1249 = vadd.f32 %v1062, %v1248
    %1250 = vmatprep.mubr.f32.mxu0 0.0
    %1251 = vmatmul.mubr.f32.gmra.mrb[0].mxu0 %v159
    %v1252 = vpop.f32.mrb[0].mxu0
    %v1253 = vadd.f32 %v1058, %v1252
    %v1254 = vpop.f32.mrb[0].mxu0
    %v1255 = vadd.f32 %v1062, %v1254
    %1256 = vmatprep.mubr.f32.mxu0 0.0
    %1257 = vmatmul.mubr.f32.gmra.mrb[0].mxu0 %v162
    %v1258 = vpop.f32.mrb[0].mxu0
    %v1259 = vadd.f32 %v1058, %v1258
    %v1260 = vpop.f32.mrb[0].mxu0
    %v1261 = vadd.f32 %v1062, %v1260
    %1262 = vmatprep.mubr.f32.mxu0 0.0
    %1263 = vmatmul.mubr.f32.gmra.mrb[0].mxu0 %v165
    %v1264 = vpop.f32.mrb[0].mxu0
    %v1265 = vadd.f32 %v1058, %v1264
    %v1266 = vpop.f32.mrb[0].mxu0
    %v1267 = vadd.f32 %v1062, %v1266
    %1268 = vmatprep.mubr.f32.mxu0 0.0
    %1269 = vmatmul.mubr.f32.gmra.mrb[0].mxu0 %v168
    %v1270 = vpop.f32.mrb[0].mxu0
    %v1271 = vadd.f32 %v1058, %v1270
    %v1272 = vpop.f32.mrb[0].mxu0
    %v1273 = vadd.f32 %v1062, %v1272
    %1274 = vmatprep.mubr.f32.mxu0 0.0
    %1275 = vmatmul.mubr.f32.gmra.mrb[0].mxu0 %v171
    %v1276 = vpop.f32.mrb[0].mxu0
    %v1277 = vadd.f32 %v1058, %v1276
    %v1278 = vpop.f32.mrb[0].mxu0
    %v1279 = vadd.f32 %v1062, %v1278
    %1280 = vmatprep.mubr.f32.mxu0 0.0
    %1281 = vmatmul.mubr.f32.gmra.mrb[0].mxu0 %v174
    %v1282 = vpop.f32.mrb[0].mxu0
    %v1283 = vadd.f32 %v1058, %v1282
    %v1284 = vpop.f32.mrb[0].mxu0
    %v1285 = vadd.f32 %v1062, %v1284
    %1286 = vmatprep.mubr.f32.mxu0 0.0
    %1287 = vmatmul.mubr.f32.gmra.mrb[0].mxu0 %v177
    %v1288 = vpop.f32.mrb[0].mxu0
    %v1289 = vadd.f32 %v1058, %v1288
    %v1290 = vpop.f32.mrb[0].mxu0
    %v1291 = vadd.f32 %v1062, %v1290
    %1292 = vdwg.mxu0
    %1293 = vst [vmem:[#allocation3 + $0x60] sm:$0xff] %v1134
    %1294 = vst [vmem:[#allocation3 + $0x68] sm:$0xff] %v1136
    %1295 = vst [vmem:[#allocation3 + $0x70] sm:$0xff] %v1247
    %1296 = vst [vmem:[#allocation3 + $0x78] sm:$0xff] %v1249
    %1297 = vst [vmem:[#allocation3 + $0xe0] sm:$0xff] %v1140
    %1298 = vst [vmem:[#allocation3 + $0xe8] sm:$0xff] %v1142
    %1299 = vst [vmem:[#allocation3 + $0xf0] sm:$0xff] %v1253
    %1300 = vst [vmem:[#allocation3 + $0xf8] sm:$0xff] %v1255
    %1301 = vst [vmem:[#allocation3 + $0x160] sm:$0xff] %v1146
    %1302 = vst [vmem:[#allocation3 + $0x168] sm:$0xff] %v1148
    %1303 = vst [vmem:[#allocation3 + $0x170] sm:$0xff] %v1259
    %1304 = vst [vmem:[#allocation3 + $0x178] sm:$0xff] %v1261
    %1305 = vst [vmem:[#allocation3 + $0x1e0] sm:$0xff] %v1152
    %1306 = vst [vmem:[#allocation3 + $0x1e8] sm:$0xff] %v1154
    %1307 = vst [vmem:[#allocation3 + $0x1f0] sm:$0xff] %v1265
    %1308 = vst [vmem:[#allocation3 + $0x1f8] sm:$0xff] %v1267
    %1309 = vst [vmem:[#allocation3 + $0x260] sm:$0xff] %v1158
    %1310 = vst [vmem:[#allocation3 + $0x268] sm:$0xff] %v1160
    %1311 = vst [vmem:[#allocation3 + $0x270] sm:$0xff] %v1271
    %1312 = vst [vmem:[#allocation3 + $0x278] sm:$0xff] %v1273
    %1313 = vst [vmem:[#allocation3 + $0x2e0] sm:$0xff] %v1164
    %1314 = vst [vmem:[#allocation3 + $0x2e8] sm:$0xff] %v1166
    %1315 = vst [vmem:[#allocation3 + $0x2f0] sm:$0xff] %v1277
    %1316 = vst [vmem:[#allocation3 + $0x2f8] sm:$0xff] %v1279
    %1317 = vst [vmem:[#allocation3 + $0x360] sm:$0xff] %v1170
    %1318 = vst [vmem:[#allocation3 + $0x368] sm:$0xff] %v1172
    %1319 = vst [vmem:[#allocation3 + $0x370] sm:$0xff] %v1283
    %1320 = vst [vmem:[#allocation3 + $0x378] sm:$0xff] %v1285
    %1321 = vst [vmem:[#allocation3 + $0x3e0] sm:$0xff] %v1176
    %1322 = vst [vmem:[#allocation3 + $0x3e8] sm:$0xff] %v1178
    %1323 = vst [vmem:[#allocation3 + $0x3f0] sm:$0xff] %v1289
    %1324 = vst [vmem:[#allocation3 + $0x3f8] sm:$0xff] %v1291
    %s1325 = smul.u32 4, 64
    %s1326 = smul.u32 %s1325, 16
    %s1327 = sshll.u32 %s1326, 4
    %1328 = dma.done [#allocation4], %s1327
    %v1329 = vld [vmem:[#allocation2] sm:$0xff]
    %v1330 = vld [vmem:[#allocation2 + $0x8] sm:$0xff]
    %v1331 = vld [vmem:[#allocation2 + $0x10] sm:$0xff]
    %v1332 = vld [vmem:[#allocation2 + $0x18] sm:$0xff]
    %v1333 = vld [vmem:[#allocation2 + $0x80] sm:$0xff]
    %v1334 = vld [vmem:[#allocation2 + $0x88] sm:$0xff]
    %v1335 = vld [vmem:[#allocation2 + $0x90] sm:$0xff]
    %v1336 = vld [vmem:[#allocation2 + $0x98] sm:$0xff]
    %v1337 = vld [vmem:[#allocation2 + $0x100] sm:$0xff]
    %v1338 = vld [vmem:[#allocation2 + $0x108] sm:$0xff]
    %v1339 = vld [vmem:[#allocation2 + $0x110] sm:$0xff]
    %v1340 = vld [vmem:[#allocation2 + $0x118] sm:$0xff]
    %v1341 = vld [vmem:[#allocation2 + $0x180] sm:$0xff]
    %v1342 = vld [vmem:[#allocation2 + $0x188] sm:$0xff]
    %v1343 = vld [vmem:[#allocation2 + $0x190] sm:$0xff]
    %v1344 = vld [vmem:[#allocation2 + $0x198] sm:$0xff]
    %v1345 = vld [vmem:[#allocation2 + $0x200] sm:$0xff]
    %v1346 = vld [vmem:[#allocation2 + $0x208] sm:$0xff]
    %v1347 = vld [vmem:[#allocation2 + $0x210] sm:$0xff]
    %v1348 = vld [vmem:[#allocation2 + $0x218] sm:$0xff]
    %v1349 = vld [vmem:[#allocation2 + $0x280] sm:$0xff]
    %v1350 = vld [vmem:[#allocation2 + $0x288] sm:$0xff]
    %v1351 = vld [vmem:[#allocation2 + $0x290] sm:$0xff]
    %v1352 = vld [vmem:[#allocation2 + $0x298] sm:$0xff]
    %v1353 = vld [vmem:[#allocation2 + $0x300] sm:$0xff]
    %v1354 = vld [vmem:[#allocation2 + $0x308] sm:$0xff]
    %v1355 = vld [vmem:[#allocation2 + $0x310] sm:$0xff]
    %v1356 = vld [vmem:[#allocation2 + $0x318] sm:$0xff]
    %v1357 = vld [vmem:[#allocation2 + $0x380] sm:$0xff]
    %v1358 = vld [vmem:[#allocation2 + $0x388] sm:$0xff]
    %v1359 = vld [vmem:[#allocation2 + $0x390] sm:$0xff]
    %v1360 = vld [vmem:[#allocation2 + $0x398] sm:$0xff]
    %v1361 = vld [vmem:[#allocation2 + $0x400] sm:$0xff]
    %v1362 = vld [vmem:[#allocation2 + $0x408] sm:$0xff]
    %v1363 = vld [vmem:[#allocation2 + $0x410] sm:$0xff]
    %v1364 = vld [vmem:[#allocation2 + $0x418] sm:$0xff]
    %v1365 = vld [vmem:[#allocation2 + $0x480] sm:$0xff]
    %v1366 = vld [vmem:[#allocation2 + $0x488] sm:$0xff]
    %v1367 = vld [vmem:[#allocation2 + $0x490] sm:$0xff]
    %v1368 = vld [vmem:[#allocation2 + $0x498] sm:$0xff]
    %v1369 = vld [vmem:[#allocation2 + $0x500] sm:$0xff]
    %v1370 = vld [vmem:[#allocation2 + $0x508] sm:$0xff]
    %v1371 = vld [vmem:[#allocation2 + $0x510] sm:$0xff]
    %v1372 = vld [vmem:[#allocation2 + $0x518] sm:$0xff]
    %v1373 = vld [vmem:[#allocation2 + $0x580] sm:$0xff]
    %v1374 = vld [vmem:[#allocation2 + $0x588] sm:$0xff]
    %v1375 = vld [vmem:[#allocation2 + $0x590] sm:$0xff]
    %v1376 = vld [vmem:[#allocation2 + $0x598] sm:$0xff]
    %v1377 = vld [vmem:[#allocation2 + $0x600] sm:$0xff]
    %v1378 = vld [vmem:[#allocation2 + $0x608] sm:$0xff]
    %v1379 = vld [vmem:[#allocation2 + $0x610] sm:$0xff]
    %v1380 = vld [vmem:[#allocation2 + $0x618] sm:$0xff]
    %v1381 = vld [vmem:[#allocation2 + $0x680] sm:$0xff]
    %v1382 = vld [vmem:[#allocation2 + $0x688] sm:$0xff]
    %v1383 = vld [vmem:[#allocation2 + $0x690] sm:$0xff]
    %v1384 = vld [vmem:[#allocation2 + $0x698] sm:$0xff]
    %v1385 = vld [vmem:[#allocation2 + $0x700] sm:$0xff]
    %v1386 = vld [vmem:[#allocation2 + $0x708] sm:$0xff]
    %v1387 = vld [vmem:[#allocation2 + $0x710] sm:$0xff]
    %v1388 = vld [vmem:[#allocation2 + $0x718] sm:$0xff]
    %v1389 = vld [vmem:[#allocation2 + $0x780] sm:$0xff]
    %v1390 = vld [vmem:[#allocation2 + $0x788] sm:$0xff]
    %v1391 = vld [vmem:[#allocation2 + $0x790] sm:$0xff]
    %v1392 = vld [vmem:[#allocation2 + $0x798] sm:$0xff]
    %v1393 = vld [vmem:[#allocation2 + $0x800] sm:$0xff]
    %v1394 = vld [vmem:[#allocation2 + $0x808] sm:$0xff]
    %v1395 = vld [vmem:[#allocation2 + $0x810] sm:$0xff]
    %v1396 = vld [vmem:[#allocation2 + $0x818] sm:$0xff]
    %v1397 = vld [vmem:[#allocation2 + $0x880] sm:$0xff]
    %v1398 = vld [vmem:[#allocation2 + $0x888] sm:$0xff]
    %v1399 = vld [vmem:[#allocation2 + $0x890] sm:$0xff]
    %v1400 = vld [vmem:[#allocation2 + $0x898] sm:$0xff]
    %v1401 = vld [vmem:[#allocation2 + $0x900] sm:$0xff]
    %v1402 = vld [vmem:[#allocation2 + $0x908] sm:$0xff]
    %v1403 = vld [vmem:[#allocation2 + $0x910] sm:$0xff]
    %v1404 = vld [vmem:[#allocation2 + $0x918] sm:$0xff]
    %v1405 = vld [vmem:[#allocation2 + $0x980] sm:$0xff]
    %v1406 = vld [vmem:[#allocation2 + $0x988] sm:$0xff]
    %v1407 = vld [vmem:[#allocation2 + $0x990] sm:$0xff]
    %v1408 = vld [vmem:[#allocation2 + $0x998] sm:$0xff]
    %v1409 = vld [vmem:[#allocation2 + $0xa00] sm:$0xff]
    %v1410 = vld [vmem:[#allocation2 + $0xa08] sm:$0xff]
    %v1411 = vld [vmem:[#allocation2 + $0xa10] sm:$0xff]
    %v1412 = vld [vmem:[#allocation2 + $0xa18] sm:$0xff]
    %v1413 = vld [vmem:[#allocation2 + $0xa80] sm:$0xff]
    %v1414 = vld [vmem:[#allocation2 + $0xa88] sm:$0xff]
    %v1415 = vld [vmem:[#allocation2 + $0xa90] sm:$0xff]
    %v1416 = vld [vmem:[#allocation2 + $0xa98] sm:$0xff]
    %v1417 = vld [vmem:[#allocation2 + $0xb00] sm:$0xff]
    %v1418 = vld [vmem:[#allocation2 + $0xb08] sm:$0xff]
    %v1419 = vld [vmem:[#allocation2 + $0xb10] sm:$0xff]
    %v1420 = vld [vmem:[#allocation2 + $0xb18] sm:$0xff]
    %v1421 = vld [vmem:[#allocation2 + $0xb80] sm:$0xff]
    %v1422 = vld [vmem:[#allocation2 + $0xb88] sm:$0xff]
    %v1423 = vld [vmem:[#allocation2 + $0xb90] sm:$0xff]
    %v1424 = vld [vmem:[#allocation2 + $0xb98] sm:$0xff]
    %v1425 = vld [vmem:[#allocation2 + $0xc00] sm:$0xff]
    %v1426 = vld [vmem:[#allocation2 + $0xc08] sm:$0xff]
    %v1427 = vld [vmem:[#allocation2 + $0xc10] sm:$0xff]
    %v1428 = vld [vmem:[#allocation2 + $0xc18] sm:$0xff]
    %v1429 = vld [vmem:[#allocation2 + $0xc80] sm:$0xff]
    %v1430 = vld [vmem:[#allocation2 + $0xc88] sm:$0xff]
    %v1431 = vld [vmem:[#allocation2 + $0xc90] sm:$0xff]
    %v1432 = vld [vmem:[#allocation2 + $0xc98] sm:$0xff]
    %v1433 = vld [vmem:[#allocation2 + $0xd00] sm:$0xff]
    %v1434 = vld [vmem:[#allocation2 + $0xd08] sm:$0xff]
    %v1435 = vld [vmem:[#allocation2 + $0xd10] sm:$0xff]
    %v1436 = vld [vmem:[#allocation2 + $0xd18] sm:$0xff]
    %v1437 = vld [vmem:[#allocation2 + $0xd80] sm:$0xff]
    %v1438 = vld [vmem:[#allocation2 + $0xd88] sm:$0xff]
    %v1439 = vld [vmem:[#allocation2 + $0xd90] sm:$0xff]
    %v1440 = vld [vmem:[#allocation2 + $0xd98] sm:$0xff]
    %v1441 = vld [vmem:[#allocation2 + $0xe00] sm:$0xff]
    %v1442 = vld [vmem:[#allocation2 + $0xe08] sm:$0xff]
    %v1443 = vld [vmem:[#allocation2 + $0xe10] sm:$0xff]
    %v1444 = vld [vmem:[#allocation2 + $0xe18] sm:$0xff]
    %v1445 = vld [vmem:[#allocation2 + $0xe80] sm:$0xff]
    %v1446 = vld [vmem:[#allocation2 + $0xe88] sm:$0xff]
    %v1447 = vld [vmem:[#allocation2 + $0xe90] sm:$0xff]
    %v1448 = vld [vmem:[#allocation2 + $0xe98] sm:$0xff]
    %v1449 = vld [vmem:[#allocation2 + $0xf00] sm:$0xff]
    %v1450 = vld [vmem:[#allocation2 + $0xf08] sm:$0xff]
    %v1451 = vld [vmem:[#allocation2 + $0xf10] sm:$0xff]
    %v1452 = vld [vmem:[#allocation2 + $0xf18] sm:$0xff]
    %v1453 = vld [vmem:[#allocation2 + $0xf80] sm:$0xff]
    %v1454 = vld [vmem:[#allocation2 + $0xf88] sm:$0xff]
    %v1455 = vld [vmem:[#allocation2 + $0xf90] sm:$0xff]
    %v1456 = vld [vmem:[#allocation2 + $0xf98] sm:$0xff]
    %1457 = vmatprep.subr.bf16.mxu0 %v1330
    %1458 = vmatpush1.bf16.msra.mxu0 %v1329
    %1459 = vmatprep.subr.bf16.mxu0 %v1334
    %1460 = vmatpush1.bf16.msra.mxu0 %v1333
    %1461 = vmatprep.subr.bf16.mxu0 %v1338
    %1462 = vmatpush1.bf16.msra.mxu0 %v1337
    %1463 = vmatprep.subr.bf16.mxu0 %v1342
    %1464 = vmatpush1.bf16.msra.mxu0 %v1341
    %1465 = vmatprep.subr.bf16.mxu0 %v1346
    %1466 = vmatpush1.bf16.msra.mxu0 %v1345
    %1467 = vmatprep.subr.bf16.mxu0 %v1350
    %1468 = vmatpush1.bf16.msra.mxu0 %v1349
    %1469 = vmatprep.subr.bf16.mxu0 %v1354
    %1470 = vmatpush1.bf16.msra.mxu0 %v1353
    %1471 = vmatprep.subr.bf16.mxu0 %v1358
    %1472 = vmatpush1.bf16.msra.mxu0 %v1357
    %1473 = vmatprep.subr.bf16.mxu0 %v1362
    %1474 = vmatpush1.bf16.msra.mxu0 %v1361
    %1475 = vmatprep.subr.bf16.mxu0 %v1366
    %1476 = vmatpush1.bf16.msra.mxu0 %v1365
    %1477 = vmatprep.subr.bf16.mxu0 %v1370
    %1478 = vmatpush1.bf16.msra.mxu0 %v1369
    %1479 = vmatprep.subr.bf16.mxu0 %v1374
    %1480 = vmatpush1.bf16.msra.mxu0 %v1373
    %1481 = vmatprep.subr.bf16.mxu0 %v1378
    %1482 = vmatpush1.bf16.msra.mxu0 %v1377
    %1483 = vmatprep.subr.bf16.mxu0 %v1382
    %1484 = vmatpush1.bf16.msra.mxu0 %v1381
    %1485 = vmatprep.subr.bf16.mxu0 %v1386
    %1486 = vmatpush1.bf16.msra.mxu0 %v1385
    %1487 = vmatprep.subr.bf16.mxu0 %v1390
    %1488 = vmatpush1.bf16.msra.mxu0 %v1389
    %1489 = vmatprep.mubr.bf16.mxu0 0
    %1490 = vmatmul.mubr.bf16.gmra.mrb[0].mxu0 0
    %v1491 = vpop.f32.mrb[0].mxu0
    %v1492 = vadd.f32 0.0, %v1491
    %v1493 = vpop.f32.mrb[0].mxu0
    %v1494 = vadd.f32 0.0, %v1493
    %v1495 = vpop.f32.mrb[0].mxu0
    %v1496 = vpop.f32.mrb[0].mxu0
    %1497 = vdwg.mxu0
    %1498 = vmatprep.subr.bf16.mxu0 %v1394
    %1499 = vmatpush1.bf16.msra.mxu0 %v1393
    %1500 = vmatprep.subr.bf16.mxu0 %v1398
    %1501 = vmatpush1.bf16.msra.mxu0 %v1397
    %1502 = vmatprep.subr.bf16.mxu0 %v1402
    %1503 = vmatpush1.bf16.msra.mxu0 %v1401
    %1504 = vmatprep.subr.bf16.mxu0 %v1406
    %1505 = vmatpush1.bf16.msra.mxu0 %v1405
    %1506 = vmatprep.subr.bf16.mxu0 %v1410
    %1507 = vmatpush1.bf16.msra.mxu0 %v1409
    %1508 = vmatprep.subr.bf16.mxu0 %v1414
    %1509 = vmatpush1.bf16.msra.mxu0 %v1413
    %1510 = vmatprep.subr.bf16.mxu0 %v1418
    %1511 = vmatpush1.bf16.msra.mxu0 %v1417
    %1512 = vmatprep.subr.bf16.mxu0 %v1422
    %1513 = vmatpush1.bf16.msra.mxu0 %v1421
    %1514 = vmatprep.subr.bf16.mxu0 %v1426
    %1515 = vmatpush1.bf16.msra.mxu0 %v1425
    %1516 = vmatprep.subr.bf16.mxu0 %v1430
    %1517 = vmatpush1.bf16.msra.mxu0 %v1429
    %1518 = vmatprep.subr.bf16.mxu0 %v1434
    %1519 = vmatpush1.bf16.msra.mxu0 %v1433
    %1520 = vmatprep.subr.bf16.mxu0 %v1438
    %1521 = vmatpush1.bf16.msra.mxu0 %v1437
    %1522 = vmatprep.subr.bf16.mxu0 %v1442
    %1523 = vmatpush1.bf16.msra.mxu0 %v1441
    %1524 = vmatprep.subr.bf16.mxu0 %v1446
    %1525 = vmatpush1.bf16.msra.mxu0 %v1445
    %1526 = vmatprep.subr.bf16.mxu0 %v1450
    %1527 = vmatpush1.bf16.msra.mxu0 %v1449
    %1528 = vmatprep.subr.bf16.mxu0 %v1454
    %1529 = vmatpush1.bf16.msra.mxu0 %v1453
    %1530 = vmatprep.mubr.bf16.mxu0 0
    %1531 = vmatmul.mubr.bf16.gmra.mrb[0].mxu0 0
    %v1532 = vpop.f32.mrb[0].mxu0
    %v1533 = vadd.f32 %v1492, %v1532
    %v1534 = vpop.f32.mrb[0].mxu0
    %v1535 = vadd.f32 %v1494, %v1534
    %v1536 = vpop.f32.mrb[0].mxu0
    %v1537 = vpop.f32.mrb[0].mxu0
    %1538 = vdwg.mxu0
    %1539 = vmatprep.subr.bf16.mxu0 %v1332
    %1540 = vmatpush1.bf16.msra.mxu0 %v1331
    %1541 = vmatprep.subr.bf16.mxu0 %v1336
    %1542 = vmatpush1.bf16.msra.mxu0 %v1335
    %1543 = vmatprep.subr.bf16.mxu0 %v1340
    %1544 = vmatpush1.bf16.msra.mxu0 %v1339
    %1545 = vmatprep.subr.bf16.mxu0 %v1344
    %1546 = vmatpush1.bf16.msra.mxu0 %v1343
    %1547 = vmatprep.subr.bf16.mxu0 %v1348
    %1548 = vmatpush1.bf16.msra.mxu0 %v1347
    %1549 = vmatprep.subr.bf16.mxu0 %v1352
    %1550 = vmatpush1.bf16.msra.mxu0 %v1351
    %1551 = vmatprep.subr.bf16.mxu0 %v1356
    %1552 = vmatpush1.bf16.msra.mxu0 %v1355
    %1553 = vmatprep.subr.bf16.mxu0 %v1360
    %1554 = vmatpush1.bf16.msra.mxu0 %v1359
    %1555 = vmatprep.subr.bf16.mxu0 %v1364
    %1556 = vmatpush1.bf16.msra.mxu0 %v1363
    %1557 = vmatprep.subr.bf16.mxu0 %v1368
    %1558 = vmatpush1.bf16.msra.mxu0 %v1367
    %1559 = vmatprep.subr.bf16.mxu0 %v1372
    %1560 = vmatpush1.bf16.msra.mxu0 %v1371
    %1561 = vmatprep.subr.bf16.mxu0 %v1376
    %1562 = vmatpush1.bf16.msra.mxu0 %v1375
    %1563 = vmatprep.subr.bf16.mxu0 %v1380
    %1564 = vmatpush1.bf16.msra.mxu0 %v1379
    %1565 = vmatprep.subr.bf16.mxu0 %v1384
    %1566 = vmatpush1.bf16.msra.mxu0 %v1383
    %1567 = vmatprep.subr.bf16.mxu0 %v1388
    %1568 = vmatpush1.bf16.msra.mxu0 %v1387
    %1569 = vmatprep.subr.bf16.mxu0 %v1392
    %1570 = vmatpush1.bf16.msra.mxu0 %v1391
    %1571 = vmatprep.mubr.bf16.mxu0 0
    %1572 = vmatmul.mubr.bf16.gmra.mrb[0].mxu0 0
    %v1573 = vpop.f32.mrb[0].mxu0
    %v1574 = vadd.f32 0.0, %v1573
    %v1575 = vpop.f32.mrb[0].mxu0
    %v1576 = vadd.f32 0.0, %v1575
    %v1577 = vpop.f32.mrb[0].mxu0
    %v1578 = vpop.f32.mrb[0].mxu0
    %1579 = vdwg.mxu0
    %1580 = vmatprep.subr.bf16.mxu0 %v1396
    %1581 = vmatpush1.bf16.msra.mxu0 %v1395
    %1582 = vmatprep.subr.bf16.mxu0 %v1400
    %1583 = vmatpush1.bf16.msra.mxu0 %v1399
    %1584 = vmatprep.subr.bf16.mxu0 %v1404
    %1585 = vmatpush1.bf16.msra.mxu0 %v1403
    %1586 = vmatprep.subr.bf16.mxu0 %v1408
    %1587 = vmatpush1.bf16.msra.mxu0 %v1407
    %1588 = vmatprep.subr.bf16.mxu0 %v1412
    %1589 = vmatpush1.bf16.msra.mxu0 %v1411
    %1590 = vmatprep.subr.bf16.mxu0 %v1416
    %1591 = vmatpush1.bf16.msra.mxu0 %v1415
    %1592 = vmatprep.subr.bf16.mxu0 %v1420
    %1593 = vmatpush1.bf16.msra.mxu0 %v1419
    %1594 = vmatprep.subr.bf16.mxu0 %v1424
    %1595 = vmatpush1.bf16.msra.mxu0 %v1423
    %1596 = vmatprep.subr.bf16.mxu0 %v1428
    %1597 = vmatpush1.bf16.msra.mxu0 %v1427
    %1598 = vmatprep.subr.bf16.mxu0 %v1432
    %1599 = vmatpush1.bf16.msra.mxu0 %v1431
    %1600 = vmatprep.subr.bf16.mxu0 %v1436
    %1601 = vmatpush1.bf16.msra.mxu0 %v1435
    %1602 = vmatprep.subr.bf16.mxu0 %v1440
    %1603 = vmatpush1.bf16.msra.mxu0 %v1439
    %1604 = vmatprep.subr.bf16.mxu0 %v1444
    %1605 = vmatpush1.bf16.msra.mxu0 %v1443
    %1606 = vmatprep.subr.bf16.mxu0 %v1448
    %1607 = vmatpush1.bf16.msra.mxu0 %v1447
    %1608 = vmatprep.subr.bf16.mxu0 %v1452
    %1609 = vmatpush1.bf16.msra.mxu0 %v1451
    %1610 = vmatprep.subr.bf16.mxu0 %v1456
    %1611 = vmatpush1.bf16.msra.mxu0 %v1455
    %1612 = vmatprep.mubr.bf16.mxu0 0
    %1613 = vmatmul.mubr.bf16.gmra.mrb[0].mxu0 0
    %v1614 = vpop.f32.mrb[0].mxu0
    %v1615 = vadd.f32 %v1574, %v1614
    %v1616 = vpop.f32.mrb[0].mxu0
    %v1617 = vadd.f32 %v1576, %v1616
    %v1618 = vpop.f32.mrb[0].mxu0
    %v1619 = vpop.f32.mrb[0].mxu0
    %1620 = vdwg.mxu0
    %v1621 = vld [vmem:[#allocation3] sm:$0xff]
    %v1622 = vld [vmem:[#allocation3 + $0x8] sm:$0xff]
    %v1623 = vld [vmem:[#allocation3 + $0x10] sm:$0xff]
    %v1624 = vld [vmem:[#allocation3 + $0x18] sm:$0xff]
    %v1625 = vadd.f32 %v1621, %v1533
    %v1626 = vadd.f32 %v1622, %v1535
    %v1627 = vadd.f32 %v1623, %v1615
    %v1628 = vadd.f32 %v1624, %v1617
    %v1629 = vxor.u32 %v1625, 2147483648
    %v1630 = vxor.u32 %v1626, 2147483648
    %v1631 = vxor.u32 %v1627, 2147483648
    %v1632 = vxor.u32 %v1628, 2147483648
    %v1633 = vmul.f32 %v1629, 1.442695
    %v1634 = vpow.pop %v1633
    %v1635 = vmul.f32 %v1630, 1.442695
    %v1636 = vpow.pop %v1635
    %v1637 = vmul.f32 %v1631, 1.442695
    %v1638 = vpow.pop %v1637
    %v1639 = vmul.f32 %v1632, 1.442695
    %v1640 = vpow.pop %v1639
    %v1641 = vadd.f32 %v1634, 1.0
    %v1642 = vadd.f32 %v1636, 1.0
    %v1643 = vadd.f32 %v1638, 1.0
    %v1644 = vadd.f32 %v1640, 1.0
    %v1645 = vrcp.pop %v1641
    %v1646 = vmul.f32 1.0, %v1645
    %v1647 = vrcp.pop %v1642
    %v1648 = vmul.f32 1.0, %v1647
    %v1649 = vrcp.pop %v1643
    %v1650 = vmul.f32 1.0, %v1649
    %v1651 = vrcp.pop %v1644
    %v1652 = vmul.f32 1.0, %v1651
    %v1653 = vld [vmem:[#allocation2 + $0x20] sm:$0xff]
    %v1654 = vld [vmem:[#allocation2 + $0x28] sm:$0xff]
    %v1655 = vld [vmem:[#allocation2 + $0x30] sm:$0xff]
    %v1656 = vld [vmem:[#allocation2 + $0x38] sm:$0xff]
    %v1657 = vld [vmem:[#allocation2 + $0xa0] sm:$0xff]
    %v1658 = vld [vmem:[#allocation2 + $0xa8] sm:$0xff]
    %v1659 = vld [vmem:[#allocation2 + $0xb0] sm:$0xff]
    %v1660 = vld [vmem:[#allocation2 + $0xb8] sm:$0xff]
    %v1661 = vld [vmem:[#allocation2 + $0x120] sm:$0xff]
    %v1662 = vld [vmem:[#allocation2 + $0x128] sm:$0xff]
    %v1663 = vld [vmem:[#allocation2 + $0x130] sm:$0xff]
    %v1664 = vld [vmem:[#allocation2 + $0x138] sm:$0xff]
    %v1665 = vld [vmem:[#allocation2 + $0x1a0] sm:$0xff]
    %v1666 = vld [vmem:[#allocation2 + $0x1a8] sm:$0xff]
    %v1667 = vld [vmem:[#allocation2 + $0x1b0] sm:$0xff]
    %v1668 = vld [vmem:[#allocation2 + $0x1b8] sm:$0xff]
    %v1669 = vld [vmem:[#allocation2 + $0x220] sm:$0xff]
    %v1670 = vld [vmem:[#allocation2 + $0x228] sm:$0xff]
    %v1671 = vld [vmem:[#allocation2 + $0x230] sm:$0xff]
    %v1672 = vld [vmem:[#allocation2 + $0x238] sm:$0xff]
    %v1673 = vld [vmem:[#allocation2 + $0x2a0] sm:$0xff]
    %v1674 = vld [vmem:[#allocation2 + $0x2a8] sm:$0xff]
    %v1675 = vld [vmem:[#allocation2 + $0x2b0] sm:$0xff]
    %v1676 = vld [vmem:[#allocation2 + $0x2b8] sm:$0xff]
    %v1677 = vld [vmem:[#allocation2 + $0x320] sm:$0xff]
    %v1678 = vld [vmem:[#allocation2 + $0x328] sm:$0xff]
    %v1679 = vld [vmem:[#allocation2 + $0x330] sm:$0xff]
    %v1680 = vld [vmem:[#allocation2 + $0x338] sm:$0xff]
    %v1681 = vld [vmem:[#allocation2 + $0x3a0] sm:$0xff]
    %v1682 = vld [vmem:[#allocation2 + $0x3a8] sm:$0xff]
    %v1683 = vld [vmem:[#allocation2 + $0x3b0] sm:$0xff]
    %v1684 = vld [vmem:[#allocation2 + $0x3b8] sm:$0xff]
    %v1685 = vld [vmem:[#allocation2 + $0x420] sm:$0xff]
    %v1686 = vld [vmem:[#allocation2 + $0x428] sm:$0xff]
    %v1687 = vld [vmem:[#allocation2 + $0x430] sm:$0xff]
    %v1688 = vld [vmem:[#allocation2 + $0x438] sm:$0xff]
    %v1689 = vld [vmem:[#allocation2 + $0x4a0] sm:$0xff]
    %v1690 = vld [vmem:[#allocation2 + $0x4a8] sm:$0xff]
    %v1691 = vld [vmem:[#allocation2 + $0x4b0] sm:$0xff]
    %v1692 = vld [vmem:[#allocation2 + $0x4b8] sm:$0xff]
    %v1693 = vld [vmem:[#allocation2 + $0x520] sm:$0xff]
    %v1694 = vld [vmem:[#allocation2 + $0x528] sm:$0xff]
    %v1695 = vld [vmem:[#allocation2 + $0x530] sm:$0xff]
    %v1696 = vld [vmem:[#allocation2 + $0x538] sm:$0xff]
    %v1697 = vld [vmem:[#allocation2 + $0x5a0] sm:$0xff]
    %v1698 = vld [vmem:[#allocation2 + $0x5a8] sm:$0xff]
    %v1699 = vld [vmem:[#allocation2 + $0x5b0] sm:$0xff]
    %v1700 = vld [vmem:[#allocation2 + $0x5b8] sm:$0xff]
    %v1701 = vld [vmem:[#allocation2 + $0x620] sm:$0xff]
    %v1702 = vld [vmem:[#allocation2 + $0x628] sm:$0xff]
    %v1703 = vld [vmem:[#allocation2 + $0x630] sm:$0xff]
    %v1704 = vld [vmem:[#allocation2 + $0x638] sm:$0xff]
    %v1705 = vld [vmem:[#allocation2 + $0x6a0] sm:$0xff]
    %v1706 = vld [vmem:[#allocation2 + $0x6a8] sm:$0xff]
    %v1707 = vld [vmem:[#allocation2 + $0x6b0] sm:$0xff]
    %v1708 = vld [vmem:[#allocation2 + $0x6b8] sm:$0xff]
    %v1709 = vld [vmem:[#allocation2 + $0x720] sm:$0xff]
    %v1710 = vld [vmem:[#allocation2 + $0x728] sm:$0xff]
    %v1711 = vld [vmem:[#allocation2 + $0x730] sm:$0xff]
    %v1712 = vld [vmem:[#allocation2 + $0x738] sm:$0xff]
    %v1713 = vld [vmem:[#allocation2 + $0x7a0] sm:$0xff]
    %v1714 = vld [vmem:[#allocation2 + $0x7a8] sm:$0xff]
    %v1715 = vld [vmem:[#allocation2 + $0x7b0] sm:$0xff]
    %v1716 = vld [vmem:[#allocation2 + $0x7b8] sm:$0xff]
    %v1717 = vld [vmem:[#allocation2 + $0x820] sm:$0xff]
    %v1718 = vld [vmem:[#allocation2 + $0x828] sm:$0xff]
    %v1719 = vld [vmem:[#allocation2 + $0x830] sm:$0xff]
    %v1720 = vld [vmem:[#allocation2 + $0x838] sm:$0xff]
    %v1721 = vld [vmem:[#allocation2 + $0x8a0] sm:$0xff]
    %v1722 = vld [vmem:[#allocation2 + $0x8a8] sm:$0xff]
    %v1723 = vld [vmem:[#allocation2 + $0x8b0] sm:$0xff]
    %v1724 = vld [vmem:[#allocation2 + $0x8b8] sm:$0xff]
    %v1725 = vld [vmem:[#allocation2 + $0x920] sm:$0xff]
    %v1726 = vld [vmem:[#allocation2 + $0x928] sm:$0xff]
    %v1727 = vld [vmem:[#allocation2 + $0x930] sm:$0xff]
    %v1728 = vld [vmem:[#allocation2 + $0x938] sm:$0xff]
    %v1729 = vld [vmem:[#allocation2 + $0x9a0] sm:$0xff]
    %v1730 = vld [vmem:[#allocation2 + $0x9a8] sm:$0xff]
    %v1731 = vld [vmem:[#allocation2 + $0x9b0] sm:$0xff]
    %v1732 = vld [vmem:[#allocation2 + $0x9b8] sm:$0xff]
    %v1733 = vld [vmem:[#allocation2 + $0xa20] sm:$0xff]
    %v1734 = vld [vmem:[#allocation2 + $0xa28] sm:$0xff]
    %v1735 = vld [vmem:[#allocation2 + $0xa30] sm:$0xff]
    %v1736 = vld [vmem:[#allocation2 + $0xa38] sm:$0xff]
    %v1737 = vld [vmem:[#allocation2 + $0xaa0] sm:$0xff]
    %v1738 = vld [vmem:[#allocation2 + $0xaa8] sm:$0xff]
    %v1739 = vld [vmem:[#allocation2 + $0xab0] sm:$0xff]
    %v1740 = vld [vmem:[#allocation2 + $0xab8] sm:$0xff]
    %v1741 = vld [vmem:[#allocation2 + $0xb20] sm:$0xff]
    %v1742 = vld [vmem:[#allocation2 + $0xb28] sm:$0xff]
    %v1743 = vld [vmem:[#allocation2 + $0xb30] sm:$0xff]
    %v1744 = vld [vmem:[#allocation2 + $0xb38] sm:$0xff]
    %v1745 = vld [vmem:[#allocation2 + $0xba0] sm:$0xff]
    %v1746 = vld [vmem:[#allocation2 + $0xba8] sm:$0xff]
    %v1747 = vld [vmem:[#allocation2 + $0xbb0] sm:$0xff]
    %v1748 = vld [vmem:[#allocation2 + $0xbb8] sm:$0xff]
    %v1749 = vld [vmem:[#allocation2 + $0xc20] sm:$0xff]
    %v1750 = vld [vmem:[#allocation2 + $0xc28] sm:$0xff]
    %v1751 = vld [vmem:[#allocation2 + $0xc30] sm:$0xff]
    %v1752 = vld [vmem:[#allocation2 + $0xc38] sm:$0xff]
    %v1753 = vld [vmem:[#allocation2 + $0xca0] sm:$0xff]
    %v1754 = vld [vmem:[#allocation2 + $0xca8] sm:$0xff]
    %v1755 = vld [vmem:[#allocation2 + $0xcb0] sm:$0xff]
    %v1756 = vld [vmem:[#allocation2 + $0xcb8] sm:$0xff]
    %v1757 = vld [vmem:[#allocation2 + $0xd20] sm:$0xff]
    %v1758 = vld [vmem:[#allocation2 + $0xd28] sm:$0xff]
    %v1759 = vld [vmem:[#allocation2 + $0xd30] sm:$0xff]
    %v1760 = vld [vmem:[#allocation2 + $0xd38] sm:$0xff]
    %v1761 = vld [vmem:[#allocation2 + $0xda0] sm:$0xff]
    %v1762 = vld [vmem:[#allocation2 + $0xda8] sm:$0xff]
    %v1763 = vld [vmem:[#allocation2 + $0xdb0] sm:$0xff]
    %v1764 = vld [vmem:[#allocation2 + $0xdb8] sm:$0xff]
    %v1765 = vld [vmem:[#allocation2 + $0xe20] sm:$0xff]
    %v1766 = vld [vmem:[#allocation2 + $0xe28] sm:$0xff]
    %v1767 = vld [vmem:[#allocation2 + $0xe30] sm:$0xff]
    %v1768 = vld [vmem:[#allocation2 + $0xe38] sm:$0xff]
    %v1769 = vld [vmem:[#allocation2 + $0xea0] sm:$0xff]
    %v1770 = vld [vmem:[#allocation2 + $0xea8] sm:$0xff]
    %v1771 = vld [vmem:[#allocation2 + $0xeb0] sm:$0xff]
    %v1772 = vld [vmem:[#allocation2 + $0xeb8] sm:$0xff]
    %v1773 = vld [vmem:[#allocation2 + $0xf20] sm:$0xff]
    %v1774 = vld [vmem:[#allocation2 + $0xf28] sm:$0xff]
    %v1775 = vld [vmem:[#allocation2 + $0xf30] sm:$0xff]
    %v1776 = vld [vmem:[#allocation2 + $0xf38] sm:$0xff]
    %v1777 = vld [vmem:[#allocation2 + $0xfa0] sm:$0xff]
    %v1778 = vld [vmem:[#allocation2 + $0xfa8] sm:$0xff]
    %v1779 = vld [vmem:[#allocation2 + $0xfb0] sm:$0xff]
    %v1780 = vld [vmem:[#allocation2 + $0xfb8] sm:$0xff]
    %1781 = vmatprep.subr.bf16.mxu0 %v1654
    %1782 = vmatpush1.bf16.msra.mxu0 %v1653
    %1783 = vmatprep.subr.bf16.mxu0 %v1658
    %1784 = vmatpush1.bf16.msra.mxu0 %v1657
    %1785 = vmatprep.subr.bf16.mxu0 %v1662
    %1786 = vmatpush1.bf16.msra.mxu0 %v1661
    %1787 = vmatprep.subr.bf16.mxu0 %v1666
    %1788 = vmatpush1.bf16.msra.mxu0 %v1665
    %1789 = vmatprep.subr.bf16.mxu0 %v1670
    %1790 = vmatpush1.bf16.msra.mxu0 %v1669
    %1791 = vmatprep.subr.bf16.mxu0 %v1674
    %1792 = vmatpush1.bf16.msra.mxu0 %v1673
    %1793 = vmatprep.subr.bf16.mxu0 %v1678
    %1794 = vmatpush1.bf16.msra.mxu0 %v1677
    %1795 = vmatprep.subr.bf16.mxu0 %v1682
    %1796 = vmatpush1.bf16.msra.mxu0 %v1681
    %1797 = vmatprep.subr.bf16.mxu0 %v1686
    %1798 = vmatpush1.bf16.msra.mxu0 %v1685
    %1799 = vmatprep.subr.bf16.mxu0 %v1690
    %1800 = vmatpush1.bf16.msra.mxu0 %v1689
    %1801 = vmatprep.subr.bf16.mxu0 %v1694
    %1802 = vmatpush1.bf16.msra.mxu0 %v1693
    %1803 = vmatprep.subr.bf16.mxu0 %v1698
    %1804 = vmatpush1.bf16.msra.mxu0 %v1697
    %1805 = vmatprep.subr.bf16.mxu0 %v1702
    %1806 = vmatpush1.bf16.msra.mxu0 %v1701
    %1807 = vmatprep.subr.bf16.mxu0 %v1706
    %1808 = vmatpush1.bf16.msra.mxu0 %v1705
    %1809 = vmatprep.subr.bf16.mxu0 %v1710
    %1810 = vmatpush1.bf16.msra.mxu0 %v1709
    %1811 = vmatprep.subr.bf16.mxu0 %v1714
    %1812 = vmatpush1.bf16.msra.mxu0 %v1713
    %1813 = vmatprep.mubr.bf16.mxu0 0
    %1814 = vmatmul.mubr.bf16.gmra.mrb[0].mxu0 0
    %v1815 = vpop.f32.mrb[0].mxu0
    %v1816 = vadd.f32 0.0, %v1815
    %v1817 = vpop.f32.mrb[0].mxu0
    %v1818 = vadd.f32 0.0, %v1817
    %v1819 = vpop.f32.mrb[0].mxu0
    %v1820 = vpop.f32.mrb[0].mxu0
    %1821 = vdwg.mxu0
    %1822 = vmatprep.subr.bf16.mxu0 %v1718
    %1823 = vmatpush1.bf16.msra.mxu0 %v1717
    %1824 = vmatprep.subr.bf16.mxu0 %v1722
    %1825 = vmatpush1.bf16.msra.mxu0 %v1721
    %1826 = vmatprep.subr.bf16.mxu0 %v1726
    %1827 = vmatpush1.bf16.msra.mxu0 %v1725
    %1828 = vmatprep.subr.bf16.mxu0 %v1730
    %1829 = vmatpush1.bf16.msra.mxu0 %v1729
    %1830 = vmatprep.subr.bf16.mxu0 %v1734
    %1831 = vmatpush1.bf16.msra.mxu0 %v1733
    %1832 = vmatprep.subr.bf16.mxu0 %v1738
    %1833 = vmatpush1.bf16.msra.mxu0 %v1737
    %1834 = vmatprep.subr.bf16.mxu0 %v1742
    %1835 = vmatpush1.bf16.msra.mxu0 %v1741
    %1836 = vmatprep.subr.bf16.mxu0 %v1746
    %1837 = vmatpush1.bf16.msra.mxu0 %v1745
    %1838 = vmatprep.subr.bf16.mxu0 %v1750
    %1839 = vmatpush1.bf16.msra.mxu0 %v1749
    %1840 = vmatprep.subr.bf16.mxu0 %v1754
    %1841 = vmatpush1.bf16.msra.mxu0 %v1753
    %1842 = vmatprep.subr.bf16.mxu0 %v1758
    %1843 = vmatpush1.bf16.msra.mxu0 %v1757
    %1844 = vmatprep.subr.bf16.mxu0 %v1762
    %1845 = vmatpush1.bf16.msra.mxu0 %v1761
    %1846 = vmatprep.subr.bf16.mxu0 %v1766
    %1847 = vmatpush1.bf16.msra.mxu0 %v1765
    %1848 = vmatprep.subr.bf16.mxu0 %v1770
    %1849 = vmatpush1.bf16.msra.mxu0 %v1769
    %1850 = vmatprep.subr.bf16.mxu0 %v1774
    %1851 = vmatpush1.bf16.msra.mxu0 %v1773
    %1852 = vmatprep.subr.bf16.mxu0 %v1778
    %1853 = vmatpush1.bf16.msra.mxu0 %v1777
    %1854 = vmatprep.mubr.bf16.mxu0 0
    %1855 = vmatmul.mubr.bf16.gmra.mrb[0].mxu0 0
    %v1856 = vpop.f32.mrb[0].mxu0
    %v1857 = vadd.f32 %v1816, %v1856
    %v1858 = vpop.f32.mrb[0].mxu0
    %v1859 = vadd.f32 %v1818, %v1858
    %v1860 = vpop.f32.mrb[0].mxu0
    %v1861 = vpop.f32.mrb[0].mxu0
    %1862 = vdwg.mxu0
    %1863 = vmatprep.subr.bf16.mxu0 %v1656
    %1864 = vmatpush1.bf16.msra.mxu0 %v1655
    %1865 = vmatprep.subr.bf16.mxu0 %v1660
    %1866 = vmatpush1.bf16.msra.mxu0 %v1659
    %1867 = vmatprep.subr.bf16.mxu0 %v1664
    %1868 = vmatpush1.bf16.msra.mxu0 %v1663
    %1869 = vmatprep.subr.bf16.mxu0 %v1668
    %1870 = vmatpush1.bf16.msra.mxu0 %v1667
    %1871 = vmatprep.subr.bf16.mxu0 %v1672
    %1872 = vmatpush1.bf16.msra.mxu0 %v1671
    %1873 = vmatprep.subr.bf16.mxu0 %v1676
    %1874 = vmatpush1.bf16.msra.mxu0 %v1675
    %1875 = vmatprep.subr.bf16.mxu0 %v1680
    %1876 = vmatpush1.bf16.msra.mxu0 %v1679
    %1877 = vmatprep.subr.bf16.mxu0 %v1684
    %1878 = vmatpush1.bf16.msra.mxu0 %v1683
    %1879 = vmatprep.subr.bf16.mxu0 %v1688
    %1880 = vmatpush1.bf16.msra.mxu0 %v1687
    %1881 = vmatprep.subr.bf16.mxu0 %v1692
    %1882 = vmatpush1.bf16.msra.mxu0 %v1691
    %1883 = vmatprep.subr.bf16.mxu0 %v1696
    %1884 = vmatpush1.bf16.msra.mxu0 %v1695
    %1885 = vmatprep.subr.bf16.mxu0 %v1700
    %1886 = vmatpush1.bf16.msra.mxu0 %v1699
    %1887 = vmatprep.subr.bf16.mxu0 %v1704
    %1888 = vmatpush1.bf16.msra.mxu0 %v1703
    %1889 = vmatprep.subr.bf16.mxu0 %v1708
    %1890 = vmatpush1.bf16.msra.mxu0 %v1707
    %1891 = vmatprep.subr.bf16.mxu0 %v1712
    %1892 = vmatpush1.bf16.msra.mxu0 %v1711
    %1893 = vmatprep.subr.bf16.mxu0 %v1716
    %1894 = vmatpush1.bf16.msra.mxu0 %v1715
    %1895 = vmatprep.mubr.bf16.mxu0 0
    %1896 = vmatmul.mubr.bf16.gmra.mrb[0].mxu0 0
    %v1897 = vpop.f32.mrb[0].mxu0
    %v1898 = vadd.f32 0.0, %v1897
    %v1899 = vpop.f32.mrb[0].mxu0
    %v1900 = vadd.f32 0.0, %v1899
    %v1901 = vpop.f32.mrb[0].mxu0
    %v1902 = vpop.f32.mrb[0].mxu0
    %1903 = vdwg.mxu0
    %1904 = vmatprep.subr.bf16.mxu0 %v1720
    %1905 = vmatpush1.bf16.msra.mxu0 %v1719
    %1906 = vmatprep.subr.bf16.mxu0 %v1724
    %1907 = vmatpush1.bf16.msra.mxu0 %v1723
    %1908 = vmatprep.subr.bf16.mxu0 %v1728
    %1909 = vmatpush1.bf16.msra.mxu0 %v1727
    %1910 = vmatprep.subr.bf16.mxu0 %v1732
    %1911 = vmatpush1.bf16.msra.mxu0 %v1731
    %1912 = vmatprep.subr.bf16.mxu0 %v1736
    %1913 = vmatpush1.bf16.msra.mxu0 %v1735
    %1914 = vmatprep.subr.bf16.mxu0 %v1740
    %1915 = vmatpush1.bf16.msra.mxu0 %v1739
    %1916 = vmatprep.subr.bf16.mxu0 %v1744
    %1917 = vmatpush1.bf16.msra.mxu0 %v1743
    %1918 = vmatprep.subr.bf16.mxu0 %v1748
    %1919 = vmatpush1.bf16.msra.mxu0 %v1747
    %1920 = vmatprep.subr.bf16.mxu0 %v1752
    %1921 = vmatpush1.bf16.msra.mxu0 %v1751
    %1922 = vmatprep.subr.bf16.mxu0 %v1756
    %1923 = vmatpush1.bf16.msra.mxu0 %v1755
    %1924 = vmatprep.subr.bf16.mxu0 %v1760
    %1925 = vmatpush1.bf16.msra.mxu0 %v1759
    %1926 = vmatprep.subr.bf16.mxu0 %v1764
    %1927 = vmatpush1.bf16.msra.mxu0 %v1763
    %1928 = vmatprep.subr.bf16.mxu0 %v1768
    %1929 = vmatpush1.bf16.msra.mxu0 %v1767
    %1930 = vmatprep.subr.bf16.mxu0 %v1772
    %1931 = vmatpush1.bf16.msra.mxu0 %v1771
    %1932 = vmatprep.subr.bf16.mxu0 %v1776
    %1933 = vmatpush1.bf16.msra.mxu0 %v1775
    %1934 = vmatprep.subr.bf16.mxu0 %v1780
    %1935 = vmatpush1.bf16.msra.mxu0 %v1779
    %1936 = vmatprep.mubr.bf16.mxu0 0
    %1937 = vmatmul.mubr.bf16.gmra.mrb[0].mxu0 0
    %v1938 = vpop.f32.mrb[0].mxu0
    %v1939 = vadd.f32 %v1898, %v1938
    %v1940 = vpop.f32.mrb[0].mxu0
    %v1941 = vadd.f32 %v1900, %v1940
    %v1942 = vpop.f32.mrb[0].mxu0
    %v1943 = vpop.f32.mrb[0].mxu0
    %1944 = vdwg.mxu0
    %v1945 = vld [vmem:[#allocation3 + $0x20] sm:$0xff]
    %v1946 = vld [vmem:[#allocation3 + $0x28] sm:$0xff]
    %v1947 = vld [vmem:[#allocation3 + $0x30] sm:$0xff]
    %v1948 = vld [vmem:[#allocation3 + $0x38] sm:$0xff]
    %v1949 = vadd.f32 %v1945, %v1857
    %v1950 = vadd.f32 %v1946, %v1859
    %v1951 = vadd.f32 %v1947, %v1939
    %v1952 = vadd.f32 %v1948, %v1941
    %v1953 = vxor.u32 %v1949, 2147483648
    %v1954 = vxor.u32 %v1950, 2147483648
    %v1955 = vxor.u32 %v1951, 2147483648
    %v1956 = vxor.u32 %v1952, 2147483648
    %v1957 = vmul.f32 %v1953, 1.442695
    %v1958 = vpow.pop %v1957
    %v1959 = vmul.f32 %v1954, 1.442695
    %v1960 = vpow.pop %v1959
    %v1961 = vmul.f32 %v1955, 1.442695
    %v1962 = vpow.pop %v1961
    %v1963 = vmul.f32 %v1956, 1.442695
    %v1964 = vpow.pop %v1963
    %v1965 = vadd.f32 %v1958, 1.0
    %v1966 = vadd.f32 %v1960, 1.0
    %v1967 = vadd.f32 %v1962, 1.0
    %v1968 = vadd.f32 %v1964, 1.0
    %v1969 = vrcp.pop %v1965
    %v1970 = vmul.f32 1.0, %v1969
    %v1971 = vrcp.pop %v1966
    %v1972 = vmul.f32 1.0, %v1971
    %v1973 = vrcp.pop %v1967
    %v1974 = vmul.f32 1.0, %v1973
    %v1975 = vrcp.pop %v1968
    %v1976 = vmul.f32 1.0, %v1975
    %v1977 = vld [vmem:[#allocation2 + $0x40] sm:$0xff]
    %v1978 = vld [vmem:[#allocation2 + $0x48] sm:$0xff]
    %v1979 = vld [vmem:[#allocation2 + $0x50] sm:$0xff]
    %v1980 = vld [vmem:[#allocation2 + $0x58] sm:$0xff]
    %v1981 = vld [vmem:[#allocation2 + $0xc0] sm:$0xff]
    %v1982 = vld [vmem:[#allocation2 + $0xc8] sm:$0xff]
    %v1983 = vld [vmem:[#allocation2 + $0xd0] sm:$0xff]
    %v1984 = vld [vmem:[#allocation2 + $0xd8] sm:$0xff]
    %v1985 = vld [vmem:[#allocation2 + $0x140] sm:$0xff]
    %v1986 = vld [vmem:[#allocation2 + $0x148] sm:$0xff]
    %v1987 = vld [vmem:[#allocation2 + $0x150] sm:$0xff]
    %v1988 = vld [vmem:[#allocation2 + $0x158] sm:$0xff]
    %v1989 = vld [vmem:[#allocation2 + $0x1c0] sm:$0xff]
    %v1990 = vld [vmem:[#allocation2 + $0x1c8] sm:$0xff]
    %v1991 = vld [vmem:[#allocation2 + $0x1d0] sm:$0xff]
    %v1992 = vld [vmem:[#allocation2 + $0x1d8] sm:$0xff]
    %v1993 = vld [vmem:[#allocation2 + $0x240] sm:$0xff]
    %v1994 = vld [vmem:[#allocation2 + $0x248] sm:$0xff]
    %v1995 = vld [vmem:[#allocation2 + $0x250] sm:$0xff]
    %v1996 = vld [vmem:[#allocation2 + $0x258] sm:$0xff]
    %v1997 = vld [vmem:[#allocation2 + $0x2c0] sm:$0xff]
    %v1998 = vld [vmem:[#allocation2 + $0x2c8] sm:$0xff]
    %v1999 = vld [vmem:[#allocation2 + $0x2d0] sm:$0xff]
    %v2000 = vld [vmem:[#allocation2 + $0x2d8] sm:$0xff]
    %v2001 = vld [vmem:[#allocation2 + $0x340] sm:$0xff]
    %v2002 = vld [vmem:[#allocation2 + $0x348] sm:$0xff]
    %v2003 = vld [vmem:[#allocation2 + $0x350] sm:$0xff]
    %v2004 = vld [vmem:[#allocation2 + $0x358] sm:$0xff]
    %v2005 = vld [vmem:[#allocation2 + $0x3c0] sm:$0xff]
    %v2006 = vld [vmem:[#allocation2 + $0x3c8] sm:$0xff]
    %v2007 = vld [vmem:[#allocation2 + $0x3d0] sm:$0xff]
    %v2008 = vld [vmem:[#allocation2 + $0x3d8] sm:$0xff]
    %v2009 = vld [vmem:[#allocation2 + $0x440] sm:$0xff]
    %v2010 = vld [vmem:[#allocation2 + $0x448] sm:$0xff]
    %v2011 = vld [vmem:[#allocation2 + $0x450] sm:$0xff]
    %v2012 = vld [vmem:[#allocation2 + $0x458] sm:$0xff]
    %v2013 = vld [vmem:[#allocation2 + $0x4c0] sm:$0xff]
    %v2014 = vld [vmem:[#allocation2 + $0x4c8] sm:$0xff]
    %v2015 = vld [vmem:[#allocation2 + $0x4d0] sm:$0xff]
    %v2016 = vld [vmem:[#allocation2 + $0x4d8] sm:$0xff]
    %v2017 = vld [vmem:[#allocation2 + $0x540] sm:$0xff]
    %v2018 = vld [vmem:[#allocation2 + $0x548] sm:$0xff]
    %v2019 = vld [vmem:[#allocation2 + $0x550] sm:$0xff]
    %v2020 = vld [vmem:[#allocation2 + $0x558] sm:$0xff]
    %v2021 = vld [vmem:[#allocation2 + $0x5c0] sm:$0xff]
    %v2022 = vld [vmem:[#allocation2 + $0x5c8] sm:$0xff]
    %v2023 = vld [vmem:[#allocation2 + $0x5d0] sm:$0xff]
    %v2024 = vld [vmem:[#allocation2 + $0x5d8] sm:$0xff]
    %v2025 = vld [vmem:[#allocation2 + $0x640] sm:$0xff]
    %v2026 = vld [vmem:[#allocation2 + $0x648] sm:$0xff]
    %v2027 = vld [vmem:[#allocation2 + $0x650] sm:$0xff]
    %v2028 = vld [vmem:[#allocation2 + $0x658] sm:$0xff]
    %v2029 = vld [vmem:[#allocation2 + $0x6c0] sm:$0xff]
    %v2030 = vld [vmem:[#allocation2 + $0x6c8] sm:$0xff]
    %v2031 = vld [vmem:[#allocation2 + $0x6d0] sm:$0xff]
    %v2032 = vld [vmem:[#allocation2 + $0x6d8] sm:$0xff]
    %v2033 = vld [vmem:[#allocation2 + $0x740] sm:$0xff]
    %v2034 = vld [vmem:[#allocation2 + $0x748] sm:$0xff]
    %v2035 = vld [vmem:[#allocation2 + $0x750] sm:$0xff]
    %v2036 = vld [vmem:[#allocation2 + $0x758] sm:$0xff]
    %v2037 = vld [vmem:[#allocation2 + $0x7c0] sm:$0xff]
    %v2038 = vld [vmem:[#allocation2 + $0x7c8] sm:$0xff]
    %v2039 = vld [vmem:[#allocation2 + $0x7d0] sm:$0xff]
    %v2040 = vld [vmem:[#allocation2 + $0x7d8] sm:$0xff]
    %v2041 = vld [vmem:[#allocation2 + $0x840] sm:$0xff]
    %v2042 = vld [vmem:[#allocation2 + $0x848] sm:$0xff]
    %v2043 = vld [vmem:[#allocation2 + $0x850] sm:$0xff]
    %v2044 = vld [vmem:[#allocation2 + $0x858] sm:$0xff]
    %v2045 = vld [vmem:[#allocation2 + $0x8c0] sm:$0xff]
    %v2046 = vld [vmem:[#allocation2 + $0x8c8] sm:$0xff]
    %v2047 = vld [vmem:[#allocation2 + $0x8d0] sm:$0xff]
    %v2048 = vld [vmem:[#allocation2 + $0x8d8] sm:$0xff]
    %v2049 = vld [vmem:[#allocation2 + $0x940] sm:$0xff]
    %v2050 = vld [vmem:[#allocation2 + $0x948] sm:$0xff]
    %v2051 = vld [vmem:[#allocation2 + $0x950] sm:$0xff]
    %v2052 = vld [vmem:[#allocation2 + $0x958] sm:$0xff]
    %v2053 = vld [vmem:[#allocation2 + $0x9c0] sm:$0xff]
    %v2054 = vld [vmem:[#allocation2 + $0x9c8] sm:$0xff]
    %v2055 = vld [vmem:[#allocation2 + $0x9d0] sm:$0xff]
    %v2056 = vld [vmem:[#allocation2 + $0x9d8] sm:$0xff]
    %v2057 = vld [vmem:[#allocation2 + $0xa40] sm:$0xff]
    %v2058 = vld [vmem:[#allocation2 + $0xa48] sm:$0xff]
    %v2059 = vld [vmem:[#allocation2 + $0xa50] sm:$0xff]
    %v2060 = vld [vmem:[#allocation2 + $0xa58] sm:$0xff]
    %v2061 = vld [vmem:[#allocation2 + $0xac0] sm:$0xff]
    %v2062 = vld [vmem:[#allocation2 + $0xac8] sm:$0xff]
    %v2063 = vld [vmem:[#allocation2 + $0xad0] sm:$0xff]
    %v2064 = vld [vmem:[#allocation2 + $0xad8] sm:$0xff]
    %v2065 = vld [vmem:[#allocation2 + $0xb40] sm:$0xff]
    %v2066 = vld [vmem:[#allocation2 + $0xb48] sm:$0xff]
    %v2067 = vld [vmem:[#allocation2 + $0xb50] sm:$0xff]
    %v2068 = vld [vmem:[#allocation2 + $0xb58] sm:$0xff]
    %v2069 = vld [vmem:[#allocation2 + $0xbc0] sm:$0xff]
    %v2070 = vld [vmem:[#allocation2 + $0xbc8] sm:$0xff]
    %v2071 = vld [vmem:[#allocation2 + $0xbd0] sm:$0xff]
    %v2072 = vld [vmem:[#allocation2 + $0xbd8] sm:$0xff]
    %v2073 = vld [vmem:[#allocation2 + $0xc40] sm:$0xff]
    %v2074 = vld [vmem:[#allocation2 + $0xc48] sm:$0xff]
    %v2075 = vld [vmem:[#allocation2 + $0xc50] sm:$0xff]
    %v2076 = vld [vmem:[#allocation2 + $0xc58] sm:$0xff]
    %v2077 = vld [vmem:[#allocation2 + $0xcc0] sm:$0xff]
    %v2078 = vld [vmem:[#allocation2 + $0xcc8] sm:$0xff]
    %v2079 = vld [vmem:[#allocation2 + $0xcd0] sm:$0xff]
    %v2080 = vld [vmem:[#allocation2 + $0xcd8] sm:$0xff]
    %v2081 = vld [vmem:[#allocation2 + $0xd40] sm:$0xff]
    %v2082 = vld [vmem:[#allocation2 + $0xd48] sm:$0xff]
    %v2083 = vld [vmem:[#allocation2 + $0xd50] sm:$0xff]
    %v2084 = vld [vmem:[#allocation2 + $0xd58] sm:$0xff]
    %v2085 = vld [vmem:[#allocation2 + $0xdc0] sm:$0xff]
    %v2086 = vld [vmem:[#allocation2 + $0xdc8] sm:$0xff]
    %v2087 = vld [vmem:[#allocation2 + $0xdd0] sm:$0xff]
    %v2088 = vld [vmem:[#allocation2 + $0xdd8] sm:$0xff]
    %v2089 = vld [vmem:[#allocation2 + $0xe40] sm:$0xff]
    %v2090 = vld [vmem:[#allocation2 + $0xe48] sm:$0xff]
    %v2091 = vld [vmem:[#allocation2 + $0xe50] sm:$0xff]
    %v2092 = vld [vmem:[#allocation2 + $0xe58] sm:$0xff]
    %v2093 = vld [vmem:[#allocation2 + $0xec0] sm:$0xff]
    %v2094 = vld [vmem:[#allocation2 + $0xec8] sm:$0xff]
    %v2095 = vld [vmem:[#allocation2 + $0xed0] sm:$0xff]
    %v2096 = vld [vmem:[#allocation2 + $0xed8] sm:$0xff]
    %v2097 = vld [vmem:[#allocation2 + $0xf40] sm:$0xff]
    %v2098 = vld [vmem:[#allocation2 + $0xf48] sm:$0xff]
    %v2099 = vld [vmem:[#allocation2 + $0xf50] sm:$0xff]
    %v2100 = vld [vmem:[#allocation2 + $0xf58] sm:$0xff]
    %v2101 = vld [vmem:[#allocation2 + $0xfc0] sm:$0xff]
    %v2102 = vld [vmem:[#allocation2 + $0xfc8] sm:$0xff]
    %v2103 = vld [vmem:[#allocation2 + $0xfd0] sm:$0xff]
    %v2104 = vld [vmem:[#allocation2 + $0xfd8] sm:$0xff]
    %2105 = vmatprep.subr.bf16.mxu0 %v1978
    %2106 = vmatpush1.bf16.msra.mxu0 %v1977
    %2107 = vmatprep.subr.bf16.mxu0 %v1982
    %2108 = vmatpush1.bf16.msra.mxu0 %v1981
    %2109 = vmatprep.subr.bf16.mxu0 %v1986
    %2110 = vmatpush1.bf16.msra.mxu0 %v1985
    %2111 = vmatprep.subr.bf16.mxu0 %v1990
    %2112 = vmatpush1.bf16.msra.mxu0 %v1989
    %2113 = vmatprep.subr.bf16.mxu0 %v1994
    %2114 = vmatpush1.bf16.msra.mxu0 %v1993
    %2115 = vmatprep.subr.bf16.mxu0 %v1998
    %2116 = vmatpush1.bf16.msra.mxu0 %v1997
    %2117 = vmatprep.subr.bf16.mxu0 %v2002
    %2118 = vmatpush1.bf16.msra.mxu0 %v2001
    %2119 = vmatprep.subr.bf16.mxu0 %v2006
    %2120 = vmatpush1.bf16.msra.mxu0 %v2005
    %2121 = vmatprep.subr.bf16.mxu0 %v2010
    %2122 = vmatpush1.bf16.msra.mxu0 %v2009
    %2123 = vmatprep.subr.bf16.mxu0 %v2014
    %2124 = vmatpush1.bf16.msra.mxu0 %v2013
    %2125 = vmatprep.subr.bf16.mxu0 %v2018
    %2126 = vmatpush1.bf16.msra.mxu0 %v2017
    %2127 = vmatprep.subr.bf16.mxu0 %v2022
    %2128 = vmatpush1.bf16.msra.mxu0 %v2021
    %2129 = vmatprep.subr.bf16.mxu0 %v2026
    %2130 = vmatpush1.bf16.msra.mxu0 %v2025
    %2131 = vmatprep.subr.bf16.mxu0 %v2030
    %2132 = vmatpush1.bf16.msra.mxu0 %v2029
    %2133 = vmatprep.subr.bf16.mxu0 %v2034
    %2134 = vmatpush1.bf16.msra.mxu0 %v2033
    %2135 = vmatprep.subr.bf16.mxu0 %v2038
    %2136 = vmatpush1.bf16.msra.mxu0 %v2037
    %2137 = vmatprep.mubr.bf16.mxu0 0
    %2138 = vmatmul.mubr.bf16.gmra.mrb[0].mxu0 0
    %v2139 = vpop.f32.mrb[0].mxu0
    %v2140 = vadd.f32 0.0, %v2139
    %v2141 = vpop.f32.mrb[0].mxu0
    %v2142 = vadd.f32 0.0, %v2141
    %v2143 = vpop.f32.mrb[0].mxu0
    %v2144 = vpop.f32.mrb[0].mxu0
    %2145 = vdwg.mxu0
    %2146 = vmatprep.subr.bf16.mxu0 %v2042
    %2147 = vmatpush1.bf16.msra.mxu0 %v2041
    %2148 = vmatprep.subr.bf16.mxu0 %v2046
    %2149 = vmatpush1.bf16.msra.mxu0 %v2045
    %2150 = vmatprep.subr.bf16.mxu0 %v2050
    %2151 = vmatpush1.bf16.msra.mxu0 %v2049
    %2152 = vmatprep.subr.bf16.mxu0 %v2054
    %2153 = vmatpush1.bf16.msra.mxu0 %v2053
    %2154 = vmatprep.subr.bf16.mxu0 %v2058
    %2155 = vmatpush1.bf16.msra.mxu0 %v2057
    %2156 = vmatprep.subr.bf16.mxu0 %v2062
    %2157 = vmatpush1.bf16.msra.mxu0 %v2061
    %2158 = vmatprep.subr.bf16.mxu0 %v2066
    %2159 = vmatpush1.bf16.msra.mxu0 %v2065
    %2160 = vmatprep.subr.bf16.mxu0 %v2070
    %2161 = vmatpush1.bf16.msra.mxu0 %v2069
    %2162 = vmatprep.subr.bf16.mxu0 %v2074
    %2163 = vmatpush1.bf16.msra.mxu0 %v2073
    %2164 = vmatprep.subr.bf16.mxu0 %v2078
    %2165 = vmatpush1.bf16.msra.mxu0 %v2077
    %2166 = vmatprep.subr.bf16.mxu0 %v2082
    %2167 = vmatpush1.bf16.msra.mxu0 %v2081
    %2168 = vmatprep.subr.bf16.mxu0 %v2086
    %2169 = vmatpush1.bf16.msra.mxu0 %v2085
    %2170 = vmatprep.subr.bf16.mxu0 %v2090
    %2171 = vmatpush1.bf16.msra.mxu0 %v2089
    %2172 = vmatprep.subr.bf16.mxu0 %v2094
    %2173 = vmatpush1.bf16.msra.mxu0 %v2093
    %2174 = vmatprep.subr.bf16.mxu0 %v2098
    %2175 = vmatpush1.bf16.msra.mxu0 %v2097
    %2176 = vmatprep.subr.bf16.mxu0 %v2102
    %2177 = vmatpush1.bf16.msra.mxu0 %v2101
    %2178 = vmatprep.mubr.bf16.mxu0 0
    %2179 = vmatmul.mubr.bf16.gmra.mrb[0].mxu0 0
    %v2180 = vpop.f32.mrb[0].mxu0
    %v2181 = vadd.f32 %v2140, %v2180
    %v2182 = vpop.f32.mrb[0].mxu0
    %v2183 = vadd.f32 %v2142, %v2182
    %v2184 = vpop.f32.mrb[0].mxu0
    %v2185 = vpop.f32.mrb[0].mxu0
    %2186 = vdwg.mxu0
    %2187 = vmatprep.subr.bf16.mxu0 %v1980
    %2188 = vmatpush1.bf16.msra.mxu0 %v1979
    %2189 = vmatprep.subr.bf16.mxu0 %v1984
    %2190 = vmatpush1.bf16.msra.mxu0 %v1983
    %2191 = vmatprep.subr.bf16.mxu0 %v1988
    %2192 = vmatpush1.bf16.msra.mxu0 %v1987
    %2193 = vmatprep.subr.bf16.mxu0 %v1992
    %2194 = vmatpush1.bf16.msra.mxu0 %v1991
    %2195 = vmatprep.subr.bf16.mxu0 %v1996
    %2196 = vmatpush1.bf16.msra.mxu0 %v1995
    %2197 = vmatprep.subr.bf16.mxu0 %v2000
    %2198 = vmatpush1.bf16.msra.mxu0 %v1999
    %2199 = vmatprep.subr.bf16.mxu0 %v2004
    %2200 = vmatpush1.bf16.msra.mxu0 %v2003
    %2201 = vmatprep.subr.bf16.mxu0 %v2008
    %2202 = vmatpush1.bf16.msra.mxu0 %v2007
    %2203 = vmatprep.subr.bf16.mxu0 %v2012
    %2204 = vmatpush1.bf16.msra.mxu0 %v2011
    %2205 = vmatprep.subr.bf16.mxu0 %v2016
    %2206 = vmatpush1.bf16.msra.mxu0 %v2015
    %2207 = vmatprep.subr.bf16.mxu0 %v2020
    %2208 = vmatpush1.bf16.msra.mxu0 %v2019
    %2209 = vmatprep.subr.bf16.mxu0 %v2024
    %2210 = vmatpush1.bf16.msra.mxu0 %v2023
    %2211 = vmatprep.subr.bf16.mxu0 %v2028
    %2212 = vmatpush1.bf16.msra.mxu0 %v2027
    %2213 = vmatprep.subr.bf16.mxu0 %v2032
    %2214 = vmatpush1.bf16.msra.mxu0 %v2031
    %2215 = vmatprep.subr.bf16.mxu0 %v2036
    %2216 = vmatpush1.bf16.msra.mxu0 %v2035
    %2217 = vmatprep.subr.bf16.mxu0 %v2040
    %2218 = vmatpush1.bf16.msra.mxu0 %v2039
    %2219 = vmatprep.mubr.bf16.mxu0 0
    %2220 = vmatmul.mubr.bf16.gmra.mrb[0].mxu0 0
    %v2221 = vpop.f32.mrb[0].mxu0
    %v2222 = vadd.f32 0.0, %v2221
    %v2223 = vpop.f32.mrb[0].mxu0
    %v2224 = vadd.f32 0.0, %v2223
    %v2225 = vpop.f32.mrb[0].mxu0
    %v2226 = vpop.f32.mrb[0].mxu0
    %2227 = vdwg.mxu0
    %2228 = vmatprep.subr.bf16.mxu0 %v2044
    %2229 = vmatpush1.bf16.msra.mxu0 %v2043
    %2230 = vmatprep.subr.bf16.mxu0 %v2048
    %2231 = vmatpush1.bf16.msra.mxu0 %v2047
    %2232 = vmatprep.subr.bf16.mxu0 %v2052
    %2233 = vmatpush1.bf16.msra.mxu0 %v2051
    %2234 = vmatprep.subr.bf16.mxu0 %v2056
    %2235 = vmatpush1.bf16.msra.mxu0 %v2055
    %2236 = vmatprep.subr.bf16.mxu0 %v2060
    %2237 = vmatpush1.bf16.msra.mxu0 %v2059
    %2238 = vmatprep.subr.bf16.mxu0 %v2064
    %2239 = vmatpush1.bf16.msra.mxu0 %v2063
    %2240 = vmatprep.subr.bf16.mxu0 %v2068
    %2241 = vmatpush1.bf16.msra.mxu0 %v2067
    %2242 = vmatprep.subr.bf16.mxu0 %v2072
    %2243 = vmatpush1.bf16.msra.mxu0 %v2071
    %2244 = vmatprep.subr.bf16.mxu0 %v2076
    %2245 = vmatpush1.bf16.msra.mxu0 %v2075
    %2246 = vmatprep.subr.bf16.mxu0 %v2080
    %2247 = vmatpush1.bf16.msra.mxu0 %v2079
    %2248 = vmatprep.subr.bf16.mxu0 %v2084
    %2249 = vmatpush1.bf16.msra.mxu0 %v2083
    %2250 = vmatprep.subr.bf16.mxu0 %v2088
    %2251 = vmatpush1.bf16.msra.mxu0 %v2087
    %2252 = vmatprep.subr.bf16.mxu0 %v2092
    %2253 = vmatpush1.bf16.msra.mxu0 %v2091
    %2254 = vmatprep.subr.bf16.mxu0 %v2096
    %2255 = vmatpush1.bf16.msra.mxu0 %v2095
    %2256 = vmatprep.subr.bf16.mxu0 %v2100
    %2257 = vmatpush1.bf16.msra.mxu0 %v2099
    %2258 = vmatprep.subr.bf16.mxu0 %v2104
    %2259 = vmatpush1.bf16.msra.mxu0 %v2103
    %2260 = vmatprep.mubr.bf16.mxu0 0
    %2261 = vmatmul.mubr.bf16.gmra.mrb[0].mxu0 0
    %v2262 = vpop.f32.mrb[0].mxu0
    %v2263 = vadd.f32 %v2222, %v2262
    %v2264 = vpop.f32.mrb[0].mxu0
    %v2265 = vadd.f32 %v2224, %v2264
    %v2266 = vpop.f32.mrb[0].mxu0
    %v2267 = vpop.f32.mrb[0].mxu0
    %2268 = vdwg.mxu0
    %v2269 = vld [vmem:[#allocation3 + $0x40] sm:$0xff]
    %v2270 = vld [vmem:[#allocation3 + $0x48] sm:$0xff]
    %v2271 = vld [vmem:[#allocation3 + $0x50] sm:$0xff]
    %v2272 = vld [vmem:[#allocation3 + $0x58] sm:$0xff]
    %v2273 = vadd.f32 %v2269, %v2181
    %v2274 = vadd.f32 %v2270, %v2183
    %v2275 = vadd.f32 %v2271, %v2263
    %v2276 = vadd.f32 %v2272, %v2265
    %v2277 = vtanh.pop %v2273
    %v2278 = vtanh.pop %v2274
    %v2279 = vtanh.pop %v2275
    %v2280 = vtanh.pop %v2276
    %v2281 = vld [vmem:[#allocation2 + $0x60] sm:$0xff]
    %v2282 = vld [vmem:[#allocation2 + $0x68] sm:$0xff]
    %v2283 = vld [vmem:[#allocation2 + $0x70] sm:$0xff]
    %v2284 = vld [vmem:[#allocation2 + $0x78] sm:$0xff]
    %v2285 = vld [vmem:[#allocation2 + $0xe0] sm:$0xff]
    %v2286 = vld [vmem:[#allocation2 + $0xe8] sm:$0xff]
    %v2287 = vld [vmem:[#allocation2 + $0xf0] sm:$0xff]
    %v2288 = vld [vmem:[#allocation2 + $0xf8] sm:$0xff]
    %v2289 = vld [vmem:[#allocation2 + $0x160] sm:$0xff]
    %v2290 = vld [vmem:[#allocation2 + $0x168] sm:$0xff]
    %v2291 = vld [vmem:[#allocation2 + $0x170] sm:$0xff]
    %v2292 = vld [vmem:[#allocation2 + $0x178] sm:$0xff]
    %v2293 = vld [vmem:[#allocation2 + $0x1e0] sm:$0xff]
    %v2294 = vld [vmem:[#allocation2 + $0x1e8] sm:$0xff]
    %v2295 = vld [vmem:[#allocation2 + $0x1f0] sm:$0xff]
    %v2296 = vld [vmem:[#allocation2 + $0x1f8] sm:$0xff]
    %v2297 = vld [vmem:[#allocation2 + $0x260] sm:$0xff]
    %v2298 = vld [vmem:[#allocation2 + $0x268] sm:$0xff]
    %v2299 = vld [vmem:[#allocation2 + $0x270] sm:$0xff]
    %v2300 = vld [vmem:[#allocation2 + $0x278] sm:$0xff]
    %v2301 = vld [vmem:[#allocation2 + $0x2e0] sm:$0xff]
    %v2302 = vld [vmem:[#allocation2 + $0x2e8] sm:$0xff]
    %v2303 = vld [vmem:[#allocation2 + $0x2f0] sm:$0xff]
    %v2304 = vld [vmem:[#allocation2 + $0x2f8] sm:$0xff]
    %v2305 = vld [vmem:[#allocation2 + $0x360] sm:$0xff]
    %v2306 = vld [vmem:[#allocation2 + $0x368] sm:$0xff]
    %v2307 = vld [vmem:[#allocation2 + $0x370] sm:$0xff]
    %v2308 = vld [vmem:[#allocation2 + $0x378] sm:$0xff]
    %v2309 = vld [vmem:[#allocation2 + $0x3e0] sm:$0xff]
    %v2310 = vld [vmem:[#allocation2 + $0x3e8] sm:$0xff]
    %v2311 = vld [vmem:[#allocation2 + $0x3f0] sm:$0xff]
    %v2312 = vld [vmem:[#allocation2 + $0x3f8] sm:$0xff]
    %v2313 = vld [vmem:[#allocation2 + $0x460] sm:$0xff]
    %v2314 = vld [vmem:[#allocation2 + $0x468] sm:$0xff]
    %v2315 = vld [vmem:[#allocation2 + $0x470] sm:$0xff]
    %v2316 = vld [vmem:[#allocation2 + $0x478] sm:$0xff]
    %v2317 = vld [vmem:[#allocation2 + $0x4e0] sm:$0xff]
    %v2318 = vld [vmem:[#allocation2 + $0x4e8] sm:$0xff]
    %v2319 = vld [vmem:[#allocation2 + $0x4f0] sm:$0xff]
    %v2320 = vld [vmem:[#allocation2 + $0x4f8] sm:$0xff]
    %v2321 = vld [vmem:[#allocation2 + $0x560] sm:$0xff]
    %v2322 = vld [vmem:[#allocation2 + $0x568] sm:$0xff]
    %v2323 = vld [vmem:[#allocation2 + $0x570] sm:$0xff]
    %v2324 = vld [vmem:[#allocation2 + $0x578] sm:$0xff]
    %v2325 = vld [vmem:[#allocation2 + $0x5e0] sm:$0xff]
    %v2326 = vld [vmem:[#allocation2 + $0x5e8] sm:$0xff]
    %v2327 = vld [vmem:[#allocation2 + $0x5f0] sm:$0xff]
    %v2328 = vld [vmem:[#allocation2 + $0x5f8] sm:$0xff]
    %v2329 = vld [vmem:[#allocation2 + $0x660] sm:$0xff]
    %v2330 = vld [vmem:[#allocation2 + $0x668] sm:$0xff]
    %v2331 = vld [vmem:[#allocation2 + $0x670] sm:$0xff]
    %v2332 = vld [vmem:[#allocation2 + $0x678] sm:$0xff]
    %v2333 = vld [vmem:[#allocation2 + $0x6e0] sm:$0xff]
    %v2334 = vld [vmem:[#allocation2 + $0x6e8] sm:$0xff]
    %v2335 = vld [vmem:[#allocation2 + $0x6f0] sm:$0xff]
    %v2336 = vld [vmem:[#allocation2 + $0x6f8] sm:$0xff]
    %v2337 = vld [vmem:[#allocation2 + $0x760] sm:$0xff]
    %v2338 = vld [vmem:[#allocation2 + $0x768] sm:$0xff]
    %v2339 = vld [vmem:[#allocation2 + $0x770] sm:$0xff]
    %v2340 = vld [vmem:[#allocation2 + $0x778] sm:$0xff]
    %v2341 = vld [vmem:[#allocation2 + $0x7e0] sm:$0xff]
    %v2342 = vld [vmem:[#allocation2 + $0x7e8] sm:$0xff]
    %v2343 = vld [vmem:[#allocation2 + $0x7f0] sm:$0xff]
    %v2344 = vld [vmem:[#allocation2 + $0x7f8] sm:$0xff]
    %v2345 = vld [vmem:[#allocation2 + $0x860] sm:$0xff]
    %v2346 = vld [vmem:[#allocation2 + $0x868] sm:$0xff]
    %v2347 = vld [vmem:[#allocation2 + $0x870] sm:$0xff]
    %v2348 = vld [vmem:[#allocation2 + $0x878] sm:$0xff]
    %v2349 = vld [vmem:[#allocation2 + $0x8e0] sm:$0xff]
    %v2350 = vld [vmem:[#allocation2 + $0x8e8] sm:$0xff]
    %v2351 = vld [vmem:[#allocation2 + $0x8f0] sm:$0xff]
    %v2352 = vld [vmem:[#allocation2 + $0x8f8] sm:$0xff]
    %v2353 = vld [vmem:[#allocation2 + $0x960] sm:$0xff]
    %v2354 = vld [vmem:[#allocation2 + $0x968] sm:$0xff]
    %v2355 = vld [vmem:[#allocation2 + $0x970] sm:$0xff]
    %v2356 = vld [vmem:[#allocation2 + $0x978] sm:$0xff]
    %v2357 = vld [vmem:[#allocation2 + $0x9e0] sm:$0xff]
    %v2358 = vld [vmem:[#allocation2 + $0x9e8] sm:$0xff]
    %v2359 = vld [vmem:[#allocation2 + $0x9f0] sm:$0xff]
    %v2360 = vld [vmem:[#allocation2 + $0x9f8] sm:$0xff]
    %v2361 = vld [vmem:[#allocation2 + $0xa60] sm:$0xff]
    %v2362 = vld [vmem:[#allocation2 + $0xa68] sm:$0xff]
    %v2363 = vld [vmem:[#allocation2 + $0xa70] sm:$0xff]
    %v2364 = vld [vmem:[#allocation2 + $0xa78] sm:$0xff]
    %v2365 = vld [vmem:[#allocation2 + $0xae0] sm:$0xff]
    %v2366 = vld [vmem:[#allocation2 + $0xae8] sm:$0xff]
    %v2367 = vld [vmem:[#allocation2 + $0xaf0] sm:$0xff]
    %v2368 = vld [vmem:[#allocation2 + $0xaf8] sm:$0xff]
    %v2369 = vld [vmem:[#allocation2 + $0xb60] sm:$0xff]
    %v2370 = vld [vmem:[#allocation2 + $0xb68] sm:$0xff]
    %v2371 = vld [vmem:[#allocation2 + $0xb70] sm:$0xff]
    %v2372 = vld [vmem:[#allocation2 + $0xb78] sm:$0xff]
    %v2373 = vld [vmem:[#allocation2 + $0xbe0] sm:$0xff]
    %v2374 = vld [vmem:[#allocation2 + $0xbe8] sm:$0xff]
    %v2375 = vld [vmem:[#allocation2 + $0xbf0] sm:$0xff]
    %v2376 = vld [vmem:[#allocation2 + $0xbf8] sm:$0xff]
    %v2377 = vld [vmem:[#allocation2 + $0xc60] sm:$0xff]
    %v2378 = vld [vmem:[#allocation2 + $0xc68] sm:$0xff]
    %v2379 = vld [vmem:[#allocation2 + $0xc70] sm:$0xff]
    %v2380 = vld [vmem:[#allocation2 + $0xc78] sm:$0xff]
    %v2381 = vld [vmem:[#allocation2 + $0xce0] sm:$0xff]
    %v2382 = vld [vmem:[#allocation2 + $0xce8] sm:$0xff]
    %v2383 = vld [vmem:[#allocation2 + $0xcf0] sm:$0xff]
    %v2384 = vld [vmem:[#allocation2 + $0xcf8] sm:$0xff]
    %v2385 = vld [vmem:[#allocation2 + $0xd60] sm:$0xff]
    %v2386 = vld [vmem:[#allocation2 + $0xd68] sm:$0xff]
    %v2387 = vld [vmem:[#allocation2 + $0xd70] sm:$0xff]
    %v2388 = vld [vmem:[#allocation2 + $0xd78] sm:$0xff]
    %v2389 = vld [vmem:[#allocation2 + $0xde0] sm:$0xff]
    %v2390 = vld [vmem:[#allocation2 + $0xde8] sm:$0xff]
    %v2391 = vld [vmem:[#allocation2 + $0xdf0] sm:$0xff]
    %v2392 = vld [vmem:[#allocation2 + $0xdf8] sm:$0xff]
    %v2393 = vld [vmem:[#allocation2 + $0xe60] sm:$0xff]
    %v2394 = vld [vmem:[#allocation2 + $0xe68] sm:$0xff]
    %v2395 = vld [vmem:[#allocation2 + $0xe70] sm:$0xff]
    %v2396 = vld [vmem:[#allocation2 + $0xe78] sm:$0xff]
    %v2397 = vld [vmem:[#allocation2 + $0xee0] sm:$0xff]
    %v2398 = vld [vmem:[#allocation2 + $0xee8] sm:$0xff]
    %v2399 = vld [vmem:[#allocation2 + $0xef0] sm:$0xff]
    %v2400 = vld [vmem:[#allocation2 + $0xef8] sm:$0xff]
    %v2401 = vld [vmem:[#allocation2 + $0xf60] sm:$0xff]
    %v2402 = vld [vmem:[#allocation2 + $0xf68] sm:$0xff]
    %v2403 = vld [vmem:[#allocation2 + $0xf70] sm:$0xff]
    %v2404 = vld [vmem:[#allocation2 + $0xf78] sm:$0xff]
    %v2405 = vld [vmem:[#allocation2 + $0xfe0] sm:$0xff]
    %v2406 = vld [vmem:[#allocation2 + $0xfe8] sm:$0xff]
    %v2407 = vld [vmem:[#allocation2 + $0xff0] sm:$0xff]
    %v2408 = vld [vmem:[#allocation2 + $0xff8] sm:$0xff]
    %2409 = vmatprep.subr.bf16.mxu0 %v2282
    %2410 = vmatpush1.bf16.msra.mxu0 %v2281
    %2411 = vmatprep.subr.bf16.mxu0 %v2286
    %2412 = vmatpush1.bf16.msra.mxu0 %v2285
    %2413 = vmatprep.subr.bf16.mxu0 %v2290
    %2414 = vmatpush1.bf16.msra.mxu0 %v2289
    %2415 = vmatprep.subr.bf16.mxu0 %v2294
    %2416 = vmatpush1.bf16.msra.mxu0 %v2293
    %2417 = vmatprep.subr.bf16.mxu0 %v2298
    %2418 = vmatpush1.bf16.msra.mxu0 %v2297
    %2419 = vmatprep.subr.bf16.mxu0 %v2302
    %2420 = vmatpush1.bf16.msra.mxu0 %v2301
    %2421 = vmatprep.subr.bf16.mxu0 %v2306
    %2422 = vmatpush1.bf16.msra.mxu0 %v2305
    %2423 = vmatprep.subr.bf16.mxu0 %v2310
    %2424 = vmatpush1.bf16.msra.mxu0 %v2309
    %2425 = vmatprep.subr.bf16.mxu0 %v2314
    %2426 = vmatpush1.bf16.msra.mxu0 %v2313
    %2427 = vmatprep.subr.bf16.mxu0 %v2318
    %2428 = vmatpush1.bf16.msra.mxu0 %v2317
    %2429 = vmatprep.subr.bf16.mxu0 %v2322
    %2430 = vmatpush1.bf16.msra.mxu0 %v2321
    %2431 = vmatprep.subr.bf16.mxu0 %v2326
    %2432 = vmatpush1.bf16.msra.mxu0 %v2325
    %2433 = vmatprep.subr.bf16.mxu0 %v2330
    %2434 = vmatpush1.bf16.msra.mxu0 %v2329
    %2435 = vmatprep.subr.bf16.mxu0 %v2334
    %2436 = vmatpush1.bf16.msra.mxu0 %v2333
    %2437 = vmatprep.subr.bf16.mxu0 %v2338
    %2438 = vmatpush1.bf16.msra.mxu0 %v2337
    %2439 = vmatprep.subr.bf16.mxu0 %v2342
    %2440 = vmatpush1.bf16.msra.mxu0 %v2341
    %2441 = vmatprep.mubr.bf16.mxu0 0
    %2442 = vmatmul.mubr.bf16.gmra.mrb[0].mxu0 0
    %v2443 = vpop.f32.mrb[0].mxu0
    %v2444 = vadd.f32 0.0, %v2443
    %v2445 = vpop.f32.mrb[0].mxu0
    %v2446 = vadd.f32 0.0, %v2445
    %v2447 = vpop.f32.mrb[0].mxu0
    %v2448 = vpop.f32.mrb[0].mxu0
    %2449 = vdwg.mxu0
    %2450 = vmatprep.subr.bf16.mxu0 %v2346
    %2451 = vmatpush1.bf16.msra.mxu0 %v2345
    %2452 = vmatprep.subr.bf16.mxu0 %v2350
    %2453 = vmatpush1.bf16.msra.mxu0 %v2349
    %2454 = vmatprep.subr.bf16.mxu0 %v2354
    %2455 = vmatpush1.bf16.msra.mxu0 %v2353
    %2456 = vmatprep.subr.bf16.mxu0 %v2358
    %2457 = vmatpush1.bf16.msra.mxu0 %v2357
    %2458 = vmatprep.subr.bf16.mxu0 %v2362
    %2459 = vmatpush1.bf16.msra.mxu0 %v2361
    %2460 = vmatprep.subr.bf16.mxu0 %v2366
    %2461 = vmatpush1.bf16.msra.mxu0 %v2365
    %2462 = vmatprep.subr.bf16.mxu0 %v2370
    %2463 = vmatpush1.bf16.msra.mxu0 %v2369
    %2464 = vmatprep.subr.bf16.mxu0 %v2374
    %2465 = vmatpush1.bf16.msra.mxu0 %v2373
    %2466 = vmatprep.subr.bf16.mxu0 %v2378
    %2467 = vmatpush1.bf16.msra.mxu0 %v2377
    %2468 = vmatprep.subr.bf16.mxu0 %v2382
    %2469 = vmatpush1.bf16.msra.mxu0 %v2381
    %2470 = vmatprep.subr.bf16.mxu0 %v2386
    %2471 = vmatpush1.bf16.msra.mxu0 %v2385
    %2472 = vmatprep.subr.bf16.mxu0 %v2390
    %2473 = vmatpush1.bf16.msra.mxu0 %v2389
    %2474 = vmatprep.subr.bf16.mxu0 %v2394
    %2475 = vmatpush1.bf16.msra.mxu0 %v2393
    %2476 = vmatprep.subr.bf16.mxu0 %v2398
    %2477 = vmatpush1.bf16.msra.mxu0 %v2397
    %2478 = vmatprep.subr.bf16.mxu0 %v2402
    %2479 = vmatpush1.bf16.msra.mxu0 %v2401
    %2480 = vmatprep.subr.bf16.mxu0 %v2406
    %2481 = vmatpush1.bf16.msra.mxu0 %v2405
    %2482 = vmatprep.mubr.bf16.mxu0 0
    %2483 = vmatmul.mubr.bf16.gmra.mrb[0].mxu0 0
    %v2484 = vpop.f32.mrb[0].mxu0
    %v2485 = vadd.f32 %v2444, %v2484
    %v2486 = vpop.f32.mrb[0].mxu0
    %v2487 = vadd.f32 %v2446, %v2486
    %v2488 = vpop.f32.mrb[0].mxu0
    %v2489 = vpop.f32.mrb[0].mxu0
    %2490 = vdwg.mxu0
    %2491 = vmatprep.subr.bf16.mxu0 %v2284
    %2492 = vmatpush1.bf16.msra.mxu0 %v2283
    %2493 = vmatprep.subr.bf16.mxu0 %v2288
    %2494 = vmatpush1.bf16.msra.mxu0 %v2287
    %2495 = vmatprep.subr.bf16.mxu0 %v2292
    %2496 = vmatpush1.bf16.msra.mxu0 %v2291
    %2497 = vmatprep.subr.bf16.mxu0 %v2296
    %2498 = vmatpush1.bf16.msra.mxu0 %v2295
    %2499 = vmatprep.subr.bf16.mxu0 %v2300
    %2500 = vmatpush1.bf16.msra.mxu0 %v2299
    %2501 = vmatprep.subr.bf16.mxu0 %v2304
    %2502 = vmatpush1.bf16.msra.mxu0 %v2303
    %2503 = vmatprep.subr.bf16.mxu0 %v2308
    %2504 = vmatpush1.bf16.msra.mxu0 %v2307
    %2505 = vmatprep.subr.bf16.mxu0 %v2312
    %2506 = vmatpush1.bf16.msra.mxu0 %v2311
    %2507 = vmatprep.subr.bf16.mxu0 %v2316
    %2508 = vmatpush1.bf16.msra.mxu0 %v2315
    %2509 = vmatprep.subr.bf16.mxu0 %v2320
    %2510 = vmatpush1.bf16.msra.mxu0 %v2319
    %2511 = vmatprep.subr.bf16.mxu0 %v2324
    %2512 = vmatpush1.bf16.msra.mxu0 %v2323
    %2513 = vmatprep.subr.bf16.mxu0 %v2328
    %2514 = vmatpush1.bf16.msra.mxu0 %v2327
    %2515 = vmatprep.subr.bf16.mxu0 %v2332
    %2516 = vmatpush1.bf16.msra.mxu0 %v2331
    %2517 = vmatprep.subr.bf16.mxu0 %v2336
    %2518 = vmatpush1.bf16.msra.mxu0 %v2335
    %2519 = vmatprep.subr.bf16.mxu0 %v2340
    %2520 = vmatpush1.bf16.msra.mxu0 %v2339
    %2521 = vmatprep.subr.bf16.mxu0 %v2344
    %2522 = vmatpush1.bf16.msra.mxu0 %v2343
    %2523 = vmatprep.mubr.bf16.mxu0 0
    %2524 = vmatmul.mubr.bf16.gmra.mrb[0].mxu0 0
    %v2525 = vpop.f32.mrb[0].mxu0
    %v2526 = vadd.f32 0.0, %v2525
    %v2527 = vpop.f32.mrb[0].mxu0
    %v2528 = vadd.f32 0.0, %v2527
    %v2529 = vpop.f32.mrb[0].mxu0
    %v2530 = vpop.f32.mrb[0].mxu0
    %2531 = vdwg.mxu0
    %2532 = vmatprep.subr.bf16.mxu0 %v2348
    %2533 = vmatpush1.bf16.msra.mxu0 %v2347
    %2534 = vmatprep.subr.bf16.mxu0 %v2352
    %2535 = vmatpush1.bf16.msra.mxu0 %v2351
    %2536 = vmatprep.subr.bf16.mxu0 %v2356
    %2537 = vmatpush1.bf16.msra.mxu0 %v2355
    %2538 = vmatprep.subr.bf16.mxu0 %v2360
    %2539 = vmatpush1.bf16.msra.mxu0 %v2359
    %2540 = vmatprep.subr.bf16.mxu0 %v2364
    %2541 = vmatpush1.bf16.msra.mxu0 %v2363
    %2542 = vmatprep.subr.bf16.mxu0 %v2368
    %2543 = vmatpush1.bf16.msra.mxu0 %v2367
    %2544 = vmatprep.subr.bf16.mxu0 %v2372
    %2545 = vmatpush1.bf16.msra.mxu0 %v2371
    %2546 = vmatprep.subr.bf16.mxu0 %v2376
    %2547 = vmatpush1.bf16.msra.mxu0 %v2375
    %2548 = vmatprep.subr.bf16.mxu0 %v2380
    %2549 = vmatpush1.bf16.msra.mxu0 %v2379
    %2550 = vmatprep.subr.bf16.mxu0 %v2384
    %2551 = vmatpush1.bf16.msra.mxu0 %v2383
    %2552 = vmatprep.subr.bf16.mxu0 %v2388
    %2553 = vmatpush1.bf16.msra.mxu0 %v2387
    %2554 = vmatprep.subr.bf16.mxu0 %v2392
    %2555 = vmatpush1.bf16.msra.mxu0 %v2391
    %2556 = vmatprep.subr.bf16.mxu0 %v2396
    %2557 = vmatpush1.bf16.msra.mxu0 %v2395
    %2558 = vmatprep.subr.bf16.mxu0 %v2400
    %2559 = vmatpush1.bf16.msra.mxu0 %v2399
    %2560 = vmatprep.subr.bf16.mxu0 %v2404
    %2561 = vmatpush1.bf16.msra.mxu0 %v2403
    %2562 = vmatprep.subr.bf16.mxu0 %v2408
    %2563 = vmatpush1.bf16.msra.mxu0 %v2407
    %2564 = vmatprep.mubr.bf16.mxu0 0
    %2565 = vmatmul.mubr.bf16.gmra.mrb[0].mxu0 0
    %v2566 = vpop.f32.mrb[0].mxu0
    %v2567 = vadd.f32 %v2526, %v2566
    %v2568 = vpop.f32.mrb[0].mxu0
    %v2569 = vadd.f32 %v2528, %v2568
    %v2570 = vpop.f32.mrb[0].mxu0
    %v2571 = vpop.f32.mrb[0].mxu0
    %2572 = vdwg.mxu0
    %v2573 = vld [vmem:[#allocation3 + $0x60] sm:$0xff]
    %v2574 = vld [vmem:[#allocation3 + $0x68] sm:$0xff]
    %v2575 = vld [vmem:[#allocation3 + $0x70] sm:$0xff]
    %v2576 = vld [vmem:[#allocation3 + $0x78] sm:$0xff]
    %v2577 = vadd.f32 %v2573, %v2485
    %v2578 = vadd.f32 %v2574, %v2487
    %v2579 = vadd.f32 %v2575, %v2567
    %v2580 = vadd.f32 %v2576, %v2569
    %v2581 = vxor.u32 %v2577, 2147483648
    %v2582 = vxor.u32 %v2578, 2147483648
    %v2583 = vxor.u32 %v2579, 2147483648
    %v2584 = vxor.u32 %v2580, 2147483648
    %v2585 = vmul.f32 %v2581, 1.442695
    %v2586 = vpow.pop %v2585
    %v2587 = vmul.f32 %v2582, 1.442695
    %v2588 = vpow.pop %v2587
    %v2589 = vmul.f32 %v2583, 1.442695
    %v2590 = vpow.pop %v2589
    %v2591 = vmul.f32 %v2584, 1.442695
    %v2592 = vpow.pop %v2591
    %v2593 = vadd.f32 %v2586, 1.0
    %v2594 = vadd.f32 %v2588, 1.0
    %v2595 = vadd.f32 %v2590, 1.0
    %v2596 = vadd.f32 %v2592, 1.0
    %v2597 = vrcp.pop %v2593
    %v2598 = vmul.f32 1.0, %v2597
    %v2599 = vrcp.pop %v2594
    %v2600 = vmul.f32 1.0, %v2599
    %v2601 = vrcp.pop %v2595
    %v2602 = vmul.f32 1.0, %v2601
    %v2603 = vrcp.pop %v2596
    %v2604 = vmul.f32 1.0, %v2603
    %v2605 = vmul.f32 %v1970, 0.0
    %v2606 = vmul.f32 %v1972, 0.0
    %v2607 = vmul.f32 %v1974, 0.0
    %v2608 = vmul.f32 %v1976, 0.0
    %v2609 = vmul.f32 %v1646, %v2277
    %v2610 = vmul.f32 %v1648, %v2278
    %v2611 = vmul.f32 %v1650, %v2279
    %v2612 = vmul.f32 %v1652, %v2280
    %v2613 = vadd.f32 %v2605, %v2609
    %v2614 = vadd.f32 %v2606, %v2610
    %v2615 = vadd.f32 %v2607, %v2611
    %v2616 = vadd.f32 %v2608, %v2612
    %v2617 = vtanh.pop %v2613
    %v2618 = vtanh.pop %v2614
    %v2619 = vtanh.pop %v2615
    %v2620 = vtanh.pop %v2616
    %v2621 = vmul.f32 %v2598, %v2617
    %v2622 = vmul.f32 %v2600, %v2618
    %v2623 = vmul.f32 %v2602, %v2619
    %v2624 = vmul.f32 %v2604, %v2620
    %v2625 = vpack.c.bf16 %v2621, %v2621
    %v2626 = vpack.c.bf16 %v2622, %v2622
    %v2627 = vpack.c.bf16 %v2623, %v2623
    %v2628 = vpack.c.bf16 %v2624, %v2624
    %2629 = vmatprep.subr.bf16.mxu0 %v1330
    %2630 = vmatpush1.bf16.msra.mxu0 %v1329
    %2631 = vmatprep.subr.bf16.mxu0 %v1334
    %2632 = vmatpush1.bf16.msra.mxu0 %v1333
    %2633 = vmatprep.subr.bf16.mxu0 %v1338
    %2634 = vmatpush1.bf16.msra.mxu0 %v1337
    %2635 = vmatprep.subr.bf16.mxu0 %v1342
    %2636 = vmatpush1.bf16.msra.mxu0 %v1341
    %2637 = vmatprep.subr.bf16.mxu0 %v1346
    %2638 = vmatpush1.bf16.msra.mxu0 %v1345
    %2639 = vmatprep.subr.bf16.mxu0 %v1350
    %2640 = vmatpush1.bf16.msra.mxu0 %v1349
    %2641 = vmatprep.subr.bf16.mxu0 %v1354
    %2642 = vmatpush1.bf16.msra.mxu0 %v1353
    %2643 = vmatprep.subr.bf16.mxu0 %v1358
    %2644 = vmatpush1.bf16.msra.mxu0 %v1357
    %2645 = vmatprep.subr.bf16.mxu0 %v1362
    %2646 = vmatpush1.bf16.msra.mxu0 %v1361
    %2647 = vmatprep.subr.bf16.mxu0 %v1366
    %2648 = vmatpush1.bf16.msra.mxu0 %v1365
    %2649 = vmatprep.subr.bf16.mxu0 %v1370
    %2650 = vmatpush1.bf16.msra.mxu0 %v1369
    %2651 = vmatprep.subr.bf16.mxu0 %v1374
    %2652 = vmatpush1.bf16.msra.mxu0 %v1373
    %2653 = vmatprep.subr.bf16.mxu0 %v1378
    %2654 = vmatpush1.bf16.msra.mxu0 %v1377
    %2655 = vmatprep.subr.bf16.mxu0 %v1382
    %2656 = vmatpush1.bf16.msra.mxu0 %v1381
    %2657 = vmatprep.subr.bf16.mxu0 %v1386
    %2658 = vmatpush1.bf16.msra.mxu0 %v1385
    %2659 = vmatprep.subr.bf16.mxu0 %v1390
    %2660 = vmatpush1.bf16.msra.mxu0 %v1389
    %2661 = vmatprep.mubr.bf16.mxu0 %v2626
    %2662 = vmatmul.mubr.bf16.gmra.mrb[0].mxu0 %v2625
    %v2663 = vpop.f32.mrb[0].mxu0
    %v2664 = vadd.f32 0.0, %v2663
    %v2665 = vpop.f32.mrb[0].mxu0
    %v2666 = vadd.f32 0.0, %v2665
    %v2667 = vpop.f32.mrb[0].mxu0
    %v2668 = vpop.f32.mrb[0].mxu0
    %2669 = vdwg.mxu0
    %2670 = vmatprep.subr.bf16.mxu0 %v1394
    %2671 = vmatpush1.bf16.msra.mxu0 %v1393
    %2672 = vmatprep.subr.bf16.mxu0 %v1398
    %2673 = vmatpush1.bf16.msra.mxu0 %v1397
    %2674 = vmatprep.subr.bf16.mxu0 %v1402
    %2675 = vmatpush1.bf16.msra.mxu0 %v1401
    %2676 = vmatprep.subr.bf16.mxu0 %v1406
    %2677 = vmatpush1.bf16.msra.mxu0 %v1405
    %2678 = vmatprep.subr.bf16.mxu0 %v1410
    %2679 = vmatpush1.bf16.msra.mxu0 %v1409
    %2680 = vmatprep.subr.bf16.mxu0 %v1414
    %2681 = vmatpush1.bf16.msra.mxu0 %v1413
    %2682 = vmatprep.subr.bf16.mxu0 %v1418
    %2683 = vmatpush1.bf16.msra.mxu0 %v1417
    %2684 = vmatprep.subr.bf16.mxu0 %v1422
    %2685 = vmatpush1.bf16.msra.mxu0 %v1421
    %2686 = vmatprep.subr.bf16.mxu0 %v1426
    %2687 = vmatpush1.bf16.msra.mxu0 %v1425
    %2688 = vmatprep.subr.bf16.mxu0 %v1430
    %2689 = vmatpush1.bf16.msra.mxu0 %v1429
    %2690 = vmatprep.subr.bf16.mxu0 %v1434
    %2691 = vmatpush1.bf16.msra.mxu0 %v1433
    %2692 = vmatprep.subr.bf16.mxu0 %v1438
    %2693 = vmatpush1.bf16.msra.mxu0 %v1437
    %2694 = vmatprep.subr.bf16.mxu0 %v1442
    %2695 = vmatpush1.bf16.msra.mxu0 %v1441
    %2696 = vmatprep.subr.bf16.mxu0 %v1446
    %2697 = vmatpush1.bf16.msra.mxu0 %v1445
    %2698 = vmatprep.subr.bf16.mxu0 %v1450
    %2699 = vmatpush1.bf16.msra.mxu0 %v1449
    %2700 = vmatprep.subr.bf16.mxu0 %v1454
    %2701 = vmatpush1.bf16.msra.mxu0 %v1453
    %2702 = vmatprep.mubr.bf16.mxu0 %v2628
    %2703 = vmatmul.mubr.bf16.gmra.mrb[0].mxu0 %v2627
    %v2704 = vpop.f32.mrb[0].mxu0
    %v2705 = vadd.f32 %v2664, %v2704
    %v2706 = vpop.f32.mrb[0].mxu0
    %v2707 = vadd.f32 %v2666, %v2706
    %v2708 = vpop.f32.mrb[0].mxu0
    %v2709 = vpop.f32.mrb[0].mxu0
    %2710 = vdwg.mxu0
    %2711 = vmatprep.subr.bf16.mxu0 %v1332
    %2712 = vmatpush1.bf16.msra.mxu0 %v1331
    %2713 = vmatprep.subr.bf16.mxu0 %v1336
    %2714 = vmatpush1.bf16.msra.mxu0 %v1335
    %2715 = vmatprep.subr.bf16.mxu0 %v1340
    %2716 = vmatpush1.bf16.msra.mxu0 %v1339
    %2717 = vmatprep.subr.bf16.mxu0 %v1344
    %2718 = vmatpush1.bf16.msra.mxu0 %v1343
    %2719 = vmatprep.subr.bf16.mxu0 %v1348
    %2720 = vmatpush1.bf16.msra.mxu0 %v1347
    %2721 = vmatprep.subr.bf16.mxu0 %v1352
    %2722 = vmatpush1.bf16.msra.mxu0 %v1351
    %2723 = vmatprep.subr.bf16.mxu0 %v1356
    %2724 = vmatpush1.bf16.msra.mxu0 %v1355
    %2725 = vmatprep.subr.bf16.mxu0 %v1360
    %2726 = vmatpush1.bf16.msra.mxu0 %v1359
    %2727 = vmatprep.subr.bf16.mxu0 %v1364
    %2728 = vmatpush1.bf16.msra.mxu0 %v1363
    %2729 = vmatprep.subr.bf16.mxu0 %v1368
    %2730 = vmatpush1.bf16.msra.mxu0 %v1367
    %2731 = vmatprep.subr.bf16.mxu0 %v1372
    %2732 = vmatpush1.bf16.msra.mxu0 %v1371
    %2733 = vmatprep.subr.bf16.mxu0 %v1376
    %2734 = vmatpush1.bf16.msra.mxu0 %v1375
    %2735 = vmatprep.subr.bf16.mxu0 %v1380
    %2736 = vmatpush1.bf16.msra.mxu0 %v1379
    %2737 = vmatprep.subr.bf16.mxu0 %v1384
    %2738 = vmatpush1.bf16.msra.mxu0 %v1383
    %2739 = vmatprep.subr.bf16.mxu0 %v1388
    %2740 = vmatpush1.bf16.msra.mxu0 %v1387
    %2741 = vmatprep.subr.bf16.mxu0 %v1392
    %2742 = vmatpush1.bf16.msra.mxu0 %v1391
    %2743 = vmatprep.mubr.bf16.mxu0 %v2626
    %2744 = vmatmul.mubr.bf16.gmra.mrb[0].mxu0 %v2625
    %v2745 = vpop.f32.mrb[0].mxu0
    %v2746 = vadd.f32 0.0, %v2745
    %v2747 = vpop.f32.mrb[0].mxu0
    %v2748 = vadd.f32 0.0, %v2747
    %v2749 = vpop.f32.mrb[0].mxu0
    %v2750 = vpop.f32.mrb[0].mxu0
    %2751 = vdwg.mxu0
    %2752 = vmatprep.subr.bf16.mxu0 %v1396
    %2753 = vmatpush1.bf16.msra.mxu0 %v1395
    %2754 = vmatprep.subr.bf16.mxu0 %v1400
    %2755 = vmatpush1.bf16.msra.mxu0 %v1399
    %2756 = vmatprep.subr.bf16.mxu0 %v1404
    %2757 = vmatpush1.bf16.msra.mxu0 %v1403
    %2758 = vmatprep.subr.bf16.mxu0 %v1408
    %2759 = vmatpush1.bf16.msra.mxu0 %v1407
    %2760 = vmatprep.subr.bf16.mxu0 %v1412
    %2761 = vmatpush1.bf16.msra.mxu0 %v1411
    %2762 = vmatprep.subr.bf16.mxu0 %v1416
    %2763 = vmatpush1.bf16.msra.mxu0 %v1415
    %2764 = vmatprep.subr.bf16.mxu0 %v1420
    %2765 = vmatpush1.bf16.msra.mxu0 %v1419
    %2766 = vmatprep.subr.bf16.mxu0 %v1424
    %2767 = vmatpush1.bf16.msra.mxu0 %v1423
    %2768 = vmatprep.subr.bf16.mxu0 %v1428
    %2769 = vmatpush1.bf16.msra.mxu0 %v1427
    %2770 = vmatprep.subr.bf16.mxu0 %v1432
    %2771 = vmatpush1.bf16.msra.mxu0 %v1431
    %2772 = vmatprep.subr.bf16.mxu0 %v1436
    %2773 = vmatpush1.bf16.msra.mxu0 %v1435
    %2774 = vmatprep.subr.bf16.mxu0 %v1440
    %2775 = vmatpush1.bf16.msra.mxu0 %v1439
    %2776 = vmatprep.subr.bf16.mxu0 %v1444
    %2777 = vmatpush1.bf16.msra.mxu0 %v1443
    %2778 = vmatprep.subr.bf16.mxu0 %v1448
    %2779 = vmatpush1.bf16.msra.mxu0 %v1447
    %2780 = vmatprep.subr.bf16.mxu0 %v1452
    %2781 = vmatpush1.bf16.msra.mxu0 %v1451
    %2782 = vmatprep.subr.bf16.mxu0 %v1456
    %2783 = vmatpush1.bf16.msra.mxu0 %v1455
    %2784 = vmatprep.mubr.bf16.mxu0 %v2628
    %2785 = vmatmul.mubr.bf16.gmra.mrb[0].mxu0 %v2627
    %v2786 = vpop.f32.mrb[0].mxu0
    %v2787 = vadd.f32 %v2746, %v2786
    %v2788 = vpop.f32.mrb[0].mxu0
    %v2789 = vadd.f32 %v2748, %v2788
    %v2790 = vpop.f32.mrb[0].mxu0
    %v2791 = vpop.f32.mrb[0].mxu0
    %2792 = vdwg.mxu0
    %v2793 = vld [vmem:[#allocation3 + $0x80] sm:$0xff]
    %v2794 = vld [vmem:[#allocation3 + $0x88] sm:$0xff]
    %v2795 = vld [vmem:[#allocation3 + $0x90] sm:$0xff]
    %v2796 = vld [vmem:[#allocation3 + $0x98] sm:$0xff]
    %v2797 = vadd.f32 %v2793, %v2705
    %v2798 = vadd.f32 %v2794, %v2707
    %v2799 = vadd.f32 %v2795, %v2787
    %v2800 = vadd.f32 %v2796, %v2789
    %v2801 = vxor.u32 %v2797, 2147483648
    %v2802 = vxor.u32 %v2798, 2147483648
    %v2803 = vxor.u32 %v2799, 2147483648
    %v2804 = vxor.u32 %v2800, 2147483648
    %v2805 = vmul.f32 %v2801, 1.442695
    %v2806 = vpow.pop %v2805
    %v2807 = vmul.f32 %v2802, 1.442695
    %v2808 = vpow.pop %v2807
    %v2809 = vmul.f32 %v2803, 1.442695
    %v2810 = vpow.pop %v2809
    %v2811 = vmul.f32 %v2804, 1.442695
    %v2812 = vpow.pop %v2811
    %v2813 = vadd.f32 %v2806, 1.0
    %v2814 = vadd.f32 %v2808, 1.0
    %v2815 = vadd.f32 %v2810, 1.0
    %v2816 = vadd.f32 %v2812, 1.0
    %v2817 = vrcp.pop %v2813
    %v2818 = vmul.f32 1.0, %v2817
    %v2819 = vrcp.pop %v2814
    %v2820 = vmul.f32 1.0, %v2819
    %v2821 = vrcp.pop %v2815
    %v2822 = vmul.f32 1.0, %v2821
    %v2823 = vrcp.pop %v2816
    %v2824 = vmul.f32 1.0, %v2823
    %2825 = vmatprep.subr.bf16.mxu0 %v1654
    %2826 = vmatpush1.bf16.msra.mxu0 %v1653
    %2827 = vmatprep.subr.bf16.mxu0 %v1658
    %2828 = vmatpush1.bf16.msra.mxu0 %v1657
    %2829 = vmatprep.subr.bf16.mxu0 %v1662
    %2830 = vmatpush1.bf16.msra.mxu0 %v1661
    %2831 = vmatprep.subr.bf16.mxu0 %v1666
    %2832 = vmatpush1.bf16.msra.mxu0 %v1665
    %2833 = vmatprep.subr.bf16.mxu0 %v1670
    %2834 = vmatpush1.bf16.msra.mxu0 %v1669
    %2835 = vmatprep.subr.bf16.mxu0 %v1674
    %2836 = vmatpush1.bf16.msra.mxu0 %v1673
    %2837 = vmatprep.subr.bf16.mxu0 %v1678
    %2838 = vmatpush1.bf16.msra.mxu0 %v1677
    %2839 = vmatprep.subr.bf16.mxu0 %v1682
    %2840 = vmatpush1.bf16.msra.mxu0 %v1681
    %2841 = vmatprep.subr.bf16.mxu0 %v1686
    %2842 = vmatpush1.bf16.msra.mxu0 %v1685
    %2843 = vmatprep.subr.bf16.mxu0 %v1690
    %2844 = vmatpush1.bf16.msra.mxu0 %v1689
    %2845 = vmatprep.subr.bf16.mxu0 %v1694
    %2846 = vmatpush1.bf16.msra.mxu0 %v1693
    %2847 = vmatprep.subr.bf16.mxu0 %v1698
    %2848 = vmatpush1.bf16.msra.mxu0 %v1697
    %2849 = vmatprep.subr.bf16.mxu0 %v1702
    %2850 = vmatpush1.bf16.msra.mxu0 %v1701
    %2851 = vmatprep.subr.bf16.mxu0 %v1706
    %2852 = vmatpush1.bf16.msra.mxu0 %v1705
    %2853 = vmatprep.subr.bf16.mxu0 %v1710
    %2854 = vmatpush1.bf16.msra.mxu0 %v1709
    %2855 = vmatprep.subr.bf16.mxu0 %v1714
    %2856 = vmatpush1.bf16.msra.mxu0 %v1713
    %2857 = vmatprep.mubr.bf16.mxu0 %v2626
    %2858 = vmatmul.mubr.bf16.gmra.mrb[0].mxu0 %v2625
    %v2859 = vpop.f32.mrb[0].mxu0
    %v2860 = vadd.f32 0.0, %v2859
    %v2861 = vpop.f32.mrb[0].mxu0
    %v2862 = vadd.f32 0.0, %v2861
    %v2863 = vpop.f32.mrb[0].mxu0
    %v2864 = vpop.f32.mrb[0].mxu0
    %2865 = vdwg.mxu0
    %2866 = vmatprep.subr.bf16.mxu0 %v1718
    %2867 = vmatpush1.bf16.msra.mxu0 %v1717
    %2868 = vmatprep.subr.bf16.mxu0 %v1722
    %2869 = vmatpush1.bf16.msra.mxu0 %v1721
    %2870 = vmatprep.subr.bf16.mxu0 %v1726
    %2871 = vmatpush1.bf16.msra.mxu0 %v1725
    %2872 = vmatprep.subr.bf16.mxu0 %v1730
    %2873 = vmatpush1.bf16.msra.mxu0 %v1729
    %2874 = vmatprep.subr.bf16.mxu0 %v1734
    %2875 = vmatpush1.bf16.msra.mxu0 %v1733
    %2876 = vmatprep.subr.bf16.mxu0 %v1738
    %2877 = vmatpush1.bf16.msra.mxu0 %v1737
    %2878 = vmatprep.subr.bf16.mxu0 %v1742
    %2879 = vmatpush1.bf16.msra.mxu0 %v1741
    %2880 = vmatprep.subr.bf16.mxu0 %v1746
    %2881 = vmatpush1.bf16.msra.mxu0 %v1745
    %2882 = vmatprep.subr.bf16.mxu0 %v1750
    %2883 = vmatpush1.bf16.msra.mxu0 %v1749
    %2884 = vmatprep.subr.bf16.mxu0 %v1754
    %2885 = vmatpush1.bf16.msra.mxu0 %v1753
    %2886 = vmatprep.subr.bf16.mxu0 %v1758
    %2887 = vmatpush1.bf16.msra.mxu0 %v1757
    %2888 = vmatprep.subr.bf16.mxu0 %v1762
    %2889 = vmatpush1.bf16.msra.mxu0 %v1761
    %2890 = vmatprep.subr.bf16.mxu0 %v1766
    %2891 = vmatpush1.bf16.msra.mxu0 %v1765
    %2892 = vmatprep.subr.bf16.mxu0 %v1770
    %2893 = vmatpush1.bf16.msra.mxu0 %v1769
    %2894 = vmatprep.subr.bf16.mxu0 %v1774
    %2895 = vmatpush1.bf16.msra.mxu0 %v1773
    %2896 = vmatprep.subr.bf16.mxu0 %v1778
    %2897 = vmatpush1.bf16.msra.mxu0 %v1777
    %2898 = vmatprep.mubr.bf16.mxu0 %v2628
    %2899 = vmatmul.mubr.bf16.gmra.mrb[0].mxu0 %v2627
    %v2900 = vpop.f32.mrb[0].mxu0
    %v2901 = vadd.f32 %v2860, %v2900
    %v2902 = vpop.f32.mrb[0].mxu0
    %v2903 = vadd.f32 %v2862, %v2902
    %v2904 = vpop.f32.mrb[0].mxu0
    %v2905 = vpop.f32.mrb[0].mxu0
    %2906 = vdwg.mxu0
    %2907 = vmatprep.subr.bf16.mxu0 %v1656
    %2908 = vmatpush1.bf16.msra.mxu0 %v1655
    %2909 = vmatprep.subr.bf16.mxu0 %v1660
    %2910 = vmatpush1.bf16.msra.mxu0 %v1659
    %2911 = vmatprep.subr.bf16.mxu0 %v1664
    %2912 = vmatpush1.bf16.msra.mxu0 %v1663
    %2913 = vmatprep.subr.bf16.mxu0 %v1668
    %2914 = vmatpush1.bf16.msra.mxu0 %v1667
    %2915 = vmatprep.subr.bf16.mxu0 %v1672
    %2916 = vmatpush1.bf16.msra.mxu0 %v1671
    %2917 = vmatprep.subr.bf16.mxu0 %v1676
    %2918 = vmatpush1.bf16.msra.mxu0 %v1675
    %2919 = vmatprep.subr.bf16.mxu0 %v1680
    %2920 = vmatpush1.bf16.msra.mxu0 %v1679
    %2921 = vmatprep.subr.bf16.mxu0 %v1684
    %2922 = vmatpush1.bf16.msra.mxu0 %v1683
    %2923 = vmatprep.subr.bf16.mxu0 %v1688
    %2924 = vmatpush1.bf16.msra.mxu0 %v1687
    %2925 = vmatprep.subr.bf16.mxu0 %v1692
    %2926 = vmatpush1.bf16.msra.mxu0 %v1691
    %2927 = vmatprep.subr.bf16.mxu0 %v1696
    %2928 = vmatpush1.bf16.msra.mxu0 %v1695
    %2929 = vmatprep.subr.bf16.mxu0 %v1700
    %2930 = vmatpush1.bf16.msra.mxu0 %v1699
    %2931 = vmatprep.subr.bf16.mxu0 %v1704
    %2932 = vmatpush1.bf16.msra.mxu0 %v1703
    %2933 = vmatprep.subr.bf16.mxu0 %v1708
    %2934 = vmatpush1.bf16.msra.mxu0 %v1707
    %2935 = vmatprep.subr.bf16.mxu0 %v1712
    %2936 = vmatpush1.bf16.msra.mxu0 %v1711
    %2937 = vmatprep.subr.bf16.mxu0 %v1716
    %2938 = vmatpush1.bf16.msra.mxu0 %v1715
    %2939 = vmatprep.mubr.bf16.mxu0 %v2626
    %2940 = vmatmul.mubr.bf16.gmra.mrb[0].mxu0 %v2625
    %v2941 = vpop.f32.mrb[0].mxu0
    %v2942 = vadd.f32 0.0, %v2941
    %v2943 = vpop.f32.mrb[0].mxu0
    %v2944 = vadd.f32 0.0, %v2943
    %v2945 = vpop.f32.mrb[0].mxu0
    %v2946 = vpop.f32.mrb[0].mxu0
    %2947 = vdwg.mxu0
    %2948 = vmatprep.subr.bf16.mxu0 %v1720
    %2949 = vmatpush1.bf16.msra.mxu0 %v1719
    %2950 = vmatprep.subr.bf16.mxu0 %v1724
    %2951 = vmatpush1.bf16.msra.mxu0 %v1723
    %2952 = vmatprep.subr.bf16.mxu0 %v1728
    %2953 = vmatpush1.bf16.msra.mxu0 %v1727
    %2954 = vmatprep.subr.bf16.mxu0 %v1732
    %2955 = vmatpush1.bf16.msra.mxu0 %v1731
    %2956 = vmatprep.subr.bf16.mxu0 %v1736
    %2957 = vmatpush1.bf16.msra.mxu0 %v1735
    %2958 = vmatprep.subr.bf16.mxu0 %v1740
    %2959 = vmatpush1.bf16.msra.mxu0 %v1739
    %2960 = vmatprep.subr.bf16.mxu0 %v1744
    %2961 = vmatpush1.bf16.msra.mxu0 %v1743
    %2962 = vmatprep.subr.bf16.mxu0 %v1748
    %2963 = vmatpush1.bf16.msra.mxu0 %v1747
    %2964 = vmatprep.subr.bf16.mxu0 %v1752
    %2965 = vmatpush1.bf16.msra.mxu0 %v1751
    %2966 = vmatprep.subr.bf16.mxu0 %v1756
    %2967 = vmatpush1.bf16.msra.mxu0 %v1755
    %2968 = vmatprep.subr.bf16.mxu0 %v1760
    %2969 = vmatpush1.bf16.msra.mxu0 %v1759
    %2970 = vmatprep.subr.bf16.mxu0 %v1764
    %2971 = vmatpush1.bf16.msra.mxu0 %v1763
    %2972 = vmatprep.subr.bf16.mxu0 %v1768
    %2973 = vmatpush1.bf16.msra.mxu0 %v1767
    %2974 = vmatprep.subr.bf16.mxu0 %v1772
    %2975 = vmatpush1.bf16.msra.mxu0 %v1771
    %2976 = vmatprep.subr.bf16.mxu0 %v1776
    %2977 = vmatpush1.bf16.msra.mxu0 %v1775
    %2978 = vmatprep.subr.bf16.mxu0 %v1780
    %2979 = vmatpush1.bf16.msra.mxu0 %v1779
    %2980 = vmatprep.mubr.bf16.mxu0 %v2628
    %2981 = vmatmul.mubr.bf16.gmra.mrb[0].mxu0 %v2627
    %v2982 = vpop.f32.mrb[0].mxu0
    %v2983 = vadd.f32 %v2942, %v2982
    %v2984 = vpop.f32.mrb[0].mxu0
    %v2985 = vadd.f32 %v2944, %v2984
    %v2986 = vpop.f32.mrb[0].mxu0
    %v2987 = vpop.f32.mrb[0].mxu0
    %2988 = vdwg.mxu0
    %v2989 = vld [vmem:[#allocation3 + $0xa0] sm:$0xff]
    %v2990 = vld [vmem:[#allocation3 + $0xa8] sm:$0xff]
    %v2991 = vld [vmem:[#allocation3 + $0xb0] sm:$0xff]
    %v2992 = vld [vmem:[#allocation3 + $0xb8] sm:$0xff]
    %v2993 = vadd.f32 %v2989, %v2901
    %v2994 = vadd.f32 %v2990, %v2903
    %v2995 = vadd.f32 %v2991, %v2983
    %v2996 = vadd.f32 %v2992, %v2985
    %v2997 = vxor.u32 %v2993, 2147483648
    %v2998 = vxor.u32 %v2994, 2147483648
    %v2999 = vxor.u32 %v2995, 2147483648
    %v3000 = vxor.u32 %v2996, 2147483648
    %v3001 = vmul.f32 %v2997, 1.442695
    %v3002 = vpow.pop %v3001
    %v3003 = vmul.f32 %v2998, 1.442695
    %v3004 = vpow.pop %v3003
    %v3005 = vmul.f32 %v2999, 1.442695
    %v3006 = vpow.pop %v3005
    %v3007 = vmul.f32 %v3000, 1.442695
    %v3008 = vpow.pop %v3007
    %v3009 = vadd.f32 %v3002, 1.0
    %v3010 = vadd.f32 %v3004, 1.0
    %v3011 = vadd.f32 %v3006, 1.0
    %v3012 = vadd.f32 %v3008, 1.0
    %v3013 = vrcp.pop %v3009
    %v3014 = vmul.f32 1.0, %v3013
    %v3015 = vrcp.pop %v3010
    %v3016 = vmul.f32 1.0, %v3015
    %v3017 = vrcp.pop %v3011
    %v3018 = vmul.f32 1.0, %v3017
    %v3019 = vrcp.pop %v3012
    %v3020 = vmul.f32 1.0, %v3019
    %3021 = vmatprep.subr.bf16.mxu0 %v1978
    %3022 = vmatpush1.bf16.msra.mxu0 %v1977
    %3023 = vmatprep.subr.bf16.mxu0 %v1982
    %3024 = vmatpush1.bf16.msra.mxu0 %v1981
    %3025 = vmatprep.subr.bf16.mxu0 %v1986
    %3026 = vmatpush1.bf16.msra.mxu0 %v1985
    %3027 = vmatprep.subr.bf16.mxu0 %v1990
    %3028 = vmatpush1.bf16.msra.mxu0 %v1989
    %3029 = vmatprep.subr.bf16.mxu0 %v1994
    %3030 = vmatpush1.bf16.msra.mxu0 %v1993
    %3031 = vmatprep.subr.bf16.mxu0 %v1998
    %3032 = vmatpush1.bf16.msra.mxu0 %v1997
    %3033 = vmatprep.subr.bf16.mxu0 %v2002
    %3034 = vmatpush1.bf16.msra.mxu0 %v2001
    %3035 = vmatprep.subr.bf16.mxu0 %v2006
    %3036 = vmatpush1.bf16.msra.mxu0 %v2005
    %3037 = vmatprep.subr.bf16.mxu0 %v2010
    %3038 = vmatpush1.bf16.msra.mxu0 %v2009
    %3039 = vmatprep.subr.bf16.mxu0 %v2014
    %3040 = vmatpush1.bf16.msra.mxu0 %v2013
    %3041 = vmatprep.subr.bf16.mxu0 %v2018
    %3042 = vmatpush1.bf16.msra.mxu0 %v2017
    %3043 = vmatprep.subr.bf16.mxu0 %v2022
    %3044 = vmatpush1.bf16.msra.mxu0 %v2021
    %3045 = vmatprep.subr.bf16.mxu0 %v2026
    %3046 = vmatpush1.bf16.msra.mxu0 %v2025
    %3047 = vmatprep.subr.bf16.mxu0 %v2030
    %3048 = vmatpush1.bf16.msra.mxu0 %v2029
    %3049 = vmatprep.subr.bf16.mxu0 %v2034
    %3050 = vmatpush1.bf16.msra.mxu0 %v2033
    %3051 = vmatprep.subr.bf16.mxu0 %v2038
    %3052 = vmatpush1.bf16.msra.mxu0 %v2037
    %3053 = vmatprep.mubr.bf16.mxu0 %v2626
    %3054 = vmatmul.mubr.bf16.gmra.mrb[0].mxu0 %v2625
    %v3055 = vpop.f32.mrb[0].mxu0
    %v3056 = vadd.f32 0.0, %v3055
    %v3057 = vpop.f32.mrb[0].mxu0
    %v3058 = vadd.f32 0.0, %v3057
    %v3059 = vpop.f32.mrb[0].mxu0
    %v3060 = vpop.f32.mrb[0].mxu0
    %3061 = vdwg.mxu0
    %3062 = vmatprep.subr.bf16.mxu0 %v2042
    %3063 = vmatpush1.bf16.msra.mxu0 %v2041
    %3064 = vmatprep.subr.bf16.mxu0 %v2046
    %3065 = vmatpush1.bf16.msra.mxu0 %v2045
    %3066 = vmatprep.subr.bf16.mxu0 %v2050
    %3067 = vmatpush1.bf16.msra.mxu0 %v2049
    %3068 = vmatprep.subr.bf16.mxu0 %v2054
    %3069 = vmatpush1.bf16.msra.mxu0 %v2053
    %3070 = vmatprep.subr.bf16.mxu0 %v2058
    %3071 = vmatpush1.bf16.msra.mxu0 %v2057
    %3072 = vmatprep.subr.bf16.mxu0 %v2062
    %3073 = vmatpush1.bf16.msra.mxu0 %v2061
    %3074 = vmatprep.subr.bf16.mxu0 %v2066
    %3075 = vmatpush1.bf16.msra.mxu0 %v2065
    %3076 = vmatprep.subr.bf16.mxu0 %v2070
    %3077 = vmatpush1.bf16.msra.mxu0 %v2069
    %3078 = vmatprep.subr.bf16.mxu0 %v2074
    %3079 = vmatpush1.bf16.msra.mxu0 %v2073
    %3080 = vmatprep.subr.bf16.mxu0 %v2078
    %3081 = vmatpush1.bf16.msra.mxu0 %v2077
    %3082 = vmatprep.subr.bf16.mxu0 %v2082
    %3083 = vmatpush1.bf16.msra.mxu0 %v2081
    %3084 = vmatprep.subr.bf16.mxu0 %v2086
    %3085 = vmatpush1.bf16.msra.mxu0 %v2085
    %3086 = vmatprep.subr.bf16.mxu0 %v2090
    %3087 = vmatpush1.bf16.msra.mxu0 %v2089
    %3088 = vmatprep.subr.bf16.mxu0 %v2094
    %3089 = vmatpush1.bf16.msra.mxu0 %v2093
    %3090 = vmatprep.subr.bf16.mxu0 %v2098
    %3091 = vmatpush1.bf16.msra.mxu0 %v2097
    %3092 = vmatprep.subr.bf16.mxu0 %v2102
    %3093 = vmatpush1.bf16.msra.mxu0 %v2101
    %3094 = vmatprep.mubr.bf16.mxu0 %v2628
    %3095 = vmatmul.mubr.bf16.gmra.mrb[0].mxu0 %v2627
    %v3096 = vpop.f32.mrb[0].mxu0
    %v3097 = vadd.f32 %v3056, %v3096
    %v3098 = vpop.f32.mrb[0].mxu0
    %v3099 = vadd.f32 %v3058, %v3098
    %v3100 = vpop.f32.mrb[0].mxu0
    %v3101 = vpop.f32.mrb[0].mxu0
    %3102 = vdwg.mxu0
    %3103 = vmatprep.subr.bf16.mxu0 %v1980
    %3104 = vmatpush1.bf16.msra.mxu0 %v1979
    %3105 = vmatprep.subr.bf16.mxu0 %v1984
    %3106 = vmatpush1.bf16.msra.mxu0 %v1983
    %3107 = vmatprep.subr.bf16.mxu0 %v1988
    %3108 = vmatpush1.bf16.msra.mxu0 %v1987
    %3109 = vmatprep.subr.bf16.mxu0 %v1992
    %3110 = vmatpush1.bf16.msra.mxu0 %v1991
    %3111 = vmatprep.subr.bf16.mxu0 %v1996
    %3112 = vmatpush1.bf16.msra.mxu0 %v1995
    %3113 = vmatprep.subr.bf16.mxu0 %v2000
    %3114 = vmatpush1.bf16.msra.mxu0 %v1999
    %3115 = vmatprep.subr.bf16.mxu0 %v2004
    %3116 = vmatpush1.bf16.msra.mxu0 %v2003
    %3117 = vmatprep.subr.bf16.mxu0 %v2008
    %3118 = vmatpush1.bf16.msra.mxu0 %v2007
    %3119 = vmatprep.subr.bf16.mxu0 %v2012
    %3120 = vmatpush1.bf16.msra.mxu0 %v2011
    %3121 = vmatprep.subr.bf16.mxu0 %v2016
    %3122 = vmatpush1.bf16.msra.mxu0 %v2015
    %3123 = vmatprep.subr.bf16.mxu0 %v2020
    %3124 = vmatpush1.bf16.msra.mxu0 %v2019
    %3125 = vmatprep.subr.bf16.mxu0 %v2024
    %3126 = vmatpush1.bf16.msra.mxu0 %v2023
    %3127 = vmatprep.subr.bf16.mxu0 %v2028
    %3128 = vmatpush1.bf16.msra.mxu0 %v2027
    %3129 = vmatprep.subr.bf16.mxu0 %v2032
    %3130 = vmatpush1.bf16.msra.mxu0 %v2031
    %3131 = vmatprep.subr.bf16.mxu0 %v2036
    %3132 = vmatpush1.bf16.msra.mxu0 %v2035
    %3133 = vmatprep.subr.bf16.mxu0 %v2040
    %3134 = vmatpush1.bf16.msra.mxu0 %v2039
    %3135 = vmatprep.mubr.bf16.mxu0 %v2626
    %3136 = vmatmul.mubr.bf16.gmra.mrb[0].mxu0 %v2625
    %v3137 = vpop.f32.mrb[0].mxu0
    %v3138 = vadd.f32 0.0, %v3137
    %v3139 = vpop.f32.mrb[0].mxu0
    %v3140 = vadd.f32 0.0, %v3139
    %v3141 = vpop.f32.mrb[0].mxu0
    %v3142 = vpop.f32.mrb[0].mxu0
    %3143 = vdwg.mxu0
    %3144 = vmatprep.subr.bf16.mxu0 %v2044
    %3145 = vmatpush1.bf16.msra.mxu0 %v2043
    %3146 = vmatprep.subr.bf16.mxu0 %v2048
    %3147 = vmatpush1.bf16.msra.mxu0 %v2047
    %3148 = vmatprep.subr.bf16.mxu0 %v2052
    %3149 = vmatpush1.bf16.msra.mxu0 %v2051
    %3150 = vmatprep.subr.bf16.mxu0 %v2056
    %3151 = vmatpush1.bf16.msra.mxu0 %v2055
    %3152 = vmatprep.subr.bf16.mxu0 %v2060
    %3153 = vmatpush1.bf16.msra.mxu0 %v2059
    %3154 = vmatprep.subr.bf16.mxu0 %v2064
    %3155 = vmatpush1.bf16.msra.mxu0 %v2063
    %3156 = vmatprep.subr.bf16.mxu0 %v2068
    %3157 = vmatpush1.bf16.msra.mxu0 %v2067
    %3158 = vmatprep.subr.bf16.mxu0 %v2072
    %3159 = vmatpush1.bf16.msra.mxu0 %v2071
    %3160 = vmatprep.subr.bf16.mxu0 %v2076
    %3161 = vmatpush1.bf16.msra.mxu0 %v2075
    %3162 = vmatprep.subr.bf16.mxu0 %v2080
    %3163 = vmatpush1.bf16.msra.mxu0 %v2079
    %3164 = vmatprep.subr.bf16.mxu0 %v2084
    %3165 = vmatpush1.bf16.msra.mxu0 %v2083
    %3166 = vmatprep.subr.bf16.mxu0 %v2088
    %3167 = vmatpush1.bf16.msra.mxu0 %v2087
    %3168 = vmatprep.subr.bf16.mxu0 %v2092
    %3169 = vmatpush1.bf16.msra.mxu0 %v2091
    %3170 = vmatprep.subr.bf16.mxu0 %v2096
    %3171 = vmatpush1.bf16.msra.mxu0 %v2095
    %3172 = vmatprep.subr.bf16.mxu0 %v2100
    %3173 = vmatpush1.bf16.msra.mxu0 %v2099
    %3174 = vmatprep.subr.bf16.mxu0 %v2104
    %3175 = vmatpush1.bf16.msra.mxu0 %v2103
    %3176 = vmatprep.mubr.bf16.mxu0 %v2628
    %3177 = vmatmul.mubr.bf16.gmra.mrb[0].mxu0 %v2627
    %v3178 = vpop.f32.mrb[0].mxu0
    %v3179 = vadd.f32 %v3138, %v3178
    %v3180 = vpop.f32.mrb[0].mxu0
    %v3181 = vadd.f32 %v3140, %v3180
    %v3182 = vpop.f32.mrb[0].mxu0
    %v3183 = vpop.f32.mrb[0].mxu0
    %3184 = vdwg.mxu0
    %v3185 = vld [vmem:[#allocation3 + $0xc0] sm:$0xff]
    %v3186 = vld [vmem:[#allocation3 + $0xc8] sm:$0xff]
    %v3187 = vld [vmem:[#allocation3 + $0xd0] sm:$0xff]
    %v3188 = vld [vmem:[#allocation3 + $0xd8] sm:$0xff]
    %v3189 = vadd.f32 %v3185, %v3097
    %v3190 = vadd.f32 %v3186, %v3099
    %v3191 = vadd.f32 %v3187, %v3179
    %v3192 = vadd.f32 %v3188, %v3181
    %v3193 = vtanh.pop %v3189
    %v3194 = vtanh.pop %v3190
    %v3195 = vtanh.pop %v3191
    %v3196 = vtanh.pop %v3192
    %3197 = vmatprep.subr.bf16.mxu0 %v2282
    %3198 = vmatpush1.bf16.msra.mxu0 %v2281
    %3199 = vmatprep.subr.bf16.mxu0 %v2286
    %3200 = vmatpush1.bf16.msra.mxu0 %v2285
    %3201 = vmatprep.subr.bf16.mxu0 %v2290
    %3202 = vmatpush1.bf16.msra.mxu0 %v2289
    %3203 = vmatprep.subr.bf16.mxu0 %v2294
    %3204 = vmatpush1.bf16.msra.mxu0 %v2293
    %3205 = vmatprep.subr.bf16.mxu0 %v2298
    %3206 = vmatpush1.bf16.msra.mxu0 %v2297
    %3207 = vmatprep.subr.bf16.mxu0 %v2302
    %3208 = vmatpush1.bf16.msra.mxu0 %v2301
    %3209 = vmatprep.subr.bf16.mxu0 %v2306
    %3210 = vmatpush1.bf16.msra.mxu0 %v2305
    %3211 = vmatprep.subr.bf16.mxu0 %v2310
    %3212 = vmatpush1.bf16.msra.mxu0 %v2309
    %3213 = vmatprep.subr.bf16.mxu0 %v2314
    %3214 = vmatpush1.bf16.msra.mxu0 %v2313
    %3215 = vmatprep.subr.bf16.mxu0 %v2318
    %3216 = vmatpush1.bf16.msra.mxu0 %v2317
    %3217 = vmatprep.subr.bf16.mxu0 %v2322
    %3218 = vmatpush1.bf16.msra.mxu0 %v2321
    %3219 = vmatprep.subr.bf16.mxu0 %v2326
    %3220 = vmatpush1.bf16.msra.mxu0 %v2325
    %3221 = vmatprep.subr.bf16.mxu0 %v2330
    %3222 = vmatpush1.bf16.msra.mxu0 %v2329
    %3223 = vmatprep.subr.bf16.mxu0 %v2334
    %3224 = vmatpush1.bf16.msra.mxu0 %v2333
    %3225 = vmatprep.subr.bf16.mxu0 %v2338
    %3226 = vmatpush1.bf16.msra.mxu0 %v2337
    %3227 = vmatprep.subr.bf16.mxu0 %v2342
    %3228 = vmatpush1.bf16.msra.mxu0 %v2341
    %3229 = vmatprep.mubr.bf16.mxu0 %v2626
    %3230 = vmatmul.mubr.bf16.gmra.mrb[0].mxu0 %v2625
    %v3231 = vpop.f32.mrb[0].mxu0
    %v3232 = vadd.f32 0.0, %v3231
    %v3233 = vpop.f32.mrb[0].mxu0
    %v3234 = vadd.f32 0.0, %v3233
    %v3235 = vpop.f32.mrb[0].mxu0
    %v3236 = vpop.f32.mrb[0].mxu0
    %3237 = vdwg.mxu0
    %3238 = vmatprep.subr.bf16.mxu0 %v2346
    %3239 = vmatpush1.bf16.msra.mxu0 %v2345
    %3240 = vmatprep.subr.bf16.mxu0 %v2350
    %3241 = vmatpush1.bf16.msra.mxu0 %v2349
    %3242 = vmatprep.subr.bf16.mxu0 %v2354
    %3243 = vmatpush1.bf16.msra.mxu0 %v2353
    %3244 = vmatprep.subr.bf16.mxu0 %v2358
    %3245 = vmatpush1.bf16.msra.mxu0 %v2357
    %3246 = vmatprep.subr.bf16.mxu0 %v2362
    %3247 = vmatpush1.bf16.msra.mxu0 %v2361
    %3248 = vmatprep.subr.bf16.mxu0 %v2366
    %3249 = vmatpush1.bf16.msra.mxu0 %v2365
    %3250 = vmatprep.subr.bf16.mxu0 %v2370
    %3251 = vmatpush1.bf16.msra.mxu0 %v2369
    %3252 = vmatprep.subr.bf16.mxu0 %v2374
    %3253 = vmatpush1.bf16.msra.mxu0 %v2373
    %3254 = vmatprep.subr.bf16.mxu0 %v2378
    %3255 = vmatpush1.bf16.msra.mxu0 %v2377
    %3256 = vmatprep.subr.bf16.mxu0 %v2382
    %3257 = vmatpush1.bf16.msra.mxu0 %v2381
    %3258 = vmatprep.subr.bf16.mxu0 %v2386
    %3259 = vmatpush1.bf16.msra.mxu0 %v2385
    %3260 = vmatprep.subr.bf16.mxu0 %v2390
    %3261 = vmatpush1.bf16.msra.mxu0 %v2389
    %3262 = vmatprep.subr.bf16.mxu0 %v2394
    %3263 = vmatpush1.bf16.msra.mxu0 %v2393
    %3264 = vmatprep.subr.bf16.mxu0 %v2398
    %3265 = vmatpush1.bf16.msra.mxu0 %v2397
    %3266 = vmatprep.subr.bf16.mxu0 %v2402
    %3267 = vmatpush1.bf16.msra.mxu0 %v2401
    %3268 = vmatprep.subr.bf16.mxu0 %v2406
    %3269 = vmatpush1.bf16.msra.mxu0 %v2405
    %3270 = vmatprep.mubr.bf16.mxu0 %v2628
    %3271 = vmatmul.mubr.bf16.gmra.mrb[0].mxu0 %v2627
    %v3272 = vpop.f32.mrb[0].mxu0
    %v3273 = vadd.f32 %v3232, %v3272
    %v3274 = vpop.f32.mrb[0].mxu0
    %v3275 = vadd.f32 %v3234, %v3274
    %v3276 = vpop.f32.mrb[0].mxu0
    %v3277 = vpop.f32.mrb[0].mxu0
    %3278 = vdwg.mxu0
    %3279 = vmatprep.subr.bf16.mxu0 %v2284
    %3280 = vmatpush1.bf16.msra.mxu0 %v2283
    %3281 = vmatprep.subr.bf16.mxu0 %v2288
    %3282 = vmatpush1.bf16.msra.mxu0 %v2287
    %3283 = vmatprep.subr.bf16.mxu0 %v2292
    %3284 = vmatpush1.bf16.msra.mxu0 %v2291
    %3285 = vmatprep.subr.bf16.mxu0 %v2296
    %3286 = vmatpush1.bf16.msra.mxu0 %v2295
    %3287 = vmatprep.subr.bf16.mxu0 %v2300
    %3288 = vmatpush1.bf16.msra.mxu0 %v2299
    %3289 = vmatprep.subr.bf16.mxu0 %v2304
    %3290 = vmatpush1.bf16.msra.mxu0 %v2303
    %3291 = vmatprep.subr.bf16.mxu0 %v2308
    %3292 = vmatpush1.bf16.msra.mxu0 %v2307
    %3293 = vmatprep.subr.bf16.mxu0 %v2312
    %3294 = vmatpush1.bf16.msra.mxu0 %v2311
    %3295 = vmatprep.subr.bf16.mxu0 %v2316
    %3296 = vmatpush1.bf16.msra.mxu0 %v2315
    %3297 = vmatprep.subr.bf16.mxu0 %v2320
    %3298 = vmatpush1.bf16.msra.mxu0 %v2319
    %3299 = vmatprep.subr.bf16.mxu0 %v2324
    %3300 = vmatpush1.bf16.msra.mxu0 %v2323
    %3301 = vmatprep.subr.bf16.mxu0 %v2328
    %3302 = vmatpush1.bf16.msra.mxu0 %v2327
    %3303 = vmatprep.subr.bf16.mxu0 %v2332
    %3304 = vmatpush1.bf16.msra.mxu0 %v2331
    %3305 = vmatprep.subr.bf16.mxu0 %v2336
    %3306 = vmatpush1.bf16.msra.mxu0 %v2335
    %3307 = vmatprep.subr.bf16.mxu0 %v2340
    %3308 = vmatpush1.bf16.msra.mxu0 %v2339
    %3309 = vmatprep.subr.bf16.mxu0 %v2344
    %3310 = vmatpush1.bf16.msra.mxu0 %v2343
    %3311 = vmatprep.mubr.bf16.mxu0 %v2626
    %3312 = vmatmul.mubr.bf16.gmra.mrb[0].mxu0 %v2625
    %v3313 = vpop.f32.mrb[0].mxu0
    %v3314 = vadd.f32 0.0, %v3313
    %v3315 = vpop.f32.mrb[0].mxu0
    %v3316 = vadd.f32 0.0, %v3315
    %v3317 = vpop.f32.mrb[0].mxu0
    %v3318 = vpop.f32.mrb[0].mxu0
    %3319 = vdwg.mxu0
    %3320 = vmatprep.subr.bf16.mxu0 %v2348
    %3321 = vmatpush1.bf16.msra.mxu0 %v2347
    %3322 = vmatprep.subr.bf16.mxu0 %v2352
    %3323 = vmatpush1.bf16.msra.mxu0 %v2351
    %3324 = vmatprep.subr.bf16.mxu0 %v2356
    %3325 = vmatpush1.bf16.msra.mxu0 %v2355
    %3326 = vmatprep.subr.bf16.mxu0 %v2360
    %3327 = vmatpush1.bf16.msra.mxu0 %v2359
    %3328 = vmatprep.subr.bf16.mxu0 %v2364
    %3329 = vmatpush1.bf16.msra.mxu0 %v2363
    %3330 = vmatprep.subr.bf16.mxu0 %v2368
    %3331 = vmatpush1.bf16.msra.mxu0 %v2367
    %3332 = vmatprep.subr.bf16.mxu0 %v2372
    %3333 = vmatpush1.bf16.msra.mxu0 %v2371
    %3334 = vmatprep.subr.bf16.mxu0 %v2376
    %3335 = vmatpush1.bf16.msra.mxu0 %v2375
    %3336 = vmatprep.subr.bf16.mxu0 %v2380
    %3337 = vmatpush1.bf16.msra.mxu0 %v2379
    %3338 = vmatprep.subr.bf16.mxu0 %v2384
    %3339 = vmatpush1.bf16.msra.mxu0 %v2383
    %3340 = vmatprep.subr.bf16.mxu0 %v2388
    %3341 = vmatpush1.bf16.msra.mxu0 %v2387
    %3342 = vmatprep.subr.bf16.mxu0 %v2392
    %3343 = vmatpush1.bf16.msra.mxu0 %v2391
    %3344 = vmatprep.subr.bf16.mxu0 %v2396
    %3345 = vmatpush1.bf16.msra.mxu0 %v2395
    %3346 = vmatprep.subr.bf16.mxu0 %v2400
    %3347 = vmatpush1.bf16.msra.mxu0 %v2399
    %3348 = vmatprep.subr.bf16.mxu0 %v2404
    %3349 = vmatpush1.bf16.msra.mxu0 %v2403
    %3350 = vmatprep.subr.bf16.mxu0 %v2408
    %3351 = vmatpush1.bf16.msra.mxu0 %v2407
    %3352 = vmatprep.mubr.bf16.mxu0 %v2628
    %3353 = vmatmul.mubr.bf16.gmra.mrb[0].mxu0 %v2627
    %v3354 = vpop.f32.mrb[0].mxu0
    %v3355 = vadd.f32 %v3314, %v3354
    %v3356 = vpop.f32.mrb[0].mxu0
    %v3357 = vadd.f32 %v3316, %v3356
    %v3358 = vpop.f32.mrb[0].mxu0
    %v3359 = vpop.f32.mrb[0].mxu0
    %3360 = vdwg.mxu0
    %v3361 = vld [vmem:[#allocation3 + $0xe0] sm:$0xff]
    %v3362 = vld [vmem:[#allocation3 + $0xe8] sm:$0xff]
    %v3363 = vld [vmem:[#allocation3 + $0xf0] sm:$0xff]
    %v3364 = vld [vmem:[#allocation3 + $0xf8] sm:$0xff]
    %v3365 = vadd.f32 %v3361, %v3273
    %v3366 = vadd.f32 %v3362, %v3275
    %v3367 = vadd.f32 %v3363, %v3355
    %v3368 = vadd.f32 %v3364, %v3357
    %v3369 = vxor.u32 %v3365, 2147483648
    %v3370 = vxor.u32 %v3366, 2147483648
    %v3371 = vxor.u32 %v3367, 2147483648
    %v3372 = vxor.u32 %v3368, 2147483648
    %v3373 = vmul.f32 %v3369, 1.442695
    %v3374 = vpow.pop %v3373
    %v3375 = vmul.f32 %v3370, 1.442695
    %v3376 = vpow.pop %v3375
    %v3377 = vmul.f32 %v3371, 1.442695
    %v3378 = vpow.pop %v3377
    %v3379 = vmul.f32 %v3372, 1.442695
    %v3380 = vpow.pop %v3379
    %v3381 = vadd.f32 %v3374, 1.0
    %v3382 = vadd.f32 %v3376, 1.0
    %v3383 = vadd.f32 %v3378, 1.0
    %v3384 = vadd.f32 %v3380, 1.0
    %v3385 = vrcp.pop %v3381
    %v3386 = vmul.f32 1.0, %v3385
    %v3387 = vrcp.pop %v3382
    %v3388 = vmul.f32 1.0, %v3387
    %v3389 = vrcp.pop %v3383
    %v3390 = vmul.f32 1.0, %v3389
    %v3391 = vrcp.pop %v3384
    %v3392 = vmul.f32 1.0, %v3391
    %v3393 = vmul.f32 %v3014, %v2613
    %v3394 = vmul.f32 %v3016, %v2614
    %v3395 = vmul.f32 %v3018, %v2615
    %v3396 = vmul.f32 %v3020, %v2616
    %v3397 = vmul.f32 %v2818, %v3193
    %v3398 = vmul.f32 %v2820, %v3194
    %v3399 = vmul.f32 %v2822, %v3195
    %v3400 = vmul.f32 %v2824, %v3196
    %v3401 = vadd.f32 %v3393, %v3397
    %v3402 = vadd.f32 %v3394, %v3398
    %v3403 = vadd.f32 %v3395, %v3399
    %v3404 = vadd.f32 %v3396, %v3400
    %v3405 = vtanh.pop %v3401
    %v3406 = vtanh.pop %v3402
    %v3407 = vtanh.pop %v3403
    %v3408 = vtanh.pop %v3404
    %v3409 = vmul.f32 %v3386, %v3405
    %v3410 = vmul.f32 %v3388, %v3406
    %v3411 = vmul.f32 %v3390, %v3407
    %v3412 = vmul.f32 %v3392, %v3408
    %v3413 = vpack.c.bf16 %v3409, %v3409
    %v3414 = vpack.c.bf16 %v3410, %v3410
    %v3415 = vpack.c.bf16 %v3411, %v3411
    %v3416 = vpack.c.bf16 %v3412, %v3412
    %3417 = vmatprep.subr.bf16.mxu0 %v1330
    %3418 = vmatpush1.bf16.msra.mxu0 %v1329
    %3419 = vmatprep.subr.bf16.mxu0 %v1334
    %3420 = vmatpush1.bf16.msra.mxu0 %v1333
    %3421 = vmatprep.subr.bf16.mxu0 %v1338
    %3422 = vmatpush1.bf16.msra.mxu0 %v1337
    %3423 = vmatprep.subr.bf16.mxu0 %v1342
    %3424 = vmatpush1.bf16.msra.mxu0 %v1341
    %3425 = vmatprep.subr.bf16.mxu0 %v1346
    %3426 = vmatpush1.bf16.msra.mxu0 %v1345
    %3427 = vmatprep.subr.bf16.mxu0 %v1350
    %3428 = vmatpush1.bf16.msra.mxu0 %v1349
    %3429 = vmatprep.subr.bf16.mxu0 %v1354
    %3430 = vmatpush1.bf16.msra.mxu0 %v1353
    %3431 = vmatprep.subr.bf16.mxu0 %v1358
    %3432 = vmatpush1.bf16.msra.mxu0 %v1357
    %3433 = vmatprep.subr.bf16.mxu0 %v1362
    %3434 = vmatpush1.bf16.msra.mxu0 %v1361
    %3435 = vmatprep.subr.bf16.mxu0 %v1366
    %3436 = vmatpush1.bf16.msra.mxu0 %v1365
    %3437 = vmatprep.subr.bf16.mxu0 %v1370
    %3438 = vmatpush1.bf16.msra.mxu0 %v1369
    %3439 = vmatprep.subr.bf16.mxu0 %v1374
    %3440 = vmatpush1.bf16.msra.mxu0 %v1373
    %3441 = vmatprep.subr.bf16.mxu0 %v1378
    %3442 = vmatpush1.bf16.msra.mxu0 %v1377
    %3443 = vmatprep.subr.bf16.mxu0 %v1382
    %3444 = vmatpush1.bf16.msra.mxu0 %v1381
    %3445 = vmatprep.subr.bf16.mxu0 %v1386
    %3446 = vmatpush1.bf16.msra.mxu0 %v1385
    %3447 = vmatprep.subr.bf16.mxu0 %v1390
    %3448 = vmatpush1.bf16.msra.mxu0 %v1389
    %3449 = vmatprep.mubr.bf16.mxu0 %v3414
    %3450 = vmatmul.mubr.bf16.gmra.mrb[0].mxu0 %v3413
    %v3451 = vpop.f32.mrb[0].mxu0
    %v3452 = vadd.f32 0.0, %v3451
    %v3453 = vpop.f32.mrb[0].mxu0
    %v3454 = vadd.f32 0.0, %v3453
    %v3455 = vpop.f32.mrb[0].mxu0
    %v3456 = vpop.f32.mrb[0].mxu0
    %3457 = vdwg.mxu0
    %3458 = vmatprep.subr.bf16.mxu0 %v1394
    %3459 = vmatpush1.bf16.msra.mxu0 %v1393
    %3460 = vmatprep.subr.bf16.mxu0 %v1398
    %3461 = vmatpush1.bf16.msra.mxu0 %v1397
    %3462 = vmatprep.subr.bf16.mxu0 %v1402
    %3463 = vmatpush1.bf16.msra.mxu0 %v1401
    %3464 = vmatprep.subr.bf16.mxu0 %v1406
    %3465 = vmatpush1.bf16.msra.mxu0 %v1405
    %3466 = vmatprep.subr.bf16.mxu0 %v1410
    %3467 = vmatpush1.bf16.msra.mxu0 %v1409
    %3468 = vmatprep.subr.bf16.mxu0 %v1414
    %3469 = vmatpush1.bf16.msra.mxu0 %v1413
    %3470 = vmatprep.subr.bf16.mxu0 %v1418
    %3471 = vmatpush1.bf16.msra.mxu0 %v1417
    %3472 = vmatprep.subr.bf16.mxu0 %v1422
    %3473 = vmatpush1.bf16.msra.mxu0 %v1421
    %3474 = vmatprep.subr.bf16.mxu0 %v1426
    %3475 = vmatpush1.bf16.msra.mxu0 %v1425
    %3476 = vmatprep.subr.bf16.mxu0 %v1430
    %3477 = vmatpush1.bf16.msra.mxu0 %v1429
    %3478 = vmatprep.subr.bf16.mxu0 %v1434
    %3479 = vmatpush1.bf16.msra.mxu0 %v1433
    %3480 = vmatprep.subr.bf16.mxu0 %v1438
    %3481 = vmatpush1.bf16.msra.mxu0 %v1437
    %3482 = vmatprep.subr.bf16.mxu0 %v1442
    %3483 = vmatpush1.bf16.msra.mxu0 %v1441
    %3484 = vmatprep.subr.bf16.mxu0 %v1446
    %3485 = vmatpush1.bf16.msra.mxu0 %v1445
    %3486 = vmatprep.subr.bf16.mxu0 %v1450
    %3487 = vmatpush1.bf16.msra.mxu0 %v1449
    %3488 = vmatprep.subr.bf16.mxu0 %v1454
    %3489 = vmatpush1.bf16.msra.mxu0 %v1453
    %3490 = vmatprep.mubr.bf16.mxu0 %v3416
    %3491 = vmatmul.mubr.bf16.gmra.mrb[0].mxu0 %v3415
    %v3492 = vpop.f32.mrb[0].mxu0
    %v3493 = vadd.f32 %v3452, %v3492
    %v3494 = vpop.f32.mrb[0].mxu0
    %v3495 = vadd.f32 %v3454, %v3494
    %v3496 = vpop.f32.mrb[0].mxu0
    %v3497 = vpop.f32.mrb[0].mxu0
    %3498 = vdwg.mxu0
    %3499 = vmatprep.subr.bf16.mxu0 %v1332
    %3500 = vmatpush1.bf16.msra.mxu0 %v1331
    %3501 = vmatprep.subr.bf16.mxu0 %v1336
    %3502 = vmatpush1.bf16.msra.mxu0 %v1335
    %3503 = vmatprep.subr.bf16.mxu0 %v1340
    %3504 = vmatpush1.bf16.msra.mxu0 %v1339
    %3505 = vmatprep.subr.bf16.mxu0 %v1344
    %3506 = vmatpush1.bf16.msra.mxu0 %v1343
    %3507 = vmatprep.subr.bf16.mxu0 %v1348
    %3508 = vmatpush1.bf16.msra.mxu0 %v1347
    %3509 = vmatprep.subr.bf16.mxu0 %v1352
    %3510 = vmatpush1.bf16.msra.mxu0 %v1351
    %3511 = vmatprep.subr.bf16.mxu0 %v1356
    %3512 = vmatpush1.bf16.msra.mxu0 %v1355
    %3513 = vmatprep.subr.bf16.mxu0 %v1360
    %3514 = vmatpush1.bf16.msra.mxu0 %v1359
    %3515 = vmatprep.subr.bf16.mxu0 %v1364
    %3516 = vmatpush1.bf16.msra.mxu0 %v1363
    %3517 = vmatprep.subr.bf16.mxu0 %v1368
    %3518 = vmatpush1.bf16.msra.mxu0 %v1367
    %3519 = vmatprep.subr.bf16.mxu0 %v1372
    %3520 = vmatpush1.bf16.msra.mxu0 %v1371
    %3521 = vmatprep.subr.bf16.mxu0 %v1376
    %3522 = vmatpush1.bf16.msra.mxu0 %v1375
    %3523 = vmatprep.subr.bf16.mxu0 %v1380
    %3524 = vmatpush1.bf16.msra.mxu0 %v1379
    %3525 = vmatprep.subr.bf16.mxu0 %v1384
    %3526 = vmatpush1.bf16.msra.mxu0 %v1383
    %3527 = vmatprep.subr.bf16.mxu0 %v1388
    %3528 = vmatpush1.bf16.msra.mxu0 %v1387
    %3529 = vmatprep.subr.bf16.mxu0 %v1392
    %3530 = vmatpush1.bf16.msra.mxu0 %v1391
    %3531 = vmatprep.mubr.bf16.mxu0 %v3414
    %3532 = vmatmul.mubr.bf16.gmra.mrb[0].mxu0 %v3413
    %v3533 = vpop.f32.mrb[0].mxu0
    %v3534 = vadd.f32 0.0, %v3533
    %v3535 = vpop.f32.mrb[0].mxu0
    %v3536 = vadd.f32 0.0, %v3535
    %v3537 = vpop.f32.mrb[0].mxu0
    %v3538 = vpop.f32.mrb[0].mxu0
    %3539 = vdwg.mxu0
    %3540 = vmatprep.subr.bf16.mxu0 %v1396
    %3541 = vmatpush1.bf16.msra.mxu0 %v1395
    %3542 = vmatprep.subr.bf16.mxu0 %v1400
    %3543 = vmatpush1.bf16.msra.mxu0 %v1399
    %3544 = vmatprep.subr.bf16.mxu0 %v1404
    %3545 = vmatpush1.bf16.msra.mxu0 %v1403
    %3546 = vmatprep.subr.bf16.mxu0 %v1408
    %3547 = vmatpush1.bf16.msra.mxu0 %v1407
    %3548 = vmatprep.subr.bf16.mxu0 %v1412
    %3549 = vmatpush1.bf16.msra.mxu0 %v1411
    %3550 = vmatprep.subr.bf16.mxu0 %v1416
    %3551 = vmatpush1.bf16.msra.mxu0 %v1415
    %3552 = vmatprep.subr.bf16.mxu0 %v1420
    %3553 = vmatpush1.bf16.msra.mxu0 %v1419
    %3554 = vmatprep.subr.bf16.mxu0 %v1424
    %3555 = vmatpush1.bf16.msra.mxu0 %v1423
    %3556 = vmatprep.subr.bf16.mxu0 %v1428
    %3557 = vmatpush1.bf16.msra.mxu0 %v1427
    %3558 = vmatprep.subr.bf16.mxu0 %v1432
    %3559 = vmatpush1.bf16.msra.mxu0 %v1431
    %3560 = vmatprep.subr.bf16.mxu0 %v1436
    %3561 = vmatpush1.bf16.msra.mxu0 %v1435
    %3562 = vmatprep.subr.bf16.mxu0 %v1440
    %3563 = vmatpush1.bf16.msra.mxu0 %v1439
    %3564 = vmatprep.subr.bf16.mxu0 %v1444
    %3565 = vmatpush1.bf16.msra.mxu0 %v1443
    %3566 = vmatprep.subr.bf16.mxu0 %v1448
    %3567 = vmatpush1.bf16.msra.mxu0 %v1447
    %3568 = vmatprep.subr.bf16.mxu0 %v1452
    %3569 = vmatpush1.bf16.msra.mxu0 %v1451
    %3570 = vmatprep.subr.bf16.mxu0 %v1456
    %3571 = vmatpush1.bf16.msra.mxu0 %v1455
    %3572 = vmatprep.mubr.bf16.mxu0 %v3416
    %3573 = vmatmul.mubr.bf16.gmra.mrb[0].mxu0 %v3415
    %v3574 = vpop.f32.mrb[0].mxu0
    %v3575 = vadd.f32 %v3534, %v3574
    %v3576 = vpop.f32.mrb[0].mxu0
    %v3577 = vadd.f32 %v3536, %v3576
    %v3578 = vpop.f32.mrb[0].mxu0
    %v3579 = vpop.f32.mrb[0].mxu0
    %3580 = vdwg.mxu0
    %v3581 = vld [vmem:[#allocation3 + $0x100] sm:$0xff]
    %v3582 = vld [vmem:[#allocation3 + $0x108] sm:$0xff]
    %v3583 = vld [vmem:[#allocation3 + $0x110] sm:$0xff]
    %v3584 = vld [vmem:[#allocation3 + $0x118] sm:$0xff]
    %v3585 = vadd.f32 %v3581, %v3493
    %v3586 = vadd.f32 %v3582, %v3495
    %v3587 = vadd.f32 %v3583, %v3575
    %v3588 = vadd.f32 %v3584, %v3577
    %v3589 = vxor.u32 %v3585, 2147483648
    %v3590 = vxor.u32 %v3586, 2147483648
    %v3591 = vxor.u32 %v3587, 2147483648
    %v3592 = vxor.u32 %v3588, 2147483648
    %v3593 = vmul.f32 %v3589, 1.442695
    %v3594 = vpow.pop %v3593
    %v3595 = vmul.f32 %v3590, 1.442695
    %v3596 = vpow.pop %v3595
    %v3597 = vmul.f32 %v3591, 1.442695
    %v3598 = vpow.pop %v3597
    %v3599 = vmul.f32 %v3592, 1.442695
    %v3600 = vpow.pop %v3599
    %v3601 = vadd.f32 %v3594, 1.0
    %v3602 = vadd.f32 %v3596, 1.0
    %v3603 = vadd.f32 %v3598, 1.0
    %v3604 = vadd.f32 %v3600, 1.0
    %v3605 = vrcp.pop %v3601
    %v3606 = vmul.f32 1.0, %v3605
    %v3607 = vrcp.pop %v3602
    %v3608 = vmul.f32 1.0, %v3607
    %v3609 = vrcp.pop %v3603
    %v3610 = vmul.f32 1.0, %v3609
    %v3611 = vrcp.pop %v3604
    %v3612 = vmul.f32 1.0, %v3611
    %3613 = vmatprep.subr.bf16.mxu0 %v1654
    %3614 = vmatpush1.bf16.msra.mxu0 %v1653
    %3615 = vmatprep.subr.bf16.mxu0 %v1658
    %3616 = vmatpush1.bf16.msra.mxu0 %v1657
    %3617 = vmatprep.subr.bf16.mxu0 %v1662
    %3618 = vmatpush1.bf16.msra.mxu0 %v1661
    %3619 = vmatprep.subr.bf16.mxu0 %v1666
    %3620 = vmatpush1.bf16.msra.mxu0 %v1665
    %3621 = vmatprep.subr.bf16.mxu0 %v1670
    %3622 = vmatpush1.bf16.msra.mxu0 %v1669
    %3623 = vmatprep.subr.bf16.mxu0 %v1674
    %3624 = vmatpush1.bf16.msra.mxu0 %v1673
    %3625 = vmatprep.subr.bf16.mxu0 %v1678
    %3626 = vmatpush1.bf16.msra.mxu0 %v1677
    %3627 = vmatprep.subr.bf16.mxu0 %v1682
    %3628 = vmatpush1.bf16.msra.mxu0 %v1681
    %3629 = vmatprep.subr.bf16.mxu0 %v1686
    %3630 = vmatpush1.bf16.msra.mxu0 %v1685
    %3631 = vmatprep.subr.bf16.mxu0 %v1690
    %3632 = vmatpush1.bf16.msra.mxu0 %v1689
    %3633 = vmatprep.subr.bf16.mxu0 %v1694
    %3634 = vmatpush1.bf16.msra.mxu0 %v1693
    %3635 = vmatprep.subr.bf16.mxu0 %v1698
    %3636 = vmatpush1.bf16.msra.mxu0 %v1697
    %3637 = vmatprep.subr.bf16.mxu0 %v1702
    %3638 = vmatpush1.bf16.msra.mxu0 %v1701
    %3639 = vmatprep.subr.bf16.mxu0 %v1706
    %3640 = vmatpush1.bf16.msra.mxu0 %v1705
    %3641 = vmatprep.subr.bf16.mxu0 %v1710
    %3642 = vmatpush1.bf16.msra.mxu0 %v1709
    %3643 = vmatprep.subr.bf16.mxu0 %v1714
    %3644 = vmatpush1.bf16.msra.mxu0 %v1713
    %3645 = vmatprep.mubr.bf16.mxu0 %v3414
    %3646 = vmatmul.mubr.bf16.gmra.mrb[0].mxu0 %v3413
    %v3647 = vpop.f32.mrb[0].mxu0
    %v3648 = vadd.f32 0.0, %v3647
    %v3649 = vpop.f32.mrb[0].mxu0
    %v3650 = vadd.f32 0.0, %v3649
    %v3651 = vpop.f32.mrb[0].mxu0
    %v3652 = vpop.f32.mrb[0].mxu0
    %3653 = vdwg.mxu0
    %3654 = vmatprep.subr.bf16.mxu0 %v1718
    %3655 = vmatpush1.bf16.msra.mxu0 %v1717
    %3656 = vmatprep.subr.bf16.mxu0 %v1722
    %3657 = vmatpush1.bf16.msra.mxu0 %v1721
    %3658 = vmatprep.subr.bf16.mxu0 %v1726
    %3659 = vmatpush1.bf16.msra.mxu0 %v1725
    %3660 = vmatprep.subr.bf16.mxu0 %v1730
    %3661 = vmatpush1.bf16.msra.mxu0 %v1729
    %3662 = vmatprep.subr.bf16.mxu0 %v1734
    %3663 = vmatpush1.bf16.msra.mxu0 %v1733
    %3664 = vmatprep.subr.bf16.mxu0 %v1738
    %3665 = vmatpush1.bf16.msra.mxu0 %v1737
    %3666 = vmatprep.subr.bf16.mxu0 %v1742
    %3667 = vmatpush1.bf16.msra.mxu0 %v1741
    %3668 = vmatprep.subr.bf16.mxu0 %v1746
    %3669 = vmatpush1.bf16.msra.mxu0 %v1745
    %3670 = vmatprep.subr.bf16.mxu0 %v1750
    %3671 = vmatpush1.bf16.msra.mxu0 %v1749
    %3672 = vmatprep.subr.bf16.mxu0 %v1754
    %3673 = vmatpush1.bf16.msra.mxu0 %v1753
    %3674 = vmatprep.subr.bf16.mxu0 %v1758
    %3675 = vmatpush1.bf16.msra.mxu0 %v1757
    %3676 = vmatprep.subr.bf16.mxu0 %v1762
    %3677 = vmatpush1.bf16.msra.mxu0 %v1761
    %3678 = vmatprep.subr.bf16.mxu0 %v1766
    %3679 = vmatpush1.bf16.msra.mxu0 %v1765
    %3680 = vmatprep.subr.bf16.mxu0 %v1770
    %3681 = vmatpush1.bf16.msra.mxu0 %v1769
    %3682 = vmatprep.subr.bf16.mxu0 %v1774
    %3683 = vmatpush1.bf16.msra.mxu0 %v1773
    %3684 = vmatprep.subr.bf16.mxu0 %v1778
    %3685 = vmatpush1.bf16.msra.mxu0 %v1777
    %3686 = vmatprep.mubr.bf16.mxu0 %v3416
    %3687 = vmatmul.mubr.bf16.gmra.mrb[0].mxu0 %v3415
    %v3688 = vpop.f32.mrb[0].mxu0
    %v3689 = vadd.f32 %v3648, %v3688
    %v3690 = vpop.f32.mrb[0].mxu0
    %v3691 = vadd.f32 %v3650, %v3690
    %v3692 = vpop.f32.mrb[0].mxu0
    %v3693 = vpop.f32.mrb[0].mxu0
    %3694 = vdwg.mxu0
    %3695 = vmatprep.subr.bf16.mxu0 %v1656
    %3696 = vmatpush1.bf16.msra.mxu0 %v1655
    %3697 = vmatprep.subr.bf16.mxu0 %v1660
    %3698 = vmatpush1.bf16.msra.mxu0 %v1659
    %3699 = vmatprep.subr.bf16.mxu0 %v1664
    %3700 = vmatpush1.bf16.msra.mxu0 %v1663
    %3701 = vmatprep.subr.bf16.mxu0 %v1668
    %3702 = vmatpush1.bf16.msra.mxu0 %v1667
    %3703 = vmatprep.subr.bf16.mxu0 %v1672
    %3704 = vmatpush1.bf16.msra.mxu0 %v1671
    %3705 = vmatprep.subr.bf16.mxu0 %v1676
    %3706 = vmatpush1.bf16.msra.mxu0 %v1675
    %3707 = vmatprep.subr.bf16.mxu0 %v1680
    %3708 = vmatpush1.bf16.msra.mxu0 %v1679
    %3709 = vmatprep.subr.bf16.mxu0 %v1684
    %3710 = vmatpush1.bf16.msra.mxu0 %v1683
    %3711 = vmatprep.subr.bf16.mxu0 %v1688
    %3712 = vmatpush1.bf16.msra.mxu0 %v1687
    %3713 = vmatprep.subr.bf16.mxu0 %v1692
    %3714 = vmatpush1.bf16.msra.mxu0 %v1691
    %3715 = vmatprep.subr.bf16.mxu0 %v1696
    %3716 = vmatpush1.bf16.msra.mxu0 %v1695
    %3717 = vmatprep.subr.bf16.mxu0 %v1700
    %3718 = vmatpush1.bf16.msra.mxu0 %v1699
    %3719 = vmatprep.subr.bf16.mxu0 %v1704
    %3720 = vmatpush1.bf16.msra.mxu0 %v1703
    %3721 = vmatprep.subr.bf16.mxu0 %v1708
    %3722 = vmatpush1.bf16.msra.mxu0 %v1707
    %3723 = vmatprep.subr.bf16.mxu0 %v1712
    %3724 = vmatpush1.bf16.msra.mxu0 %v1711
    %3725 = vmatprep.subr.bf16.mxu0 %v1716
    %3726 = vmatpush1.bf16.msra.mxu0 %v1715
    %3727 = vmatprep.mubr.bf16.mxu0 %v3414
    %3728 = vmatmul.mubr.bf16.gmra.mrb[0].mxu0 %v3413
    %v3729 = vpop.f32.mrb[0].mxu0
    %v3730 = vadd.f32 0.0, %v3729
    %v3731 = vpop.f32.mrb[0].mxu0
    %v3732 = vadd.f32 0.0, %v3731
    %v3733 = vpop.f32.mrb[0].mxu0
    %v3734 = vpop.f32.mrb[0].mxu0
    %3735 = vdwg.mxu0
    %3736 = vmatprep.subr.bf16.mxu0 %v1720
    %3737 = vmatpush1.bf16.msra.mxu0 %v1719
    %3738 = vmatprep.subr.bf16.mxu0 %v1724
    %3739 = vmatpush1.bf16.msra.mxu0 %v1723
    %3740 = vmatprep.subr.bf16.mxu0 %v1728
    %3741 = vmatpush1.bf16.msra.mxu0 %v1727
    %3742 = vmatprep.subr.bf16.mxu0 %v1732
    %3743 = vmatpush1.bf16.msra.mxu0 %v1731
    %3744 = vmatprep.subr.bf16.mxu0 %v1736
    %3745 = vmatpush1.bf16.msra.mxu0 %v1735
    %3746 = vmatprep.subr.bf16.mxu0 %v1740
    %3747 = vmatpush1.bf16.msra.mxu0 %v1739
    %3748 = vmatprep.subr.bf16.mxu0 %v1744
    %3749 = vmatpush1.bf16.msra.mxu0 %v1743
    %3750 = vmatprep.subr.bf16.mxu0 %v1748
    %3751 = vmatpush1.bf16.msra.mxu0 %v1747
    %3752 = vmatprep.subr.bf16.mxu0 %v1752
    %3753 = vmatpush1.bf16.msra.mxu0 %v1751
    %3754 = vmatprep.subr.bf16.mxu0 %v1756
    %3755 = vmatpush1.bf16.msra.mxu0 %v1755
    %3756 = vmatprep.subr.bf16.mxu0 %v1760
    %3757 = vmatpush1.bf16.msra.mxu0 %v1759
    %3758 = vmatprep.subr.bf16.mxu0 %v1764
    %3759 = vmatpush1.bf16.msra.mxu0 %v1763
    %3760 = vmatprep.subr.bf16.mxu0 %v1768
    %3761 = vmatpush1.bf16.msra.mxu0 %v1767
    %3762 = vmatprep.subr.bf16.mxu0 %v1772
    %3763 = vmatpush1.bf16.msra.mxu0 %v1771
    %3764 = vmatprep.subr.bf16.mxu0 %v1776
    %3765 = vmatpush1.bf16.msra.mxu0 %v1775
    %3766 = vmatprep.subr.bf16.mxu0 %v1780
    %3767 = vmatpush1.bf16.msra.mxu0 %v1779
    %3768 = vmatprep.mubr.bf16.mxu0 %v3416
    %3769 = vmatmul.mubr.bf16.gmra.mrb[0].mxu0 %v3415
    %v3770 = vpop.f32.mrb[0].mxu0
    %v3771 = vadd.f32 %v3730, %v3770
    %v3772 = vpop.f32.mrb[0].mxu0
    %v3773 = vadd.f32 %v3732, %v3772
    %v3774 = vpop.f32.mrb[0].mxu0
    %v3775 = vpop.f32.mrb[0].mxu0
    %3776 = vdwg.mxu0
    %v3777 = vld [vmem:[#allocation3 + $0x120] sm:$0xff]
    %v3778 = vld [vmem:[#allocation3 + $0x128] sm:$0xff]
    %v3779 = vld [vmem:[#allocation3 + $0x130] sm:$0xff]
    %v3780 = vld [vmem:[#allocation3 + $0x138] sm:$0xff]
    %v3781 = vadd.f32 %v3777, %v3689
    %v3782 = vadd.f32 %v3778, %v3691
    %v3783 = vadd.f32 %v3779, %v3771
    %v3784 = vadd.f32 %v3780, %v3773
    %v3785 = vxor.u32 %v3781, 2147483648
    %v3786 = vxor.u32 %v3782, 2147483648
    %v3787 = vxor.u32 %v3783, 2147483648
    %v3788 = vxor.u32 %v3784, 2147483648
    %v3789 = vmul.f32 %v3785, 1.442695
    %v3790 = vpow.pop %v3789
    %v3791 = vmul.f32 %v3786, 1.442695
    %v3792 = vpow.pop %v3791
    %v3793 = vmul.f32 %v3787, 1.442695
    %v3794 = vpow.pop %v3793
    %v3795 = vmul.f32 %v3788, 1.442695
    %v3796 = vpow.pop %v3795
    %v3797 = vadd.f32 %v3790, 1.0
    %v3798 = vadd.f32 %v3792, 1.0
    %v3799 = vadd.f32 %v3794, 1.0
    %v3800 = vadd.f32 %v3796, 1.0
    %v3801 = vrcp.pop %v3797
    %v3802 = vmul.f32 1.0, %v3801
    %v3803 = vrcp.pop %v3798
    %v3804 = vmul.f32 1.0, %v3803
    %v3805 = vrcp.pop %v3799
    %v3806 = vmul.f32 1.0, %v3805
    %v3807 = vrcp.pop %v3800
    %v3808 = vmul.f32 1.0, %v3807
    %3809 = vmatprep.subr.bf16.mxu0 %v1978
    %3810 = vmatpush1.bf16.msra.mxu0 %v1977
    %3811 = vmatprep.subr.bf16.mxu0 %v1982
    %3812 = vmatpush1.bf16.msra.mxu0 %v1981
    %3813 = vmatprep.subr.bf16.mxu0 %v1986
    %3814 = vmatpush1.bf16.msra.mxu0 %v1985
    %3815 = vmatprep.subr.bf16.mxu0 %v1990
    %3816 = vmatpush1.bf16.msra.mxu0 %v1989
    %3817 = vmatprep.subr.bf16.mxu0 %v1994
    %3818 = vmatpush1.bf16.msra.mxu0 %v1993
    %3819 = vmatprep.subr.bf16.mxu0 %v1998
    %3820 = vmatpush1.bf16.msra.mxu0 %v1997
    %3821 = vmatprep.subr.bf16.mxu0 %v2002
    %3822 = vmatpush1.bf16.msra.mxu0 %v2001
    %3823 = vmatprep.subr.bf16.mxu0 %v2006
    %3824 = vmatpush1.bf16.msra.mxu0 %v2005
    %3825 = vmatprep.subr.bf16.mxu0 %v2010
    %3826 = vmatpush1.bf16.msra.mxu0 %v2009
    %3827 = vmatprep.subr.bf16.mxu0 %v2014
    %3828 = vmatpush1.bf16.msra.mxu0 %v2013
    %3829 = vmatprep.subr.bf16.mxu0 %v2018
    %3830 = vmatpush1.bf16.msra.mxu0 %v2017
    %3831 = vmatprep.subr.bf16.mxu0 %v2022
    %3832 = vmatpush1.bf16.msra.mxu0 %v2021
    %3833 = vmatprep.subr.bf16.mxu0 %v2026
    %3834 = vmatpush1.bf16.msra.mxu0 %v2025
    %3835 = vmatprep.subr.bf16.mxu0 %v2030
    %3836 = vmatpush1.bf16.msra.mxu0 %v2029
    %3837 = vmatprep.subr.bf16.mxu0 %v2034
    %3838 = vmatpush1.bf16.msra.mxu0 %v2033
    %3839 = vmatprep.subr.bf16.mxu0 %v2038
    %3840 = vmatpush1.bf16.msra.mxu0 %v2037
    %3841 = vmatprep.mubr.bf16.mxu0 %v3414
    %3842 = vmatmul.mubr.bf16.gmra.mrb[0].mxu0 %v3413
    %v3843 = vpop.f32.mrb[0].mxu0
    %v3844 = vadd.f32 0.0, %v3843
    %v3845 = vpop.f32.mrb[0].mxu0
    %v3846 = vadd.f32 0.0, %v3845
    %v3847 = vpop.f32.mrb[0].mxu0
    %v3848 = vpop.f32.mrb[0].mxu0
    %3849 = vdwg.mxu0
    %3850 = vmatprep.subr.bf16.mxu0 %v2042
    %3851 = vmatpush1.bf16.msra.mxu0 %v2041
    %3852 = vmatprep.subr.bf16.mxu0 %v2046
    %3853 = vmatpush1.bf16.msra.mxu0 %v2045
    %3854 = vmatprep.subr.bf16.mxu0 %v2050
    %3855 = vmatpush1.bf16.msra.mxu0 %v2049
    %3856 = vmatprep.subr.bf16.mxu0 %v2054
    %3857 = vmatpush1.bf16.msra.mxu0 %v2053
    %3858 = vmatprep.subr.bf16.mxu0 %v2058
    %3859 = vmatpush1.bf16.msra.mxu0 %v2057
    %3860 = vmatprep.subr.bf16.mxu0 %v2062
    %3861 = vmatpush1.bf16.msra.mxu0 %v2061
    %3862 = vmatprep.subr.bf16.mxu0 %v2066
    %3863 = vmatpush1.bf16.msra.mxu0 %v2065
    %3864 = vmatprep.subr.bf16.mxu0 %v2070
    %3865 = vmatpush1.bf16.msra.mxu0 %v2069
    %3866 = vmatprep.subr.bf16.mxu0 %v2074
    %3867 = vmatpush1.bf16.msra.mxu0 %v2073
    %3868 = vmatprep.subr.bf16.mxu0 %v2078
    %3869 = vmatpush1.bf16.msra.mxu0 %v2077
    %3870 = vmatprep.subr.bf16.mxu0 %v2082
    %3871 = vmatpush1.bf16.msra.mxu0 %v2081
    %3872 = vmatprep.subr.bf16.mxu0 %v2086
    %3873 = vmatpush1.bf16.msra.mxu0 %v2085
    %3874 = vmatprep.subr.bf16.mxu0 %v2090
    %3875 = vmatpush1.bf16.msra.mxu0 %v2089
    %3876 = vmatprep.subr.bf16.mxu0 %v2094
    %3877 = vmatpush1.bf16.msra.mxu0 %v2093
    %3878 = vmatprep.subr.bf16.mxu0 %v2098
    %3879 = vmatpush1.bf16.msra.mxu0 %v2097
    %3880 = vmatprep.subr.bf16.mxu0 %v2102
    %3881 = vmatpush1.bf16.msra.mxu0 %v2101
    %3882 = vmatprep.mubr.bf16.mxu0 %v3416
    %3883 = vmatmul.mubr.bf16.gmra.mrb[0].mxu0 %v3415
    %v3884 = vpop.f32.mrb[0].mxu0
    %v3885 = vadd.f32 %v3844, %v3884
    %v3886 = vpop.f32.mrb[0].mxu0
    %v3887 = vadd.f32 %v3846, %v3886
    %v3888 = vpop.f32.mrb[0].mxu0
    %v3889 = vpop.f32.mrb[0].mxu0
    %3890 = vdwg.mxu0
    %3891 = vmatprep.subr.bf16.mxu0 %v1980
    %3892 = vmatpush1.bf16.msra.mxu0 %v1979
    %3893 = vmatprep.subr.bf16.mxu0 %v1984
    %3894 = vmatpush1.bf16.msra.mxu0 %v1983
    %3895 = vmatprep.subr.bf16.mxu0 %v1988
    %3896 = vmatpush1.bf16.msra.mxu0 %v1987
    %3897 = vmatprep.subr.bf16.mxu0 %v1992
    %3898 = vmatpush1.bf16.msra.mxu0 %v1991
    %3899 = vmatprep.subr.bf16.mxu0 %v1996
    %3900 = vmatpush1.bf16.msra.mxu0 %v1995
    %3901 = vmatprep.subr.bf16.mxu0 %v2000
    %3902 = vmatpush1.bf16.msra.mxu0 %v1999
    %3903 = vmatprep.subr.bf16.mxu0 %v2004
    %3904 = vmatpush1.bf16.msra.mxu0 %v2003
    %3905 = vmatprep.subr.bf16.mxu0 %v2008
    %3906 = vmatpush1.bf16.msra.mxu0 %v2007
    %3907 = vmatprep.subr.bf16.mxu0 %v2012
    %3908 = vmatpush1.bf16.msra.mxu0 %v2011
    %3909 = vmatprep.subr.bf16.mxu0 %v2016
    %3910 = vmatpush1.bf16.msra.mxu0 %v2015
    %3911 = vmatprep.subr.bf16.mxu0 %v2020
    %3912 = vmatpush1.bf16.msra.mxu0 %v2019
    %3913 = vmatprep.subr.bf16.mxu0 %v2024
    %3914 = vmatpush1.bf16.msra.mxu0 %v2023
    %3915 = vmatprep.subr.bf16.mxu0 %v2028
    %3916 = vmatpush1.bf16.msra.mxu0 %v2027
    %3917 = vmatprep.subr.bf16.mxu0 %v2032
    %3918 = vmatpush1.bf16.msra.mxu0 %v2031
    %3919 = vmatprep.subr.bf16.mxu0 %v2036
    %3920 = vmatpush1.bf16.msra.mxu0 %v2035
    %3921 = vmatprep.subr.bf16.mxu0 %v2040
    %3922 = vmatpush1.bf16.msra.mxu0 %v2039
    %3923 = vmatprep.mubr.bf16.mxu0 %v3414
    %3924 = vmatmul.mubr.bf16.gmra.mrb[0].mxu0 %v3413
    %v3925 = vpop.f32.mrb[0].mxu0
    %v3926 = vadd.f32 0.0, %v3925
    %v3927 = vpop.f32.mrb[0].mxu0
    %v3928 = vadd.f32 0.0, %v3927
    %v3929 = vpop.f32.mrb[0].mxu0
    %v3930 = vpop.f32.mrb[0].mxu0
    %3931 = vdwg.mxu0
    %3932 = vmatprep.subr.bf16.mxu0 %v2044
    %3933 = vmatpush1.bf16.msra.mxu0 %v2043
    %3934 = vmatprep.subr.bf16.mxu0 %v2048
    %3935 = vmatpush1.bf16.msra.mxu0 %v2047
    %3936 = vmatprep.subr.bf16.mxu0 %v2052
    %3937 = vmatpush1.bf16.msra.mxu0 %v2051
    %3938 = vmatprep.subr.bf16.mxu0 %v2056
    %3939 = vmatpush1.bf16.msra.mxu0 %v2055
    %3940 = vmatprep.subr.bf16.mxu0 %v2060
    %3941 = vmatpush1.bf16.msra.mxu0 %v2059
    %3942 = vmatprep.subr.bf16.mxu0 %v2064
    %3943 = vmatpush1.bf16.msra.mxu0 %v2063
    %3944 = vmatprep.subr.bf16.mxu0 %v2068
    %3945 = vmatpush1.bf16.msra.mxu0 %v2067
    %3946 = vmatprep.subr.bf16.mxu0 %v2072
    %3947 = vmatpush1.bf16.msra.mxu0 %v2071
    %3948 = vmatprep.subr.bf16.mxu0 %v2076
    %3949 = vmatpush1.bf16.msra.mxu0 %v2075
    %3950 = vmatprep.subr.bf16.mxu0 %v2080
    %3951 = vmatpush1.bf16.msra.mxu0 %v2079
    %3952 = vmatprep.subr.bf16.mxu0 %v2084
    %3953 = vmatpush1.bf16.msra.mxu0 %v2083
    %3954 = vmatprep.subr.bf16.mxu0 %v2088
    %3955 = vmatpush1.bf16.msra.mxu0 %v2087
    %3956 = vmatprep.subr.bf16.mxu0 %v2092
    %3957 = vmatpush1.bf16.msra.mxu0 %v2091
    %3958 = vmatprep.subr.bf16.mxu0 %v2096
    %3959 = vmatpush1.bf16.msra.mxu0 %v2095
    %3960 = vmatprep.subr.bf16.mxu0 %v2100
    %3961 = vmatpush1.bf16.msra.mxu0 %v2099
    %3962 = vmatprep.subr.bf16.mxu0 %v2104
    %3963 = vmatpush1.bf16.msra.mxu0 %v2103
    %3964 = vmatprep.mubr.bf16.mxu0 %v3416
    %3965 = vmatmul.mubr.bf16.gmra.mrb[0].mxu0 %v3415
    %v3966 = vpop.f32.mrb[0].mxu0
    %v3967 = vadd.f32 %v3926, %v3966
    %v3968 = vpop.f32.mrb[0].mxu0
    %v3969 = vadd.f32 %v3928, %v3968
    %v3970 = vpop.f32.mrb[0].mxu0
    %v3971 = vpop.f32.mrb[0].mxu0
    %3972 = vdwg.mxu0
    %v3973 = vld [vmem:[#allocation3 + $0x140] sm:$0xff]
    %v3974 = vld [vmem:[#allocation3 + $0x148] sm:$0xff]
    %v3975 = vld [vmem:[#allocation3 + $0x150] sm:$0xff]
    %v3976 = vld [vmem:[#allocation3 + $0x158] sm:$0xff]
    %v3977 = vadd.f32 %v3973, %v3885
    %v3978 = vadd.f32 %v3974, %v3887
    %v3979 = vadd.f32 %v3975, %v3967
    %v3980 = vadd.f32 %v3976, %v3969
    %v3981 = vtanh.pop %v3977
    %v3982 = vtanh.pop %v3978
    %v3983 = vtanh.pop %v3979
    %v3984 = vtanh.pop %v3980
    %3985 = vmatprep.subr.bf16.mxu0 %v2282
    %3986 = vmatpush1.bf16.msra.mxu0 %v2281
    %3987 = vmatprep.subr.bf16.mxu0 %v2286
    %3988 = vmatpush1.bf16.msra.mxu0 %v2285
    %3989 = vmatprep.subr.bf16.mxu0 %v2290
    %3990 = vmatpush1.bf16.msra.mxu0 %v2289
    %3991 = vmatprep.subr.bf16.mxu0 %v2294
    %3992 = vmatpush1.bf16.msra.mxu0 %v2293
    %3993 = vmatprep.subr.bf16.mxu0 %v2298
    %3994 = vmatpush1.bf16.msra.mxu0 %v2297
    %3995 = vmatprep.subr.bf16.mxu0 %v2302
    %3996 = vmatpush1.bf16.msra.mxu0 %v2301
    %3997 = vmatprep.subr.bf16.mxu0 %v2306
    %3998 = vmatpush1.bf16.msra.mxu0 %v2305
    %3999 = vmatprep.subr.bf16.mxu0 %v2310
    %4000 = vmatpush1.bf16.msra.mxu0 %v2309
    %4001 = vmatprep.subr.bf16.mxu0 %v2314
    %4002 = vmatpush1.bf16.msra.mxu0 %v2313
    %4003 = vmatprep.subr.bf16.mxu0 %v2318
    %4004 = vmatpush1.bf16.msra.mxu0 %v2317
    %4005 = vmatprep.subr.bf16.mxu0 %v2322
    %4006 = vmatpush1.bf16.msra.mxu0 %v2321
    %4007 = vmatprep.subr.bf16.mxu0 %v2326
    %4008 = vmatpush1.bf16.msra.mxu0 %v2325
    %4009 = vmatprep.subr.bf16.mxu0 %v2330
    %4010 = vmatpush1.bf16.msra.mxu0 %v2329
    %4011 = vmatprep.subr.bf16.mxu0 %v2334
    %4012 = vmatpush1.bf16.msra.mxu0 %v2333
    %4013 = vmatprep.subr.bf16.mxu0 %v2338
    %4014 = vmatpush1.bf16.msra.mxu0 %v2337
    %4015 = vmatprep.subr.bf16.mxu0 %v2342
    %4016 = vmatpush1.bf16.msra.mxu0 %v2341
    %4017 = vmatprep.mubr.bf16.mxu0 %v3414
    %4018 = vmatmul.mubr.bf16.gmra.mrb[0].mxu0 %v3413
    %v4019 = vpop.f32.mrb[0].mxu0
    %v4020 = vadd.f32 0.0, %v4019
    %v4021 = vpop.f32.mrb[0].mxu0
    %v4022 = vadd.f32 0.0, %v4021
    %v4023 = vpop.f32.mrb[0].mxu0
    %v4024 = vpop.f32.mrb[0].mxu0
    %4025 = vdwg.mxu0
    %4026 = vmatprep.subr.bf16.mxu0 %v2346
    %4027 = vmatpush1.bf16.msra.mxu0 %v2345
    %4028 = vmatprep.subr.bf16.mxu0 %v2350
    %4029 = vmatpush1.bf16.msra.mxu0 %v2349
    %4030 = vmatprep.subr.bf16.mxu0 %v2354
    %4031 = vmatpush1.bf16.msra.mxu0 %v2353
    %4032 = vmatprep.subr.bf16.mxu0 %v2358
    %4033 = vmatpush1.bf16.msra.mxu0 %v2357
    %4034 = vmatprep.subr.bf16.mxu0 %v2362
    %4035 = vmatpush1.bf16.msra.mxu0 %v2361
    %4036 = vmatprep.subr.bf16.mxu0 %v2366
    %4037 = vmatpush1.bf16.msra.mxu0 %v2365
    %4038 = vmatprep.subr.bf16.mxu0 %v2370
    %4039 = vmatpush1.bf16.msra.mxu0 %v2369
    %4040 = vmatprep.subr.bf16.mxu0 %v2374
    %4041 = vmatpush1.bf16.msra.mxu0 %v2373
    %4042 = vmatprep.subr.bf16.mxu0 %v2378
    %4043 = vmatpush1.bf16.msra.mxu0 %v2377
    %4044 = vmatprep.subr.bf16.mxu0 %v2382
    %4045 = vmatpush1.bf16.msra.mxu0 %v2381
    %4046 = vmatprep.subr.bf16.mxu0 %v2386
    %4047 = vmatpush1.bf16.msra.mxu0 %v2385
    %4048 = vmatprep.subr.bf16.mxu0 %v2390
    %4049 = vmatpush1.bf16.msra.mxu0 %v2389
    %4050 = vmatprep.subr.bf16.mxu0 %v2394
    %4051 = vmatpush1.bf16.msra.mxu0 %v2393
    %4052 = vmatprep.subr.bf16.mxu0 %v2398
    %4053 = vmatpush1.bf16.msra.mxu0 %v2397
    %4054 = vmatprep.subr.bf16.mxu0 %v2402
    %4055 = vmatpush1.bf16.msra.mxu0 %v2401
    %4056 = vmatprep.subr.bf16.mxu0 %v2406
    %4057 = vmatpush1.bf16.msra.mxu0 %v2405
    %4058 = vmatprep.mubr.bf16.mxu0 %v3416
    %4059 = vmatmul.mubr.bf16.gmra.mrb[0].mxu0 %v3415
    %v4060 = vpop.f32.mrb[0].mxu0
    %v4061 = vadd.f32 %v4020, %v4060
    %v4062 = vpop.f32.mrb[0].mxu0
    %v4063 = vadd.f32 %v4022, %v4062
    %v4064 = vpop.f32.mrb[0].mxu0
    %v4065 = vpop.f32.mrb[0].mxu0
    %4066 = vdwg.mxu0
    %4067 = vmatprep.subr.bf16.mxu0 %v2284
    %4068 = vmatpush1.bf16.msra.mxu0 %v2283
    %4069 = vmatprep.subr.bf16.mxu0 %v2288
    %4070 = vmatpush1.bf16.msra.mxu0 %v2287
    %4071 = vmatprep.subr.bf16.mxu0 %v2292
    %4072 = vmatpush1.bf16.msra.mxu0 %v2291
    %4073 = vmatprep.subr.bf16.mxu0 %v2296
    %4074 = vmatpush1.bf16.msra.mxu0 %v2295
    %4075 = vmatprep.subr.bf16.mxu0 %v2300
    %4076 = vmatpush1.bf16.msra.mxu0 %v2299
    %4077 = vmatprep.subr.bf16.mxu0 %v2304
    %4078 = vmatpush1.bf16.msra.mxu0 %v2303
    %4079 = vmatprep.subr.bf16.mxu0 %v2308
    %4080 = vmatpush1.bf16.msra.mxu0 %v2307
    %4081 = vmatprep.subr.bf16.mxu0 %v2312
    %4082 = vmatpush1.bf16.msra.mxu0 %v2311
    %4083 = vmatprep.subr.bf16.mxu0 %v2316
    %4084 = vmatpush1.bf16.msra.mxu0 %v2315
    %4085 = vmatprep.subr.bf16.mxu0 %v2320
    %4086 = vmatpush1.bf16.msra.mxu0 %v2319
    %4087 = vmatprep.subr.bf16.mxu0 %v2324
    %4088 = vmatpush1.bf16.msra.mxu0 %v2323
    %4089 = vmatprep.subr.bf16.mxu0 %v2328
    %4090 = vmatpush1.bf16.msra.mxu0 %v2327
    %4091 = vmatprep.subr.bf16.mxu0 %v2332
    %4092 = vmatpush1.bf16.msra.mxu0 %v2331
    %4093 = vmatprep.subr.bf16.mxu0 %v2336
    %4094 = vmatpush1.bf16.msra.mxu0 %v2335
    %4095 = vmatprep.subr.bf16.mxu0 %v2340
    %4096 = vmatpush1.bf16.msra.mxu0 %v2339
    %4097 = vmatprep.subr.bf16.mxu0 %v2344
    %4098 = vmatpush1.bf16.msra.mxu0 %v2343
    %4099 = vmatprep.mubr.bf16.mxu0 %v3414
    %4100 = vmatmul.mubr.bf16.gmra.mrb[0].mxu0 %v3413
    %v4101 = vpop.f32.mrb[0].mxu0
    %v4102 = vadd.f32 0.0, %v4101
    %v4103 = vpop.f32.mrb[0].mxu0
    %v4104 = vadd.f32 0.0, %v4103
    %v4105 = vpop.f32.mrb[0].mxu0
    %v4106 = vpop.f32.mrb[0].mxu0
    %4107 = vdwg.mxu0
    %4108 = vmatprep.subr.bf16.mxu0 %v2348
    %4109 = vmatpush1.bf16.msra.mxu0 %v2347
    %4110 = vmatprep.subr.bf16.mxu0 %v2352
    %4111 = vmatpush1.bf16.msra.mxu0 %v2351
    %4112 = vmatprep.subr.bf16.mxu0 %v2356
    %4113 = vmatpush1.bf16.msra.mxu0 %v2355
    %4114 = vmatprep.subr.bf16.mxu0 %v2360
    %4115 = vmatpush1.bf16.msra.mxu0 %v2359
    %4116 = vmatprep.subr.bf16.mxu0 %v2364
    %4117 = vmatpush1.bf16.msra.mxu0 %v2363
    %4118 = vmatprep.subr.bf16.mxu0 %v2368
    %4119 = vmatpush1.bf16.msra.mxu0 %v2367
    %4120 = vmatprep.subr.bf16.mxu0 %v2372
    %4121 = vmatpush1.bf16.msra.mxu0 %v2371
    %4122 = vmatprep.subr.bf16.mxu0 %v2376
    %4123 = vmatpush1.bf16.msra.mxu0 %v2375
    %4124 = vmatprep.subr.bf16.mxu0 %v2380
    %4125 = vmatpush1.bf16.msra.mxu0 %v2379
    %4126 = vmatprep.subr.bf16.mxu0 %v2384
    %4127 = vmatpush1.bf16.msra.mxu0 %v2383
    %4128 = vmatprep.subr.bf16.mxu0 %v2388
    %4129 = vmatpush1.bf16.msra.mxu0 %v2387
    %4130 = vmatprep.subr.bf16.mxu0 %v2392
    %4131 = vmatpush1.bf16.msra.mxu0 %v2391
    %4132 = vmatprep.subr.bf16.mxu0 %v2396
    %4133 = vmatpush1.bf16.msra.mxu0 %v2395
    %4134 = vmatprep.subr.bf16.mxu0 %v2400
    %4135 = vmatpush1.bf16.msra.mxu0 %v2399
    %4136 = vmatprep.subr.bf16.mxu0 %v2404
    %4137 = vmatpush1.bf16.msra.mxu0 %v2403
    %4138 = vmatprep.subr.bf16.mxu0 %v2408
    %4139 = vmatpush1.bf16.msra.mxu0 %v2407
    %4140 = vmatprep.mubr.bf16.mxu0 %v3416
    %4141 = vmatmul.mubr.bf16.gmra.mrb[0].mxu0 %v3415
    %v4142 = vpop.f32.mrb[0].mxu0
    %v4143 = vadd.f32 %v4102, %v4142
    %v4144 = vpop.f32.mrb[0].mxu0
    %v4145 = vadd.f32 %v4104, %v4144
    %v4146 = vpop.f32.mrb[0].mxu0
    %v4147 = vpop.f32.mrb[0].mxu0
    %4148 = vdwg.mxu0
    %v4149 = vld [vmem:[#allocation3 + $0x160] sm:$0xff]
    %v4150 = vld [vmem:[#allocation3 + $0x168] sm:$0xff]
    %v4151 = vld [vmem:[#allocation3 + $0x170] sm:$0xff]
    %v4152 = vld [vmem:[#allocation3 + $0x178] sm:$0xff]
    %v4153 = vadd.f32 %v4149, %v4061
    %v4154 = vadd.f32 %v4150, %v4063
    %v4155 = vadd.f32 %v4151, %v4143
    %v4156 = vadd.f32 %v4152, %v4145
    %v4157 = vxor.u32 %v4153, 2147483648
    %v4158 = vxor.u32 %v4154, 2147483648
    %v4159 = vxor.u32 %v4155, 2147483648
    %v4160 = vxor.u32 %v4156, 2147483648
    %v4161 = vmul.f32 %v4157, 1.442695
    %v4162 = vpow.pop %v4161
    %v4163 = vmul.f32 %v4158, 1.442695
    %v4164 = vpow.pop %v4163
    %v4165 = vmul.f32 %v4159, 1.442695
    %v4166 = vpow.pop %v4165
    %v4167 = vmul.f32 %v4160, 1.442695
    %v4168 = vpow.pop %v4167
    %v4169 = vadd.f32 %v4162, 1.0
    %v4170 = vadd.f32 %v4164, 1.0
    %v4171 = vadd.f32 %v4166, 1.0
    %v4172 = vadd.f32 %v4168, 1.0
    %v4173 = vrcp.pop %v4169
    %v4174 = vmul.f32 1.0, %v4173
    %v4175 = vrcp.pop %v4170
    %v4176 = vmul.f32 1.0, %v4175
    %v4177 = vrcp.pop %v4171
    %v4178 = vmul.f32 1.0, %v4177
    %v4179 = vrcp.pop %v4172
    %v4180 = vmul.f32 1.0, %v4179
    %v4181 = vmul.f32 %v3802, %v3401
    %v4182 = vmul.f32 %v3804, %v3402
    %v4183 = vmul.f32 %v3806, %v3403
    %v4184 = vmul.f32 %v3808, %v3404
    %v4185 = vmul.f32 %v3606, %v3981
    %v4186 = vmul.f32 %v3608, %v3982
    %v4187 = vmul.f32 %v3610, %v3983
    %v4188 = vmul.f32 %v3612, %v3984
    %v4189 = vadd.f32 %v4181, %v4185
    %v4190 = vadd.f32 %v4182, %v4186
    %v4191 = vadd.f32 %v4183, %v4187
    %v4192 = vadd.f32 %v4184, %v4188
    %v4193 = vtanh.pop %v4189
    %v4194 = vtanh.pop %v4190
    %v4195 = vtanh.pop %v4191
    %v4196 = vtanh.pop %v4192
    %v4197 = vmul.f32 %v4174, %v4193
    %v4198 = vmul.f32 %v4176, %v4194
    %v4199 = vmul.f32 %v4178, %v4195
    %v4200 = vmul.f32 %v4180, %v4196
    %v4201 = vpack.c.bf16 %v4197, %v4197
    %v4202 = vpack.c.bf16 %v4198, %v4198
    %v4203 = vpack.c.bf16 %v4199, %v4199
    %v4204 = vpack.c.bf16 %v4200, %v4200
    %4205 = vmatprep.subr.bf16.mxu0 %v1330
    %4206 = vmatpush1.bf16.msra.mxu0 %v1329
    %4207 = vmatprep.subr.bf16.mxu0 %v1334
    %4208 = vmatpush1.bf16.msra.mxu0 %v1333
    %4209 = vmatprep.subr.bf16.mxu0 %v1338
    %4210 = vmatpush1.bf16.msra.mxu0 %v1337
    %4211 = vmatprep.subr.bf16.mxu0 %v1342
    %4212 = vmatpush1.bf16.msra.mxu0 %v1341
    %4213 = vmatprep.subr.bf16.mxu0 %v1346
    %4214 = vmatpush1.bf16.msra.mxu0 %v1345
    %4215 = vmatprep.subr.bf16.mxu0 %v1350
    %4216 = vmatpush1.bf16.msra.mxu0 %v1349
    %4217 = vmatprep.subr.bf16.mxu0 %v1354
    %4218 = vmatpush1.bf16.msra.mxu0 %v1353
    %4219 = vmatprep.subr.bf16.mxu0 %v1358
    %4220 = vmatpush1.bf16.msra.mxu0 %v1357
    %4221 = vmatprep.subr.bf16.mxu0 %v1362
    %4222 = vmatpush1.bf16.msra.mxu0 %v1361
    %4223 = vmatprep.subr.bf16.mxu0 %v1366
    %4224 = vmatpush1.bf16.msra.mxu0 %v1365
    %4225 = vmatprep.subr.bf16.mxu0 %v1370
    %4226 = vmatpush1.bf16.msra.mxu0 %v1369
    %4227 = vmatprep.subr.bf16.mxu0 %v1374
    %4228 = vmatpush1.bf16.msra.mxu0 %v1373
    %4229 = vmatprep.subr.bf16.mxu0 %v1378
    %4230 = vmatpush1.bf16.msra.mxu0 %v1377
    %4231 = vmatprep.subr.bf16.mxu0 %v1382
    %4232 = vmatpush1.bf16.msra.mxu0 %v1381
    %4233 = vmatprep.subr.bf16.mxu0 %v1386
    %4234 = vmatpush1.bf16.msra.mxu0 %v1385
    %4235 = vmatprep.subr.bf16.mxu0 %v1390
    %4236 = vmatpush1.bf16.msra.mxu0 %v1389
    %4237 = vmatprep.mubr.bf16.mxu0 %v4202
    %4238 = vmatmul.mubr.bf16.gmra.mrb[0].mxu0 %v4201
    %v4239 = vpop.f32.mrb[0].mxu0
    %v4240 = vadd.f32 0.0, %v4239
    %v4241 = vpop.f32.mrb[0].mxu0
    %v4242 = vadd.f32 0.0, %v4241
    %v4243 = vpop.f32.mrb[0].mxu0
    %v4244 = vpop.f32.mrb[0].mxu0
    %4245 = vdwg.mxu0
    %4246 = vmatprep.subr.bf16.mxu0 %v1394
    %4247 = vmatpush1.bf16.msra.mxu0 %v1393
    %4248 = vmatprep.subr.bf16.mxu0 %v1398
    %4249 = vmatpush1.bf16.msra.mxu0 %v1397
    %4250 = vmatprep.subr.bf16.mxu0 %v1402
    %4251 = vmatpush1.bf16.msra.mxu0 %v1401
    %4252 = vmatprep.subr.bf16.mxu0 %v1406
    %4253 = vmatpush1.bf16.msra.mxu0 %v1405
    %4254 = vmatprep.subr.bf16.mxu0 %v1410
    %4255 = vmatpush1.bf16.msra.mxu0 %v1409
    %4256 = vmatprep.subr.bf16.mxu0 %v1414
    %4257 = vmatpush1.bf16.msra.mxu0 %v1413
    %4258 = vmatprep.subr.bf16.mxu0 %v1418
    %4259 = vmatpush1.bf16.msra.mxu0 %v1417
    %4260 = vmatprep.subr.bf16.mxu0 %v1422
    %4261 = vmatpush1.bf16.msra.mxu0 %v1421
    %4262 = vmatprep.subr.bf16.mxu0 %v1426
    %4263 = vmatpush1.bf16.msra.mxu0 %v1425
    %4264 = vmatprep.subr.bf16.mxu0 %v1430
    %4265 = vmatpush1.bf16.msra.mxu0 %v1429
    %4266 = vmatprep.subr.bf16.mxu0 %v1434
    %4267 = vmatpush1.bf16.msra.mxu0 %v1433
    %4268 = vmatprep.subr.bf16.mxu0 %v1438
    %4269 = vmatpush1.bf16.msra.mxu0 %v1437
    %4270 = vmatprep.subr.bf16.mxu0 %v1442
    %4271 = vmatpush1.bf16.msra.mxu0 %v1441
    %4272 = vmatprep.subr.bf16.mxu0 %v1446
    %4273 = vmatpush1.bf16.msra.mxu0 %v1445
    %4274 = vmatprep.subr.bf16.mxu0 %v1450
    %4275 = vmatpush1.bf16.msra.mxu0 %v1449
    %4276 = vmatprep.subr.bf16.mxu0 %v1454
    %4277 = vmatpush1.bf16.msra.mxu0 %v1453
    %4278 = vmatprep.mubr.bf16.mxu0 %v4204
    %4279 = vmatmul.mubr.bf16.gmra.mrb[0].mxu0 %v4203
    %v4280 = vpop.f32.mrb[0].mxu0
    %v4281 = vadd.f32 %v4240, %v4280
    %v4282 = vpop.f32.mrb[0].mxu0
    %v4283 = vadd.f32 %v4242, %v4282
    %v4284 = vpop.f32.mrb[0].mxu0
    %v4285 = vpop.f32.mrb[0].mxu0
    %4286 = vdwg.mxu0
    %4287 = vmatprep.subr.bf16.mxu0 %v1332
    %4288 = vmatpush1.bf16.msra.mxu0 %v1331
    %4289 = vmatprep.subr.bf16.mxu0 %v1336
    %4290 = vmatpush1.bf16.msra.mxu0 %v1335
    %4291 = vmatprep.subr.bf16.mxu0 %v1340
    %4292 = vmatpush1.bf16.msra.mxu0 %v1339
    %4293 = vmatprep.subr.bf16.mxu0 %v1344
    %4294 = vmatpush1.bf16.msra.mxu0 %v1343
    %4295 = vmatprep.subr.bf16.mxu0 %v1348
    %4296 = vmatpush1.bf16.msra.mxu0 %v1347
    %4297 = vmatprep.subr.bf16.mxu0 %v1352
    %4298 = vmatpush1.bf16.msra.mxu0 %v1351
    %4299 = vmatprep.subr.bf16.mxu0 %v1356
    %4300 = vmatpush1.bf16.msra.mxu0 %v1355
    %4301 = vmatprep.subr.bf16.mxu0 %v1360
    %4302 = vmatpush1.bf16.msra.mxu0 %v1359
    %4303 = vmatprep.subr.bf16.mxu0 %v1364
    %4304 = vmatpush1.bf16.msra.mxu0 %v1363
    %4305 = vmatprep.subr.bf16.mxu0 %v1368
    %4306 = vmatpush1.bf16.msra.mxu0 %v1367
    %4307 = vmatprep.subr.bf16.mxu0 %v1372
    %4308 = vmatpush1.bf16.msra.mxu0 %v1371
    %4309 = vmatprep.subr.bf16.mxu0 %v1376
    %4310 = vmatpush1.bf16.msra.mxu0 %v1375
    %4311 = vmatprep.subr.bf16.mxu0 %v1380
    %4312 = vmatpush1.bf16.msra.mxu0 %v1379
    %4313 = vmatprep.subr.bf16.mxu0 %v1384
    %4314 = vmatpush1.bf16.msra.mxu0 %v1383
    %4315 = vmatprep.subr.bf16.mxu0 %v1388
    %4316 = vmatpush1.bf16.msra.mxu0 %v1387
    %4317 = vmatprep.subr.bf16.mxu0 %v1392
    %4318 = vmatpush1.bf16.msra.mxu0 %v1391
    %4319 = vmatprep.mubr.bf16.mxu0 %v4202
    %4320 = vmatmul.mubr.bf16.gmra.mrb[0].mxu0 %v4201
    %v4321 = vpop.f32.mrb[0].mxu0
    %v4322 = vadd.f32 0.0, %v4321
    %v4323 = vpop.f32.mrb[0].mxu0
    %v4324 = vadd.f32 0.0, %v4323
    %v4325 = vpop.f32.mrb[0].mxu0
    %v4326 = vpop.f32.mrb[0].mxu0
    %4327 = vdwg.mxu0
    %4328 = vmatprep.subr.bf16.mxu0 %v1396
    %4329 = vmatpush1.bf16.msra.mxu0 %v1395
    %4330 = vmatprep.subr.bf16.mxu0 %v1400
    %4331 = vmatpush1.bf16.msra.mxu0 %v1399
    %4332 = vmatprep.subr.bf16.mxu0 %v1404
    %4333 = vmatpush1.bf16.msra.mxu0 %v1403
    %4334 = vmatprep.subr.bf16.mxu0 %v1408
    %4335 = vmatpush1.bf16.msra.mxu0 %v1407
    %4336 = vmatprep.subr.bf16.mxu0 %v1412
    %4337 = vmatpush1.bf16.msra.mxu0 %v1411
    %4338 = vmatprep.subr.bf16.mxu0 %v1416
    %4339 = vmatpush1.bf16.msra.mxu0 %v1415
    %4340 = vmatprep.subr.bf16.mxu0 %v1420
    %4341 = vmatpush1.bf16.msra.mxu0 %v1419
    %4342 = vmatprep.subr.bf16.mxu0 %v1424
    %4343 = vmatpush1.bf16.msra.mxu0 %v1423
    %4344 = vmatprep.subr.bf16.mxu0 %v1428
    %4345 = vmatpush1.bf16.msra.mxu0 %v1427
    %4346 = vmatprep.subr.bf16.mxu0 %v1432
    %4347 = vmatpush1.bf16.msra.mxu0 %v1431
    %4348 = vmatprep.subr.bf16.mxu0 %v1436
    %4349 = vmatpush1.bf16.msra.mxu0 %v1435
    %4350 = vmatprep.subr.bf16.mxu0 %v1440
    %4351 = vmatpush1.bf16.msra.mxu0 %v1439
    %4352 = vmatprep.subr.bf16.mxu0 %v1444
    %4353 = vmatpush1.bf16.msra.mxu0 %v1443
    %4354 = vmatprep.subr.bf16.mxu0 %v1448
    %4355 = vmatpush1.bf16.msra.mxu0 %v1447
    %4356 = vmatprep.subr.bf16.mxu0 %v1452
    %4357 = vmatpush1.bf16.msra.mxu0 %v1451
    %4358 = vmatprep.subr.bf16.mxu0 %v1456
    %4359 = vmatpush1.bf16.msra.mxu0 %v1455
    %4360 = vmatprep.mubr.bf16.mxu0 %v4204
    %4361 = vmatmul.mubr.bf16.gmra.mrb[0].mxu0 %v4203
    %v4362 = vpop.f32.mrb[0].mxu0
    %v4363 = vadd.f32 %v4322, %v4362
    %v4364 = vpop.f32.mrb[0].mxu0
    %v4365 = vadd.f32 %v4324, %v4364
    %v4366 = vpop.f32.mrb[0].mxu0
    %v4367 = vpop.f32.mrb[0].mxu0
    %4368 = vdwg.mxu0
    %v4369 = vld [vmem:[#allocation3 + $0x180] sm:$0xff]
    %v4370 = vld [vmem:[#allocation3 + $0x188] sm:$0xff]
    %v4371 = vld [vmem:[#allocation3 + $0x190] sm:$0xff]
    %v4372 = vld [vmem:[#allocation3 + $0x198] sm:$0xff]
    %v4373 = vadd.f32 %v4369, %v4281
    %v4374 = vadd.f32 %v4370, %v4283
    %v4375 = vadd.f32 %v4371, %v4363
    %v4376 = vadd.f32 %v4372, %v4365
    %v4377 = vxor.u32 %v4373, 2147483648
    %v4378 = vxor.u32 %v4374, 2147483648
    %v4379 = vxor.u32 %v4375, 2147483648
    %v4380 = vxor.u32 %v4376, 2147483648
    %v4381 = vmul.f32 %v4377, 1.442695
    %v4382 = vpow.pop %v4381
    %v4383 = vmul.f32 %v4378, 1.442695
    %v4384 = vpow.pop %v4383
    %v4385 = vmul.f32 %v4379, 1.442695
    %v4386 = vpow.pop %v4385
    %v4387 = vmul.f32 %v4380, 1.442695
    %v4388 = vpow.pop %v4387
    %v4389 = vadd.f32 %v4382, 1.0
    %v4390 = vadd.f32 %v4384, 1.0
    %v4391 = vadd.f32 %v4386, 1.0
    %v4392 = vadd.f32 %v4388, 1.0
    %v4393 = vrcp.pop %v4389
    %v4394 = vmul.f32 1.0, %v4393
    %v4395 = vrcp.pop %v4390
    %v4396 = vmul.f32 1.0, %v4395
    %v4397 = vrcp.pop %v4391
    %v4398 = vmul.f32 1.0, %v4397
    %v4399 = vrcp.pop %v4392
    %v4400 = vmul.f32 1.0, %v4399
    %4401 = vmatprep.subr.bf16.mxu0 %v1654
    %4402 = vmatpush1.bf16.msra.mxu0 %v1653
    %4403 = vmatprep.subr.bf16.mxu0 %v1658
    %4404 = vmatpush1.bf16.msra.mxu0 %v1657
    %4405 = vmatprep.subr.bf16.mxu0 %v1662
    %4406 = vmatpush1.bf16.msra.mxu0 %v1661
    %4407 = vmatprep.subr.bf16.mxu0 %v1666
    %4408 = vmatpush1.bf16.msra.mxu0 %v1665
    %4409 = vmatprep.subr.bf16.mxu0 %v1670
    %4410 = vmatpush1.bf16.msra.mxu0 %v1669
    %4411 = vmatprep.subr.bf16.mxu0 %v1674
    %4412 = vmatpush1.bf16.msra.mxu0 %v1673
    %4413 = vmatprep.subr.bf16.mxu0 %v1678
    %4414 = vmatpush1.bf16.msra.mxu0 %v1677
    %4415 = vmatprep.subr.bf16.mxu0 %v1682
    %4416 = vmatpush1.bf16.msra.mxu0 %v1681
    %4417 = vmatprep.subr.bf16.mxu0 %v1686
    %4418 = vmatpush1.bf16.msra.mxu0 %v1685
    %4419 = vmatprep.subr.bf16.mxu0 %v1690
    %4420 = vmatpush1.bf16.msra.mxu0 %v1689
    %4421 = vmatprep.subr.bf16.mxu0 %v1694
    %4422 = vmatpush1.bf16.msra.mxu0 %v1693
    %4423 = vmatprep.subr.bf16.mxu0 %v1698
    %4424 = vmatpush1.bf16.msra.mxu0 %v1697
    %4425 = vmatprep.subr.bf16.mxu0 %v1702
    %4426 = vmatpush1.bf16.msra.mxu0 %v1701
    %4427 = vmatprep.subr.bf16.mxu0 %v1706
    %4428 = vmatpush1.bf16.msra.mxu0 %v1705
    %4429 = vmatprep.subr.bf16.mxu0 %v1710
    %4430 = vmatpush1.bf16.msra.mxu0 %v1709
    %4431 = vmatprep.subr.bf16.mxu0 %v1714
    %4432 = vmatpush1.bf16.msra.mxu0 %v1713
    %4433 = vmatprep.mubr.bf16.mxu0 %v4202
    %4434 = vmatmul.mubr.bf16.gmra.mrb[0].mxu0 %v4201
    %v4435 = vpop.f32.mrb[0].mxu0
    %v4436 = vadd.f32 0.0, %v4435
    %v4437 = vpop.f32.mrb[0].mxu0
    %v4438 = vadd.f32 0.0, %v4437
    %v4439 = vpop.f32.mrb[0].mxu0
    %v4440 = vpop.f32.mrb[0].mxu0
    %4441 = vdwg.mxu0
    %4442 = vmatprep.subr.bf16.mxu0 %v1718
    %4443 = vmatpush1.bf16.msra.mxu0 %v1717
    %4444 = vmatprep.subr.bf16.mxu0 %v1722
    %4445 = vmatpush1.bf16.msra.mxu0 %v1721
    %4446 = vmatprep.subr.bf16.mxu0 %v1726
    %4447 = vmatpush1.bf16.msra.mxu0 %v1725
    %4448 = vmatprep.subr.bf16.mxu0 %v1730
    %4449 = vmatpush1.bf16.msra.mxu0 %v1729
    %4450 = vmatprep.subr.bf16.mxu0 %v1734
    %4451 = vmatpush1.bf16.msra.mxu0 %v1733
    %4452 = vmatprep.subr.bf16.mxu0 %v1738
    %4453 = vmatpush1.bf16.msra.mxu0 %v1737
    %4454 = vmatprep.subr.bf16.mxu0 %v1742
    %4455 = vmatpush1.bf16.msra.mxu0 %v1741
    %4456 = vmatprep.subr.bf16.mxu0 %v1746
    %4457 = vmatpush1.bf16.msra.mxu0 %v1745
    %4458 = vmatprep.subr.bf16.mxu0 %v1750
    %4459 = vmatpush1.bf16.msra.mxu0 %v1749
    %4460 = vmatprep.subr.bf16.mxu0 %v1754
    %4461 = vmatpush1.bf16.msra.mxu0 %v1753
    %4462 = vmatprep.subr.bf16.mxu0 %v1758
    %4463 = vmatpush1.bf16.msra.mxu0 %v1757
    %4464 = vmatprep.subr.bf16.mxu0 %v1762
    %4465 = vmatpush1.bf16.msra.mxu0 %v1761
    %4466 = vmatprep.subr.bf16.mxu0 %v1766
    %4467 = vmatpush1.bf16.msra.mxu0 %v1765
    %4468 = vmatprep.subr.bf16.mxu0 %v1770
    %4469 = vmatpush1.bf16.msra.mxu0 %v1769
    %4470 = vmatprep.subr.bf16.mxu0 %v1774
    %4471 = vmatpush1.bf16.msra.mxu0 %v1773
    %4472 = vmatprep.subr.bf16.mxu0 %v1778
    %4473 = vmatpush1.bf16.msra.mxu0 %v1777
    %4474 = vmatprep.mubr.bf16.mxu0 %v4204
    %4475 = vmatmul.mubr.bf16.gmra.mrb[0].mxu0 %v4203
    %v4476 = vpop.f32.mrb[0].mxu0
    %v4477 = vadd.f32 %v4436, %v4476
    %v4478 = vpop.f32.mrb[0].mxu0
    %v4479 = vadd.f32 %v4438, %v4478
    %v4480 = vpop.f32.mrb[0].mxu0
    %v4481 = vpop.f32.mrb[0].mxu0
    %4482 = vdwg.mxu0
    %4483 = vmatprep.subr.bf16.mxu0 %v1656
    %4484 = vmatpush1.bf16.msra.mxu0 %v1655
    %4485 = vmatprep.subr.bf16.mxu0 %v1660
    %4486 = vmatpush1.bf16.msra.mxu0 %v1659
    %4487 = vmatprep.subr.bf16.mxu0 %v1664
    %4488 = vmatpush1.bf16.msra.mxu0 %v1663
    %4489 = vmatprep.subr.bf16.mxu0 %v1668
    %4490 = vmatpush1.bf16.msra.mxu0 %v1667
    %4491 = vmatprep.subr.bf16.mxu0 %v1672
    %4492 = vmatpush1.bf16.msra.mxu0 %v1671
    %4493 = vmatprep.subr.bf16.mxu0 %v1676
    %4494 = vmatpush1.bf16.msra.mxu0 %v1675
    %4495 = vmatprep.subr.bf16.mxu0 %v1680
    %4496 = vmatpush1.bf16.msra.mxu0 %v1679
    %4497 = vmatprep.subr.bf16.mxu0 %v1684
    %4498 = vmatpush1.bf16.msra.mxu0 %v1683
    %4499 = vmatprep.subr.bf16.mxu0 %v1688
    %4500 = vmatpush1.bf16.msra.mxu0 %v1687
    %4501 = vmatprep.subr.bf16.mxu0 %v1692
    %4502 = vmatpush1.bf16.msra.mxu0 %v1691
    %4503 = vmatprep.subr.bf16.mxu0 %v1696
    %4504 = vmatpush1.bf16.msra.mxu0 %v1695
    %4505 = vmatprep.subr.bf16.mxu0 %v1700
    %4506 = vmatpush1.bf16.msra.mxu0 %v1699
    %4507 = vmatprep.subr.bf16.mxu0 %v1704
    %4508 = vmatpush1.bf16.msra.mxu0 %v1703
    %4509 = vmatprep.subr.bf16.mxu0 %v1708
    %4510 = vmatpush1.bf16.msra.mxu0 %v1707
    %4511 = vmatprep.subr.bf16.mxu0 %v1712
    %4512 = vmatpush1.bf16.msra.mxu0 %v1711
    %4513 = vmatprep.subr.bf16.mxu0 %v1716
    %4514 = vmatpush1.bf16.msra.mxu0 %v1715
    %4515 = vmatprep.mubr.bf16.mxu0 %v4202
    %4516 = vmatmul.mubr.bf16.gmra.mrb[0].mxu0 %v4201
    %v4517 = vpop.f32.mrb[0].mxu0
    %v4518 = vadd.f32 0.0, %v4517
    %v4519 = vpop.f32.mrb[0].mxu0
    %v4520 = vadd.f32 0.0, %v4519
    %v4521 = vpop.f32.mrb[0].mxu0
    %v4522 = vpop.f32.mrb[0].mxu0
    %4523 = vdwg.mxu0
    %4524 = vmatprep.subr.bf16.mxu0 %v1720
    %4525 = vmatpush1.bf16.msra.mxu0 %v1719
    %4526 = vmatprep.subr.bf16.mxu0 %v1724
    %4527 = vmatpush1.bf16.msra.mxu0 %v1723
    %4528 = vmatprep.subr.bf16.mxu0 %v1728
    %4529 = vmatpush1.bf16.msra.mxu0 %v1727
    %4530 = vmatprep.subr.bf16.mxu0 %v1732
    %4531 = vmatpush1.bf16.msra.mxu0 %v1731
    %4532 = vmatprep.subr.bf16.mxu0 %v1736
    %4533 = vmatpush1.bf16.msra.mxu0 %v1735
    %4534 = vmatprep.subr.bf16.mxu0 %v1740
    %4535 = vmatpush1.bf16.msra.mxu0 %v1739
    %4536 = vmatprep.subr.bf16.mxu0 %v1744
    %4537 = vmatpush1.bf16.msra.mxu0 %v1743
    %4538 = vmatprep.subr.bf16.mxu0 %v1748
    %4539 = vmatpush1.bf16.msra.mxu0 %v1747
    %4540 = vmatprep.subr.bf16.mxu0 %v1752
    %4541 = vmatpush1.bf16.msra.mxu0 %v1751
    %4542 = vmatprep.subr.bf16.mxu0 %v1756
    %4543 = vmatpush1.bf16.msra.mxu0 %v1755
    %4544 = vmatprep.subr.bf16.mxu0 %v1760
    %4545 = vmatpush1.bf16.msra.mxu0 %v1759
    %4546 = vmatprep.subr.bf16.mxu0 %v1764
    %4547 = vmatpush1.bf16.msra.mxu0 %v1763
    %4548 = vmatprep.subr.bf16.mxu0 %v1768
    %4549 = vmatpush1.bf16.msra.mxu0 %v1767
    %4550 = vmatprep.subr.bf16.mxu0 %v1772
    %4551 = vmatpush1.bf16.msra.mxu0 %v1771
    %4552 = vmatprep.subr.bf16.mxu0 %v1776
    %4553 = vmatpush1.bf16.msra.mxu0 %v1775
    %4554 = vmatprep.subr.bf16.mxu0 %v1780
    %4555 = vmatpush1.bf16.msra.mxu0 %v1779
    %4556 = vmatprep.mubr.bf16.mxu0 %v4204
    %4557 = vmatmul.mubr.bf16.gmra.mrb[0].mxu0 %v4203
    %v4558 = vpop.f32.mrb[0].mxu0
    %v4559 = vadd.f32 %v4518, %v4558
    %v4560 = vpop.f32.mrb[0].mxu0
    %v4561 = vadd.f32 %v4520, %v4560
    %v4562 = vpop.f32.mrb[0].mxu0
    %v4563 = vpop.f32.mrb[0].mxu0
    %4564 = vdwg.mxu0
    %v4565 = vld [vmem:[#allocation3 + $0x1a0] sm:$0xff]
    %v4566 = vld [vmem:[#allocation3 + $0x1a8] sm:$0xff]
    %v4567 = vld [vmem:[#allocation3 + $0x1b0] sm:$0xff]
    %v4568 = vld [vmem:[#allocation3 + $0x1b8] sm:$0xff]
    %v4569 = vadd.f32 %v4565, %v4477
    %v4570 = vadd.f32 %v4566, %v4479
    %v4571 = vadd.f32 %v4567, %v4559
    %v4572 = vadd.f32 %v4568, %v4561
    %v4573 = vxor.u32 %v4569, 2147483648
    %v4574 = vxor.u32 %v4570, 2147483648
    %v4575 = vxor.u32 %v4571, 2147483648
    %v4576 = vxor.u32 %v4572, 2147483648
    %v4577 = vmul.f32 %v4573, 1.442695
    %v4578 = vpow.pop %v4577
    %v4579 = vmul.f32 %v4574, 1.442695
    %v4580 = vpow.pop %v4579
    %v4581 = vmul.f32 %v4575, 1.442695
    %v4582 = vpow.pop %v4581
    %v4583 = vmul.f32 %v4576, 1.442695
    %v4584 = vpow.pop %v4583
    %v4585 = vadd.f32 %v4578, 1.0
    %v4586 = vadd.f32 %v4580, 1.0
    %v4587 = vadd.f32 %v4582, 1.0
    %v4588 = vadd.f32 %v4584, 1.0
    %v4589 = vrcp.pop %v4585
    %v4590 = vmul.f32 1.0, %v4589
    %v4591 = vrcp.pop %v4586
    %v4592 = vmul.f32 1.0, %v4591
    %v4593 = vrcp.pop %v4587
    %v4594 = vmul.f32 1.0, %v4593
    %v4595 = vrcp.pop %v4588
    %v4596 = vmul.f32 1.0, %v4595
    %4597 = vmatprep.subr.bf16.mxu0 %v1978
    %4598 = vmatpush1.bf16.msra.mxu0 %v1977
    %4599 = vmatprep.subr.bf16.mxu0 %v1982
    %4600 = vmatpush1.bf16.msra.mxu0 %v1981
    %4601 = vmatprep.subr.bf16.mxu0 %v1986
    %4602 = vmatpush1.bf16.msra.mxu0 %v1985
    %4603 = vmatprep.subr.bf16.mxu0 %v1990
    %4604 = vmatpush1.bf16.msra.mxu0 %v1989
    %4605 = vmatprep.subr.bf16.mxu0 %v1994
    %4606 = vmatpush1.bf16.msra.mxu0 %v1993
    %4607 = vmatprep.subr.bf16.mxu0 %v1998
    %4608 = vmatpush1.bf16.msra.mxu0 %v1997
    %4609 = vmatprep.subr.bf16.mxu0 %v2002
    %4610 = vmatpush1.bf16.msra.mxu0 %v2001
    %4611 = vmatprep.subr.bf16.mxu0 %v2006
    %4612 = vmatpush1.bf16.msra.mxu0 %v2005
    %4613 = vmatprep.subr.bf16.mxu0 %v2010
    %4614 = vmatpush1.bf16.msra.mxu0 %v2009
    %4615 = vmatprep.subr.bf16.mxu0 %v2014
    %4616 = vmatpush1.bf16.msra.mxu0 %v2013
    %4617 = vmatprep.subr.bf16.mxu0 %v2018
    %4618 = vmatpush1.bf16.msra.mxu0 %v2017
    %4619 = vmatprep.subr.bf16.mxu0 %v2022
    %4620 = vmatpush1.bf16.msra.mxu0 %v2021
    %4621 = vmatprep.subr.bf16.mxu0 %v2026
    %4622 = vmatpush1.bf16.msra.mxu0 %v2025
    %4623 = vmatprep.subr.bf16.mxu0 %v2030
    %4624 = vmatpush1.bf16.msra.mxu0 %v2029
    %4625 = vmatprep.subr.bf16.mxu0 %v2034
    %4626 = vmatpush1.bf16.msra.mxu0 %v2033
    %4627 = vmatprep.subr.bf16.mxu0 %v2038
    %4628 = vmatpush1.bf16.msra.mxu0 %v2037
    %4629 = vmatprep.mubr.bf16.mxu0 %v4202
    %4630 = vmatmul.mubr.bf16.gmra.mrb[0].mxu0 %v4201
    %v4631 = vpop.f32.mrb[0].mxu0
    %v4632 = vadd.f32 0.0, %v4631
    %v4633 = vpop.f32.mrb[0].mxu0
    %v4634 = vadd.f32 0.0, %v4633
    %v4635 = vpop.f32.mrb[0].mxu0
    %v4636 = vpop.f32.mrb[0].mxu0
    %4637 = vdwg.mxu0
    %4638 = vmatprep.subr.bf16.mxu0 %v2042
    %4639 = vmatpush1.bf16.msra.mxu0 %v2041
    %4640 = vmatprep.subr.bf16.mxu0 %v2046
    %4641 = vmatpush1.bf16.msra.mxu0 %v2045
    %4642 = vmatprep.subr.bf16.mxu0 %v2050
    %4643 = vmatpush1.bf16.msra.mxu0 %v2049
    %4644 = vmatprep.subr.bf16.mxu0 %v2054
    %4645 = vmatpush1.bf16.msra.mxu0 %v2053
    %4646 = vmatprep.subr.bf16.mxu0 %v2058
    %4647 = vmatpush1.bf16.msra.mxu0 %v2057
    %4648 = vmatprep.subr.bf16.mxu0 %v2062
    %4649 = vmatpush1.bf16.msra.mxu0 %v2061
    %4650 = vmatprep.subr.bf16.mxu0 %v2066
    %4651 = vmatpush1.bf16.msra.mxu0 %v2065
    %4652 = vmatprep.subr.bf16.mxu0 %v2070
    %4653 = vmatpush1.bf16.msra.mxu0 %v2069
    %4654 = vmatprep.subr.bf16.mxu0 %v2074
    %4655 = vmatpush1.bf16.msra.mxu0 %v2073
    %4656 = vmatprep.subr.bf16.mxu0 %v2078
    %4657 = vmatpush1.bf16.msra.mxu0 %v2077
    %4658 = vmatprep.subr.bf16.mxu0 %v2082
    %4659 = vmatpush1.bf16.msra.mxu0 %v2081
    %4660 = vmatprep.subr.bf16.mxu0 %v2086
    %4661 = vmatpush1.bf16.msra.mxu0 %v2085
    %4662 = vmatprep.subr.bf16.mxu0 %v2090
    %4663 = vmatpush1.bf16.msra.mxu0 %v2089
    %4664 = vmatprep.subr.bf16.mxu0 %v2094
    %4665 = vmatpush1.bf16.msra.mxu0 %v2093
    %4666 = vmatprep.subr.bf16.mxu0 %v2098
    %4667 = vmatpush1.bf16.msra.mxu0 %v2097
    %4668 = vmatprep.subr.bf16.mxu0 %v2102
    %4669 = vmatpush1.bf16.msra.mxu0 %v2101
    %4670 = vmatprep.mubr.bf16.mxu0 %v4204
    %4671 = vmatmul.mubr.bf16.gmra.mrb[0].mxu0 %v4203
    %v4672 = vpop.f32.mrb[0].mxu0
    %v4673 = vadd.f32 %v4632, %v4672
    %v4674 = vpop.f32.mrb[0].mxu0
    %v4675 = vadd.f32 %v4634, %v4674
    %v4676 = vpop.f32.mrb[0].mxu0
    %v4677 = vpop.f32.mrb[0].mxu0
    %4678 = vdwg.mxu0
    %4679 = vmatprep.subr.bf16.mxu0 %v1980
    %4680 = vmatpush1.bf16.msra.mxu0 %v1979
    %4681 = vmatprep.subr.bf16.mxu0 %v1984
    %4682 = vmatpush1.bf16.msra.mxu0 %v1983
    %4683 = vmatprep.subr.bf16.mxu0 %v1988
    %4684 = vmatpush1.bf16.msra.mxu0 %v1987
    %4685 = vmatprep.subr.bf16.mxu0 %v1992
    %4686 = vmatpush1.bf16.msra.mxu0 %v1991
    %4687 = vmatprep.subr.bf16.mxu0 %v1996
    %4688 = vmatpush1.bf16.msra.mxu0 %v1995
    %4689 = vmatprep.subr.bf16.mxu0 %v2000
    %4690 = vmatpush1.bf16.msra.mxu0 %v1999
    %4691 = vmatprep.subr.bf16.mxu0 %v2004
    %4692 = vmatpush1.bf16.msra.mxu0 %v2003
    %4693 = vmatprep.subr.bf16.mxu0 %v2008
    %4694 = vmatpush1.bf16.msra.mxu0 %v2007
    %4695 = vmatprep.subr.bf16.mxu0 %v2012
    %4696 = vmatpush1.bf16.msra.mxu0 %v2011
    %4697 = vmatprep.subr.bf16.mxu0 %v2016
    %4698 = vmatpush1.bf16.msra.mxu0 %v2015
    %4699 = vmatprep.subr.bf16.mxu0 %v2020
    %4700 = vmatpush1.bf16.msra.mxu0 %v2019
    %4701 = vmatprep.subr.bf16.mxu0 %v2024
    %4702 = vmatpush1.bf16.msra.mxu0 %v2023
    %4703 = vmatprep.subr.bf16.mxu0 %v2028
    %4704 = vmatpush1.bf16.msra.mxu0 %v2027
    %4705 = vmatprep.subr.bf16.mxu0 %v2032
    %4706 = vmatpush1.bf16.msra.mxu0 %v2031
    %4707 = vmatprep.subr.bf16.mxu0 %v2036
    %4708 = vmatpush1.bf16.msra.mxu0 %v2035
    %4709 = vmatprep.subr.bf16.mxu0 %v2040
    %4710 = vmatpush1.bf16.msra.mxu0 %v2039
    %4711 = vmatprep.mubr.bf16.mxu0 %v4202
    %4712 = vmatmul.mubr.bf16.gmra.mrb[0].mxu0 %v4201
    %v4713 = vpop.f32.mrb[0].mxu0
    %v4714 = vadd.f32 0.0, %v4713
    %v4715 = vpop.f32.mrb[0].mxu0
    %v4716 = vadd.f32 0.0, %v4715
    %v4717 = vpop.f32.mrb[0].mxu0
    %v4718 = vpop.f32.mrb[0].mxu0
    %4719 = vdwg.mxu0
    %4720 = vmatprep.subr.bf16.mxu0 %v2044
    %4721 = vmatpush1.bf16.msra.mxu0 %v2043
    %4722 = vmatprep.subr.bf16.mxu0 %v2048
    %4723 = vmatpush1.bf16.msra.mxu0 %v2047
    %4724 = vmatprep.subr.bf16.mxu0 %v2052
    %4725 = vmatpush1.bf16.msra.mxu0 %v2051
    %4726 = vmatprep.subr.bf16.mxu0 %v2056
    %4727 = vmatpush1.bf16.msra.mxu0 %v2055
    %4728 = vmatprep.subr.bf16.mxu0 %v2060
    %4729 = vmatpush1.bf16.msra.mxu0 %v2059
    %4730 = vmatprep.subr.bf16.mxu0 %v2064
    %4731 = vmatpush1.bf16.msra.mxu0 %v2063
    %4732 = vmatprep.subr.bf16.mxu0 %v2068
    %4733 = vmatpush1.bf16.msra.mxu0 %v2067
    %4734 = vmatprep.subr.bf16.mxu0 %v2072
    %4735 = vmatpush1.bf16.msra.mxu0 %v2071
    %4736 = vmatprep.subr.bf16.mxu0 %v2076
    %4737 = vmatpush1.bf16.msra.mxu0 %v2075
    %4738 = vmatprep.subr.bf16.mxu0 %v2080
    %4739 = vmatpush1.bf16.msra.mxu0 %v2079
    %4740 = vmatprep.subr.bf16.mxu0 %v2084
    %4741 = vmatpush1.bf16.msra.mxu0 %v2083
    %4742 = vmatprep.subr.bf16.mxu0 %v2088
    %4743 = vmatpush1.bf16.msra.mxu0 %v2087
    %4744 = vmatprep.subr.bf16.mxu0 %v2092
    %4745 = vmatpush1.bf16.msra.mxu0 %v2091
    %4746 = vmatprep.subr.bf16.mxu0 %v2096
    %4747 = vmatpush1.bf16.msra.mxu0 %v2095
    %4748 = vmatprep.subr.bf16.mxu0 %v2100
    %4749 = vmatpush1.bf16.msra.mxu0 %v2099
    %4750 = vmatprep.subr.bf16.mxu0 %v2104
    %4751 = vmatpush1.bf16.msra.mxu0 %v2103
    %4752 = vmatprep.mubr.bf16.mxu0 %v4204
    %4753 = vmatmul.mubr.bf16.gmra.mrb[0].mxu0 %v4203
    %v4754 = vpop.f32.mrb[0].mxu0
    %v4755 = vadd.f32 %v4714, %v4754
    %v4756 = vpop.f32.mrb[0].mxu0
    %v4757 = vadd.f32 %v4716, %v4756
    %v4758 = vpop.f32.mrb[0].mxu0
    %v4759 = vpop.f32.mrb[0].mxu0
    %4760 = vdwg.mxu0
    %v4761 = vld [vmem:[#allocation3 + $0x1c0] sm:$0xff]
    %v4762 = vld [vmem:[#allocation3 + $0x1c8] sm:$0xff]
    %v4763 = vld [vmem:[#allocation3 + $0x1d0] sm:$0xff]
    %v4764 = vld [vmem:[#allocation3 + $0x1d8] sm:$0xff]
    %v4765 = vadd.f32 %v4761, %v4673
    %v4766 = vadd.f32 %v4762, %v4675
    %v4767 = vadd.f32 %v4763, %v4755
    %v4768 = vadd.f32 %v4764, %v4757
    %v4769 = vtanh.pop %v4765
    %v4770 = vtanh.pop %v4766
    %v4771 = vtanh.pop %v4767
    %v4772 = vtanh.pop %v4768
    %4773 = vmatprep.subr.bf16.mxu0 %v2282
    %4774 = vmatpush1.bf16.msra.mxu0 %v2281
    %4775 = vmatprep.subr.bf16.mxu0 %v2286
    %4776 = vmatpush1.bf16.msra.mxu0 %v2285
    %4777 = vmatprep.subr.bf16.mxu0 %v2290
    %4778 = vmatpush1.bf16.msra.mxu0 %v2289
    %4779 = vmatprep.subr.bf16.mxu0 %v2294
    %4780 = vmatpush1.bf16.msra.mxu0 %v2293
    %4781 = vmatprep.subr.bf16.mxu0 %v2298
    %4782 = vmatpush1.bf16.msra.mxu0 %v2297
    %4783 = vmatprep.subr.bf16.mxu0 %v2302
    %4784 = vmatpush1.bf16.msra.mxu0 %v2301
    %4785 = vmatprep.subr.bf16.mxu0 %v2306
    %4786 = vmatpush1.bf16.msra.mxu0 %v2305
    %4787 = vmatprep.subr.bf16.mxu0 %v2310
    %4788 = vmatpush1.bf16.msra.mxu0 %v2309
    %4789 = vmatprep.subr.bf16.mxu0 %v2314
    %4790 = vmatpush1.bf16.msra.mxu0 %v2313
    %4791 = vmatprep.subr.bf16.mxu0 %v2318
    %4792 = vmatpush1.bf16.msra.mxu0 %v2317
    %4793 = vmatprep.subr.bf16.mxu0 %v2322
    %4794 = vmatpush1.bf16.msra.mxu0 %v2321
    %4795 = vmatprep.subr.bf16.mxu0 %v2326
    %4796 = vmatpush1.bf16.msra.mxu0 %v2325
    %4797 = vmatprep.subr.bf16.mxu0 %v2330
    %4798 = vmatpush1.bf16.msra.mxu0 %v2329
    %4799 = vmatprep.subr.bf16.mxu0 %v2334
    %4800 = vmatpush1.bf16.msra.mxu0 %v2333
    %4801 = vmatprep.subr.bf16.mxu0 %v2338
    %4802 = vmatpush1.bf16.msra.mxu0 %v2337
    %4803 = vmatprep.subr.bf16.mxu0 %v2342
    %4804 = vmatpush1.bf16.msra.mxu0 %v2341
    %4805 = vmatprep.mubr.bf16.mxu0 %v4202
    %4806 = vmatmul.mubr.bf16.gmra.mrb[0].mxu0 %v4201
    %v4807 = vpop.f32.mrb[0].mxu0
    %v4808 = vadd.f32 0.0, %v4807
    %v4809 = vpop.f32.mrb[0].mxu0
    %v4810 = vadd.f32 0.0, %v4809
    %v4811 = vpop.f32.mrb[0].mxu0
    %v4812 = vpop.f32.mrb[0].mxu0
    %4813 = vdwg.mxu0
    %4814 = vmatprep.subr.bf16.mxu0 %v2346
    %4815 = vmatpush1.bf16.msra.mxu0 %v2345
    %4816 = vmatprep.subr.bf16.mxu0 %v2350
    %4817 = vmatpush1.bf16.msra.mxu0 %v2349
    %4818 = vmatprep.subr.bf16.mxu0 %v2354
    %4819 = vmatpush1.bf16.msra.mxu0 %v2353
    %4820 = vmatprep.subr.bf16.mxu0 %v2358
    %4821 = vmatpush1.bf16.msra.mxu0 %v2357
    %4822 = vmatprep.subr.bf16.mxu0 %v2362
    %4823 = vmatpush1.bf16.msra.mxu0 %v2361
    %4824 = vmatprep.subr.bf16.mxu0 %v2366
    %4825 = vmatpush1.bf16.msra.mxu0 %v2365
    %4826 = vmatprep.subr.bf16.mxu0 %v2370
    %4827 = vmatpush1.bf16.msra.mxu0 %v2369
    %4828 = vmatprep.subr.bf16.mxu0 %v2374
    %4829 = vmatpush1.bf16.msra.mxu0 %v2373
    %4830 = vmatprep.subr.bf16.mxu0 %v2378
    %4831 = vmatpush1.bf16.msra.mxu0 %v2377
    %4832 = vmatprep.subr.bf16.mxu0 %v2382
    %4833 = vmatpush1.bf16.msra.mxu0 %v2381
    %4834 = vmatprep.subr.bf16.mxu0 %v2386
    %4835 = vmatpush1.bf16.msra.mxu0 %v2385
    %4836 = vmatprep.subr.bf16.mxu0 %v2390
    %4837 = vmatpush1.bf16.msra.mxu0 %v2389
    %4838 = vmatprep.subr.bf16.mxu0 %v2394
    %4839 = vmatpush1.bf16.msra.mxu0 %v2393
    %4840 = vmatprep.subr.bf16.mxu0 %v2398
    %4841 = vmatpush1.bf16.msra.mxu0 %v2397
    %4842 = vmatprep.subr.bf16.mxu0 %v2402
    %4843 = vmatpush1.bf16.msra.mxu0 %v2401
    %4844 = vmatprep.subr.bf16.mxu0 %v2406
    %4845 = vmatpush1.bf16.msra.mxu0 %v2405
    %4846 = vmatprep.mubr.bf16.mxu0 %v4204
    %4847 = vmatmul.mubr.bf16.gmra.mrb[0].mxu0 %v4203
    %v4848 = vpop.f32.mrb[0].mxu0
    %v4849 = vadd.f32 %v4808, %v4848
    %v4850 = vpop.f32.mrb[0].mxu0
    %v4851 = vadd.f32 %v4810, %v4850
    %v4852 = vpop.f32.mrb[0].mxu0
    %v4853 = vpop.f32.mrb[0].mxu0
    %4854 = vdwg.mxu0
    %4855 = vmatprep.subr.bf16.mxu0 %v2284
    %4856 = vmatpush1.bf16.msra.mxu0 %v2283
    %4857 = vmatprep.subr.bf16.mxu0 %v2288
    %4858 = vmatpush1.bf16.msra.mxu0 %v2287
    %4859 = vmatprep.subr.bf16.mxu0 %v2292
    %4860 = vmatpush1.bf16.msra.mxu0 %v2291
    %4861 = vmatprep.subr.bf16.mxu0 %v2296
    %4862 = vmatpush1.bf16.msra.mxu0 %v2295
    %4863 = vmatprep.subr.bf16.mxu0 %v2300
    %4864 = vmatpush1.bf16.msra.mxu0 %v2299
    %4865 = vmatprep.subr.bf16.mxu0 %v2304
    %4866 = vmatpush1.bf16.msra.mxu0 %v2303
    %4867 = vmatprep.subr.bf16.mxu0 %v2308
    %4868 = vmatpush1.bf16.msra.mxu0 %v2307
    %4869 = vmatprep.subr.bf16.mxu0 %v2312
    %4870 = vmatpush1.bf16.msra.mxu0 %v2311
    %4871 = vmatprep.subr.bf16.mxu0 %v2316
    %4872 = vmatpush1.bf16.msra.mxu0 %v2315
    %4873 = vmatprep.subr.bf16.mxu0 %v2320
    %4874 = vmatpush1.bf16.msra.mxu0 %v2319
    %4875 = vmatprep.subr.bf16.mxu0 %v2324
    %4876 = vmatpush1.bf16.msra.mxu0 %v2323
    %4877 = vmatprep.subr.bf16.mxu0 %v2328
    %4878 = vmatpush1.bf16.msra.mxu0 %v2327
    %4879 = vmatprep.subr.bf16.mxu0 %v2332
    %4880 = vmatpush1.bf16.msra.mxu0 %v2331
    %4881 = vmatprep.subr.bf16.mxu0 %v2336
    %4882 = vmatpush1.bf16.msra.mxu0 %v2335
    %4883 = vmatprep.subr.bf16.mxu0 %v2340
    %4884 = vmatpush1.bf16.msra.mxu0 %v2339
    %4885 = vmatprep.subr.bf16.mxu0 %v2344
    %4886 = vmatpush1.bf16.msra.mxu0 %v2343
    %4887 = vmatprep.mubr.bf16.mxu0 %v4202
    %4888 = vmatmul.mubr.bf16.gmra.mrb[0].mxu0 %v4201
    %v4889 = vpop.f32.mrb[0].mxu0
    %v4890 = vadd.f32 0.0, %v4889
    %v4891 = vpop.f32.mrb[0].mxu0
    %v4892 = vadd.f32 0.0, %v4891
    %v4893 = vpop.f32.mrb[0].mxu0
    %v4894 = vpop.f32.mrb[0].mxu0
    %4895 = vdwg.mxu0
    %4896 = vmatprep.subr.bf16.mxu0 %v2348
    %4897 = vmatpush1.bf16.msra.mxu0 %v2347
    %4898 = vmatprep.subr.bf16.mxu0 %v2352
    %4899 = vmatpush1.bf16.msra.mxu0 %v2351
    %4900 = vmatprep.subr.bf16.mxu0 %v2356
    %4901 = vmatpush1.bf16.msra.mxu0 %v2355
    %4902 = vmatprep.subr.bf16.mxu0 %v2360
    %4903 = vmatpush1.bf16.msra.mxu0 %v2359
    %4904 = vmatprep.subr.bf16.mxu0 %v2364
    %4905 = vmatpush1.bf16.msra.mxu0 %v2363
    %4906 = vmatprep.subr.bf16.mxu0 %v2368
    %4907 = vmatpush1.bf16.msra.mxu0 %v2367
    %4908 = vmatprep.subr.bf16.mxu0 %v2372
    %4909 = vmatpush1.bf16.msra.mxu0 %v2371
    %4910 = vmatprep.subr.bf16.mxu0 %v2376
    %4911 = vmatpush1.bf16.msra.mxu0 %v2375
    %4912 = vmatprep.subr.bf16.mxu0 %v2380
    %4913 = vmatpush1.bf16.msra.mxu0 %v2379
    %4914 = vmatprep.subr.bf16.mxu0 %v2384
    %4915 = vmatpush1.bf16.msra.mxu0 %v2383
    %4916 = vmatprep.subr.bf16.mxu0 %v2388
    %4917 = vmatpush1.bf16.msra.mxu0 %v2387
    %4918 = vmatprep.subr.bf16.mxu0 %v2392
    %4919 = vmatpush1.bf16.msra.mxu0 %v2391
    %4920 = vmatprep.subr.bf16.mxu0 %v2396
    %4921 = vmatpush1.bf16.msra.mxu0 %v2395
    %4922 = vmatprep.subr.bf16.mxu0 %v2400
    %4923 = vmatpush1.bf16.msra.mxu0 %v2399
    %4924 = vmatprep.subr.bf16.mxu0 %v2404
    %4925 = vmatpush1.bf16.msra.mxu0 %v2403
    %4926 = vmatprep.subr.bf16.mxu0 %v2408
    %4927 = vmatpush1.bf16.msra.mxu0 %v2407
    %4928 = vmatprep.mubr.bf16.mxu0 %v4204
    %4929 = vmatmul.mubr.bf16.gmra.mrb[0].mxu0 %v4203
    %v4930 = vpop.f32.mrb[0].mxu0
    %v4931 = vadd.f32 %v4890, %v4930
    %v4932 = vpop.f32.mrb[0].mxu0
    %v4933 = vadd.f32 %v4892, %v4932
    %v4934 = vpop.f32.mrb[0].mxu0
    %v4935 = vpop.f32.mrb[0].mxu0
    %4936 = vdwg.mxu0
    %v4937 = vld [vmem:[#allocation3 + $0x1e0] sm:$0xff]
    %v4938 = vld [vmem:[#allocation3 + $0x1e8] sm:$0xff]
    %v4939 = vld [vmem:[#allocation3 + $0x1f0] sm:$0xff]
    %v4940 = vld [vmem:[#allocation3 + $0x1f8] sm:$0xff]
    %v4941 = vadd.f32 %v4937, %v4849
    %v4942 = vadd.f32 %v4938, %v4851
    %v4943 = vadd.f32 %v4939, %v4931
    %v4944 = vadd.f32 %v4940, %v4933
    %v4945 = vxor.u32 %v4941, 2147483648
    %v4946 = vxor.u32 %v4942, 2147483648
    %v4947 = vxor.u32 %v4943, 2147483648
    %v4948 = vxor.u32 %v4944, 2147483648
    %v4949 = vmul.f32 %v4945, 1.442695
    %v4950 = vpow.pop %v4949
    %v4951 = vmul.f32 %v4946, 1.442695
    %v4952 = vpow.pop %v4951
    %v4953 = vmul.f32 %v4947, 1.442695
    %v4954 = vpow.pop %v4953
    %v4955 = vmul.f32 %v4948, 1.442695
    %v4956 = vpow.pop %v4955
    %v4957 = vadd.f32 %v4950, 1.0
    %v4958 = vadd.f32 %v4952, 1.0
    %v4959 = vadd.f32 %v4954, 1.0
    %v4960 = vadd.f32 %v4956, 1.0
    %v4961 = vrcp.pop %v4957
    %v4962 = vmul.f32 1.0, %v4961
    %v4963 = vrcp.pop %v4958
    %v4964 = vmul.f32 1.0, %v4963
    %v4965 = vrcp.pop %v4959
    %v4966 = vmul.f32 1.0, %v4965
    %v4967 = vrcp.pop %v4960
    %v4968 = vmul.f32 1.0, %v4967
    %v4969 = vmul.f32 %v4590, %v4189
    %v4970 = vmul.f32 %v4592, %v4190
    %v4971 = vmul.f32 %v4594, %v4191
    %v4972 = vmul.f32 %v4596, %v4192
    %v4973 = vmul.f32 %v4394, %v4769
    %v4974 = vmul.f32 %v4396, %v4770
    %v4975 = vmul.f32 %v4398, %v4771
    %v4976 = vmul.f32 %v4400, %v4772
    %v4977 = vadd.f32 %v4969, %v4973
    %v4978 = vadd.f32 %v4970, %v4974
    %v4979 = vadd.f32 %v4971, %v4975
    %v4980 = vadd.f32 %v4972, %v4976
    %v4981 = vtanh.pop %v4977
    %v4982 = vtanh.pop %v4978
    %v4983 = vtanh.pop %v4979
    %v4984 = vtanh.pop %v4980
    %v4985 = vmul.f32 %v4962, %v4981
    %v4986 = vmul.f32 %v4964, %v4982
    %v4987 = vmul.f32 %v4966, %v4983
    %v4988 = vmul.f32 %v4968, %v4984
    %v4989 = vpack.c.bf16 %v4985, %v4985
    %v4990 = vpack.c.bf16 %v4986, %v4986
    %v4991 = vpack.c.bf16 %v4987, %v4987
    %v4992 = vpack.c.bf16 %v4988, %v4988
    %4993 = vmatprep.subr.bf16.mxu0 %v1330
    %4994 = vmatpush1.bf16.msra.mxu0 %v1329
    %4995 = vmatprep.subr.bf16.mxu0 %v1334
    %4996 = vmatpush1.bf16.msra.mxu0 %v1333
    %4997 = vmatprep.subr.bf16.mxu0 %v1338
    %4998 = vmatpush1.bf16.msra.mxu0 %v1337
    %4999 = vmatprep.subr.bf16.mxu0 %v1342
    %5000 = vmatpush1.bf16.msra.mxu0 %v1341
    %5001 = vmatprep.subr.bf16.mxu0 %v1346
    %5002 = vmatpush1.bf16.msra.mxu0 %v1345
    %5003 = vmatprep.subr.bf16.mxu0 %v1350
    %5004 = vmatpush1.bf16.msra.mxu0 %v1349
    %5005 = vmatprep.subr.bf16.mxu0 %v1354
    %5006 = vmatpush1.bf16.msra.mxu0 %v1353
    %5007 = vmatprep.subr.bf16.mxu0 %v1358
    %5008 = vmatpush1.bf16.msra.mxu0 %v1357
    %5009 = vmatprep.subr.bf16.mxu0 %v1362
    %5010 = vmatpush1.bf16.msra.mxu0 %v1361
    %5011 = vmatprep.subr.bf16.mxu0 %v1366
    %5012 = vmatpush1.bf16.msra.mxu0 %v1365
    %5013 = vmatprep.subr.bf16.mxu0 %v1370
    %5014 = vmatpush1.bf16.msra.mxu0 %v1369
    %5015 = vmatprep.subr.bf16.mxu0 %v1374
    %5016 = vmatpush1.bf16.msra.mxu0 %v1373
    %5017 = vmatprep.subr.bf16.mxu0 %v1378
    %5018 = vmatpush1.bf16.msra.mxu0 %v1377
    %5019 = vmatprep.subr.bf16.mxu0 %v1382
    %5020 = vmatpush1.bf16.msra.mxu0 %v1381
    %5021 = vmatprep.subr.bf16.mxu0 %v1386
    %5022 = vmatpush1.bf16.msra.mxu0 %v1385
    %5023 = vmatprep.subr.bf16.mxu0 %v1390
    %5024 = vmatpush1.bf16.msra.mxu0 %v1389
    %5025 = vmatprep.mubr.bf16.mxu0 %v4990
    %5026 = vmatmul.mubr.bf16.gmra.mrb[0].mxu0 %v4989
    %v5027 = vpop.f32.mrb[0].mxu0
    %v5028 = vadd.f32 0.0, %v5027
    %v5029 = vpop.f32.mrb[0].mxu0
    %v5030 = vadd.f32 0.0, %v5029
    %v5031 = vpop.f32.mrb[0].mxu0
    %v5032 = vpop.f32.mrb[0].mxu0
    %5033 = vdwg.mxu0
    %5034 = vmatprep.subr.bf16.mxu0 %v1394
    %5035 = vmatpush1.bf16.msra.mxu0 %v1393
    %5036 = vmatprep.subr.bf16.mxu0 %v1398
    %5037 = vmatpush1.bf16.msra.mxu0 %v1397
    %5038 = vmatprep.subr.bf16.mxu0 %v1402
    %5039 = vmatpush1.bf16.msra.mxu0 %v1401
    %5040 = vmatprep.subr.bf16.mxu0 %v1406
    %5041 = vmatpush1.bf16.msra.mxu0 %v1405
    %5042 = vmatprep.subr.bf16.mxu0 %v1410
    %5043 = vmatpush1.bf16.msra.mxu0 %v1409
    %5044 = vmatprep.subr.bf16.mxu0 %v1414
    %5045 = vmatpush1.bf16.msra.mxu0 %v1413
    %5046 = vmatprep.subr.bf16.mxu0 %v1418
    %5047 = vmatpush1.bf16.msra.mxu0 %v1417
    %5048 = vmatprep.subr.bf16.mxu0 %v1422
    %5049 = vmatpush1.bf16.msra.mxu0 %v1421
    %5050 = vmatprep.subr.bf16.mxu0 %v1426
    %5051 = vmatpush1.bf16.msra.mxu0 %v1425
    %5052 = vmatprep.subr.bf16.mxu0 %v1430
    %5053 = vmatpush1.bf16.msra.mxu0 %v1429
    %5054 = vmatprep.subr.bf16.mxu0 %v1434
    %5055 = vmatpush1.bf16.msra.mxu0 %v1433
    %5056 = vmatprep.subr.bf16.mxu0 %v1438
    %5057 = vmatpush1.bf16.msra.mxu0 %v1437
    %5058 = vmatprep.subr.bf16.mxu0 %v1442
    %5059 = vmatpush1.bf16.msra.mxu0 %v1441
    %5060 = vmatprep.subr.bf16.mxu0 %v1446
    %5061 = vmatpush1.bf16.msra.mxu0 %v1445
    %5062 = vmatprep.subr.bf16.mxu0 %v1450
    %5063 = vmatpush1.bf16.msra.mxu0 %v1449
    %5064 = vmatprep.subr.bf16.mxu0 %v1454
    %5065 = vmatpush1.bf16.msra.mxu0 %v1453
    %5066 = vmatprep.mubr.bf16.mxu0 %v4992
    %5067 = vmatmul.mubr.bf16.gmra.mrb[0].mxu0 %v4991
    %v5068 = vpop.f32.mrb[0].mxu0
    %v5069 = vadd.f32 %v5028, %v5068
    %v5070 = vpop.f32.mrb[0].mxu0
    %v5071 = vadd.f32 %v5030, %v5070
    %v5072 = vpop.f32.mrb[0].mxu0
    %v5073 = vpop.f32.mrb[0].mxu0
    %5074 = vdwg.mxu0
    %5075 = vmatprep.subr.bf16.mxu0 %v1332
    %5076 = vmatpush1.bf16.msra.mxu0 %v1331
    %5077 = vmatprep.subr.bf16.mxu0 %v1336
    %5078 = vmatpush1.bf16.msra.mxu0 %v1335
    %5079 = vmatprep.subr.bf16.mxu0 %v1340
    %5080 = vmatpush1.bf16.msra.mxu0 %v1339
    %5081 = vmatprep.subr.bf16.mxu0 %v1344
    %5082 = vmatpush1.bf16.msra.mxu0 %v1343
    %5083 = vmatprep.subr.bf16.mxu0 %v1348
    %5084 = vmatpush1.bf16.msra.mxu0 %v1347
    %5085 = vmatprep.subr.bf16.mxu0 %v1352
    %5086 = vmatpush1.bf16.msra.mxu0 %v1351
    %5087 = vmatprep.subr.bf16.mxu0 %v1356
    %5088 = vmatpush1.bf16.msra.mxu0 %v1355
    %5089 = vmatprep.subr.bf16.mxu0 %v1360
    %5090 = vmatpush1.bf16.msra.mxu0 %v1359
    %5091 = vmatprep.subr.bf16.mxu0 %v1364
    %5092 = vmatpush1.bf16.msra.mxu0 %v1363
    %5093 = vmatprep.subr.bf16.mxu0 %v1368
    %5094 = vmatpush1.bf16.msra.mxu0 %v1367
    %5095 = vmatprep.subr.bf16.mxu0 %v1372
    %5096 = vmatpush1.bf16.msra.mxu0 %v1371
    %5097 = vmatprep.subr.bf16.mxu0 %v1376
    %5098 = vmatpush1.bf16.msra.mxu0 %v1375
    %5099 = vmatprep.subr.bf16.mxu0 %v1380
    %5100 = vmatpush1.bf16.msra.mxu0 %v1379
    %5101 = vmatprep.subr.bf16.mxu0 %v1384
    %5102 = vmatpush1.bf16.msra.mxu0 %v1383
    %5103 = vmatprep.subr.bf16.mxu0 %v1388
    %5104 = vmatpush1.bf16.msra.mxu0 %v1387
    %5105 = vmatprep.subr.bf16.mxu0 %v1392
    %5106 = vmatpush1.bf16.msra.mxu0 %v1391
    %5107 = vmatprep.mubr.bf16.mxu0 %v4990
    %5108 = vmatmul.mubr.bf16.gmra.mrb[0].mxu0 %v4989
    %v5109 = vpop.f32.mrb[0].mxu0
    %v5110 = vadd.f32 0.0, %v5109
    %v5111 = vpop.f32.mrb[0].mxu0
    %v5112 = vadd.f32 0.0, %v5111
    %v5113 = vpop.f32.mrb[0].mxu0
    %v5114 = vpop.f32.mrb[0].mxu0
    %5115 = vdwg.mxu0
    %5116 = vmatprep.subr.bf16.mxu0 %v1396
    %5117 = vmatpush1.bf16.msra.mxu0 %v1395
    %5118 = vmatprep.subr.bf16.mxu0 %v1400
    %5119 = vmatpush1.bf16.msra.mxu0 %v1399
    %5120 = vmatprep.subr.bf16.mxu0 %v1404
    %5121 = vmatpush1.bf16.msra.mxu0 %v1403
    %5122 = vmatprep.subr.bf16.mxu0 %v1408
    %5123 = vmatpush1.bf16.msra.mxu0 %v1407
    %5124 = vmatprep.subr.bf16.mxu0 %v1412
    %5125 = vmatpush1.bf16.msra.mxu0 %v1411
    %5126 = vmatprep.subr.bf16.mxu0 %v1416
    %5127 = vmatpush1.bf16.msra.mxu0 %v1415
    %5128 = vmatprep.subr.bf16.mxu0 %v1420
    %5129 = vmatpush1.bf16.msra.mxu0 %v1419
    %5130 = vmatprep.subr.bf16.mxu0 %v1424
    %5131 = vmatpush1.bf16.msra.mxu0 %v1423
    %5132 = vmatprep.subr.bf16.mxu0 %v1428
    %5133 = vmatpush1.bf16.msra.mxu0 %v1427
    %5134 = vmatprep.subr.bf16.mxu0 %v1432
    %5135 = vmatpush1.bf16.msra.mxu0 %v1431
    %5136 = vmatprep.subr.bf16.mxu0 %v1436
    %5137 = vmatpush1.bf16.msra.mxu0 %v1435
    %5138 = vmatprep.subr.bf16.mxu0 %v1440
    %5139 = vmatpush1.bf16.msra.mxu0 %v1439
    %5140 = vmatprep.subr.bf16.mxu0 %v1444
    %5141 = vmatpush1.bf16.msra.mxu0 %v1443
    %5142 = vmatprep.subr.bf16.mxu0 %v1448
    %5143 = vmatpush1.bf16.msra.mxu0 %v1447
    %5144 = vmatprep.subr.bf16.mxu0 %v1452
    %5145 = vmatpush1.bf16.msra.mxu0 %v1451
    %5146 = vmatprep.subr.bf16.mxu0 %v1456
    %5147 = vmatpush1.bf16.msra.mxu0 %v1455
    %5148 = vmatprep.mubr.bf16.mxu0 %v4992
    %5149 = vmatmul.mubr.bf16.gmra.mrb[0].mxu0 %v4991
    %v5150 = vpop.f32.mrb[0].mxu0
    %v5151 = vadd.f32 %v5110, %v5150
    %v5152 = vpop.f32.mrb[0].mxu0
    %v5153 = vadd.f32 %v5112, %v5152
    %v5154 = vpop.f32.mrb[0].mxu0
    %v5155 = vpop.f32.mrb[0].mxu0
    %5156 = vdwg.mxu0
    %v5157 = vld [vmem:[#allocation3 + $0x200] sm:$0xff]
    %v5158 = vld [vmem:[#allocation3 + $0x208] sm:$0xff]
    %v5159 = vld [vmem:[#allocation3 + $0x210] sm:$0xff]
    %v5160 = vld [vmem:[#allocation3 + $0x218] sm:$0xff]
    %v5161 = vadd.f32 %v5157, %v5069
    %v5162 = vadd.f32 %v5158, %v5071
    %v5163 = vadd.f32 %v5159, %v5151
    %v5164 = vadd.f32 %v5160, %v5153
    %v5165 = vxor.u32 %v5161, 2147483648
    %v5166 = vxor.u32 %v5162, 2147483648
    %v5167 = vxor.u32 %v5163, 2147483648
    %v5168 = vxor.u32 %v5164, 2147483648
    %v5169 = vmul.f32 %v5165, 1.442695
    %v5170 = vpow.pop %v5169
    %v5171 = vmul.f32 %v5166, 1.442695
    %v5172 = vpow.pop %v5171
    %v5173 = vmul.f32 %v5167, 1.442695
    %v5174 = vpow.pop %v5173
    %v5175 = vmul.f32 %v5168, 1.442695
    %v5176 = vpow.pop %v5175
    %v5177 = vadd.f32 %v5170, 1.0
    %v5178 = vadd.f32 %v5172, 1.0
    %v5179 = vadd.f32 %v5174, 1.0
    %v5180 = vadd.f32 %v5176, 1.0
    %v5181 = vrcp.pop %v5177
    %v5182 = vmul.f32 1.0, %v5181
    %v5183 = vrcp.pop %v5178
    %v5184 = vmul.f32 1.0, %v5183
    %v5185 = vrcp.pop %v5179
    %v5186 = vmul.f32 1.0, %v5185
    %v5187 = vrcp.pop %v5180
    %v5188 = vmul.f32 1.0, %v5187
    %5189 = vmatprep.subr.bf16.mxu0 %v1654
    %5190 = vmatpush1.bf16.msra.mxu0 %v1653
    %5191 = vmatprep.subr.bf16.mxu0 %v1658
    %5192 = vmatpush1.bf16.msra.mxu0 %v1657
    %5193 = vmatprep.subr.bf16.mxu0 %v1662
    %5194 = vmatpush1.bf16.msra.mxu0 %v1661
    %5195 = vmatprep.subr.bf16.mxu0 %v1666
    %5196 = vmatpush1.bf16.msra.mxu0 %v1665
    %5197 = vmatprep.subr.bf16.mxu0 %v1670
    %5198 = vmatpush1.bf16.msra.mxu0 %v1669
    %5199 = vmatprep.subr.bf16.mxu0 %v1674
    %5200 = vmatpush1.bf16.msra.mxu0 %v1673
    %5201 = vmatprep.subr.bf16.mxu0 %v1678
    %5202 = vmatpush1.bf16.msra.mxu0 %v1677
    %5203 = vmatprep.subr.bf16.mxu0 %v1682
    %5204 = vmatpush1.bf16.msra.mxu0 %v1681
    %5205 = vmatprep.subr.bf16.mxu0 %v1686
    %5206 = vmatpush1.bf16.msra.mxu0 %v1685
    %5207 = vmatprep.subr.bf16.mxu0 %v1690
    %5208 = vmatpush1.bf16.msra.mxu0 %v1689
    %5209 = vmatprep.subr.bf16.mxu0 %v1694
    %5210 = vmatpush1.bf16.msra.mxu0 %v1693
    %5211 = vmatprep.subr.bf16.mxu0 %v1698
    %5212 = vmatpush1.bf16.msra.mxu0 %v1697
    %5213 = vmatprep.subr.bf16.mxu0 %v1702
    %5214 = vmatpush1.bf16.msra.mxu0 %v1701
    %5215 = vmatprep.subr.bf16.mxu0 %v1706
    %5216 = vmatpush1.bf16.msra.mxu0 %v1705
    %5217 = vmatprep.subr.bf16.mxu0 %v1710
    %5218 = vmatpush1.bf16.msra.mxu0 %v1709
    %5219 = vmatprep.subr.bf16.mxu0 %v1714
    %5220 = vmatpush1.bf16.msra.mxu0 %v1713
    %5221 = vmatprep.mubr.bf16.mxu0 %v4990
    %5222 = vmatmul.mubr.bf16.gmra.mrb[0].mxu0 %v4989
    %v5223 = vpop.f32.mrb[0].mxu0
    %v5224 = vadd.f32 0.0, %v5223
    %v5225 = vpop.f32.mrb[0].mxu0
    %v5226 = vadd.f32 0.0, %v5225
    %v5227 = vpop.f32.mrb[0].mxu0
    %v5228 = vpop.f32.mrb[0].mxu0
    %5229 = vdwg.mxu0
    %5230 = vmatprep.subr.bf16.mxu0 %v1718
    %5231 = vmatpush1.bf16.msra.mxu0 %v1717
    %5232 = vmatprep.subr.bf16.mxu0 %v1722
    %5233 = vmatpush1.bf16.msra.mxu0 %v1721
    %5234 = vmatprep.subr.bf16.mxu0 %v1726
    %5235 = vmatpush1.bf16.msra.mxu0 %v1725
    %5236 = vmatprep.subr.bf16.mxu0 %v1730
    %5237 = vmatpush1.bf16.msra.mxu0 %v1729
    %5238 = vmatprep.subr.bf16.mxu0 %v1734
    %5239 = vmatpush1.bf16.msra.mxu0 %v1733
    %5240 = vmatprep.subr.bf16.mxu0 %v1738
    %5241 = vmatpush1.bf16.msra.mxu0 %v1737
    %5242 = vmatprep.subr.bf16.mxu0 %v1742
    %5243 = vmatpush1.bf16.msra.mxu0 %v1741
    %5244 = vmatprep.subr.bf16.mxu0 %v1746
    %5245 = vmatpush1.bf16.msra.mxu0 %v1745
    %5246 = vmatprep.subr.bf16.mxu0 %v1750
    %5247 = vmatpush1.bf16.msra.mxu0 %v1749
    %5248 = vmatprep.subr.bf16.mxu0 %v1754
    %5249 = vmatpush1.bf16.msra.mxu0 %v1753
    %5250 = vmatprep.subr.bf16.mxu0 %v1758
    %5251 = vmatpush1.bf16.msra.mxu0 %v1757
    %5252 = vmatprep.subr.bf16.mxu0 %v1762
    %5253 = vmatpush1.bf16.msra.mxu0 %v1761
    %5254 = vmatprep.subr.bf16.mxu0 %v1766
    %5255 = vmatpush1.bf16.msra.mxu0 %v1765
    %5256 = vmatprep.subr.bf16.mxu0 %v1770
    %5257 = vmatpush1.bf16.msra.mxu0 %v1769
    %5258 = vmatprep.subr.bf16.mxu0 %v1774
    %5259 = vmatpush1.bf16.msra.mxu0 %v1773
    %5260 = vmatprep.subr.bf16.mxu0 %v1778
    %5261 = vmatpush1.bf16.msra.mxu0 %v1777
    %5262 = vmatprep.mubr.bf16.mxu0 %v4992
    %5263 = vmatmul.mubr.bf16.gmra.mrb[0].mxu0 %v4991
    %v5264 = vpop.f32.mrb[0].mxu0
    %v5265 = vadd.f32 %v5224, %v5264
    %v5266 = vpop.f32.mrb[0].mxu0
    %v5267 = vadd.f32 %v5226, %v5266
    %v5268 = vpop.f32.mrb[0].mxu0
    %v5269 = vpop.f32.mrb[0].mxu0
    %5270 = vdwg.mxu0
    %5271 = vmatprep.subr.bf16.mxu0 %v1656
    %5272 = vmatpush1.bf16.msra.mxu0 %v1655
    %5273 = vmatprep.subr.bf16.mxu0 %v1660
    %5274 = vmatpush1.bf16.msra.mxu0 %v1659
    %5275 = vmatprep.subr.bf16.mxu0 %v1664
    %5276 = vmatpush1.bf16.msra.mxu0 %v1663
    %5277 = vmatprep.subr.bf16.mxu0 %v1668
    %5278 = vmatpush1.bf16.msra.mxu0 %v1667
    %5279 = vmatprep.subr.bf16.mxu0 %v1672
    %5280 = vmatpush1.bf16.msra.mxu0 %v1671
    %5281 = vmatprep.subr.bf16.mxu0 %v1676
    %5282 = vmatpush1.bf16.msra.mxu0 %v1675
    %5283 = vmatprep.subr.bf16.mxu0 %v1680
    %5284 = vmatpush1.bf16.msra.mxu0 %v1679
    %5285 = vmatprep.subr.bf16.mxu0 %v1684
    %5286 = vmatpush1.bf16.msra.mxu0 %v1683
    %5287 = vmatprep.subr.bf16.mxu0 %v1688
    %5288 = vmatpush1.bf16.msra.mxu0 %v1687
    %5289 = vmatprep.subr.bf16.mxu0 %v1692
    %5290 = vmatpush1.bf16.msra.mxu0 %v1691
    %5291 = vmatprep.subr.bf16.mxu0 %v1696
    %5292 = vmatpush1.bf16.msra.mxu0 %v1695
    %5293 = vmatprep.subr.bf16.mxu0 %v1700
    %5294 = vmatpush1.bf16.msra.mxu0 %v1699
    %5295 = vmatprep.subr.bf16.mxu0 %v1704
    %5296 = vmatpush1.bf16.msra.mxu0 %v1703
    %5297 = vmatprep.subr.bf16.mxu0 %v1708
    %5298 = vmatpush1.bf16.msra.mxu0 %v1707
    %5299 = vmatprep.subr.bf16.mxu0 %v1712
    %5300 = vmatpush1.bf16.msra.mxu0 %v1711
    %5301 = vmatprep.subr.bf16.mxu0 %v1716
    %5302 = vmatpush1.bf16.msra.mxu0 %v1715
    %5303 = vmatprep.mubr.bf16.mxu0 %v4990
    %5304 = vmatmul.mubr.bf16.gmra.mrb[0].mxu0 %v4989
    %v5305 = vpop.f32.mrb[0].mxu0
    %v5306 = vadd.f32 0.0, %v5305
    %v5307 = vpop.f32.mrb[0].mxu0
    %v5308 = vadd.f32 0.0, %v5307
    %v5309 = vpop.f32.mrb[0].mxu0
    %v5310 = vpop.f32.mrb[0].mxu0
    %5311 = vdwg.mxu0
    %5312 = vmatprep.subr.bf16.mxu0 %v1720
    %5313 = vmatpush1.bf16.msra.mxu0 %v1719
    %5314 = vmatprep.subr.bf16.mxu0 %v1724
    %5315 = vmatpush1.bf16.msra.mxu0 %v1723
    %5316 = vmatprep.subr.bf16.mxu0 %v1728
    %5317 = vmatpush1.bf16.msra.mxu0 %v1727
    %5318 = vmatprep.subr.bf16.mxu0 %v1732
    %5319 = vmatpush1.bf16.msra.mxu0 %v1731
    %5320 = vmatprep.subr.bf16.mxu0 %v1736
    %5321 = vmatpush1.bf16.msra.mxu0 %v1735
    %5322 = vmatprep.subr.bf16.mxu0 %v1740
    %5323 = vmatpush1.bf16.msra.mxu0 %v1739
    %5324 = vmatprep.subr.bf16.mxu0 %v1744
    %5325 = vmatpush1.bf16.msra.mxu0 %v1743
    %5326 = vmatprep.subr.bf16.mxu0 %v1748
    %5327 = vmatpush1.bf16.msra.mxu0 %v1747
    %5328 = vmatprep.subr.bf16.mxu0 %v1752
    %5329 = vmatpush1.bf16.msra.mxu0 %v1751
    %5330 = vmatprep.subr.bf16.mxu0 %v1756
    %5331 = vmatpush1.bf16.msra.mxu0 %v1755
    %5332 = vmatprep.subr.bf16.mxu0 %v1760
    %5333 = vmatpush1.bf16.msra.mxu0 %v1759
    %5334 = vmatprep.subr.bf16.mxu0 %v1764
    %5335 = vmatpush1.bf16.msra.mxu0 %v1763
    %5336 = vmatprep.subr.bf16.mxu0 %v1768
    %5337 = vmatpush1.bf16.msra.mxu0 %v1767
    %5338 = vmatprep.subr.bf16.mxu0 %v1772
    %5339 = vmatpush1.bf16.msra.mxu0 %v1771
    %5340 = vmatprep.subr.bf16.mxu0 %v1776
    %5341 = vmatpush1.bf16.msra.mxu0 %v1775
    %5342 = vmatprep.subr.bf16.mxu0 %v1780
    %5343 = vmatpush1.bf16.msra.mxu0 %v1779
    %5344 = vmatprep.mubr.bf16.mxu0 %v4992
    %5345 = vmatmul.mubr.bf16.gmra.mrb[0].mxu0 %v4991
    %v5346 = vpop.f32.mrb[0].mxu0
    %v5347 = vadd.f32 %v5306, %v5346
    %v5348 = vpop.f32.mrb[0].mxu0
    %v5349 = vadd.f32 %v5308, %v5348
    %v5350 = vpop.f32.mrb[0].mxu0
    %v5351 = vpop.f32.mrb[0].mxu0
    %5352 = vdwg.mxu0
    %v5353 = vld [vmem:[#allocation3 + $0x220] sm:$0xff]
    %v5354 = vld [vmem:[#allocation3 + $0x228] sm:$0xff]
    %v5355 = vld [vmem:[#allocation3 + $0x230] sm:$0xff]
    %v5356 = vld [vmem:[#allocation3 + $0x238] sm:$0xff]
    %v5357 = vadd.f32 %v5353, %v5265
    %v5358 = vadd.f32 %v5354, %v5267
    %v5359 = vadd.f32 %v5355, %v5347
    %v5360 = vadd.f32 %v5356, %v5349
    %v5361 = vxor.u32 %v5357, 2147483648
    %v5362 = vxor.u32 %v5358, 2147483648
    %v5363 = vxor.u32 %v5359, 2147483648
    %v5364 = vxor.u32 %v5360, 2147483648
    %v5365 = vmul.f32 %v5361, 1.442695
    %v5366 = vpow.pop %v5365
    %v5367 = vmul.f32 %v5362, 1.442695
    %v5368 = vpow.pop %v5367
    %v5369 = vmul.f32 %v5363, 1.442695
    %v5370 = vpow.pop %v5369
    %v5371 = vmul.f32 %v5364, 1.442695
    %v5372 = vpow.pop %v5371
    %v5373 = vadd.f32 %v5366, 1.0
    %v5374 = vadd.f32 %v5368, 1.0
    %v5375 = vadd.f32 %v5370, 1.0
    %v5376 = vadd.f32 %v5372, 1.0
    %v5377 = vrcp.pop %v5373
    %v5378 = vmul.f32 1.0, %v5377
    %v5379 = vrcp.pop %v5374
    %v5380 = vmul.f32 1.0, %v5379
    %v5381 = vrcp.pop %v5375
    %v5382 = vmul.f32 1.0, %v5381
    %v5383 = vrcp.pop %v5376
    %v5384 = vmul.f32 1.0, %v5383
    %5385 = vmatprep.subr.bf16.mxu0 %v1978
    %5386 = vmatpush1.bf16.msra.mxu0 %v1977
    %5387 = vmatprep.subr.bf16.mxu0 %v1982
    %5388 = vmatpush1.bf16.msra.mxu0 %v1981
    %5389 = vmatprep.subr.bf16.mxu0 %v1986
    %5390 = vmatpush1.bf16.msra.mxu0 %v1985
    %5391 = vmatprep.subr.bf16.mxu0 %v1990
    %5392 = vmatpush1.bf16.msra.mxu0 %v1989
    %5393 = vmatprep.subr.bf16.mxu0 %v1994
    %5394 = vmatpush1.bf16.msra.mxu0 %v1993
    %5395 = vmatprep.subr.bf16.mxu0 %v1998
    %5396 = vmatpush1.bf16.msra.mxu0 %v1997
    %5397 = vmatprep.subr.bf16.mxu0 %v2002
    %5398 = vmatpush1.bf16.msra.mxu0 %v2001
    %5399 = vmatprep.subr.bf16.mxu0 %v2006
    %5400 = vmatpush1.bf16.msra.mxu0 %v2005
    %5401 = vmatprep.subr.bf16.mxu0 %v2010
    %5402 = vmatpush1.bf16.msra.mxu0 %v2009
    %5403 = vmatprep.subr.bf16.mxu0 %v2014
    %5404 = vmatpush1.bf16.msra.mxu0 %v2013
    %5405 = vmatprep.subr.bf16.mxu0 %v2018
    %5406 = vmatpush1.bf16.msra.mxu0 %v2017
    %5407 = vmatprep.subr.bf16.mxu0 %v2022
    %5408 = vmatpush1.bf16.msra.mxu0 %v2021
    %5409 = vmatprep.subr.bf16.mxu0 %v2026
    %5410 = vmatpush1.bf16.msra.mxu0 %v2025
    %5411 = vmatprep.subr.bf16.mxu0 %v2030
    %5412 = vmatpush1.bf16.msra.mxu0 %v2029
    %5413 = vmatprep.subr.bf16.mxu0 %v2034
    %5414 = vmatpush1.bf16.msra.mxu0 %v2033
    %5415 = vmatprep.subr.bf16.mxu0 %v2038
    %5416 = vmatpush1.bf16.msra.mxu0 %v2037
    %5417 = vmatprep.mubr.bf16.mxu0 %v4990
    %5418 = vmatmul.mubr.bf16.gmra.mrb[0].mxu0 %v4989
    %v5419 = vpop.f32.mrb[0].mxu0
    %v5420 = vadd.f32 0.0, %v5419
    %v5421 = vpop.f32.mrb[0].mxu0
    %v5422 = vadd.f32 0.0, %v5421
    %v5423 = vpop.f32.mrb[0].mxu0
    %v5424 = vpop.f32.mrb[0].mxu0
    %5425 = vdwg.mxu0
    %5426 = vmatprep.subr.bf16.mxu0 %v2042
    %5427 = vmatpush1.bf16.msra.mxu0 %v2041
    %5428 = vmatprep.subr.bf16.mxu0 %v2046
    %5429 = vmatpush1.bf16.msra.mxu0 %v2045
    %5430 = vmatprep.subr.bf16.mxu0 %v2050
    %5431 = vmatpush1.bf16.msra.mxu0 %v2049
    %5432 = vmatprep.subr.bf16.mxu0 %v2054
    %5433 = vmatpush1.bf16.msra.mxu0 %v2053
    %5434 = vmatprep.subr.bf16.mxu0 %v2058
    %5435 = vmatpush1.bf16.msra.mxu0 %v2057
    %5436 = vmatprep.subr.bf16.mxu0 %v2062
    %5437 = vmatpush1.bf16.msra.mxu0 %v2061
    %5438 = vmatprep.subr.bf16.mxu0 %v2066
    %5439 = vmatpush1.bf16.msra.mxu0 %v2065
    %5440 = vmatprep.subr.bf16.mxu0 %v2070
    %5441 = vmatpush1.bf16.msra.mxu0 %v2069
    %5442 = vmatprep.subr.bf16.mxu0 %v2074
    %5443 = vmatpush1.bf16.msra.mxu0 %v2073
    %5444 = vmatprep.subr.bf16.mxu0 %v2078
    %5445 = vmatpush1.bf16.msra.mxu0 %v2077
    %5446 = vmatprep.subr.bf16.mxu0 %v2082
    %5447 = vmatpush1.bf16.msra.mxu0 %v2081
    %5448 = vmatprep.subr.bf16.mxu0 %v2086
    %5449 = vmatpush1.bf16.msra.mxu0 %v2085
    %5450 = vmatprep.subr.bf16.mxu0 %v2090
    %5451 = vmatpush1.bf16.msra.mxu0 %v2089
    %5452 = vmatprep.subr.bf16.mxu0 %v2094
    %5453 = vmatpush1.bf16.msra.mxu0 %v2093
    %5454 = vmatprep.subr.bf16.mxu0 %v2098
    %5455 = vmatpush1.bf16.msra.mxu0 %v2097
    %5456 = vmatprep.subr.bf16.mxu0 %v2102
    %5457 = vmatpush1.bf16.msra.mxu0 %v2101
    %5458 = vmatprep.mubr.bf16.mxu0 %v4992
    %5459 = vmatmul.mubr.bf16.gmra.mrb[0].mxu0 %v4991
    %v5460 = vpop.f32.mrb[0].mxu0
    %v5461 = vadd.f32 %v5420, %v5460
    %v5462 = vpop.f32.mrb[0].mxu0
    %v5463 = vadd.f32 %v5422, %v5462
    %v5464 = vpop.f32.mrb[0].mxu0
    %v5465 = vpop.f32.mrb[0].mxu0
    %5466 = vdwg.mxu0
    %5467 = vmatprep.subr.bf16.mxu0 %v1980
    %5468 = vmatpush1.bf16.msra.mxu0 %v1979
    %5469 = vmatprep.subr.bf16.mxu0 %v1984
    %5470 = vmatpush1.bf16.msra.mxu0 %v1983
    %5471 = vmatprep.subr.bf16.mxu0 %v1988
    %5472 = vmatpush1.bf16.msra.mxu0 %v1987
    %5473 = vmatprep.subr.bf16.mxu0 %v1992
    %5474 = vmatpush1.bf16.msra.mxu0 %v1991
    %5475 = vmatprep.subr.bf16.mxu0 %v1996
    %5476 = vmatpush1.bf16.msra.mxu0 %v1995
    %5477 = vmatprep.subr.bf16.mxu0 %v2000
    %5478 = vmatpush1.bf16.msra.mxu0 %v1999
    %5479 = vmatprep.subr.bf16.mxu0 %v2004
    %5480 = vmatpush1.bf16.msra.mxu0 %v2003
    %5481 = vmatprep.subr.bf16.mxu0 %v2008
    %5482 = vmatpush1.bf16.msra.mxu0 %v2007
    %5483 = vmatprep.subr.bf16.mxu0 %v2012
    %5484 = vmatpush1.bf16.msra.mxu0 %v2011
    %5485 = vmatprep.subr.bf16.mxu0 %v2016
    %5486 = vmatpush1.bf16.msra.mxu0 %v2015
    %5487 = vmatprep.subr.bf16.mxu0 %v2020
    %5488 = vmatpush1.bf16.msra.mxu0 %v2019
    %5489 = vmatprep.subr.bf16.mxu0 %v2024
    %5490 = vmatpush1.bf16.msra.mxu0 %v2023
    %5491 = vmatprep.subr.bf16.mxu0 %v2028
    %5492 = vmatpush1.bf16.msra.mxu0 %v2027
    %5493 = vmatprep.subr.bf16.mxu0 %v2032
    %5494 = vmatpush1.bf16.msra.mxu0 %v2031
    %5495 = vmatprep.subr.bf16.mxu0 %v2036
    %5496 = vmatpush1.bf16.msra.mxu0 %v2035
    %5497 = vmatprep.subr.bf16.mxu0 %v2040
    %5498 = vmatpush1.bf16.msra.mxu0 %v2039
    %5499 = vmatprep.mubr.bf16.mxu0 %v4990
    %5500 = vmatmul.mubr.bf16.gmra.mrb[0].mxu0 %v4989
    %v5501 = vpop.f32.mrb[0].mxu0
    %v5502 = vadd.f32 0.0, %v5501
    %v5503 = vpop.f32.mrb[0].mxu0
    %v5504 = vadd.f32 0.0, %v5503
    %v5505 = vpop.f32.mrb[0].mxu0
    %v5506 = vpop.f32.mrb[0].mxu0
    %5507 = vdwg.mxu0
    %5508 = vmatprep.subr.bf16.mxu0 %v2044
    %5509 = vmatpush1.bf16.msra.mxu0 %v2043
    %5510 = vmatprep.subr.bf16.mxu0 %v2048
    %5511 = vmatpush1.bf16.msra.mxu0 %v2047
    %5512 = vmatprep.subr.bf16.mxu0 %v2052
    %5513 = vmatpush1.bf16.msra.mxu0 %v2051
    %5514 = vmatprep.subr.bf16.mxu0 %v2056
    %5515 = vmatpush1.bf16.msra.mxu0 %v2055
    %5516 = vmatprep.subr.bf16.mxu0 %v2060
    %5517 = vmatpush1.bf16.msra.mxu0 %v2059
    %5518 = vmatprep.subr.bf16.mxu0 %v2064
    %5519 = vmatpush1.bf16.msra.mxu0 %v2063
    %5520 = vmatprep.subr.bf16.mxu0 %v2068
    %5521 = vmatpush1.bf16.msra.mxu0 %v2067
    %5522 = vmatprep.subr.bf16.mxu0 %v2072
    %5523 = vmatpush1.bf16.msra.mxu0 %v2071
    %5524 = vmatprep.subr.bf16.mxu0 %v2076
    %5525 = vmatpush1.bf16.msra.mxu0 %v2075
    %5526 = vmatprep.subr.bf16.mxu0 %v2080
    %5527 = vmatpush1.bf16.msra.mxu0 %v2079
    %5528 = vmatprep.subr.bf16.mxu0 %v2084
    %5529 = vmatpush1.bf16.msra.mxu0 %v2083
    %5530 = vmatprep.subr.bf16.mxu0 %v2088
    %5531 = vmatpush1.bf16.msra.mxu0 %v2087
    %5532 = vmatprep.subr.bf16.mxu0 %v2092
    %5533 = vmatpush1.bf16.msra.mxu0 %v2091
    %5534 = vmatprep.subr.bf16.mxu0 %v2096
    %5535 = vmatpush1.bf16.msra.mxu0 %v2095
    %5536 = vmatprep.subr.bf16.mxu0 %v2100
    %5537 = vmatpush1.bf16.msra.mxu0 %v2099
    %5538 = vmatprep.subr.bf16.mxu0 %v2104
    %5539 = vmatpush1.bf16.msra.mxu0 %v2103
    %5540 = vmatprep.mubr.bf16.mxu0 %v4992
    %5541 = vmatmul.mubr.bf16.gmra.mrb[0].mxu0 %v4991
    %v5542 = vpop.f32.mrb[0].mxu0
    %v5543 = vadd.f32 %v5502, %v5542
    %v5544 = vpop.f32.mrb[0].mxu0
    %v5545 = vadd.f32 %v5504, %v5544
    %v5546 = vpop.f32.mrb[0].mxu0
    %v5547 = vpop.f32.mrb[0].mxu0
    %5548 = vdwg.mxu0
    %v5549 = vld [vmem:[#allocation3 + $0x240] sm:$0xff]
    %v5550 = vld [vmem:[#allocation3 + $0x248] sm:$0xff]
    %v5551 = vld [vmem:[#allocation3 + $0x250] sm:$0xff]
    %v5552 = vld [vmem:[#allocation3 + $0x258] sm:$0xff]
    %v5553 = vadd.f32 %v5549, %v5461
    %v5554 = vadd.f32 %v5550, %v5463
    %v5555 = vadd.f32 %v5551, %v5543
    %v5556 = vadd.f32 %v5552, %v5545
    %v5557 = vtanh.pop %v5553
    %v5558 = vtanh.pop %v5554
    %v5559 = vtanh.pop %v5555
    %v5560 = vtanh.pop %v5556
    %5561 = vmatprep.subr.bf16.mxu0 %v2282
    %5562 = vmatpush1.bf16.msra.mxu0 %v2281
    %5563 = vmatprep.subr.bf16.mxu0 %v2286
    %5564 = vmatpush1.bf16.msra.mxu0 %v2285
    %5565 = vmatprep.subr.bf16.mxu0 %v2290
    %5566 = vmatpush1.bf16.msra.mxu0 %v2289
    %5567 = vmatprep.subr.bf16.mxu0 %v2294
    %5568 = vmatpush1.bf16.msra.mxu0 %v2293
    %5569 = vmatprep.subr.bf16.mxu0 %v2298
    %5570 = vmatpush1.bf16.msra.mxu0 %v2297
    %5571 = vmatprep.subr.bf16.mxu0 %v2302
    %5572 = vmatpush1.bf16.msra.mxu0 %v2301
    %5573 = vmatprep.subr.bf16.mxu0 %v2306
    %5574 = vmatpush1.bf16.msra.mxu0 %v2305
    %5575 = vmatprep.subr.bf16.mxu0 %v2310
    %5576 = vmatpush1.bf16.msra.mxu0 %v2309
    %5577 = vmatprep.subr.bf16.mxu0 %v2314
    %5578 = vmatpush1.bf16.msra.mxu0 %v2313
    %5579 = vmatprep.subr.bf16.mxu0 %v2318
    %5580 = vmatpush1.bf16.msra.mxu0 %v2317
    %5581 = vmatprep.subr.bf16.mxu0 %v2322
    %5582 = vmatpush1.bf16.msra.mxu0 %v2321
    %5583 = vmatprep.subr.bf16.mxu0 %v2326
    %5584 = vmatpush1.bf16.msra.mxu0 %v2325
    %5585 = vmatprep.subr.bf16.mxu0 %v2330
    %5586 = vmatpush1.bf16.msra.mxu0 %v2329
    %5587 = vmatprep.subr.bf16.mxu0 %v2334
    %5588 = vmatpush1.bf16.msra.mxu0 %v2333
    %5589 = vmatprep.subr.bf16.mxu0 %v2338
    %5590 = vmatpush1.bf16.msra.mxu0 %v2337
    %5591 = vmatprep.subr.bf16.mxu0 %v2342
    %5592 = vmatpush1.bf16.msra.mxu0 %v2341
    %5593 = vmatprep.mubr.bf16.mxu0 %v4990
    %5594 = vmatmul.mubr.bf16.gmra.mrb[0].mxu0 %v4989
    %v5595 = vpop.f32.mrb[0].mxu0
    %v5596 = vadd.f32 0.0, %v5595
    %v5597 = vpop.f32.mrb[0].mxu0
    %v5598 = vadd.f32 0.0, %v5597
    %v5599 = vpop.f32.mrb[0].mxu0
    %v5600 = vpop.f32.mrb[0].mxu0
    %5601 = vdwg.mxu0
    %5602 = vmatprep.subr.bf16.mxu0 %v2346
    %5603 = vmatpush1.bf16.msra.mxu0 %v2345
    %5604 = vmatprep.subr.bf16.mxu0 %v2350
    %5605 = vmatpush1.bf16.msra.mxu0 %v2349
    %5606 = vmatprep.subr.bf16.mxu0 %v2354
    %5607 = vmatpush1.bf16.msra.mxu0 %v2353
    %5608 = vmatprep.subr.bf16.mxu0 %v2358
    %5609 = vmatpush1.bf16.msra.mxu0 %v2357
    %5610 = vmatprep.subr.bf16.mxu0 %v2362
    %5611 = vmatpush1.bf16.msra.mxu0 %v2361
    %5612 = vmatprep.subr.bf16.mxu0 %v2366
    %5613 = vmatpush1.bf16.msra.mxu0 %v2365
    %5614 = vmatprep.subr.bf16.mxu0 %v2370
    %5615 = vmatpush1.bf16.msra.mxu0 %v2369
    %5616 = vmatprep.subr.bf16.mxu0 %v2374
    %5617 = vmatpush1.bf16.msra.mxu0 %v2373
    %5618 = vmatprep.subr.bf16.mxu0 %v2378
    %5619 = vmatpush1.bf16.msra.mxu0 %v2377
    %5620 = vmatprep.subr.bf16.mxu0 %v2382
    %5621 = vmatpush1.bf16.msra.mxu0 %v2381
    %5622 = vmatprep.subr.bf16.mxu0 %v2386
    %5623 = vmatpush1.bf16.msra.mxu0 %v2385
    %5624 = vmatprep.subr.bf16.mxu0 %v2390
    %5625 = vmatpush1.bf16.msra.mxu0 %v2389
    %5626 = vmatprep.subr.bf16.mxu0 %v2394
    %5627 = vmatpush1.bf16.msra.mxu0 %v2393
    %5628 = vmatprep.subr.bf16.mxu0 %v2398
    %5629 = vmatpush1.bf16.msra.mxu0 %v2397
    %5630 = vmatprep.subr.bf16.mxu0 %v2402
    %5631 = vmatpush1.bf16.msra.mxu0 %v2401
    %5632 = vmatprep.subr.bf16.mxu0 %v2406
    %5633 = vmatpush1.bf16.msra.mxu0 %v2405
    %5634 = vmatprep.mubr.bf16.mxu0 %v4992
    %5635 = vmatmul.mubr.bf16.gmra.mrb[0].mxu0 %v4991
    %v5636 = vpop.f32.mrb[0].mxu0
    %v5637 = vadd.f32 %v5596, %v5636
    %v5638 = vpop.f32.mrb[0].mxu0
    %v5639 = vadd.f32 %v5598, %v5638
    %v5640 = vpop.f32.mrb[0].mxu0
    %v5641 = vpop.f32.mrb[0].mxu0
    %5642 = vdwg.mxu0
    %5643 = vmatprep.subr.bf16.mxu0 %v2284
    %5644 = vmatpush1.bf16.msra.mxu0 %v2283
    %5645 = vmatprep.subr.bf16.mxu0 %v2288
    %5646 = vmatpush1.bf16.msra.mxu0 %v2287
    %5647 = vmatprep.subr.bf16.mxu0 %v2292
    %5648 = vmatpush1.bf16.msra.mxu0 %v2291
    %5649 = vmatprep.subr.bf16.mxu0 %v2296
    %5650 = vmatpush1.bf16.msra.mxu0 %v2295
    %5651 = vmatprep.subr.bf16.mxu0 %v2300
    %5652 = vmatpush1.bf16.msra.mxu0 %v2299
    %5653 = vmatprep.subr.bf16.mxu0 %v2304
    %5654 = vmatpush1.bf16.msra.mxu0 %v2303
    %5655 = vmatprep.subr.bf16.mxu0 %v2308
    %5656 = vmatpush1.bf16.msra.mxu0 %v2307
    %5657 = vmatprep.subr.bf16.mxu0 %v2312
    %5658 = vmatpush1.bf16.msra.mxu0 %v2311
    %5659 = vmatprep.subr.bf16.mxu0 %v2316
    %5660 = vmatpush1.bf16.msra.mxu0 %v2315
    %5661 = vmatprep.subr.bf16.mxu0 %v2320
    %5662 = vmatpush1.bf16.msra.mxu0 %v2319
    %5663 = vmatprep.subr.bf16.mxu0 %v2324
    %5664 = vmatpush1.bf16.msra.mxu0 %v2323
    %5665 = vmatprep.subr.bf16.mxu0 %v2328
    %5666 = vmatpush1.bf16.msra.mxu0 %v2327
    %5667 = vmatprep.subr.bf16.mxu0 %v2332
    %5668 = vmatpush1.bf16.msra.mxu0 %v2331
    %5669 = vmatprep.subr.bf16.mxu0 %v2336
    %5670 = vmatpush1.bf16.msra.mxu0 %v2335
    %5671 = vmatprep.subr.bf16.mxu0 %v2340
    %5672 = vmatpush1.bf16.msra.mxu0 %v2339
    %5673 = vmatprep.subr.bf16.mxu0 %v2344
    %5674 = vmatpush1.bf16.msra.mxu0 %v2343
    %5675 = vmatprep.mubr.bf16.mxu0 %v4990
    %5676 = vmatmul.mubr.bf16.gmra.mrb[0].mxu0 %v4989
    %v5677 = vpop.f32.mrb[0].mxu0
    %v5678 = vadd.f32 0.0, %v5677
    %v5679 = vpop.f32.mrb[0].mxu0
    %v5680 = vadd.f32 0.0, %v5679
    %v5681 = vpop.f32.mrb[0].mxu0
    %v5682 = vpop.f32.mrb[0].mxu0
    %5683 = vdwg.mxu0
    %5684 = vmatprep.subr.bf16.mxu0 %v2348
    %5685 = vmatpush1.bf16.msra.mxu0 %v2347
    %5686 = vmatprep.subr.bf16.mxu0 %v2352
    %5687 = vmatpush1.bf16.msra.mxu0 %v2351
    %5688 = vmatprep.subr.bf16.mxu0 %v2356
    %5689 = vmatpush1.bf16.msra.mxu0 %v2355
    %5690 = vmatprep.subr.bf16.mxu0 %v2360
    %5691 = vmatpush1.bf16.msra.mxu0 %v2359
    %5692 = vmatprep.subr.bf16.mxu0 %v2364
    %5693 = vmatpush1.bf16.msra.mxu0 %v2363
    %5694 = vmatprep.subr.bf16.mxu0 %v2368
    %5695 = vmatpush1.bf16.msra.mxu0 %v2367
    %5696 = vmatprep.subr.bf16.mxu0 %v2372
    %5697 = vmatpush1.bf16.msra.mxu0 %v2371
    %5698 = vmatprep.subr.bf16.mxu0 %v2376
    %5699 = vmatpush1.bf16.msra.mxu0 %v2375
    %5700 = vmatprep.subr.bf16.mxu0 %v2380
    %5701 = vmatpush1.bf16.msra.mxu0 %v2379
    %5702 = vmatprep.subr.bf16.mxu0 %v2384
    %5703 = vmatpush1.bf16.msra.mxu0 %v2383
    %5704 = vmatprep.subr.bf16.mxu0 %v2388
    %5705 = vmatpush1.bf16.msra.mxu0 %v2387
    %5706 = vmatprep.subr.bf16.mxu0 %v2392
    %5707 = vmatpush1.bf16.msra.mxu0 %v2391
    %5708 = vmatprep.subr.bf16.mxu0 %v2396
    %5709 = vmatpush1.bf16.msra.mxu0 %v2395
    %5710 = vmatprep.subr.bf16.mxu0 %v2400
    %5711 = vmatpush1.bf16.msra.mxu0 %v2399
    %5712 = vmatprep.subr.bf16.mxu0 %v2404
    %5713 = vmatpush1.bf16.msra.mxu0 %v2403
    %5714 = vmatprep.subr.bf16.mxu0 %v2408
    %5715 = vmatpush1.bf16.msra.mxu0 %v2407
    %5716 = vmatprep.mubr.bf16.mxu0 %v4992
    %5717 = vmatmul.mubr.bf16.gmra.mrb[0].mxu0 %v4991
    %v5718 = vpop.f32.mrb[0].mxu0
    %v5719 = vadd.f32 %v5678, %v5718
    %v5720 = vpop.f32.mrb[0].mxu0
    %v5721 = vadd.f32 %v5680, %v5720
    %v5722 = vpop.f32.mrb[0].mxu0
    %v5723 = vpop.f32.mrb[0].mxu0
    %5724 = vdwg.mxu0
    %v5725 = vld [vmem:[#allocation3 + $0x260] sm:$0xff]
    %v5726 = vld [vmem:[#allocation3 + $0x268] sm:$0xff]
    %v5727 = vld [vmem:[#allocation3 + $0x270] sm:$0xff]
    %v5728 = vld [vmem:[#allocation3 + $0x278] sm:$0xff]
    %v5729 = vadd.f32 %v5725, %v5637
    %v5730 = vadd.f32 %v5726, %v5639
    %v5731 = vadd.f32 %v5727, %v5719
    %v5732 = vadd.f32 %v5728, %v5721
    %v5733 = vxor.u32 %v5729, 2147483648
    %v5734 = vxor.u32 %v5730, 2147483648
    %v5735 = vxor.u32 %v5731, 2147483648
    %v5736 = vxor.u32 %v5732, 2147483648
    %v5737 = vmul.f32 %v5733, 1.442695
    %v5738 = vpow.pop %v5737
    %v5739 = vmul.f32 %v5734, 1.442695
    %v5740 = vpow.pop %v5739
    %v5741 = vmul.f32 %v5735, 1.442695
    %v5742 = vpow.pop %v5741
    %v5743 = vmul.f32 %v5736, 1.442695
    %v5744 = vpow.pop %v5743
    %v5745 = vadd.f32 %v5738, 1.0
    %v5746 = vadd.f32 %v5740, 1.0
    %v5747 = vadd.f32 %v5742, 1.0
    %v5748 = vadd.f32 %v5744, 1.0
    %v5749 = vrcp.pop %v5745
    %v5750 = vmul.f32 1.0, %v5749
    %v5751 = vrcp.pop %v5746
    %v5752 = vmul.f32 1.0, %v5751
    %v5753 = vrcp.pop %v5747
    %v5754 = vmul.f32 1.0, %v5753
    %v5755 = vrcp.pop %v5748
    %v5756 = vmul.f32 1.0, %v5755
    %v5757 = vmul.f32 %v5378, %v4977
    %v5758 = vmul.f32 %v5380, %v4978
    %v5759 = vmul.f32 %v5382, %v4979
    %v5760 = vmul.f32 %v5384, %v4980
    %v5761 = vmul.f32 %v5182, %v5557
    %v5762 = vmul.f32 %v5184, %v5558
    %v5763 = vmul.f32 %v5186, %v5559
    %v5764 = vmul.f32 %v5188, %v5560
    %v5765 = vadd.f32 %v5757, %v5761
    %v5766 = vadd.f32 %v5758, %v5762
    %v5767 = vadd.f32 %v5759, %v5763
    %v5768 = vadd.f32 %v5760, %v5764
    %v5769 = vtanh.pop %v5765
    %v5770 = vtanh.pop %v5766
    %v5771 = vtanh.pop %v5767
    %v5772 = vtanh.pop %v5768
    %v5773 = vmul.f32 %v5750, %v5769
    %v5774 = vmul.f32 %v5752, %v5770
    %v5775 = vmul.f32 %v5754, %v5771
    %v5776 = vmul.f32 %v5756, %v5772
    %v5777 = vpack.c.bf16 %v5773, %v5773
    %v5778 = vpack.c.bf16 %v5774, %v5774
    %v5779 = vpack.c.bf16 %v5775, %v5775
    %v5780 = vpack.c.bf16 %v5776, %v5776
    %5781 = vmatprep.subr.bf16.mxu0 %v1330
    %5782 = vmatpush1.bf16.msra.mxu0 %v1329
    %5783 = vmatprep.subr.bf16.mxu0 %v1334
    %5784 = vmatpush1.bf16.msra.mxu0 %v1333
    %5785 = vmatprep.subr.bf16.mxu0 %v1338
    %5786 = vmatpush1.bf16.msra.mxu0 %v1337
    %5787 = vmatprep.subr.bf16.mxu0 %v1342
    %5788 = vmatpush1.bf16.msra.mxu0 %v1341
    %5789 = vmatprep.subr.bf16.mxu0 %v1346
    %5790 = vmatpush1.bf16.msra.mxu0 %v1345
    %5791 = vmatprep.subr.bf16.mxu0 %v1350
    %5792 = vmatpush1.bf16.msra.mxu0 %v1349
    %5793 = vmatprep.subr.bf16.mxu0 %v1354
    %5794 = vmatpush1.bf16.msra.mxu0 %v1353
    %5795 = vmatprep.subr.bf16.mxu0 %v1358
    %5796 = vmatpush1.bf16.msra.mxu0 %v1357
    %5797 = vmatprep.subr.bf16.mxu0 %v1362
    %5798 = vmatpush1.bf16.msra.mxu0 %v1361
    %5799 = vmatprep.subr.bf16.mxu0 %v1366
    %5800 = vmatpush1.bf16.msra.mxu0 %v1365
    %5801 = vmatprep.subr.bf16.mxu0 %v1370
    %5802 = vmatpush1.bf16.msra.mxu0 %v1369
    %5803 = vmatprep.subr.bf16.mxu0 %v1374
    %5804 = vmatpush1.bf16.msra.mxu0 %v1373
    %5805 = vmatprep.subr.bf16.mxu0 %v1378
    %5806 = vmatpush1.bf16.msra.mxu0 %v1377
    %5807 = vmatprep.subr.bf16.mxu0 %v1382
    %5808 = vmatpush1.bf16.msra.mxu0 %v1381
    %5809 = vmatprep.subr.bf16.mxu0 %v1386
    %5810 = vmatpush1.bf16.msra.mxu0 %v1385
    %5811 = vmatprep.subr.bf16.mxu0 %v1390
    %5812 = vmatpush1.bf16.msra.mxu0 %v1389
    %5813 = vmatprep.mubr.bf16.mxu0 %v5778
    %5814 = vmatmul.mubr.bf16.gmra.mrb[0].mxu0 %v5777
    %v5815 = vpop.f32.mrb[0].mxu0
    %v5816 = vadd.f32 0.0, %v5815
    %v5817 = vpop.f32.mrb[0].mxu0
    %v5818 = vadd.f32 0.0, %v5817
    %v5819 = vpop.f32.mrb[0].mxu0
    %v5820 = vpop.f32.mrb[0].mxu0
    %5821 = vdwg.mxu0
    %5822 = vmatprep.subr.bf16.mxu0 %v1394
    %5823 = vmatpush1.bf16.msra.mxu0 %v1393
    %5824 = vmatprep.subr.bf16.mxu0 %v1398
    %5825 = vmatpush1.bf16.msra.mxu0 %v1397
    %5826 = vmatprep.subr.bf16.mxu0 %v1402
    %5827 = vmatpush1.bf16.msra.mxu0 %v1401
    %5828 = vmatprep.subr.bf16.mxu0 %v1406
    %5829 = vmatpush1.bf16.msra.mxu0 %v1405
    %5830 = vmatprep.subr.bf16.mxu0 %v1410
    %5831 = vmatpush1.bf16.msra.mxu0 %v1409
    %5832 = vmatprep.subr.bf16.mxu0 %v1414
    %5833 = vmatpush1.bf16.msra.mxu0 %v1413
    %5834 = vmatprep.subr.bf16.mxu0 %v1418
    %5835 = vmatpush1.bf16.msra.mxu0 %v1417
    %5836 = vmatprep.subr.bf16.mxu0 %v1422
    %5837 = vmatpush1.bf16.msra.mxu0 %v1421
    %5838 = vmatprep.subr.bf16.mxu0 %v1426
    %5839 = vmatpush1.bf16.msra.mxu0 %v1425
    %5840 = vmatprep.subr.bf16.mxu0 %v1430
    %5841 = vmatpush1.bf16.msra.mxu0 %v1429
    %5842 = vmatprep.subr.bf16.mxu0 %v1434
    %5843 = vmatpush1.bf16.msra.mxu0 %v1433
    %5844 = vmatprep.subr.bf16.mxu0 %v1438
    %5845 = vmatpush1.bf16.msra.mxu0 %v1437
    %5846 = vmatprep.subr.bf16.mxu0 %v1442
    %5847 = vmatpush1.bf16.msra.mxu0 %v1441
    %5848 = vmatprep.subr.bf16.mxu0 %v1446
    %5849 = vmatpush1.bf16.msra.mxu0 %v1445
    %5850 = vmatprep.subr.bf16.mxu0 %v1450
    %5851 = vmatpush1.bf16.msra.mxu0 %v1449
    %5852 = vmatprep.subr.bf16.mxu0 %v1454
    %5853 = vmatpush1.bf16.msra.mxu0 %v1453
    %5854 = vmatprep.mubr.bf16.mxu0 %v5780
    %5855 = vmatmul.mubr.bf16.gmra.mrb[0].mxu0 %v5779
    %v5856 = vpop.f32.mrb[0].mxu0
    %v5857 = vadd.f32 %v5816, %v5856
    %v5858 = vpop.f32.mrb[0].mxu0
    %v5859 = vadd.f32 %v5818, %v5858
    %v5860 = vpop.f32.mrb[0].mxu0
    %v5861 = vpop.f32.mrb[0].mxu0
    %5862 = vdwg.mxu0
    %5863 = vmatprep.subr.bf16.mxu0 %v1332
    %5864 = vmatpush1.bf16.msra.mxu0 %v1331
    %5865 = vmatprep.subr.bf16.mxu0 %v1336
    %5866 = vmatpush1.bf16.msra.mxu0 %v1335
    %5867 = vmatprep.subr.bf16.mxu0 %v1340
    %5868 = vmatpush1.bf16.msra.mxu0 %v1339
    %5869 = vmatprep.subr.bf16.mxu0 %v1344
    %5870 = vmatpush1.bf16.msra.mxu0 %v1343
    %5871 = vmatprep.subr.bf16.mxu0 %v1348
    %5872 = vmatpush1.bf16.msra.mxu0 %v1347
    %5873 = vmatprep.subr.bf16.mxu0 %v1352
    %5874 = vmatpush1.bf16.msra.mxu0 %v1351
    %5875 = vmatprep.subr.bf16.mxu0 %v1356
    %5876 = vmatpush1.bf16.msra.mxu0 %v1355
    %5877 = vmatprep.subr.bf16.mxu0 %v1360
    %5878 = vmatpush1.bf16.msra.mxu0 %v1359
    %5879 = vmatprep.subr.bf16.mxu0 %v1364
    %5880 = vmatpush1.bf16.msra.mxu0 %v1363
    %5881 = vmatprep.subr.bf16.mxu0 %v1368
    %5882 = vmatpush1.bf16.msra.mxu0 %v1367
    %5883 = vmatprep.subr.bf16.mxu0 %v1372
    %5884 = vmatpush1.bf16.msra.mxu0 %v1371
    %5885 = vmatprep.subr.bf16.mxu0 %v1376
    %5886 = vmatpush1.bf16.msra.mxu0 %v1375
    %5887 = vmatprep.subr.bf16.mxu0 %v1380
    %5888 = vmatpush1.bf16.msra.mxu0 %v1379
    %5889 = vmatprep.subr.bf16.mxu0 %v1384
    %5890 = vmatpush1.bf16.msra.mxu0 %v1383
    %5891 = vmatprep.subr.bf16.mxu0 %v1388
    %5892 = vmatpush1.bf16.msra.mxu0 %v1387
    %5893 = vmatprep.subr.bf16.mxu0 %v1392
    %5894 = vmatpush1.bf16.msra.mxu0 %v1391
    %5895 = vmatprep.mubr.bf16.mxu0 %v5778
    %5896 = vmatmul.mubr.bf16.gmra.mrb[0].mxu0 %v5777
    %v5897 = vpop.f32.mrb[0].mxu0
    %v5898 = vadd.f32 0.0, %v5897
    %v5899 = vpop.f32.mrb[0].mxu0
    %v5900 = vadd.f32 0.0, %v5899
    %v5901 = vpop.f32.mrb[0].mxu0
    %v5902 = vpop.f32.mrb[0].mxu0
    %5903 = vdwg.mxu0
    %5904 = vmatprep.subr.bf16.mxu0 %v1396
    %5905 = vmatpush1.bf16.msra.mxu0 %v1395
    %5906 = vmatprep.subr.bf16.mxu0 %v1400
    %5907 = vmatpush1.bf16.msra.mxu0 %v1399
    %5908 = vmatprep.subr.bf16.mxu0 %v1404
    %5909 = vmatpush1.bf16.msra.mxu0 %v1403
    %5910 = vmatprep.subr.bf16.mxu0 %v1408
    %5911 = vmatpush1.bf16.msra.mxu0 %v1407
    %5912 = vmatprep.subr.bf16.mxu0 %v1412
    %5913 = vmatpush1.bf16.msra.mxu0 %v1411
    %5914 = vmatprep.subr.bf16.mxu0 %v1416
    %5915 = vmatpush1.bf16.msra.mxu0 %v1415
    %5916 = vmatprep.subr.bf16.mxu0 %v1420
    %5917 = vmatpush1.bf16.msra.mxu0 %v1419
    %5918 = vmatprep.subr.bf16.mxu0 %v1424
    %5919 = vmatpush1.bf16.msra.mxu0 %v1423
    %5920 = vmatprep.subr.bf16.mxu0 %v1428
    %5921 = vmatpush1.bf16.msra.mxu0 %v1427
    %5922 = vmatprep.subr.bf16.mxu0 %v1432
    %5923 = vmatpush1.bf16.msra.mxu0 %v1431
    %5924 = vmatprep.subr.bf16.mxu0 %v1436
    %5925 = vmatpush1.bf16.msra.mxu0 %v1435
    %5926 = vmatprep.subr.bf16.mxu0 %v1440
    %5927 = vmatpush1.bf16.msra.mxu0 %v1439
    %5928 = vmatprep.subr.bf16.mxu0 %v1444
    %5929 = vmatpush1.bf16.msra.mxu0 %v1443
    %5930 = vmatprep.subr.bf16.mxu0 %v1448
    %5931 = vmatpush1.bf16.msra.mxu0 %v1447
    %5932 = vmatprep.subr.bf16.mxu0 %v1452
    %5933 = vmatpush1.bf16.msra.mxu0 %v1451
    %5934 = vmatprep.subr.bf16.mxu0 %v1456
    %5935 = vmatpush1.bf16.msra.mxu0 %v1455
    %5936 = vmatprep.mubr.bf16.mxu0 %v5780
    %5937 = vmatmul.mubr.bf16.gmra.mrb[0].mxu0 %v5779
    %v5938 = vpop.f32.mrb[0].mxu0
    %v5939 = vadd.f32 %v5898, %v5938
    %v5940 = vpop.f32.mrb[0].mxu0
    %v5941 = vadd.f32 %v5900, %v5940
    %v5942 = vpop.f32.mrb[0].mxu0
    %v5943 = vpop.f32.mrb[0].mxu0
    %5944 = vdwg.mxu0
    %v5945 = vld [vmem:[#allocation3 + $0x280] sm:$0xff]
    %v5946 = vld [vmem:[#allocation3 + $0x288] sm:$0xff]
    %v5947 = vld [vmem:[#allocation3 + $0x290] sm:$0xff]
    %v5948 = vld [vmem:[#allocation3 + $0x298] sm:$0xff]
    %v5949 = vadd.f32 %v5945, %v5857
    %v5950 = vadd.f32 %v5946, %v5859
    %v5951 = vadd.f32 %v5947, %v5939
    %v5952 = vadd.f32 %v5948, %v5941
    %v5953 = vxor.u32 %v5949, 2147483648
    %v5954 = vxor.u32 %v5950, 2147483648
    %v5955 = vxor.u32 %v5951, 2147483648
    %v5956 = vxor.u32 %v5952, 2147483648
    %v5957 = vmul.f32 %v5953, 1.442695
    %v5958 = vpow.pop %v5957
    %v5959 = vmul.f32 %v5954, 1.442695
    %v5960 = vpow.pop %v5959
    %v5961 = vmul.f32 %v5955, 1.442695
    %v5962 = vpow.pop %v5961
    %v5963 = vmul.f32 %v5956, 1.442695
    %v5964 = vpow.pop %v5963
    %v5965 = vadd.f32 %v5958, 1.0
    %v5966 = vadd.f32 %v5960, 1.0
    %v5967 = vadd.f32 %v5962, 1.0
    %v5968 = vadd.f32 %v5964, 1.0
    %v5969 = vrcp.pop %v5965
    %v5970 = vmul.f32 1.0, %v5969
    %v5971 = vrcp.pop %v5966
    %v5972 = vmul.f32 1.0, %v5971
    %v5973 = vrcp.pop %v5967
    %v5974 = vmul.f32 1.0, %v5973
    %v5975 = vrcp.pop %v5968
    %v5976 = vmul.f32 1.0, %v5975
    %5977 = vmatprep.subr.bf16.mxu0 %v1654
    %5978 = vmatpush1.bf16.msra.mxu0 %v1653
    %5979 = vmatprep.subr.bf16.mxu0 %v1658
    %5980 = vmatpush1.bf16.msra.mxu0 %v1657
    %5981 = vmatprep.subr.bf16.mxu0 %v1662
    %5982 = vmatpush1.bf16.msra.mxu0 %v1661
    %5983 = vmatprep.subr.bf16.mxu0 %v1666
    %5984 = vmatpush1.bf16.msra.mxu0 %v1665
    %5985 = vmatprep.subr.bf16.mxu0 %v1670
    %5986 = vmatpush1.bf16.msra.mxu0 %v1669
    %5987 = vmatprep.subr.bf16.mxu0 %v1674
    %5988 = vmatpush1.bf16.msra.mxu0 %v1673
    %5989 = vmatprep.subr.bf16.mxu0 %v1678
    %5990 = vmatpush1.bf16.msra.mxu0 %v1677
    %5991 = vmatprep.subr.bf16.mxu0 %v1682
    %5992 = vmatpush1.bf16.msra.mxu0 %v1681
    %5993 = vmatprep.subr.bf16.mxu0 %v1686
    %5994 = vmatpush1.bf16.msra.mxu0 %v1685
    %5995 = vmatprep.subr.bf16.mxu0 %v1690
    %5996 = vmatpush1.bf16.msra.mxu0 %v1689
    %5997 = vmatprep.subr.bf16.mxu0 %v1694
    %5998 = vmatpush1.bf16.msra.mxu0 %v1693
    %5999 = vmatprep.subr.bf16.mxu0 %v1698
    %6000 = vmatpush1.bf16.msra.mxu0 %v1697
    %6001 = vmatprep.subr.bf16.mxu0 %v1702
    %6002 = vmatpush1.bf16.msra.mxu0 %v1701
    %6003 = vmatprep.subr.bf16.mxu0 %v1706
    %6004 = vmatpush1.bf16.msra.mxu0 %v1705
    %6005 = vmatprep.subr.bf16.mxu0 %v1710
    %6006 = vmatpush1.bf16.msra.mxu0 %v1709
    %6007 = vmatprep.subr.bf16.mxu0 %v1714
    %6008 = vmatpush1.bf16.msra.mxu0 %v1713
    %6009 = vmatprep.mubr.bf16.mxu0 %v5778
    %6010 = vmatmul.mubr.bf16.gmra.mrb[0].mxu0 %v5777
    %v6011 = vpop.f32.mrb[0].mxu0
    %v6012 = vadd.f32 0.0, %v6011
    %v6013 = vpop.f32.mrb[0].mxu0
    %v6014 = vadd.f32 0.0, %v6013
    %v6015 = vpop.f32.mrb[0].mxu0
    %v6016 = vpop.f32.mrb[0].mxu0
    %6017 = vdwg.mxu0
    %6018 = vmatprep.subr.bf16.mxu0 %v1718
    %6019 = vmatpush1.bf16.msra.mxu0 %v1717
    %6020 = vmatprep.subr.bf16.mxu0 %v1722
    %6021 = vmatpush1.bf16.msra.mxu0 %v1721
    %6022 = vmatprep.subr.bf16.mxu0 %v1726
    %6023 = vmatpush1.bf16.msra.mxu0 %v1725
    %6024 = vmatprep.subr.bf16.mxu0 %v1730
    %6025 = vmatpush1.bf16.msra.mxu0 %v1729
    %6026 = vmatprep.subr.bf16.mxu0 %v1734
    %6027 = vmatpush1.bf16.msra.mxu0 %v1733
    %6028 = vmatprep.subr.bf16.mxu0 %v1738
    %6029 = vmatpush1.bf16.msra.mxu0 %v1737
    %6030 = vmatprep.subr.bf16.mxu0 %v1742
    %6031 = vmatpush1.bf16.msra.mxu0 %v1741
    %6032 = vmatprep.subr.bf16.mxu0 %v1746
    %6033 = vmatpush1.bf16.msra.mxu0 %v1745
    %6034 = vmatprep.subr.bf16.mxu0 %v1750
    %6035 = vmatpush1.bf16.msra.mxu0 %v1749
    %6036 = vmatprep.subr.bf16.mxu0 %v1754
    %6037 = vmatpush1.bf16.msra.mxu0 %v1753
    %6038 = vmatprep.subr.bf16.mxu0 %v1758
    %6039 = vmatpush1.bf16.msra.mxu0 %v1757
    %6040 = vmatprep.subr.bf16.mxu0 %v1762
    %6041 = vmatpush1.bf16.msra.mxu0 %v1761
    %6042 = vmatprep.subr.bf16.mxu0 %v1766
    %6043 = vmatpush1.bf16.msra.mxu0 %v1765
    %6044 = vmatprep.subr.bf16.mxu0 %v1770
    %6045 = vmatpush1.bf16.msra.mxu0 %v1769
    %6046 = vmatprep.subr.bf16.mxu0 %v1774
    %6047 = vmatpush1.bf16.msra.mxu0 %v1773
    %6048 = vmatprep.subr.bf16.mxu0 %v1778
    %6049 = vmatpush1.bf16.msra.mxu0 %v1777
    %6050 = vmatprep.mubr.bf16.mxu0 %v5780
    %6051 = vmatmul.mubr.bf16.gmra.mrb[0].mxu0 %v5779
    %v6052 = vpop.f32.mrb[0].mxu0
    %v6053 = vadd.f32 %v6012, %v6052
    %v6054 = vpop.f32.mrb[0].mxu0
    %v6055 = vadd.f32 %v6014, %v6054
    %v6056 = vpop.f32.mrb[0].mxu0
    %v6057 = vpop.f32.mrb[0].mxu0
    %6058 = vdwg.mxu0
    %6059 = vmatprep.subr.bf16.mxu0 %v1656
    %6060 = vmatpush1.bf16.msra.mxu0 %v1655
    %6061 = vmatprep.subr.bf16.mxu0 %v1660
    %6062 = vmatpush1.bf16.msra.mxu0 %v1659
    %6063 = vmatprep.subr.bf16.mxu0 %v1664
    %6064 = vmatpush1.bf16.msra.mxu0 %v1663
    %6065 = vmatprep.subr.bf16.mxu0 %v1668
    %6066 = vmatpush1.bf16.msra.mxu0 %v1667
    %6067 = vmatprep.subr.bf16.mxu0 %v1672
    %6068 = vmatpush1.bf16.msra.mxu0 %v1671
    %6069 = vmatprep.subr.bf16.mxu0 %v1676
    %6070 = vmatpush1.bf16.msra.mxu0 %v1675
    %6071 = vmatprep.subr.bf16.mxu0 %v1680
    %6072 = vmatpush1.bf16.msra.mxu0 %v1679
    %6073 = vmatprep.subr.bf16.mxu0 %v1684
    %6074 = vmatpush1.bf16.msra.mxu0 %v1683
    %6075 = vmatprep.subr.bf16.mxu0 %v1688
    %6076 = vmatpush1.bf16.msra.mxu0 %v1687
    %6077 = vmatprep.subr.bf16.mxu0 %v1692
    %6078 = vmatpush1.bf16.msra.mxu0 %v1691
    %6079 = vmatprep.subr.bf16.mxu0 %v1696
    %6080 = vmatpush1.bf16.msra.mxu0 %v1695
    %6081 = vmatprep.subr.bf16.mxu0 %v1700
    %6082 = vmatpush1.bf16.msra.mxu0 %v1699
    %6083 = vmatprep.subr.bf16.mxu0 %v1704
    %6084 = vmatpush1.bf16.msra.mxu0 %v1703
    %6085 = vmatprep.subr.bf16.mxu0 %v1708
    %6086 = vmatpush1.bf16.msra.mxu0 %v1707
    %6087 = vmatprep.subr.bf16.mxu0 %v1712
    %6088 = vmatpush1.bf16.msra.mxu0 %v1711
    %6089 = vmatprep.subr.bf16.mxu0 %v1716
    %6090 = vmatpush1.bf16.msra.mxu0 %v1715
    %6091 = vmatprep.mubr.bf16.mxu0 %v5778
    %6092 = vmatmul.mubr.bf16.gmra.mrb[0].mxu0 %v5777
    %v6093 = vpop.f32.mrb[0].mxu0
    %v6094 = vadd.f32 0.0, %v6093
    %v6095 = vpop.f32.mrb[0].mxu0
    %v6096 = vadd.f32 0.0, %v6095
    %v6097 = vpop.f32.mrb[0].mxu0
    %v6098 = vpop.f32.mrb[0].mxu0
    %6099 = vdwg.mxu0
    %6100 = vmatprep.subr.bf16.mxu0 %v1720
    %6101 = vmatpush1.bf16.msra.mxu0 %v1719
    %6102 = vmatprep.subr.bf16.mxu0 %v1724
    %6103 = vmatpush1.bf16.msra.mxu0 %v1723
    %6104 = vmatprep.subr.bf16.mxu0 %v1728
    %6105 = vmatpush1.bf16.msra.mxu0 %v1727
    %6106 = vmatprep.subr.bf16.mxu0 %v1732
    %6107 = vmatpush1.bf16.msra.mxu0 %v1731
    %6108 = vmatprep.subr.bf16.mxu0 %v1736
    %6109 = vmatpush1.bf16.msra.mxu0 %v1735
    %6110 = vmatprep.subr.bf16.mxu0 %v1740
    %6111 = vmatpush1.bf16.msra.mxu0 %v1739
    %6112 = vmatprep.subr.bf16.mxu0 %v1744
    %6113 = vmatpush1.bf16.msra.mxu0 %v1743
    %6114 = vmatprep.subr.bf16.mxu0 %v1748
    %6115 = vmatpush1.bf16.msra.mxu0 %v1747
    %6116 = vmatprep.subr.bf16.mxu0 %v1752
    %6117 = vmatpush1.bf16.msra.mxu0 %v1751
    %6118 = vmatprep.subr.bf16.mxu0 %v1756
    %6119 = vmatpush1.bf16.msra.mxu0 %v1755
    %6120 = vmatprep.subr.bf16.mxu0 %v1760
    %6121 = vmatpush1.bf16.msra.mxu0 %v1759
    %6122 = vmatprep.subr.bf16.mxu0 %v1764
    %6123 = vmatpush1.bf16.msra.mxu0 %v1763
    %6124 = vmatprep.subr.bf16.mxu0 %v1768
    %6125 = vmatpush1.bf16.msra.mxu0 %v1767
    %6126 = vmatprep.subr.bf16.mxu0 %v1772
    %6127 = vmatpush1.bf16.msra.mxu0 %v1771
    %6128 = vmatprep.subr.bf16.mxu0 %v1776
    %6129 = vmatpush1.bf16.msra.mxu0 %v1775
    %6130 = vmatprep.subr.bf16.mxu0 %v1780
    %6131 = vmatpush1.bf16.msra.mxu0 %v1779
    %6132 = vmatprep.mubr.bf16.mxu0 %v5780
    %6133 = vmatmul.mubr.bf16.gmra.mrb[0].mxu0 %v5779
    %v6134 = vpop.f32.mrb[0].mxu0
    %v6135 = vadd.f32 %v6094, %v6134
    %v6136 = vpop.f32.mrb[0].mxu0
    %v6137 = vadd.f32 %v6096, %v6136
    %v6138 = vpop.f32.mrb[0].mxu0
    %v6139 = vpop.f32.mrb[0].mxu0
    %6140 = vdwg.mxu0
    %v6141 = vld [vmem:[#allocation3 + $0x2a0] sm:$0xff]
    %v6142 = vld [vmem:[#allocation3 + $0x2a8] sm:$0xff]
    %v6143 = vld [vmem:[#allocation3 + $0x2b0] sm:$0xff]
    %v6144 = vld [vmem:[#allocation3 + $0x2b8] sm:$0xff]
    %v6145 = vadd.f32 %v6141, %v6053
    %v6146 = vadd.f32 %v6142, %v6055
    %v6147 = vadd.f32 %v6143, %v6135
    %v6148 = vadd.f32 %v6144, %v6137
    %v6149 = vxor.u32 %v6145, 2147483648
    %v6150 = vxor.u32 %v6146, 2147483648
    %v6151 = vxor.u32 %v6147, 2147483648
    %v6152 = vxor.u32 %v6148, 2147483648
    %v6153 = vmul.f32 %v6149, 1.442695
    %v6154 = vpow.pop %v6153
    %v6155 = vmul.f32 %v6150, 1.442695
    %v6156 = vpow.pop %v6155
    %v6157 = vmul.f32 %v6151, 1.442695
    %v6158 = vpow.pop %v6157
    %v6159 = vmul.f32 %v6152, 1.442695
    %v6160 = vpow.pop %v6159
    %v6161 = vadd.f32 %v6154, 1.0
    %v6162 = vadd.f32 %v6156, 1.0
    %v6163 = vadd.f32 %v6158, 1.0
    %v6164 = vadd.f32 %v6160, 1.0
    %v6165 = vrcp.pop %v6161
    %v6166 = vmul.f32 1.0, %v6165
    %v6167 = vrcp.pop %v6162
    %v6168 = vmul.f32 1.0, %v6167
    %v6169 = vrcp.pop %v6163
    %v6170 = vmul.f32 1.0, %v6169
    %v6171 = vrcp.pop %v6164
    %v6172 = vmul.f32 1.0, %v6171
    %6173 = vmatprep.subr.bf16.mxu0 %v1978
    %6174 = vmatpush1.bf16.msra.mxu0 %v1977
    %6175 = vmatprep.subr.bf16.mxu0 %v1982
    %6176 = vmatpush1.bf16.msra.mxu0 %v1981
    %6177 = vmatprep.subr.bf16.mxu0 %v1986
    %6178 = vmatpush1.bf16.msra.mxu0 %v1985
    %6179 = vmatprep.subr.bf16.mxu0 %v1990
    %6180 = vmatpush1.bf16.msra.mxu0 %v1989
    %6181 = vmatprep.subr.bf16.mxu0 %v1994
    %6182 = vmatpush1.bf16.msra.mxu0 %v1993
    %6183 = vmatprep.subr.bf16.mxu0 %v1998
    %6184 = vmatpush1.bf16.msra.mxu0 %v1997
    %6185 = vmatprep.subr.bf16.mxu0 %v2002
    %6186 = vmatpush1.bf16.msra.mxu0 %v2001
    %6187 = vmatprep.subr.bf16.mxu0 %v2006
    %6188 = vmatpush1.bf16.msra.mxu0 %v2005
    %6189 = vmatprep.subr.bf16.mxu0 %v2010
    %6190 = vmatpush1.bf16.msra.mxu0 %v2009
    %6191 = vmatprep.subr.bf16.mxu0 %v2014
    %6192 = vmatpush1.bf16.msra.mxu0 %v2013
    %6193 = vmatprep.subr.bf16.mxu0 %v2018
    %6194 = vmatpush1.bf16.msra.mxu0 %v2017
    %6195 = vmatprep.subr.bf16.mxu0 %v2022
    %6196 = vmatpush1.bf16.msra.mxu0 %v2021
    %6197 = vmatprep.subr.bf16.mxu0 %v2026
    %6198 = vmatpush1.bf16.msra.mxu0 %v2025
    %6199 = vmatprep.subr.bf16.mxu0 %v2030
    %6200 = vmatpush1.bf16.msra.mxu0 %v2029
    %6201 = vmatprep.subr.bf16.mxu0 %v2034
    %6202 = vmatpush1.bf16.msra.mxu0 %v2033
    %6203 = vmatprep.subr.bf16.mxu0 %v2038
    %6204 = vmatpush1.bf16.msra.mxu0 %v2037
    %6205 = vmatprep.mubr.bf16.mxu0 %v5778
    %6206 = vmatmul.mubr.bf16.gmra.mrb[0].mxu0 %v5777
    %v6207 = vpop.f32.mrb[0].mxu0
    %v6208 = vadd.f32 0.0, %v6207
    %v6209 = vpop.f32.mrb[0].mxu0
    %v6210 = vadd.f32 0.0, %v6209
    %v6211 = vpop.f32.mrb[0].mxu0
    %v6212 = vpop.f32.mrb[0].mxu0
    %6213 = vdwg.mxu0
    %6214 = vmatprep.subr.bf16.mxu0 %v2042
    %6215 = vmatpush1.bf16.msra.mxu0 %v2041
    %6216 = vmatprep.subr.bf16.mxu0 %v2046
    %6217 = vmatpush1.bf16.msra.mxu0 %v2045
    %6218 = vmatprep.subr.bf16.mxu0 %v2050
    %6219 = vmatpush1.bf16.msra.mxu0 %v2049
    %6220 = vmatprep.subr.bf16.mxu0 %v2054
    %6221 = vmatpush1.bf16.msra.mxu0 %v2053
    %6222 = vmatprep.subr.bf16.mxu0 %v2058
    %6223 = vmatpush1.bf16.msra.mxu0 %v2057
    %6224 = vmatprep.subr.bf16.mxu0 %v2062
    %6225 = vmatpush1.bf16.msra.mxu0 %v2061
    %6226 = vmatprep.subr.bf16.mxu0 %v2066
    %6227 = vmatpush1.bf16.msra.mxu0 %v2065
    %6228 = vmatprep.subr.bf16.mxu0 %v2070
    %6229 = vmatpush1.bf16.msra.mxu0 %v2069
    %6230 = vmatprep.subr.bf16.mxu0 %v2074
    %6231 = vmatpush1.bf16.msra.mxu0 %v2073
    %6232 = vmatprep.subr.bf16.mxu0 %v2078
    %6233 = vmatpush1.bf16.msra.mxu0 %v2077
    %6234 = vmatprep.subr.bf16.mxu0 %v2082
    %6235 = vmatpush1.bf16.msra.mxu0 %v2081
    %6236 = vmatprep.subr.bf16.mxu0 %v2086
    %6237 = vmatpush1.bf16.msra.mxu0 %v2085
    %6238 = vmatprep.subr.bf16.mxu0 %v2090
    %6239 = vmatpush1.bf16.msra.mxu0 %v2089
    %6240 = vmatprep.subr.bf16.mxu0 %v2094
    %6241 = vmatpush1.bf16.msra.mxu0 %v2093
    %6242 = vmatprep.subr.bf16.mxu0 %v2098
    %6243 = vmatpush1.bf16.msra.mxu0 %v2097
    %6244 = vmatprep.subr.bf16.mxu0 %v2102
    %6245 = vmatpush1.bf16.msra.mxu0 %v2101
    %6246 = vmatprep.mubr.bf16.mxu0 %v5780
    %6247 = vmatmul.mubr.bf16.gmra.mrb[0].mxu0 %v5779
    %v6248 = vpop.f32.mrb[0].mxu0
    %v6249 = vadd.f32 %v6208, %v6248
    %v6250 = vpop.f32.mrb[0].mxu0
    %v6251 = vadd.f32 %v6210, %v6250
    %v6252 = vpop.f32.mrb[0].mxu0
    %v6253 = vpop.f32.mrb[0].mxu0
    %6254 = vdwg.mxu0
    %6255 = vmatprep.subr.bf16.mxu0 %v1980
    %6256 = vmatpush1.bf16.msra.mxu0 %v1979
    %6257 = vmatprep.subr.bf16.mxu0 %v1984
    %6258 = vmatpush1.bf16.msra.mxu0 %v1983
    %6259 = vmatprep.subr.bf16.mxu0 %v1988
    %6260 = vmatpush1.bf16.msra.mxu0 %v1987
    %6261 = vmatprep.subr.bf16.mxu0 %v1992
    %6262 = vmatpush1.bf16.msra.mxu0 %v1991
    %6263 = vmatprep.subr.bf16.mxu0 %v1996
    %6264 = vmatpush1.bf16.msra.mxu0 %v1995
    %6265 = vmatprep.subr.bf16.mxu0 %v2000
    %6266 = vmatpush1.bf16.msra.mxu0 %v1999
    %6267 = vmatprep.subr.bf16.mxu0 %v2004
    %6268 = vmatpush1.bf16.msra.mxu0 %v2003
    %6269 = vmatprep.subr.bf16.mxu0 %v2008
    %6270 = vmatpush1.bf16.msra.mxu0 %v2007
    %6271 = vmatprep.subr.bf16.mxu0 %v2012
    %6272 = vmatpush1.bf16.msra.mxu0 %v2011
    %6273 = vmatprep.subr.bf16.mxu0 %v2016
    %6274 = vmatpush1.bf16.msra.mxu0 %v2015
    %6275 = vmatprep.subr.bf16.mxu0 %v2020
    %6276 = vmatpush1.bf16.msra.mxu0 %v2019
    %6277 = vmatprep.subr.bf16.mxu0 %v2024
    %6278 = vmatpush1.bf16.msra.mxu0 %v2023
    %6279 = vmatprep.subr.bf16.mxu0 %v2028
    %6280 = vmatpush1.bf16.msra.mxu0 %v2027
    %6281 = vmatprep.subr.bf16.mxu0 %v2032
    %6282 = vmatpush1.bf16.msra.mxu0 %v2031
    %6283 = vmatprep.subr.bf16.mxu0 %v2036
    %6284 = vmatpush1.bf16.msra.mxu0 %v2035
    %6285 = vmatprep.subr.bf16.mxu0 %v2040
    %6286 = vmatpush1.bf16.msra.mxu0 %v2039
    %6287 = vmatprep.mubr.bf16.mxu0 %v5778
    %6288 = vmatmul.mubr.bf16.gmra.mrb[0].mxu0 %v5777
    %v6289 = vpop.f32.mrb[0].mxu0
    %v6290 = vadd.f32 0.0, %v6289
    %v6291 = vpop.f32.mrb[0].mxu0
    %v6292 = vadd.f32 0.0, %v6291
    %v6293 = vpop.f32.mrb[0].mxu0
    %v6294 = vpop.f32.mrb[0].mxu0
    %6295 = vdwg.mxu0
    %6296 = vmatprep.subr.bf16.mxu0 %v2044
    %6297 = vmatpush1.bf16.msra.mxu0 %v2043
    %6298 = vmatprep.subr.bf16.mxu0 %v2048
    %6299 = vmatpush1.bf16.msra.mxu0 %v2047
    %6300 = vmatprep.subr.bf16.mxu0 %v2052
    %6301 = vmatpush1.bf16.msra.mxu0 %v2051
    %6302 = vmatprep.subr.bf16.mxu0 %v2056
    %6303 = vmatpush1.bf16.msra.mxu0 %v2055
    %6304 = vmatprep.subr.bf16.mxu0 %v2060
    %6305 = vmatpush1.bf16.msra.mxu0 %v2059
    %6306 = vmatprep.subr.bf16.mxu0 %v2064
    %6307 = vmatpush1.bf16.msra.mxu0 %v2063
    %6308 = vmatprep.subr.bf16.mxu0 %v2068
    %6309 = vmatpush1.bf16.msra.mxu0 %v2067
    %6310 = vmatprep.subr.bf16.mxu0 %v2072
    %6311 = vmatpush1.bf16.msra.mxu0 %v2071
    %6312 = vmatprep.subr.bf16.mxu0 %v2076
    %6313 = vmatpush1.bf16.msra.mxu0 %v2075
    %6314 = vmatprep.subr.bf16.mxu0 %v2080
    %6315 = vmatpush1.bf16.msra.mxu0 %v2079
    %6316 = vmatprep.subr.bf16.mxu0 %v2084
    %6317 = vmatpush1.bf16.msra.mxu0 %v2083
    %6318 = vmatprep.subr.bf16.mxu0 %v2088
    %6319 = vmatpush1.bf16.msra.mxu0 %v2087
    %6320 = vmatprep.subr.bf16.mxu0 %v2092
    %6321 = vmatpush1.bf16.msra.mxu0 %v2091
    %6322 = vmatprep.subr.bf16.mxu0 %v2096
    %6323 = vmatpush1.bf16.msra.mxu0 %v2095
    %6324 = vmatprep.subr.bf16.mxu0 %v2100
    %6325 = vmatpush1.bf16.msra.mxu0 %v2099
    %6326 = vmatprep.subr.bf16.mxu0 %v2104
    %6327 = vmatpush1.bf16.msra.mxu0 %v2103
    %6328 = vmatprep.mubr.bf16.mxu0 %v5780
    %6329 = vmatmul.mubr.bf16.gmra.mrb[0].mxu0 %v5779
    %v6330 = vpop.f32.mrb[0].mxu0
    %v6331 = vadd.f32 %v6290, %v6330
    %v6332 = vpop.f32.mrb[0].mxu0
    %v6333 = vadd.f32 %v6292, %v6332
    %v6334 = vpop.f32.mrb[0].mxu0
    %v6335 = vpop.f32.mrb[0].mxu0
    %6336 = vdwg.mxu0
    %v6337 = vld [vmem:[#allocation3 + $0x2c0] sm:$0xff]
    %v6338 = vld [vmem:[#allocation3 + $0x2c8] sm:$0xff]
    %v6339 = vld [vmem:[#allocation3 + $0x2d0] sm:$0xff]
    %v6340 = vld [vmem:[#allocation3 + $0x2d8] sm:$0xff]
    %v6341 = vadd.f32 %v6337, %v6249
    %v6342 = vadd.f32 %v6338, %v6251
    %v6343 = vadd.f32 %v6339, %v6331
    %v6344 = vadd.f32 %v6340, %v6333
    %v6345 = vtanh.pop %v6341
    %v6346 = vtanh.pop %v6342
    %v6347 = vtanh.pop %v6343
    %v6348 = vtanh.pop %v6344
    %6349 = vmatprep.subr.bf16.mxu0 %v2282
    %6350 = vmatpush1.bf16.msra.mxu0 %v2281
    %6351 = vmatprep.subr.bf16.mxu0 %v2286
    %6352 = vmatpush1.bf16.msra.mxu0 %v2285
    %6353 = vmatprep.subr.bf16.mxu0 %v2290
    %6354 = vmatpush1.bf16.msra.mxu0 %v2289
    %6355 = vmatprep.subr.bf16.mxu0 %v2294
    %6356 = vmatpush1.bf16.msra.mxu0 %v2293
    %6357 = vmatprep.subr.bf16.mxu0 %v2298
    %6358 = vmatpush1.bf16.msra.mxu0 %v2297
    %6359 = vmatprep.subr.bf16.mxu0 %v2302
    %6360 = vmatpush1.bf16.msra.mxu0 %v2301
    %6361 = vmatprep.subr.bf16.mxu0 %v2306
    %6362 = vmatpush1.bf16.msra.mxu0 %v2305
    %6363 = vmatprep.subr.bf16.mxu0 %v2310
    %6364 = vmatpush1.bf16.msra.mxu0 %v2309
    %6365 = vmatprep.subr.bf16.mxu0 %v2314
    %6366 = vmatpush1.bf16.msra.mxu0 %v2313
    %6367 = vmatprep.subr.bf16.mxu0 %v2318
    %6368 = vmatpush1.bf16.msra.mxu0 %v2317
    %6369 = vmatprep.subr.bf16.mxu0 %v2322
    %6370 = vmatpush1.bf16.msra.mxu0 %v2321
    %6371 = vmatprep.subr.bf16.mxu0 %v2326
    %6372 = vmatpush1.bf16.msra.mxu0 %v2325
    %6373 = vmatprep.subr.bf16.mxu0 %v2330
    %6374 = vmatpush1.bf16.msra.mxu0 %v2329
    %6375 = vmatprep.subr.bf16.mxu0 %v2334
    %6376 = vmatpush1.bf16.msra.mxu0 %v2333
    %6377 = vmatprep.subr.bf16.mxu0 %v2338
    %6378 = vmatpush1.bf16.msra.mxu0 %v2337
    %6379 = vmatprep.subr.bf16.mxu0 %v2342
    %6380 = vmatpush1.bf16.msra.mxu0 %v2341
    %6381 = vmatprep.mubr.bf16.mxu0 %v5778
    %6382 = vmatmul.mubr.bf16.gmra.mrb[0].mxu0 %v5777
    %v6383 = vpop.f32.mrb[0].mxu0
    %v6384 = vadd.f32 0.0, %v6383
    %v6385 = vpop.f32.mrb[0].mxu0
    %v6386 = vadd.f32 0.0, %v6385
    %v6387 = vpop.f32.mrb[0].mxu0
    %v6388 = vpop.f32.mrb[0].mxu0
    %6389 = vdwg.mxu0
    %6390 = vmatprep.subr.bf16.mxu0 %v2346
    %6391 = vmatpush1.bf16.msra.mxu0 %v2345
    %6392 = vmatprep.subr.bf16.mxu0 %v2350
    %6393 = vmatpush1.bf16.msra.mxu0 %v2349
    %6394 = vmatprep.subr.bf16.mxu0 %v2354
    %6395 = vmatpush1.bf16.msra.mxu0 %v2353
    %6396 = vmatprep.subr.bf16.mxu0 %v2358
    %6397 = vmatpush1.bf16.msra.mxu0 %v2357
    %6398 = vmatprep.subr.bf16.mxu0 %v2362
    %6399 = vmatpush1.bf16.msra.mxu0 %v2361
    %6400 = vmatprep.subr.bf16.mxu0 %v2366
    %6401 = vmatpush1.bf16.msra.mxu0 %v2365
    %6402 = vmatprep.subr.bf16.mxu0 %v2370
    %6403 = vmatpush1.bf16.msra.mxu0 %v2369
    %6404 = vmatprep.subr.bf16.mxu0 %v2374
    %6405 = vmatpush1.bf16.msra.mxu0 %v2373
    %6406 = vmatprep.subr.bf16.mxu0 %v2378
    %6407 = vmatpush1.bf16.msra.mxu0 %v2377
    %6408 = vmatprep.subr.bf16.mxu0 %v2382
    %6409 = vmatpush1.bf16.msra.mxu0 %v2381
    %6410 = vmatprep.subr.bf16.mxu0 %v2386
    %6411 = vmatpush1.bf16.msra.mxu0 %v2385
    %6412 = vmatprep.subr.bf16.mxu0 %v2390
    %6413 = vmatpush1.bf16.msra.mxu0 %v2389
    %6414 = vmatprep.subr.bf16.mxu0 %v2394
    %6415 = vmatpush1.bf16.msra.mxu0 %v2393
    %6416 = vmatprep.subr.bf16.mxu0 %v2398
    %6417 = vmatpush1.bf16.msra.mxu0 %v2397
    %6418 = vmatprep.subr.bf16.mxu0 %v2402
    %6419 = vmatpush1.bf16.msra.mxu0 %v2401
    %6420 = vmatprep.subr.bf16.mxu0 %v2406
    %6421 = vmatpush1.bf16.msra.mxu0 %v2405
    %6422 = vmatprep.mubr.bf16.mxu0 %v5780
    %6423 = vmatmul.mubr.bf16.gmra.mrb[0].mxu0 %v5779
    %v6424 = vpop.f32.mrb[0].mxu0
    %v6425 = vadd.f32 %v6384, %v6424
    %v6426 = vpop.f32.mrb[0].mxu0
    %v6427 = vadd.f32 %v6386, %v6426
    %v6428 = vpop.f32.mrb[0].mxu0
    %v6429 = vpop.f32.mrb[0].mxu0
    %6430 = vdwg.mxu0
    %6431 = vmatprep.subr.bf16.mxu0 %v2284
    %6432 = vmatpush1.bf16.msra.mxu0 %v2283
    %6433 = vmatprep.subr.bf16.mxu0 %v2288
    %6434 = vmatpush1.bf16.msra.mxu0 %v2287
    %6435 = vmatprep.subr.bf16.mxu0 %v2292
    %6436 = vmatpush1.bf16.msra.mxu0 %v2291
    %6437 = vmatprep.subr.bf16.mxu0 %v2296
    %6438 = vmatpush1.bf16.msra.mxu0 %v2295
    %6439 = vmatprep.subr.bf16.mxu0 %v2300
    %6440 = vmatpush1.bf16.msra.mxu0 %v2299
    %6441 = vmatprep.subr.bf16.mxu0 %v2304
    %6442 = vmatpush1.bf16.msra.mxu0 %v2303
    %6443 = vmatprep.subr.bf16.mxu0 %v2308
    %6444 = vmatpush1.bf16.msra.mxu0 %v2307
    %6445 = vmatprep.subr.bf16.mxu0 %v2312
    %6446 = vmatpush1.bf16.msra.mxu0 %v2311
    %6447 = vmatprep.subr.bf16.mxu0 %v2316
    %6448 = vmatpush1.bf16.msra.mxu0 %v2315
    %6449 = vmatprep.subr.bf16.mxu0 %v2320
    %6450 = vmatpush1.bf16.msra.mxu0 %v2319
    %6451 = vmatprep.subr.bf16.mxu0 %v2324
    %6452 = vmatpush1.bf16.msra.mxu0 %v2323
    %6453 = vmatprep.subr.bf16.mxu0 %v2328
    %6454 = vmatpush1.bf16.msra.mxu0 %v2327
    %6455 = vmatprep.subr.bf16.mxu0 %v2332
    %6456 = vmatpush1.bf16.msra.mxu0 %v2331
    %6457 = vmatprep.subr.bf16.mxu0 %v2336
    %6458 = vmatpush1.bf16.msra.mxu0 %v2335
    %6459 = vmatprep.subr.bf16.mxu0 %v2340
    %6460 = vmatpush1.bf16.msra.mxu0 %v2339
    %6461 = vmatprep.subr.bf16.mxu0 %v2344
    %6462 = vmatpush1.bf16.msra.mxu0 %v2343
    %6463 = vmatprep.mubr.bf16.mxu0 %v5778
    %6464 = vmatmul.mubr.bf16.gmra.mrb[0].mxu0 %v5777
    %v6465 = vpop.f32.mrb[0].mxu0
    %v6466 = vadd.f32 0.0, %v6465
    %v6467 = vpop.f32.mrb[0].mxu0
    %v6468 = vadd.f32 0.0, %v6467
    %v6469 = vpop.f32.mrb[0].mxu0
    %v6470 = vpop.f32.mrb[0].mxu0
    %6471 = vdwg.mxu0
    %6472 = vmatprep.subr.bf16.mxu0 %v2348
    %6473 = vmatpush1.bf16.msra.mxu0 %v2347
    %6474 = vmatprep.subr.bf16.mxu0 %v2352
    %6475 = vmatpush1.bf16.msra.mxu0 %v2351
    %6476 = vmatprep.subr.bf16.mxu0 %v2356
    %6477 = vmatpush1.bf16.msra.mxu0 %v2355
    %6478 = vmatprep.subr.bf16.mxu0 %v2360
    %6479 = vmatpush1.bf16.msra.mxu0 %v2359
    %6480 = vmatprep.subr.bf16.mxu0 %v2364
    %6481 = vmatpush1.bf16.msra.mxu0 %v2363
    %6482 = vmatprep.subr.bf16.mxu0 %v2368
    %6483 = vmatpush1.bf16.msra.mxu0 %v2367
    %6484 = vmatprep.subr.bf16.mxu0 %v2372
    %6485 = vmatpush1.bf16.msra.mxu0 %v2371
    %6486 = vmatprep.subr.bf16.mxu0 %v2376
    %6487 = vmatpush1.bf16.msra.mxu0 %v2375
    %6488 = vmatprep.subr.bf16.mxu0 %v2380
    %6489 = vmatpush1.bf16.msra.mxu0 %v2379
    %6490 = vmatprep.subr.bf16.mxu0 %v2384
    %6491 = vmatpush1.bf16.msra.mxu0 %v2383
    %6492 = vmatprep.subr.bf16.mxu0 %v2388
    %6493 = vmatpush1.bf16.msra.mxu0 %v2387
    %6494 = vmatprep.subr.bf16.mxu0 %v2392
    %6495 = vmatpush1.bf16.msra.mxu0 %v2391
    %6496 = vmatprep.subr.bf16.mxu0 %v2396
    %6497 = vmatpush1.bf16.msra.mxu0 %v2395
    %6498 = vmatprep.subr.bf16.mxu0 %v2400
    %6499 = vmatpush1.bf16.msra.mxu0 %v2399
    %6500 = vmatprep.subr.bf16.mxu0 %v2404
    %6501 = vmatpush1.bf16.msra.mxu0 %v2403
    %6502 = vmatprep.subr.bf16.mxu0 %v2408
    %6503 = vmatpush1.bf16.msra.mxu0 %v2407
    %6504 = vmatprep.mubr.bf16.mxu0 %v5780
    %6505 = vmatmul.mubr.bf16.gmra.mrb[0].mxu0 %v5779
    %v6506 = vpop.f32.mrb[0].mxu0
    %v6507 = vadd.f32 %v6466, %v6506
    %v6508 = vpop.f32.mrb[0].mxu0
    %v6509 = vadd.f32 %v6468, %v6508
    %v6510 = vpop.f32.mrb[0].mxu0
    %v6511 = vpop.f32.mrb[0].mxu0
    %6512 = vdwg.mxu0
    %v6513 = vld [vmem:[#allocation3 + $0x2e0] sm:$0xff]
    %v6514 = vld [vmem:[#allocation3 + $0x2e8] sm:$0xff]
    %v6515 = vld [vmem:[#allocation3 + $0x2f0] sm:$0xff]
    %v6516 = vld [vmem:[#allocation3 + $0x2f8] sm:$0xff]
    %v6517 = vadd.f32 %v6513, %v6425
    %v6518 = vadd.f32 %v6514, %v6427
    %v6519 = vadd.f32 %v6515, %v6507
    %v6520 = vadd.f32 %v6516, %v6509
    %v6521 = vxor.u32 %v6517, 2147483648
    %v6522 = vxor.u32 %v6518, 2147483648
    %v6523 = vxor.u32 %v6519, 2147483648
    %v6524 = vxor.u32 %v6520, 2147483648
    %v6525 = vmul.f32 %v6521, 1.442695
    %v6526 = vpow.pop %v6525
    %v6527 = vmul.f32 %v6522, 1.442695
    %v6528 = vpow.pop %v6527
    %v6529 = vmul.f32 %v6523, 1.442695
    %v6530 = vpow.pop %v6529
    %v6531 = vmul.f32 %v6524, 1.442695
    %v6532 = vpow.pop %v6531
    %v6533 = vadd.f32 %v6526, 1.0
    %v6534 = vadd.f32 %v6528, 1.0
    %v6535 = vadd.f32 %v6530, 1.0
    %v6536 = vadd.f32 %v6532, 1.0
    %v6537 = vrcp.pop %v6533
    %v6538 = vmul.f32 1.0, %v6537
    %v6539 = vrcp.pop %v6534
    %v6540 = vmul.f32 1.0, %v6539
    %v6541 = vrcp.pop %v6535
    %v6542 = vmul.f32 1.0, %v6541
    %v6543 = vrcp.pop %v6536
    %v6544 = vmul.f32 1.0, %v6543
    %v6545 = vmul.f32 %v6166, %v5765
    %v6546 = vmul.f32 %v6168, %v5766
    %v6547 = vmul.f32 %v6170, %v5767
    %v6548 = vmul.f32 %v6172, %v5768
    %v6549 = vmul.f32 %v5970, %v6345
    %v6550 = vmul.f32 %v5972, %v6346
    %v6551 = vmul.f32 %v5974, %v6347
    %v6552 = vmul.f32 %v5976, %v6348
    %v6553 = vadd.f32 %v6545, %v6549
    %v6554 = vadd.f32 %v6546, %v6550
    %v6555 = vadd.f32 %v6547, %v6551
    %v6556 = vadd.f32 %v6548, %v6552
    %v6557 = vtanh.pop %v6553
    %v6558 = vtanh.pop %v6554
    %v6559 = vtanh.pop %v6555
    %v6560 = vtanh.pop %v6556
    %v6561 = vmul.f32 %v6538, %v6557
    %v6562 = vmul.f32 %v6540, %v6558
    %v6563 = vmul.f32 %v6542, %v6559
    %v6564 = vmul.f32 %v6544, %v6560
    %v6565 = vpack.c.bf16 %v6561, %v6561
    %v6566 = vpack.c.bf16 %v6562, %v6562
    %v6567 = vpack.c.bf16 %v6563, %v6563
    %v6568 = vpack.c.bf16 %v6564, %v6564
    %6569 = vmatprep.subr.bf16.mxu0 %v1330
    %6570 = vmatpush1.bf16.msra.mxu0 %v1329
    %6571 = vmatprep.subr.bf16.mxu0 %v1334
    %6572 = vmatpush1.bf16.msra.mxu0 %v1333
    %6573 = vmatprep.subr.bf16.mxu0 %v1338
    %6574 = vmatpush1.bf16.msra.mxu0 %v1337
    %6575 = vmatprep.subr.bf16.mxu0 %v1342
    %6576 = vmatpush1.bf16.msra.mxu0 %v1341
    %6577 = vmatprep.subr.bf16.mxu0 %v1346
    %6578 = vmatpush1.bf16.msra.mxu0 %v1345
    %6579 = vmatprep.subr.bf16.mxu0 %v1350
    %6580 = vmatpush1.bf16.msra.mxu0 %v1349
    %6581 = vmatprep.subr.bf16.mxu0 %v1354
    %6582 = vmatpush1.bf16.msra.mxu0 %v1353
    %6583 = vmatprep.subr.bf16.mxu0 %v1358
    %6584 = vmatpush1.bf16.msra.mxu0 %v1357
    %6585 = vmatprep.subr.bf16.mxu0 %v1362
    %6586 = vmatpush1.bf16.msra.mxu0 %v1361
    %6587 = vmatprep.subr.bf16.mxu0 %v1366
    %6588 = vmatpush1.bf16.msra.mxu0 %v1365
    %6589 = vmatprep.subr.bf16.mxu0 %v1370
    %6590 = vmatpush1.bf16.msra.mxu0 %v1369
    %6591 = vmatprep.subr.bf16.mxu0 %v1374
    %6592 = vmatpush1.bf16.msra.mxu0 %v1373
    %6593 = vmatprep.subr.bf16.mxu0 %v1378
    %6594 = vmatpush1.bf16.msra.mxu0 %v1377
    %6595 = vmatprep.subr.bf16.mxu0 %v1382
    %6596 = vmatpush1.bf16.msra.mxu0 %v1381
    %6597 = vmatprep.subr.bf16.mxu0 %v1386
    %6598 = vmatpush1.bf16.msra.mxu0 %v1385
    %6599 = vmatprep.subr.bf16.mxu0 %v1390
    %6600 = vmatpush1.bf16.msra.mxu0 %v1389
    %6601 = vmatprep.mubr.bf16.mxu0 %v6566
    %6602 = vmatmul.mubr.bf16.gmra.mrb[0].mxu0 %v6565
    %v6603 = vpop.f32.mrb[0].mxu0
    %v6604 = vadd.f32 0.0, %v6603
    %v6605 = vpop.f32.mrb[0].mxu0
    %v6606 = vadd.f32 0.0, %v6605
    %v6607 = vpop.f32.mrb[0].mxu0
    %v6608 = vpop.f32.mrb[0].mxu0
    %6609 = vdwg.mxu0
    %6610 = vmatprep.subr.bf16.mxu0 %v1394
    %6611 = vmatpush1.bf16.msra.mxu0 %v1393
    %6612 = vmatprep.subr.bf16.mxu0 %v1398
    %6613 = vmatpush1.bf16.msra.mxu0 %v1397
    %6614 = vmatprep.subr.bf16.mxu0 %v1402
    %6615 = vmatpush1.bf16.msra.mxu0 %v1401
    %6616 = vmatprep.subr.bf16.mxu0 %v1406
    %6617 = vmatpush1.bf16.msra.mxu0 %v1405
    %6618 = vmatprep.subr.bf16.mxu0 %v1410
    %6619 = vmatpush1.bf16.msra.mxu0 %v1409
    %6620 = vmatprep.subr.bf16.mxu0 %v1414
    %6621 = vmatpush1.bf16.msra.mxu0 %v1413
    %6622 = vmatprep.subr.bf16.mxu0 %v1418
    %6623 = vmatpush1.bf16.msra.mxu0 %v1417
    %6624 = vmatprep.subr.bf16.mxu0 %v1422
    %6625 = vmatpush1.bf16.msra.mxu0 %v1421
    %6626 = vmatprep.subr.bf16.mxu0 %v1426
    %6627 = vmatpush1.bf16.msra.mxu0 %v1425
    %6628 = vmatprep.subr.bf16.mxu0 %v1430
    %6629 = vmatpush1.bf16.msra.mxu0 %v1429
    %6630 = vmatprep.subr.bf16.mxu0 %v1434
    %6631 = vmatpush1.bf16.msra.mxu0 %v1433
    %6632 = vmatprep.subr.bf16.mxu0 %v1438
    %6633 = vmatpush1.bf16.msra.mxu0 %v1437
    %6634 = vmatprep.subr.bf16.mxu0 %v1442
    %6635 = vmatpush1.bf16.msra.mxu0 %v1441
    %6636 = vmatprep.subr.bf16.mxu0 %v1446
    %6637 = vmatpush1.bf16.msra.mxu0 %v1445
    %6638 = vmatprep.subr.bf16.mxu0 %v1450
    %6639 = vmatpush1.bf16.msra.mxu0 %v1449
    %6640 = vmatprep.subr.bf16.mxu0 %v1454
    %6641 = vmatpush1.bf16.msra.mxu0 %v1453
    %6642 = vmatprep.mubr.bf16.mxu0 %v6568
    %6643 = vmatmul.mubr.bf16.gmra.mrb[0].mxu0 %v6567
    %v6644 = vpop.f32.mrb[0].mxu0
    %v6645 = vadd.f32 %v6604, %v6644
    %v6646 = vpop.f32.mrb[0].mxu0
    %v6647 = vadd.f32 %v6606, %v6646
    %v6648 = vpop.f32.mrb[0].mxu0
    %v6649 = vpop.f32.mrb[0].mxu0
    %6650 = vdwg.mxu0
    %6651 = vmatprep.subr.bf16.mxu0 %v1332
    %6652 = vmatpush1.bf16.msra.mxu0 %v1331
    %6653 = vmatprep.subr.bf16.mxu0 %v1336
    %6654 = vmatpush1.bf16.msra.mxu0 %v1335
    %6655 = vmatprep.subr.bf16.mxu0 %v1340
    %6656 = vmatpush1.bf16.msra.mxu0 %v1339
    %6657 = vmatprep.subr.bf16.mxu0 %v1344
    %6658 = vmatpush1.bf16.msra.mxu0 %v1343
    %6659 = vmatprep.subr.bf16.mxu0 %v1348
    %6660 = vmatpush1.bf16.msra.mxu0 %v1347
    %6661 = vmatprep.subr.bf16.mxu0 %v1352
    %6662 = vmatpush1.bf16.msra.mxu0 %v1351
    %6663 = vmatprep.subr.bf16.mxu0 %v1356
    %6664 = vmatpush1.bf16.msra.mxu0 %v1355
    %6665 = vmatprep.subr.bf16.mxu0 %v1360
    %6666 = vmatpush1.bf16.msra.mxu0 %v1359
    %6667 = vmatprep.subr.bf16.mxu0 %v1364
    %6668 = vmatpush1.bf16.msra.mxu0 %v1363
    %6669 = vmatprep.subr.bf16.mxu0 %v1368
    %6670 = vmatpush1.bf16.msra.mxu0 %v1367
    %6671 = vmatprep.subr.bf16.mxu0 %v1372
    %6672 = vmatpush1.bf16.msra.mxu0 %v1371
    %6673 = vmatprep.subr.bf16.mxu0 %v1376
    %6674 = vmatpush1.bf16.msra.mxu0 %v1375
    %6675 = vmatprep.subr.bf16.mxu0 %v1380
    %6676 = vmatpush1.bf16.msra.mxu0 %v1379
    %6677 = vmatprep.subr.bf16.mxu0 %v1384
    %6678 = vmatpush1.bf16.msra.mxu0 %v1383
    %6679 = vmatprep.subr.bf16.mxu0 %v1388
    %6680 = vmatpush1.bf16.msra.mxu0 %v1387
    %6681 = vmatprep.subr.bf16.mxu0 %v1392
    %6682 = vmatpush1.bf16.msra.mxu0 %v1391
    %6683 = vmatprep.mubr.bf16.mxu0 %v6566
    %6684 = vmatmul.mubr.bf16.gmra.mrb[0].mxu0 %v6565
    %v6685 = vpop.f32.mrb[0].mxu0
    %v6686 = vadd.f32 0.0, %v6685
    %v6687 = vpop.f32.mrb[0].mxu0
    %v6688 = vadd.f32 0.0, %v6687
    %v6689 = vpop.f32.mrb[0].mxu0
    %v6690 = vpop.f32.mrb[0].mxu0
    %6691 = vdwg.mxu0
    %6692 = vmatprep.subr.bf16.mxu0 %v1396
    %6693 = vmatpush1.bf16.msra.mxu0 %v1395
    %6694 = vmatprep.subr.bf16.mxu0 %v1400
    %6695 = vmatpush1.bf16.msra.mxu0 %v1399
    %6696 = vmatprep.subr.bf16.mxu0 %v1404
    %6697 = vmatpush1.bf16.msra.mxu0 %v1403
    %6698 = vmatprep.subr.bf16.mxu0 %v1408
    %6699 = vmatpush1.bf16.msra.mxu0 %v1407
    %6700 = vmatprep.subr.bf16.mxu0 %v1412
    %6701 = vmatpush1.bf16.msra.mxu0 %v1411
    %6702 = vmatprep.subr.bf16.mxu0 %v1416
    %6703 = vmatpush1.bf16.msra.mxu0 %v1415
    %6704 = vmatprep.subr.bf16.mxu0 %v1420
    %6705 = vmatpush1.bf16.msra.mxu0 %v1419
    %6706 = vmatprep.subr.bf16.mxu0 %v1424
    %6707 = vmatpush1.bf16.msra.mxu0 %v1423
    %6708 = vmatprep.subr.bf16.mxu0 %v1428
    %6709 = vmatpush1.bf16.msra.mxu0 %v1427
    %6710 = vmatprep.subr.bf16.mxu0 %v1432
    %6711 = vmatpush1.bf16.msra.mxu0 %v1431
    %6712 = vmatprep.subr.bf16.mxu0 %v1436
    %6713 = vmatpush1.bf16.msra.mxu0 %v1435
    %6714 = vmatprep.subr.bf16.mxu0 %v1440
    %6715 = vmatpush1.bf16.msra.mxu0 %v1439
    %6716 = vmatprep.subr.bf16.mxu0 %v1444
    %6717 = vmatpush1.bf16.msra.mxu0 %v1443
    %6718 = vmatprep.subr.bf16.mxu0 %v1448
    %6719 = vmatpush1.bf16.msra.mxu0 %v1447
    %6720 = vmatprep.subr.bf16.mxu0 %v1452
    %6721 = vmatpush1.bf16.msra.mxu0 %v1451
    %6722 = vmatprep.subr.bf16.mxu0 %v1456
    %6723 = vmatpush1.bf16.msra.mxu0 %v1455
    %6724 = vmatprep.mubr.bf16.mxu0 %v6568
    %6725 = vmatmul.mubr.bf16.gmra.mrb[0].mxu0 %v6567
    %v6726 = vpop.f32.mrb[0].mxu0
    %v6727 = vadd.f32 %v6686, %v6726
    %v6728 = vpop.f32.mrb[0].mxu0
    %v6729 = vadd.f32 %v6688, %v6728
    %v6730 = vpop.f32.mrb[0].mxu0
    %v6731 = vpop.f32.mrb[0].mxu0
    %6732 = vdwg.mxu0
    %v6733 = vld [vmem:[#allocation3 + $0x300] sm:$0xff]
    %v6734 = vld [vmem:[#allocation3 + $0x308] sm:$0xff]
    %v6735 = vld [vmem:[#allocation3 + $0x310] sm:$0xff]
    %v6736 = vld [vmem:[#allocation3 + $0x318] sm:$0xff]
    %v6737 = vadd.f32 %v6733, %v6645
    %v6738 = vadd.f32 %v6734, %v6647
    %v6739 = vadd.f32 %v6735, %v6727
    %v6740 = vadd.f32 %v6736, %v6729
    %v6741 = vxor.u32 %v6737, 2147483648
    %v6742 = vxor.u32 %v6738, 2147483648
    %v6743 = vxor.u32 %v6739, 2147483648
    %v6744 = vxor.u32 %v6740, 2147483648
    %v6745 = vmul.f32 %v6741, 1.442695
    %v6746 = vpow.pop %v6745
    %v6747 = vmul.f32 %v6742, 1.442695
    %v6748 = vpow.pop %v6747
    %v6749 = vmul.f32 %v6743, 1.442695
    %v6750 = vpow.pop %v6749
    %v6751 = vmul.f32 %v6744, 1.442695
    %v6752 = vpow.pop %v6751
    %v6753 = vadd.f32 %v6746, 1.0
    %v6754 = vadd.f32 %v6748, 1.0
    %v6755 = vadd.f32 %v6750, 1.0
    %v6756 = vadd.f32 %v6752, 1.0
    %v6757 = vrcp.pop %v6753
    %v6758 = vmul.f32 1.0, %v6757
    %v6759 = vrcp.pop %v6754
    %v6760 = vmul.f32 1.0, %v6759
    %v6761 = vrcp.pop %v6755
    %v6762 = vmul.f32 1.0, %v6761
    %v6763 = vrcp.pop %v6756
    %v6764 = vmul.f32 1.0, %v6763
    %6765 = vmatprep.subr.bf16.mxu0 %v1654
    %6766 = vmatpush1.bf16.msra.mxu0 %v1653
    %6767 = vmatprep.subr.bf16.mxu0 %v1658
    %6768 = vmatpush1.bf16.msra.mxu0 %v1657
    %6769 = vmatprep.subr.bf16.mxu0 %v1662
    %6770 = vmatpush1.bf16.msra.mxu0 %v1661
    %6771 = vmatprep.subr.bf16.mxu0 %v1666
    %6772 = vmatpush1.bf16.msra.mxu0 %v1665
    %6773 = vmatprep.subr.bf16.mxu0 %v1670
    %6774 = vmatpush1.bf16.msra.mxu0 %v1669
    %6775 = vmatprep.subr.bf16.mxu0 %v1674
    %6776 = vmatpush1.bf16.msra.mxu0 %v1673
    %6777 = vmatprep.subr.bf16.mxu0 %v1678
    %6778 = vmatpush1.bf16.msra.mxu0 %v1677
    %6779 = vmatprep.subr.bf16.mxu0 %v1682
    %6780 = vmatpush1.bf16.msra.mxu0 %v1681
    %6781 = vmatprep.subr.bf16.mxu0 %v1686
    %6782 = vmatpush1.bf16.msra.mxu0 %v1685
    %6783 = vmatprep.subr.bf16.mxu0 %v1690
    %6784 = vmatpush1.bf16.msra.mxu0 %v1689
    %6785 = vmatprep.subr.bf16.mxu0 %v1694
    %6786 = vmatpush1.bf16.msra.mxu0 %v1693
    %6787 = vmatprep.subr.bf16.mxu0 %v1698
    %6788 = vmatpush1.bf16.msra.mxu0 %v1697
    %6789 = vmatprep.subr.bf16.mxu0 %v1702
    %6790 = vmatpush1.bf16.msra.mxu0 %v1701
    %6791 = vmatprep.subr.bf16.mxu0 %v1706
    %6792 = vmatpush1.bf16.msra.mxu0 %v1705
    %6793 = vmatprep.subr.bf16.mxu0 %v1710
    %6794 = vmatpush1.bf16.msra.mxu0 %v1709
    %6795 = vmatprep.subr.bf16.mxu0 %v1714
    %6796 = vmatpush1.bf16.msra.mxu0 %v1713
    %6797 = vmatprep.mubr.bf16.mxu0 %v6566
    %6798 = vmatmul.mubr.bf16.gmra.mrb[0].mxu0 %v6565
    %v6799 = vpop.f32.mrb[0].mxu0
    %v6800 = vadd.f32 0.0, %v6799
    %v6801 = vpop.f32.mrb[0].mxu0
    %v6802 = vadd.f32 0.0, %v6801
    %v6803 = vpop.f32.mrb[0].mxu0
    %v6804 = vpop.f32.mrb[0].mxu0
    %6805 = vdwg.mxu0
    %6806 = vmatprep.subr.bf16.mxu0 %v1718
    %6807 = vmatpush1.bf16.msra.mxu0 %v1717
    %6808 = vmatprep.subr.bf16.mxu0 %v1722
    %6809 = vmatpush1.bf16.msra.mxu0 %v1721
    %6810 = vmatprep.subr.bf16.mxu0 %v1726
    %6811 = vmatpush1.bf16.msra.mxu0 %v1725
    %6812 = vmatprep.subr.bf16.mxu0 %v1730
    %6813 = vmatpush1.bf16.msra.mxu0 %v1729
    %6814 = vmatprep.subr.bf16.mxu0 %v1734
    %6815 = vmatpush1.bf16.msra.mxu0 %v1733
    %6816 = vmatprep.subr.bf16.mxu0 %v1738
    %6817 = vmatpush1.bf16.msra.mxu0 %v1737
    %6818 = vmatprep.subr.bf16.mxu0 %v1742
    %6819 = vmatpush1.bf16.msra.mxu0 %v1741
    %6820 = vmatprep.subr.bf16.mxu0 %v1746
    %6821 = vmatpush1.bf16.msra.mxu0 %v1745
    %6822 = vmatprep.subr.bf16.mxu0 %v1750
    %6823 = vmatpush1.bf16.msra.mxu0 %v1749
    %6824 = vmatprep.subr.bf16.mxu0 %v1754
    %6825 = vmatpush1.bf16.msra.mxu0 %v1753
    %6826 = vmatprep.subr.bf16.mxu0 %v1758
    %6827 = vmatpush1.bf16.msra.mxu0 %v1757
    %6828 = vmatprep.subr.bf16.mxu0 %v1762
    %6829 = vmatpush1.bf16.msra.mxu0 %v1761
    %6830 = vmatprep.subr.bf16.mxu0 %v1766
    %6831 = vmatpush1.bf16.msra.mxu0 %v1765
    %6832 = vmatprep.subr.bf16.mxu0 %v1770
    %6833 = vmatpush1.bf16.msra.mxu0 %v1769
    %6834 = vmatprep.subr.bf16.mxu0 %v1774
    %6835 = vmatpush1.bf16.msra.mxu0 %v1773
    %6836 = vmatprep.subr.bf16.mxu0 %v1778
    %6837 = vmatpush1.bf16.msra.mxu0 %v1777
    %6838 = vmatprep.mubr.bf16.mxu0 %v6568
    %6839 = vmatmul.mubr.bf16.gmra.mrb[0].mxu0 %v6567
    %v6840 = vpop.f32.mrb[0].mxu0
    %v6841 = vadd.f32 %v6800, %v6840
    %v6842 = vpop.f32.mrb[0].mxu0
    %v6843 = vadd.f32 %v6802, %v6842
    %v6844 = vpop.f32.mrb[0].mxu0
    %v6845 = vpop.f32.mrb[0].mxu0
    %6846 = vdwg.mxu0
    %6847 = vmatprep.subr.bf16.mxu0 %v1656
    %6848 = vmatpush1.bf16.msra.mxu0 %v1655
    %6849 = vmatprep.subr.bf16.mxu0 %v1660
    %6850 = vmatpush1.bf16.msra.mxu0 %v1659
    %6851 = vmatprep.subr.bf16.mxu0 %v1664
    %6852 = vmatpush1.bf16.msra.mxu0 %v1663
    %6853 = vmatprep.subr.bf16.mxu0 %v1668
    %6854 = vmatpush1.bf16.msra.mxu0 %v1667
    %6855 = vmatprep.subr.bf16.mxu0 %v1672
    %6856 = vmatpush1.bf16.msra.mxu0 %v1671
    %6857 = vmatprep.subr.bf16.mxu0 %v1676
    %6858 = vmatpush1.bf16.msra.mxu0 %v1675
    %6859 = vmatprep.subr.bf16.mxu0 %v1680
    %6860 = vmatpush1.bf16.msra.mxu0 %v1679
    %6861 = vmatprep.subr.bf16.mxu0 %v1684
    %6862 = vmatpush1.bf16.msra.mxu0 %v1683
    %6863 = vmatprep.subr.bf16.mxu0 %v1688
    %6864 = vmatpush1.bf16.msra.mxu0 %v1687
    %6865 = vmatprep.subr.bf16.mxu0 %v1692
    %6866 = vmatpush1.bf16.msra.mxu0 %v1691
    %6867 = vmatprep.subr.bf16.mxu0 %v1696
    %6868 = vmatpush1.bf16.msra.mxu0 %v1695
    %6869 = vmatprep.subr.bf16.mxu0 %v1700
    %6870 = vmatpush1.bf16.msra.mxu0 %v1699
    %6871 = vmatprep.subr.bf16.mxu0 %v1704
    %6872 = vmatpush1.bf16.msra.mxu0 %v1703
    %6873 = vmatprep.subr.bf16.mxu0 %v1708
    %6874 = vmatpush1.bf16.msra.mxu0 %v1707
    %6875 = vmatprep.subr.bf16.mxu0 %v1712
    %6876 = vmatpush1.bf16.msra.mxu0 %v1711
    %6877 = vmatprep.subr.bf16.mxu0 %v1716
    %6878 = vmatpush1.bf16.msra.mxu0 %v1715
    %6879 = vmatprep.mubr.bf16.mxu0 %v6566
    %6880 = vmatmul.mubr.bf16.gmra.mrb[0].mxu0 %v6565
    %v6881 = vpop.f32.mrb[0].mxu0
    %v6882 = vadd.f32 0.0, %v6881
    %v6883 = vpop.f32.mrb[0].mxu0
    %v6884 = vadd.f32 0.0, %v6883
    %v6885 = vpop.f32.mrb[0].mxu0
    %v6886 = vpop.f32.mrb[0].mxu0
    %6887 = vdwg.mxu0
    %6888 = vmatprep.subr.bf16.mxu0 %v1720
    %6889 = vmatpush1.bf16.msra.mxu0 %v1719
    %6890 = vmatprep.subr.bf16.mxu0 %v1724
    %6891 = vmatpush1.bf16.msra.mxu0 %v1723
    %6892 = vmatprep.subr.bf16.mxu0 %v1728
    %6893 = vmatpush1.bf16.msra.mxu0 %v1727
    %6894 = vmatprep.subr.bf16.mxu0 %v1732
    %6895 = vmatpush1.bf16.msra.mxu0 %v1731
    %6896 = vmatprep.subr.bf16.mxu0 %v1736
    %6897 = vmatpush1.bf16.msra.mxu0 %v1735
    %6898 = vmatprep.subr.bf16.mxu0 %v1740
    %6899 = vmatpush1.bf16.msra.mxu0 %v1739
    %6900 = vmatprep.subr.bf16.mxu0 %v1744
    %6901 = vmatpush1.bf16.msra.mxu0 %v1743
    %6902 = vmatprep.subr.bf16.mxu0 %v1748
    %6903 = vmatpush1.bf16.msra.mxu0 %v1747
    %6904 = vmatprep.subr.bf16.mxu0 %v1752
    %6905 = vmatpush1.bf16.msra.mxu0 %v1751
    %6906 = vmatprep.subr.bf16.mxu0 %v1756
    %6907 = vmatpush1.bf16.msra.mxu0 %v1755
    %6908 = vmatprep.subr.bf16.mxu0 %v1760
    %6909 = vmatpush1.bf16.msra.mxu0 %v1759
    %6910 = vmatprep.subr.bf16.mxu0 %v1764
    %6911 = vmatpush1.bf16.msra.mxu0 %v1763
    %6912 = vmatprep.subr.bf16.mxu0 %v1768
    %6913 = vmatpush1.bf16.msra.mxu0 %v1767
    %6914 = vmatprep.subr.bf16.mxu0 %v1772
    %6915 = vmatpush1.bf16.msra.mxu0 %v1771
    %6916 = vmatprep.subr.bf16.mxu0 %v1776
    %6917 = vmatpush1.bf16.msra.mxu0 %v1775
    %6918 = vmatprep.subr.bf16.mxu0 %v1780
    %6919 = vmatpush1.bf16.msra.mxu0 %v1779
    %6920 = vmatprep.mubr.bf16.mxu0 %v6568
    %6921 = vmatmul.mubr.bf16.gmra.mrb[0].mxu0 %v6567
    %v6922 = vpop.f32.mrb[0].mxu0
    %v6923 = vadd.f32 %v6882, %v6922
    %v6924 = vpop.f32.mrb[0].mxu0
    %v6925 = vadd.f32 %v6884, %v6924
    %v6926 = vpop.f32.mrb[0].mxu0
    %v6927 = vpop.f32.mrb[0].mxu0
    %6928 = vdwg.mxu0
    %v6929 = vld [vmem:[#allocation3 + $0x320] sm:$0xff]
    %v6930 = vld [vmem:[#allocation3 + $0x328] sm:$0xff]
    %v6931 = vld [vmem:[#allocation3 + $0x330] sm:$0xff]
    %v6932 = vld [vmem:[#allocation3 + $0x338] sm:$0xff]
    %v6933 = vadd.f32 %v6929, %v6841
    %v6934 = vadd.f32 %v6930, %v6843
    %v6935 = vadd.f32 %v6931, %v6923
    %v6936 = vadd.f32 %v6932, %v6925
    %v6937 = vxor.u32 %v6933, 2147483648
    %v6938 = vxor.u32 %v6934, 2147483648
    %v6939 = vxor.u32 %v6935, 2147483648
    %v6940 = vxor.u32 %v6936, 2147483648
    %v6941 = vmul.f32 %v6937, 1.442695
    %v6942 = vpow.pop %v6941
    %v6943 = vmul.f32 %v6938, 1.442695
    %v6944 = vpow.pop %v6943
    %v6945 = vmul.f32 %v6939, 1.442695
    %v6946 = vpow.pop %v6945
    %v6947 = vmul.f32 %v6940, 1.442695
    %v6948 = vpow.pop %v6947
    %v6949 = vadd.f32 %v6942, 1.0
    %v6950 = vadd.f32 %v6944, 1.0
    %v6951 = vadd.f32 %v6946, 1.0
    %v6952 = vadd.f32 %v6948, 1.0
    %v6953 = vrcp.pop %v6949
    %v6954 = vmul.f32 1.0, %v6953
    %v6955 = vrcp.pop %v6950
    %v6956 = vmul.f32 1.0, %v6955
    %v6957 = vrcp.pop %v6951
    %v6958 = vmul.f32 1.0, %v6957
    %v6959 = vrcp.pop %v6952
    %v6960 = vmul.f32 1.0, %v6959
    %6961 = vmatprep.subr.bf16.mxu0 %v1978
    %6962 = vmatpush1.bf16.msra.mxu0 %v1977
    %6963 = vmatprep.subr.bf16.mxu0 %v1982
    %6964 = vmatpush1.bf16.msra.mxu0 %v1981
    %6965 = vmatprep.subr.bf16.mxu0 %v1986
    %6966 = vmatpush1.bf16.msra.mxu0 %v1985
    %6967 = vmatprep.subr.bf16.mxu0 %v1990
    %6968 = vmatpush1.bf16.msra.mxu0 %v1989
    %6969 = vmatprep.subr.bf16.mxu0 %v1994
    %6970 = vmatpush1.bf16.msra.mxu0 %v1993
    %6971 = vmatprep.subr.bf16.mxu0 %v1998
    %6972 = vmatpush1.bf16.msra.mxu0 %v1997
    %6973 = vmatprep.subr.bf16.mxu0 %v2002
    %6974 = vmatpush1.bf16.msra.mxu0 %v2001
    %6975 = vmatprep.subr.bf16.mxu0 %v2006
    %6976 = vmatpush1.bf16.msra.mxu0 %v2005
    %6977 = vmatprep.subr.bf16.mxu0 %v2010
    %6978 = vmatpush1.bf16.msra.mxu0 %v2009
    %6979 = vmatprep.subr.bf16.mxu0 %v2014
    %6980 = vmatpush1.bf16.msra.mxu0 %v2013
    %6981 = vmatprep.subr.bf16.mxu0 %v2018
    %6982 = vmatpush1.bf16.msra.mxu0 %v2017
    %6983 = vmatprep.subr.bf16.mxu0 %v2022
    %6984 = vmatpush1.bf16.msra.mxu0 %v2021
    %6985 = vmatprep.subr.bf16.mxu0 %v2026
    %6986 = vmatpush1.bf16.msra.mxu0 %v2025
    %6987 = vmatprep.subr.bf16.mxu0 %v2030
    %6988 = vmatpush1.bf16.msra.mxu0 %v2029
    %6989 = vmatprep.subr.bf16.mxu0 %v2034
    %6990 = vmatpush1.bf16.msra.mxu0 %v2033
    %6991 = vmatprep.subr.bf16.mxu0 %v2038
    %6992 = vmatpush1.bf16.msra.mxu0 %v2037
    %6993 = vmatprep.mubr.bf16.mxu0 %v6566
    %6994 = vmatmul.mubr.bf16.gmra.mrb[0].mxu0 %v6565
    %v6995 = vpop.f32.mrb[0].mxu0
    %v6996 = vadd.f32 0.0, %v6995
    %v6997 = vpop.f32.mrb[0].mxu0
    %v6998 = vadd.f32 0.0, %v6997
    %v6999 = vpop.f32.mrb[0].mxu0
    %v7000 = vpop.f32.mrb[0].mxu0
    %7001 = vdwg.mxu0
    %7002 = vmatprep.subr.bf16.mxu0 %v2042
    %7003 = vmatpush1.bf16.msra.mxu0 %v2041
    %7004 = vmatprep.subr.bf16.mxu0 %v2046
    %7005 = vmatpush1.bf16.msra.mxu0 %v2045
    %7006 = vmatprep.subr.bf16.mxu0 %v2050
    %7007 = vmatpush1.bf16.msra.mxu0 %v2049
    %7008 = vmatprep.subr.bf16.mxu0 %v2054
    %7009 = vmatpush1.bf16.msra.mxu0 %v2053
    %7010 = vmatprep.subr.bf16.mxu0 %v2058
    %7011 = vmatpush1.bf16.msra.mxu0 %v2057
    %7012 = vmatprep.subr.bf16.mxu0 %v2062
    %7013 = vmatpush1.bf16.msra.mxu0 %v2061
    %7014 = vmatprep.subr.bf16.mxu0 %v2066
    %7015 = vmatpush1.bf16.msra.mxu0 %v2065
    %7016 = vmatprep.subr.bf16.mxu0 %v2070
    %7017 = vmatpush1.bf16.msra.mxu0 %v2069
    %7018 = vmatprep.subr.bf16.mxu0 %v2074
    %7019 = vmatpush1.bf16.msra.mxu0 %v2073
    %7020 = vmatprep.subr.bf16.mxu0 %v2078
    %7021 = vmatpush1.bf16.msra.mxu0 %v2077
    %7022 = vmatprep.subr.bf16.mxu0 %v2082
    %7023 = vmatpush1.bf16.msra.mxu0 %v2081
    %7024 = vmatprep.subr.bf16.mxu0 %v2086
    %7025 = vmatpush1.bf16.msra.mxu0 %v2085
    %7026 = vmatprep.subr.bf16.mxu0 %v2090
    %7027 = vmatpush1.bf16.msra.mxu0 %v2089
    %7028 = vmatprep.subr.bf16.mxu0 %v2094
    %7029 = vmatpush1.bf16.msra.mxu0 %v2093
    %7030 = vmatprep.subr.bf16.mxu0 %v2098
    %7031 = vmatpush1.bf16.msra.mxu0 %v2097
    %7032 = vmatprep.subr.bf16.mxu0 %v2102
    %7033 = vmatpush1.bf16.msra.mxu0 %v2101
    %7034 = vmatprep.mubr.bf16.mxu0 %v6568
    %7035 = vmatmul.mubr.bf16.gmra.mrb[0].mxu0 %v6567
    %v7036 = vpop.f32.mrb[0].mxu0
    %v7037 = vadd.f32 %v6996, %v7036
    %v7038 = vpop.f32.mrb[0].mxu0
    %v7039 = vadd.f32 %v6998, %v7038
    %v7040 = vpop.f32.mrb[0].mxu0
    %v7041 = vpop.f32.mrb[0].mxu0
    %7042 = vdwg.mxu0
    %7043 = vmatprep.subr.bf16.mxu0 %v1980
    %7044 = vmatpush1.bf16.msra.mxu0 %v1979
    %7045 = vmatprep.subr.bf16.mxu0 %v1984
    %7046 = vmatpush1.bf16.msra.mxu0 %v1983
    %7047 = vmatprep.subr.bf16.mxu0 %v1988
    %7048 = vmatpush1.bf16.msra.mxu0 %v1987
    %7049 = vmatprep.subr.bf16.mxu0 %v1992
    %7050 = vmatpush1.bf16.msra.mxu0 %v1991
    %7051 = vmatprep.subr.bf16.mxu0 %v1996
    %7052 = vmatpush1.bf16.msra.mxu0 %v1995
    %7053 = vmatprep.subr.bf16.mxu0 %v2000
    %7054 = vmatpush1.bf16.msra.mxu0 %v1999
    %7055 = vmatprep.subr.bf16.mxu0 %v2004
    %7056 = vmatpush1.bf16.msra.mxu0 %v2003
    %7057 = vmatprep.subr.bf16.mxu0 %v2008
    %7058 = vmatpush1.bf16.msra.mxu0 %v2007
    %7059 = vmatprep.subr.bf16.mxu0 %v2012
    %7060 = vmatpush1.bf16.msra.mxu0 %v2011
    %7061 = vmatprep.subr.bf16.mxu0 %v2016
    %7062 = vmatpush1.bf16.msra.mxu0 %v2015
    %7063 = vmatprep.subr.bf16.mxu0 %v2020
    %7064 = vmatpush1.bf16.msra.mxu0 %v2019
    %7065 = vmatprep.subr.bf16.mxu0 %v2024
    %7066 = vmatpush1.bf16.msra.mxu0 %v2023
    %7067 = vmatprep.subr.bf16.mxu0 %v2028
    %7068 = vmatpush1.bf16.msra.mxu0 %v2027
    %7069 = vmatprep.subr.bf16.mxu0 %v2032
    %7070 = vmatpush1.bf16.msra.mxu0 %v2031
    %7071 = vmatprep.subr.bf16.mxu0 %v2036
    %7072 = vmatpush1.bf16.msra.mxu0 %v2035
    %7073 = vmatprep.subr.bf16.mxu0 %v2040
    %7074 = vmatpush1.bf16.msra.mxu0 %v2039
    %7075 = vmatprep.mubr.bf16.mxu0 %v6566
    %7076 = vmatmul.mubr.bf16.gmra.mrb[0].mxu0 %v6565
    %v7077 = vpop.f32.mrb[0].mxu0
    %v7078 = vadd.f32 0.0, %v7077
    %v7079 = vpop.f32.mrb[0].mxu0
    %v7080 = vadd.f32 0.0, %v7079
    %v7081 = vpop.f32.mrb[0].mxu0
    %v7082 = vpop.f32.mrb[0].mxu0
    %7083 = vdwg.mxu0
    %7084 = vmatprep.subr.bf16.mxu0 %v2044
    %7085 = vmatpush1.bf16.msra.mxu0 %v2043
    %7086 = vmatprep.subr.bf16.mxu0 %v2048
    %7087 = vmatpush1.bf16.msra.mxu0 %v2047
    %7088 = vmatprep.subr.bf16.mxu0 %v2052
    %7089 = vmatpush1.bf16.msra.mxu0 %v2051
    %7090 = vmatprep.subr.bf16.mxu0 %v2056
    %7091 = vmatpush1.bf16.msra.mxu0 %v2055
    %7092 = vmatprep.subr.bf16.mxu0 %v2060
    %7093 = vmatpush1.bf16.msra.mxu0 %v2059
    %7094 = vmatprep.subr.bf16.mxu0 %v2064
    %7095 = vmatpush1.bf16.msra.mxu0 %v2063
    %7096 = vmatprep.subr.bf16.mxu0 %v2068
    %7097 = vmatpush1.bf16.msra.mxu0 %v2067
    %7098 = vmatprep.subr.bf16.mxu0 %v2072
    %7099 = vmatpush1.bf16.msra.mxu0 %v2071
    %7100 = vmatprep.subr.bf16.mxu0 %v2076
    %7101 = vmatpush1.bf16.msra.mxu0 %v2075
    %7102 = vmatprep.subr.bf16.mxu0 %v2080
    %7103 = vmatpush1.bf16.msra.mxu0 %v2079
    %7104 = vmatprep.subr.bf16.mxu0 %v2084
    %7105 = vmatpush1.bf16.msra.mxu0 %v2083
    %7106 = vmatprep.subr.bf16.mxu0 %v2088
    %7107 = vmatpush1.bf16.msra.mxu0 %v2087
    %7108 = vmatprep.subr.bf16.mxu0 %v2092
    %7109 = vmatpush1.bf16.msra.mxu0 %v2091
    %7110 = vmatprep.subr.bf16.mxu0 %v2096
    %7111 = vmatpush1.bf16.msra.mxu0 %v2095
    %7112 = vmatprep.subr.bf16.mxu0 %v2100
    %7113 = vmatpush1.bf16.msra.mxu0 %v2099
    %7114 = vmatprep.subr.bf16.mxu0 %v2104
    %7115 = vmatpush1.bf16.msra.mxu0 %v2103
    %7116 = vmatprep.mubr.bf16.mxu0 %v6568
    %7117 = vmatmul.mubr.bf16.gmra.mrb[0].mxu0 %v6567
    %v7118 = vpop.f32.mrb[0].mxu0
    %v7119 = vadd.f32 %v7078, %v7118
    %v7120 = vpop.f32.mrb[0].mxu0
    %v7121 = vadd.f32 %v7080, %v7120
    %v7122 = vpop.f32.mrb[0].mxu0
    %v7123 = vpop.f32.mrb[0].mxu0
    %7124 = vdwg.mxu0
    %v7125 = vld [vmem:[#allocation3 + $0x340] sm:$0xff]
    %v7126 = vld [vmem:[#allocation3 + $0x348] sm:$0xff]
    %v7127 = vld [vmem:[#allocation3 + $0x350] sm:$0xff]
    %v7128 = vld [vmem:[#allocation3 + $0x358] sm:$0xff]
    %v7129 = vadd.f32 %v7125, %v7037
    %v7130 = vadd.f32 %v7126, %v7039
    %v7131 = vadd.f32 %v7127, %v7119
    %v7132 = vadd.f32 %v7128, %v7121
    %v7133 = vtanh.pop %v7129
    %v7134 = vtanh.pop %v7130
    %v7135 = vtanh.pop %v7131
    %v7136 = vtanh.pop %v7132
    %7137 = vmatprep.subr.bf16.mxu0 %v2282
    %7138 = vmatpush1.bf16.msra.mxu0 %v2281
    %7139 = vmatprep.subr.bf16.mxu0 %v2286
    %7140 = vmatpush1.bf16.msra.mxu0 %v2285
    %7141 = vmatprep.subr.bf16.mxu0 %v2290
    %7142 = vmatpush1.bf16.msra.mxu0 %v2289
    %7143 = vmatprep.subr.bf16.mxu0 %v2294
    %7144 = vmatpush1.bf16.msra.mxu0 %v2293
    %7145 = vmatprep.subr.bf16.mxu0 %v2298
    %7146 = vmatpush1.bf16.msra.mxu0 %v2297
    %7147 = vmatprep.subr.bf16.mxu0 %v2302
    %7148 = vmatpush1.bf16.msra.mxu0 %v2301
    %7149 = vmatprep.subr.bf16.mxu0 %v2306
    %7150 = vmatpush1.bf16.msra.mxu0 %v2305
    %7151 = vmatprep.subr.bf16.mxu0 %v2310
    %7152 = vmatpush1.bf16.msra.mxu0 %v2309
    %7153 = vmatprep.subr.bf16.mxu0 %v2314
    %7154 = vmatpush1.bf16.msra.mxu0 %v2313
    %7155 = vmatprep.subr.bf16.mxu0 %v2318
    %7156 = vmatpush1.bf16.msra.mxu0 %v2317
    %7157 = vmatprep.subr.bf16.mxu0 %v2322
    %7158 = vmatpush1.bf16.msra.mxu0 %v2321
    %7159 = vmatprep.subr.bf16.mxu0 %v2326
    %7160 = vmatpush1.bf16.msra.mxu0 %v2325
    %7161 = vmatprep.subr.bf16.mxu0 %v2330
    %7162 = vmatpush1.bf16.msra.mxu0 %v2329
    %7163 = vmatprep.subr.bf16.mxu0 %v2334
    %7164 = vmatpush1.bf16.msra.mxu0 %v2333
    %7165 = vmatprep.subr.bf16.mxu0 %v2338
    %7166 = vmatpush1.bf16.msra.mxu0 %v2337
    %7167 = vmatprep.subr.bf16.mxu0 %v2342
    %7168 = vmatpush1.bf16.msra.mxu0 %v2341
    %7169 = vmatprep.mubr.bf16.mxu0 %v6566
    %7170 = vmatmul.mubr.bf16.gmra.mrb[0].mxu0 %v6565
    %v7171 = vpop.f32.mrb[0].mxu0
    %v7172 = vadd.f32 0.0, %v7171
    %v7173 = vpop.f32.mrb[0].mxu0
    %v7174 = vadd.f32 0.0, %v7173
    %v7175 = vpop.f32.mrb[0].mxu0
    %v7176 = vpop.f32.mrb[0].mxu0
    %7177 = vdwg.mxu0
    %7178 = vmatprep.subr.bf16.mxu0 %v2346
    %7179 = vmatpush1.bf16.msra.mxu0 %v2345
    %7180 = vmatprep.subr.bf16.mxu0 %v2350
    %7181 = vmatpush1.bf16.msra.mxu0 %v2349
    %7182 = vmatprep.subr.bf16.mxu0 %v2354
    %7183 = vmatpush1.bf16.msra.mxu0 %v2353
    %7184 = vmatprep.subr.bf16.mxu0 %v2358
    %7185 = vmatpush1.bf16.msra.mxu0 %v2357
    %7186 = vmatprep.subr.bf16.mxu0 %v2362
    %7187 = vmatpush1.bf16.msra.mxu0 %v2361
    %7188 = vmatprep.subr.bf16.mxu0 %v2366
    %7189 = vmatpush1.bf16.msra.mxu0 %v2365
    %7190 = vmatprep.subr.bf16.mxu0 %v2370
    %7191 = vmatpush1.bf16.msra.mxu0 %v2369
    %7192 = vmatprep.subr.bf16.mxu0 %v2374
    %7193 = vmatpush1.bf16.msra.mxu0 %v2373
    %7194 = vmatprep.subr.bf16.mxu0 %v2378
    %7195 = vmatpush1.bf16.msra.mxu0 %v2377
    %7196 = vmatprep.subr.bf16.mxu0 %v2382
    %7197 = vmatpush1.bf16.msra.mxu0 %v2381
    %7198 = vmatprep.subr.bf16.mxu0 %v2386
    %7199 = vmatpush1.bf16.msra.mxu0 %v2385
    %7200 = vmatprep.subr.bf16.mxu0 %v2390
    %7201 = vmatpush1.bf16.msra.mxu0 %v2389
    %7202 = vmatprep.subr.bf16.mxu0 %v2394
    %7203 = vmatpush1.bf16.msra.mxu0 %v2393
    %7204 = vmatprep.subr.bf16.mxu0 %v2398
    %7205 = vmatpush1.bf16.msra.mxu0 %v2397
    %7206 = vmatprep.subr.bf16.mxu0 %v2402
    %7207 = vmatpush1.bf16.msra.mxu0 %v2401
    %7208 = vmatprep.subr.bf16.mxu0 %v2406
    %7209 = vmatpush1.bf16.msra.mxu0 %v2405
    %7210 = vmatprep.mubr.bf16.mxu0 %v6568
    %7211 = vmatmul.mubr.bf16.gmra.mrb[0].mxu0 %v6567
    %v7212 = vpop.f32.mrb[0].mxu0
    %v7213 = vadd.f32 %v7172, %v7212
    %v7214 = vpop.f32.mrb[0].mxu0
    %v7215 = vadd.f32 %v7174, %v7214
    %v7216 = vpop.f32.mrb[0].mxu0
    %v7217 = vpop.f32.mrb[0].mxu0
    %7218 = vdwg.mxu0
    %7219 = vmatprep.subr.bf16.mxu0 %v2284
    %7220 = vmatpush1.bf16.msra.mxu0 %v2283
    %7221 = vmatprep.subr.bf16.mxu0 %v2288
    %7222 = vmatpush1.bf16.msra.mxu0 %v2287
    %7223 = vmatprep.subr.bf16.mxu0 %v2292
    %7224 = vmatpush1.bf16.msra.mxu0 %v2291
    %7225 = vmatprep.subr.bf16.mxu0 %v2296
    %7226 = vmatpush1.bf16.msra.mxu0 %v2295
    %7227 = vmatprep.subr.bf16.mxu0 %v2300
    %7228 = vmatpush1.bf16.msra.mxu0 %v2299
    %7229 = vmatprep.subr.bf16.mxu0 %v2304
    %7230 = vmatpush1.bf16.msra.mxu0 %v2303
    %7231 = vmatprep.subr.bf16.mxu0 %v2308
    %7232 = vmatpush1.bf16.msra.mxu0 %v2307
    %7233 = vmatprep.subr.bf16.mxu0 %v2312
    %7234 = vmatpush1.bf16.msra.mxu0 %v2311
    %7235 = vmatprep.subr.bf16.mxu0 %v2316
    %7236 = vmatpush1.bf16.msra.mxu0 %v2315
    %7237 = vmatprep.subr.bf16.mxu0 %v2320
    %7238 = vmatpush1.bf16.msra.mxu0 %v2319
    %7239 = vmatprep.subr.bf16.mxu0 %v2324
    %7240 = vmatpush1.bf16.msra.mxu0 %v2323
    %7241 = vmatprep.subr.bf16.mxu0 %v2328
    %7242 = vmatpush1.bf16.msra.mxu0 %v2327
    %7243 = vmatprep.subr.bf16.mxu0 %v2332
    %7244 = vmatpush1.bf16.msra.mxu0 %v2331
    %7245 = vmatprep.subr.bf16.mxu0 %v2336
    %7246 = vmatpush1.bf16.msra.mxu0 %v2335
    %7247 = vmatprep.subr.bf16.mxu0 %v2340
    %7248 = vmatpush1.bf16.msra.mxu0 %v2339
    %7249 = vmatprep.subr.bf16.mxu0 %v2344
    %7250 = vmatpush1.bf16.msra.mxu0 %v2343
    %7251 = vmatprep.mubr.bf16.mxu0 %v6566
    %7252 = vmatmul.mubr.bf16.gmra.mrb[0].mxu0 %v6565
    %v7253 = vpop.f32.mrb[0].mxu0
    %v7254 = vadd.f32 0.0, %v7253
    %v7255 = vpop.f32.mrb[0].mxu0
    %v7256 = vadd.f32 0.0, %v7255
    %v7257 = vpop.f32.mrb[0].mxu0
    %v7258 = vpop.f32.mrb[0].mxu0
    %7259 = vdwg.mxu0
    %7260 = vmatprep.subr.bf16.mxu0 %v2348
    %7261 = vmatpush1.bf16.msra.mxu0 %v2347
    %7262 = vmatprep.subr.bf16.mxu0 %v2352
    %7263 = vmatpush1.bf16.msra.mxu0 %v2351
    %7264 = vmatprep.subr.bf16.mxu0 %v2356
    %7265 = vmatpush1.bf16.msra.mxu0 %v2355
    %7266 = vmatprep.subr.bf16.mxu0 %v2360
    %7267 = vmatpush1.bf16.msra.mxu0 %v2359
    %7268 = vmatprep.subr.bf16.mxu0 %v2364
    %7269 = vmatpush1.bf16.msra.mxu0 %v2363
    %7270 = vmatprep.subr.bf16.mxu0 %v2368
    %7271 = vmatpush1.bf16.msra.mxu0 %v2367
    %7272 = vmatprep.subr.bf16.mxu0 %v2372
    %7273 = vmatpush1.bf16.msra.mxu0 %v2371
    %7274 = vmatprep.subr.bf16.mxu0 %v2376
    %7275 = vmatpush1.bf16.msra.mxu0 %v2375
    %7276 = vmatprep.subr.bf16.mxu0 %v2380
    %7277 = vmatpush1.bf16.msra.mxu0 %v2379
    %7278 = vmatprep.subr.bf16.mxu0 %v2384
    %7279 = vmatpush1.bf16.msra.mxu0 %v2383
    %7280 = vmatprep.subr.bf16.mxu0 %v2388
    %7281 = vmatpush1.bf16.msra.mxu0 %v2387
    %7282 = vmatprep.subr.bf16.mxu0 %v2392
    %7283 = vmatpush1.bf16.msra.mxu0 %v2391
    %7284 = vmatprep.subr.bf16.mxu0 %v2396
    %7285 = vmatpush1.bf16.msra.mxu0 %v2395
    %7286 = vmatprep.subr.bf16.mxu0 %v2400
    %7287 = vmatpush1.bf16.msra.mxu0 %v2399
    %7288 = vmatprep.subr.bf16.mxu0 %v2404
    %7289 = vmatpush1.bf16.msra.mxu0 %v2403
    %7290 = vmatprep.subr.bf16.mxu0 %v2408
    %7291 = vmatpush1.bf16.msra.mxu0 %v2407
    %7292 = vmatprep.mubr.bf16.mxu0 %v6568
    %7293 = vmatmul.mubr.bf16.gmra.mrb[0].mxu0 %v6567
    %v7294 = vpop.f32.mrb[0].mxu0
    %v7295 = vadd.f32 %v7254, %v7294
    %v7296 = vpop.f32.mrb[0].mxu0
    %v7297 = vadd.f32 %v7256, %v7296
    %v7298 = vpop.f32.mrb[0].mxu0
    %v7299 = vpop.f32.mrb[0].mxu0
    %7300 = vdwg.mxu0
    %v7301 = vld [vmem:[#allocation3 + $0x360] sm:$0xff]
    %v7302 = vld [vmem:[#allocation3 + $0x368] sm:$0xff]
    %v7303 = vld [vmem:[#allocation3 + $0x370] sm:$0xff]
    %v7304 = vld [vmem:[#allocation3 + $0x378] sm:$0xff]
    %v7305 = vadd.f32 %v7301, %v7213
    %v7306 = vadd.f32 %v7302, %v7215
    %v7307 = vadd.f32 %v7303, %v7295
    %v7308 = vadd.f32 %v7304, %v7297
    %v7309 = vxor.u32 %v7305, 2147483648
    %v7310 = vxor.u32 %v7306, 2147483648
    %v7311 = vxor.u32 %v7307, 2147483648
    %v7312 = vxor.u32 %v7308, 2147483648
    %v7313 = vmul.f32 %v7309, 1.442695
    %v7314 = vpow.pop %v7313
    %v7315 = vmul.f32 %v7310, 1.442695
    %v7316 = vpow.pop %v7315
    %v7317 = vmul.f32 %v7311, 1.442695
    %v7318 = vpow.pop %v7317
    %v7319 = vmul.f32 %v7312, 1.442695
    %v7320 = vpow.pop %v7319
    %v7321 = vadd.f32 %v7314, 1.0
    %v7322 = vadd.f32 %v7316, 1.0
    %v7323 = vadd.f32 %v7318, 1.0
    %v7324 = vadd.f32 %v7320, 1.0
    %v7325 = vrcp.pop %v7321
    %v7326 = vmul.f32 1.0, %v7325
    %v7327 = vrcp.pop %v7322
    %v7328 = vmul.f32 1.0, %v7327
    %v7329 = vrcp.pop %v7323
    %v7330 = vmul.f32 1.0, %v7329
    %v7331 = vrcp.pop %v7324
    %v7332 = vmul.f32 1.0, %v7331
    %v7333 = vmul.f32 %v6954, %v6553
    %v7334 = vmul.f32 %v6956, %v6554
    %v7335 = vmul.f32 %v6958, %v6555
    %v7336 = vmul.f32 %v6960, %v6556
    %v7337 = vmul.f32 %v6758, %v7133
    %v7338 = vmul.f32 %v6760, %v7134
    %v7339 = vmul.f32 %v6762, %v7135
    %v7340 = vmul.f32 %v6764, %v7136
    %v7341 = vadd.f32 %v7333, %v7337
    %v7342 = vadd.f32 %v7334, %v7338
    %v7343 = vadd.f32 %v7335, %v7339
    %v7344 = vadd.f32 %v7336, %v7340
    %v7345 = vtanh.pop %v7341
    %v7346 = vtanh.pop %v7342
    %v7347 = vtanh.pop %v7343
    %v7348 = vtanh.pop %v7344
    %v7349 = vmul.f32 %v7326, %v7345
    %v7350 = vmul.f32 %v7328, %v7346
    %v7351 = vmul.f32 %v7330, %v7347
    %v7352 = vmul.f32 %v7332, %v7348
    %v7353 = vpack.c.bf16 %v7349, %v7349
    %v7354 = vpack.c.bf16 %v7350, %v7350
    %v7355 = vpack.c.bf16 %v7351, %v7351
    %v7356 = vpack.c.bf16 %v7352, %v7352
    %7357 = vmatprep.subr.bf16.mxu0 %v1330
    %7358 = vmatpush1.bf16.msra.mxu0 %v1329
    %7359 = vmatprep.subr.bf16.mxu0 %v1334
    %7360 = vmatpush1.bf16.msra.mxu0 %v1333
    %7361 = vmatprep.subr.bf16.mxu0 %v1338
    %7362 = vmatpush1.bf16.msra.mxu0 %v1337
    %7363 = vmatprep.subr.bf16.mxu0 %v1342
    %7364 = vmatpush1.bf16.msra.mxu0 %v1341
    %7365 = vmatprep.subr.bf16.mxu0 %v1346
    %7366 = vmatpush1.bf16.msra.mxu0 %v1345
    %7367 = vmatprep.subr.bf16.mxu0 %v1350
    %7368 = vmatpush1.bf16.msra.mxu0 %v1349
    %7369 = vmatprep.subr.bf16.mxu0 %v1354
    %7370 = vmatpush1.bf16.msra.mxu0 %v1353
    %7371 = vmatprep.subr.bf16.mxu0 %v1358
    %7372 = vmatpush1.bf16.msra.mxu0 %v1357
    %7373 = vmatprep.subr.bf16.mxu0 %v1362
    %7374 = vmatpush1.bf16.msra.mxu0 %v1361
    %7375 = vmatprep.subr.bf16.mxu0 %v1366
    %7376 = vmatpush1.bf16.msra.mxu0 %v1365
    %7377 = vmatprep.subr.bf16.mxu0 %v1370
    %7378 = vmatpush1.bf16.msra.mxu0 %v1369
    %7379 = vmatprep.subr.bf16.mxu0 %v1374
    %7380 = vmatpush1.bf16.msra.mxu0 %v1373
    %7381 = vmatprep.subr.bf16.mxu0 %v1378
    %7382 = vmatpush1.bf16.msra.mxu0 %v1377
    %7383 = vmatprep.subr.bf16.mxu0 %v1382
    %7384 = vmatpush1.bf16.msra.mxu0 %v1381
    %7385 = vmatprep.subr.bf16.mxu0 %v1386
    %7386 = vmatpush1.bf16.msra.mxu0 %v1385
    %7387 = vmatprep.subr.bf16.mxu0 %v1390
    %7388 = vmatpush1.bf16.msra.mxu0 %v1389
    %7389 = vmatprep.mubr.bf16.mxu0 %v7354
    %7390 = vmatmul.mubr.bf16.gmra.mrb[0].mxu0 %v7353
    %v7391 = vpop.f32.mrb[0].mxu0
    %v7392 = vadd.f32 0.0, %v7391
    %v7393 = vpop.f32.mrb[0].mxu0
    %v7394 = vadd.f32 0.0, %v7393
    %v7395 = vpop.f32.mrb[0].mxu0
    %v7396 = vpop.f32.mrb[0].mxu0
    %7397 = vdwg.mxu0
    %7398 = vmatprep.subr.bf16.mxu0 %v1394
    %7399 = vmatpush1.bf16.msra.mxu0 %v1393
    %7400 = vmatprep.subr.bf16.mxu0 %v1398
    %7401 = vmatpush1.bf16.msra.mxu0 %v1397
    %7402 = vmatprep.subr.bf16.mxu0 %v1402
    %7403 = vmatpush1.bf16.msra.mxu0 %v1401
    %7404 = vmatprep.subr.bf16.mxu0 %v1406
    %7405 = vmatpush1.bf16.msra.mxu0 %v1405
    %7406 = vmatprep.subr.bf16.mxu0 %v1410
    %7407 = vmatpush1.bf16.msra.mxu0 %v1409
    %7408 = vmatprep.subr.bf16.mxu0 %v1414
    %7409 = vmatpush1.bf16.msra.mxu0 %v1413
    %7410 = vmatprep.subr.bf16.mxu0 %v1418
    %7411 = vmatpush1.bf16.msra.mxu0 %v1417
    %7412 = vmatprep.subr.bf16.mxu0 %v1422
    %7413 = vmatpush1.bf16.msra.mxu0 %v1421
    %7414 = vmatprep.subr.bf16.mxu0 %v1426
    %7415 = vmatpush1.bf16.msra.mxu0 %v1425
    %7416 = vmatprep.subr.bf16.mxu0 %v1430
    %7417 = vmatpush1.bf16.msra.mxu0 %v1429
    %7418 = vmatprep.subr.bf16.mxu0 %v1434
    %7419 = vmatpush1.bf16.msra.mxu0 %v1433
    %7420 = vmatprep.subr.bf16.mxu0 %v1438
    %7421 = vmatpush1.bf16.msra.mxu0 %v1437
    %7422 = vmatprep.subr.bf16.mxu0 %v1442
    %7423 = vmatpush1.bf16.msra.mxu0 %v1441
    %7424 = vmatprep.subr.bf16.mxu0 %v1446
    %7425 = vmatpush1.bf16.msra.mxu0 %v1445
    %7426 = vmatprep.subr.bf16.mxu0 %v1450
    %7427 = vmatpush1.bf16.msra.mxu0 %v1449
    %7428 = vmatprep.subr.bf16.mxu0 %v1454
    %7429 = vmatpush1.bf16.msra.mxu0 %v1453
    %7430 = vmatprep.mubr.bf16.mxu0 %v7356
    %7431 = vmatmul.mubr.bf16.gmra.mrb[0].mxu0 %v7355
    %v7432 = vpop.f32.mrb[0].mxu0
    %v7433 = vadd.f32 %v7392, %v7432
    %v7434 = vpop.f32.mrb[0].mxu0
    %v7435 = vadd.f32 %v7394, %v7434
    %v7436 = vpop.f32.mrb[0].mxu0
    %v7437 = vpop.f32.mrb[0].mxu0
    %7438 = vdwg.mxu0
    %7439 = vmatprep.subr.bf16.mxu0 %v1332
    %7440 = vmatpush1.bf16.msra.mxu0 %v1331
    %7441 = vmatprep.subr.bf16.mxu0 %v1336
    %7442 = vmatpush1.bf16.msra.mxu0 %v1335
    %7443 = vmatprep.subr.bf16.mxu0 %v1340
    %7444 = vmatpush1.bf16.msra.mxu0 %v1339
    %7445 = vmatprep.subr.bf16.mxu0 %v1344
    %7446 = vmatpush1.bf16.msra.mxu0 %v1343
    %7447 = vmatprep.subr.bf16.mxu0 %v1348
    %7448 = vmatpush1.bf16.msra.mxu0 %v1347
    %7449 = vmatprep.subr.bf16.mxu0 %v1352
    %7450 = vmatpush1.bf16.msra.mxu0 %v1351
    %7451 = vmatprep.subr.bf16.mxu0 %v1356
    %7452 = vmatpush1.bf16.msra.mxu0 %v1355
    %7453 = vmatprep.subr.bf16.mxu0 %v1360
    %7454 = vmatpush1.bf16.msra.mxu0 %v1359
    %7455 = vmatprep.subr.bf16.mxu0 %v1364
    %7456 = vmatpush1.bf16.msra.mxu0 %v1363
    %7457 = vmatprep.subr.bf16.mxu0 %v1368
    %7458 = vmatpush1.bf16.msra.mxu0 %v1367
    %7459 = vmatprep.subr.bf16.mxu0 %v1372
    %7460 = vmatpush1.bf16.msra.mxu0 %v1371
    %7461 = vmatprep.subr.bf16.mxu0 %v1376
    %7462 = vmatpush1.bf16.msra.mxu0 %v1375
    %7463 = vmatprep.subr.bf16.mxu0 %v1380
    %7464 = vmatpush1.bf16.msra.mxu0 %v1379
    %7465 = vmatprep.subr.bf16.mxu0 %v1384
    %7466 = vmatpush1.bf16.msra.mxu0 %v1383
    %7467 = vmatprep.subr.bf16.mxu0 %v1388
    %7468 = vmatpush1.bf16.msra.mxu0 %v1387
    %7469 = vmatprep.subr.bf16.mxu0 %v1392
    %7470 = vmatpush1.bf16.msra.mxu0 %v1391
    %7471 = vmatprep.mubr.bf16.mxu0 %v7354
    %7472 = vmatmul.mubr.bf16.gmra.mrb[0].mxu0 %v7353
    %v7473 = vpop.f32.mrb[0].mxu0
    %v7474 = vadd.f32 0.0, %v7473
    %v7475 = vpop.f32.mrb[0].mxu0
    %v7476 = vadd.f32 0.0, %v7475
    %v7477 = vpop.f32.mrb[0].mxu0
    %v7478 = vpop.f32.mrb[0].mxu0
    %7479 = vdwg.mxu0
    %7480 = vmatprep.subr.bf16.mxu0 %v1396
    %7481 = vmatpush1.bf16.msra.mxu0 %v1395
    %7482 = vmatprep.subr.bf16.mxu0 %v1400
    %7483 = vmatpush1.bf16.msra.mxu0 %v1399
    %7484 = vmatprep.subr.bf16.mxu0 %v1404
    %7485 = vmatpush1.bf16.msra.mxu0 %v1403
    %7486 = vmatprep.subr.bf16.mxu0 %v1408
    %7487 = vmatpush1.bf16.msra.mxu0 %v1407
    %7488 = vmatprep.subr.bf16.mxu0 %v1412
    %7489 = vmatpush1.bf16.msra.mxu0 %v1411
    %7490 = vmatprep.subr.bf16.mxu0 %v1416
    %7491 = vmatpush1.bf16.msra.mxu0 %v1415
    %7492 = vmatprep.subr.bf16.mxu0 %v1420
    %7493 = vmatpush1.bf16.msra.mxu0 %v1419
    %7494 = vmatprep.subr.bf16.mxu0 %v1424
    %7495 = vmatpush1.bf16.msra.mxu0 %v1423
    %7496 = vmatprep.subr.bf16.mxu0 %v1428
    %7497 = vmatpush1.bf16.msra.mxu0 %v1427
    %7498 = vmatprep.subr.bf16.mxu0 %v1432
    %7499 = vmatpush1.bf16.msra.mxu0 %v1431
    %7500 = vmatprep.subr.bf16.mxu0 %v1436
    %7501 = vmatpush1.bf16.msra.mxu0 %v1435
    %7502 = vmatprep.subr.bf16.mxu0 %v1440
    %7503 = vmatpush1.bf16.msra.mxu0 %v1439
    %7504 = vmatprep.subr.bf16.mxu0 %v1444
    %7505 = vmatpush1.bf16.msra.mxu0 %v1443
    %7506 = vmatprep.subr.bf16.mxu0 %v1448
    %7507 = vmatpush1.bf16.msra.mxu0 %v1447
    %7508 = vmatprep.subr.bf16.mxu0 %v1452
    %7509 = vmatpush1.bf16.msra.mxu0 %v1451
    %7510 = vmatprep.subr.bf16.mxu0 %v1456
    %7511 = vmatpush1.bf16.msra.mxu0 %v1455
    %7512 = vmatprep.mubr.bf16.mxu0 %v7356
    %7513 = vmatmul.mubr.bf16.gmra.mrb[0].mxu0 %v7355
    %v7514 = vpop.f32.mrb[0].mxu0
    %v7515 = vadd.f32 %v7474, %v7514
    %v7516 = vpop.f32.mrb[0].mxu0
    %v7517 = vadd.f32 %v7476, %v7516
    %v7518 = vpop.f32.mrb[0].mxu0
    %v7519 = vpop.f32.mrb[0].mxu0
    %7520 = vdwg.mxu0
    %v7521 = vld [vmem:[#allocation3 + $0x380] sm:$0xff]
    %v7522 = vld [vmem:[#allocation3 + $0x388] sm:$0xff]
    %v7523 = vld [vmem:[#allocation3 + $0x390] sm:$0xff]
    %v7524 = vld [vmem:[#allocation3 + $0x398] sm:$0xff]
    %v7525 = vadd.f32 %v7521, %v7433
    %v7526 = vadd.f32 %v7522, %v7435
    %v7527 = vadd.f32 %v7523, %v7515
    %v7528 = vadd.f32 %v7524, %v7517
    %v7529 = vxor.u32 %v7525, 2147483648
    %v7530 = vxor.u32 %v7526, 2147483648
    %v7531 = vxor.u32 %v7527, 2147483648
    %v7532 = vxor.u32 %v7528, 2147483648
    %v7533 = vmul.f32 %v7529, 1.442695
    %v7534 = vpow.pop %v7533
    %v7535 = vmul.f32 %v7530, 1.442695
    %v7536 = vpow.pop %v7535
    %v7537 = vmul.f32 %v7531, 1.442695
    %v7538 = vpow.pop %v7537
    %v7539 = vmul.f32 %v7532, 1.442695
    %v7540 = vpow.pop %v7539
    %v7541 = vadd.f32 %v7534, 1.0
    %v7542 = vadd.f32 %v7536, 1.0
    %v7543 = vadd.f32 %v7538, 1.0
    %v7544 = vadd.f32 %v7540, 1.0
    %v7545 = vrcp.pop %v7541
    %v7546 = vmul.f32 1.0, %v7545
    %v7547 = vrcp.pop %v7542
    %v7548 = vmul.f32 1.0, %v7547
    %v7549 = vrcp.pop %v7543
    %v7550 = vmul.f32 1.0, %v7549
    %v7551 = vrcp.pop %v7544
    %v7552 = vmul.f32 1.0, %v7551
    %7553 = vmatprep.subr.bf16.mxu0 %v1654
    %7554 = vmatpush1.bf16.msra.mxu0 %v1653
    %7555 = vmatprep.subr.bf16.mxu0 %v1658
    %7556 = vmatpush1.bf16.msra.mxu0 %v1657
    %7557 = vmatprep.subr.bf16.mxu0 %v1662
    %7558 = vmatpush1.bf16.msra.mxu0 %v1661
    %7559 = vmatprep.subr.bf16.mxu0 %v1666
    %7560 = vmatpush1.bf16.msra.mxu0 %v1665
    %7561 = vmatprep.subr.bf16.mxu0 %v1670
    %7562 = vmatpush1.bf16.msra.mxu0 %v1669
    %7563 = vmatprep.subr.bf16.mxu0 %v1674
    %7564 = vmatpush1.bf16.msra.mxu0 %v1673
    %7565 = vmatprep.subr.bf16.mxu0 %v1678
    %7566 = vmatpush1.bf16.msra.mxu0 %v1677
    %7567 = vmatprep.subr.bf16.mxu0 %v1682
    %7568 = vmatpush1.bf16.msra.mxu0 %v1681
    %7569 = vmatprep.subr.bf16.mxu0 %v1686
    %7570 = vmatpush1.bf16.msra.mxu0 %v1685
    %7571 = vmatprep.subr.bf16.mxu0 %v1690
    %7572 = vmatpush1.bf16.msra.mxu0 %v1689
    %7573 = vmatprep.subr.bf16.mxu0 %v1694
    %7574 = vmatpush1.bf16.msra.mxu0 %v1693
    %7575 = vmatprep.subr.bf16.mxu0 %v1698
    %7576 = vmatpush1.bf16.msra.mxu0 %v1697
    %7577 = vmatprep.subr.bf16.mxu0 %v1702
    %7578 = vmatpush1.bf16.msra.mxu0 %v1701
    %7579 = vmatprep.subr.bf16.mxu0 %v1706
    %7580 = vmatpush1.bf16.msra.mxu0 %v1705
    %7581 = vmatprep.subr.bf16.mxu0 %v1710
    %7582 = vmatpush1.bf16.msra.mxu0 %v1709
    %7583 = vmatprep.subr.bf16.mxu0 %v1714
    %7584 = vmatpush1.bf16.msra.mxu0 %v1713
    %7585 = vmatprep.mubr.bf16.mxu0 %v7354
    %7586 = vmatmul.mubr.bf16.gmra.mrb[0].mxu0 %v7353
    %v7587 = vpop.f32.mrb[0].mxu0
    %v7588 = vadd.f32 0.0, %v7587
    %v7589 = vpop.f32.mrb[0].mxu0
    %v7590 = vadd.f32 0.0, %v7589
    %v7591 = vpop.f32.mrb[0].mxu0
    %v7592 = vpop.f32.mrb[0].mxu0
    %7593 = vdwg.mxu0
    %7594 = vmatprep.subr.bf16.mxu0 %v1718
    %7595 = vmatpush1.bf16.msra.mxu0 %v1717
    %7596 = vmatprep.subr.bf16.mxu0 %v1722
    %7597 = vmatpush1.bf16.msra.mxu0 %v1721
    %7598 = vmatprep.subr.bf16.mxu0 %v1726
    %7599 = vmatpush1.bf16.msra.mxu0 %v1725
    %7600 = vmatprep.subr.bf16.mxu0 %v1730
    %7601 = vmatpush1.bf16.msra.mxu0 %v1729
    %7602 = vmatprep.subr.bf16.mxu0 %v1734
    %7603 = vmatpush1.bf16.msra.mxu0 %v1733
    %7604 = vmatprep.subr.bf16.mxu0 %v1738
    %7605 = vmatpush1.bf16.msra.mxu0 %v1737
    %7606 = vmatprep.subr.bf16.mxu0 %v1742
    %7607 = vmatpush1.bf16.msra.mxu0 %v1741
    %7608 = vmatprep.subr.bf16.mxu0 %v1746
    %7609 = vmatpush1.bf16.msra.mxu0 %v1745
    %7610 = vmatprep.subr.bf16.mxu0 %v1750
    %7611 = vmatpush1.bf16.msra.mxu0 %v1749
    %7612 = vmatprep.subr.bf16.mxu0 %v1754
    %7613 = vmatpush1.bf16.msra.mxu0 %v1753
    %7614 = vmatprep.subr.bf16.mxu0 %v1758
    %7615 = vmatpush1.bf16.msra.mxu0 %v1757
    %7616 = vmatprep.subr.bf16.mxu0 %v1762
    %7617 = vmatpush1.bf16.msra.mxu0 %v1761
    %7618 = vmatprep.subr.bf16.mxu0 %v1766
    %7619 = vmatpush1.bf16.msra.mxu0 %v1765
    %7620 = vmatprep.subr.bf16.mxu0 %v1770
    %7621 = vmatpush1.bf16.msra.mxu0 %v1769
    %7622 = vmatprep.subr.bf16.mxu0 %v1774
    %7623 = vmatpush1.bf16.msra.mxu0 %v1773
    %7624 = vmatprep.subr.bf16.mxu0 %v1778
    %7625 = vmatpush1.bf16.msra.mxu0 %v1777
    %7626 = vmatprep.mubr.bf16.mxu0 %v7356
    %7627 = vmatmul.mubr.bf16.gmra.mrb[0].mxu0 %v7355
    %v7628 = vpop.f32.mrb[0].mxu0
    %v7629 = vadd.f32 %v7588, %v7628
    %v7630 = vpop.f32.mrb[0].mxu0
    %v7631 = vadd.f32 %v7590, %v7630
    %v7632 = vpop.f32.mrb[0].mxu0
    %v7633 = vpop.f32.mrb[0].mxu0
    %7634 = vdwg.mxu0
    %7635 = vmatprep.subr.bf16.mxu0 %v1656
    %7636 = vmatpush1.bf16.msra.mxu0 %v1655
    %7637 = vmatprep.subr.bf16.mxu0 %v1660
    %7638 = vmatpush1.bf16.msra.mxu0 %v1659
    %7639 = vmatprep.subr.bf16.mxu0 %v1664
    %7640 = vmatpush1.bf16.msra.mxu0 %v1663
    %7641 = vmatprep.subr.bf16.mxu0 %v1668
    %7642 = vmatpush1.bf16.msra.mxu0 %v1667
    %7643 = vmatprep.subr.bf16.mxu0 %v1672
    %7644 = vmatpush1.bf16.msra.mxu0 %v1671
    %7645 = vmatprep.subr.bf16.mxu0 %v1676
    %7646 = vmatpush1.bf16.msra.mxu0 %v1675
    %7647 = vmatprep.subr.bf16.mxu0 %v1680
    %7648 = vmatpush1.bf16.msra.mxu0 %v1679
    %7649 = vmatprep.subr.bf16.mxu0 %v1684
    %7650 = vmatpush1.bf16.msra.mxu0 %v1683
    %7651 = vmatprep.subr.bf16.mxu0 %v1688
    %7652 = vmatpush1.bf16.msra.mxu0 %v1687
    %7653 = vmatprep.subr.bf16.mxu0 %v1692
    %7654 = vmatpush1.bf16.msra.mxu0 %v1691
    %7655 = vmatprep.subr.bf16.mxu0 %v1696
    %7656 = vmatpush1.bf16.msra.mxu0 %v1695
    %7657 = vmatprep.subr.bf16.mxu0 %v1700
    %7658 = vmatpush1.bf16.msra.mxu0 %v1699
    %7659 = vmatprep.subr.bf16.mxu0 %v1704
    %7660 = vmatpush1.bf16.msra.mxu0 %v1703
    %7661 = vmatprep.subr.bf16.mxu0 %v1708
    %7662 = vmatpush1.bf16.msra.mxu0 %v1707
    %7663 = vmatprep.subr.bf16.mxu0 %v1712
    %7664 = vmatpush1.bf16.msra.mxu0 %v1711
    %7665 = vmatprep.subr.bf16.mxu0 %v1716
    %7666 = vmatpush1.bf16.msra.mxu0 %v1715
    %7667 = vmatprep.mubr.bf16.mxu0 %v7354
    %7668 = vmatmul.mubr.bf16.gmra.mrb[0].mxu0 %v7353
    %v7669 = vpop.f32.mrb[0].mxu0
    %v7670 = vadd.f32 0.0, %v7669
    %v7671 = vpop.f32.mrb[0].mxu0
    %v7672 = vadd.f32 0.0, %v7671
    %v7673 = vpop.f32.mrb[0].mxu0
    %v7674 = vpop.f32.mrb[0].mxu0
    %7675 = vdwg.mxu0
    %7676 = vmatprep.subr.bf16.mxu0 %v1720
    %7677 = vmatpush1.bf16.msra.mxu0 %v1719
    %7678 = vmatprep.subr.bf16.mxu0 %v1724
    %7679 = vmatpush1.bf16.msra.mxu0 %v1723
    %7680 = vmatprep.subr.bf16.mxu0 %v1728
    %7681 = vmatpush1.bf16.msra.mxu0 %v1727
    %7682 = vmatprep.subr.bf16.mxu0 %v1732
    %7683 = vmatpush1.bf16.msra.mxu0 %v1731
    %7684 = vmatprep.subr.bf16.mxu0 %v1736
    %7685 = vmatpush1.bf16.msra.mxu0 %v1735
    %7686 = vmatprep.subr.bf16.mxu0 %v1740
    %7687 = vmatpush1.bf16.msra.mxu0 %v1739
    %7688 = vmatprep.subr.bf16.mxu0 %v1744
    %7689 = vmatpush1.bf16.msra.mxu0 %v1743
    %7690 = vmatprep.subr.bf16.mxu0 %v1748
    %7691 = vmatpush1.bf16.msra.mxu0 %v1747
    %7692 = vmatprep.subr.bf16.mxu0 %v1752
    %7693 = vmatpush1.bf16.msra.mxu0 %v1751
    %7694 = vmatprep.subr.bf16.mxu0 %v1756
    %7695 = vmatpush1.bf16.msra.mxu0 %v1755
    %7696 = vmatprep.subr.bf16.mxu0 %v1760
    %7697 = vmatpush1.bf16.msra.mxu0 %v1759
    %7698 = vmatprep.subr.bf16.mxu0 %v1764
    %7699 = vmatpush1.bf16.msra.mxu0 %v1763
    %7700 = vmatprep.subr.bf16.mxu0 %v1768
    %7701 = vmatpush1.bf16.msra.mxu0 %v1767
    %7702 = vmatprep.subr.bf16.mxu0 %v1772
    %7703 = vmatpush1.bf16.msra.mxu0 %v1771
    %7704 = vmatprep.subr.bf16.mxu0 %v1776
    %7705 = vmatpush1.bf16.msra.mxu0 %v1775
    %7706 = vmatprep.subr.bf16.mxu0 %v1780
    %7707 = vmatpush1.bf16.msra.mxu0 %v1779
    %7708 = vmatprep.mubr.bf16.mxu0 %v7356
    %7709 = vmatmul.mubr.bf16.gmra.mrb[0].mxu0 %v7355
    %v7710 = vpop.f32.mrb[0].mxu0
    %v7711 = vadd.f32 %v7670, %v7710
    %v7712 = vpop.f32.mrb[0].mxu0
    %v7713 = vadd.f32 %v7672, %v7712
    %v7714 = vpop.f32.mrb[0].mxu0
    %v7715 = vpop.f32.mrb[0].mxu0
    %7716 = vdwg.mxu0
    %v7717 = vld [vmem:[#allocation3 + $0x3a0] sm:$0xff]
    %v7718 = vld [vmem:[#allocation3 + $0x3a8] sm:$0xff]
    %v7719 = vld [vmem:[#allocation3 + $0x3b0] sm:$0xff]
    %v7720 = vld [vmem:[#allocation3 + $0x3b8] sm:$0xff]
    %v7721 = vadd.f32 %v7717, %v7629
    %v7722 = vadd.f32 %v7718, %v7631
    %v7723 = vadd.f32 %v7719, %v7711
    %v7724 = vadd.f32 %v7720, %v7713
    %v7725 = vxor.u32 %v7721, 2147483648
    %v7726 = vxor.u32 %v7722, 2147483648
    %v7727 = vxor.u32 %v7723, 2147483648
    %v7728 = vxor.u32 %v7724, 2147483648
    %v7729 = vmul.f32 %v7725, 1.442695
    %v7730 = vpow.pop %v7729
    %v7731 = vmul.f32 %v7726, 1.442695
    %v7732 = vpow.pop %v7731
    %v7733 = vmul.f32 %v7727, 1.442695
    %v7734 = vpow.pop %v7733
    %v7735 = vmul.f32 %v7728, 1.442695
    %v7736 = vpow.pop %v7735
    %v7737 = vadd.f32 %v7730, 1.0
    %v7738 = vadd.f32 %v7732, 1.0
    %v7739 = vadd.f32 %v7734, 1.0
    %v7740 = vadd.f32 %v7736, 1.0
    %v7741 = vrcp.pop %v7737
    %v7742 = vmul.f32 1.0, %v7741
    %v7743 = vrcp.pop %v7738
    %v7744 = vmul.f32 1.0, %v7743
    %v7745 = vrcp.pop %v7739
    %v7746 = vmul.f32 1.0, %v7745
    %v7747 = vrcp.pop %v7740
    %v7748 = vmul.f32 1.0, %v7747
    %7749 = vmatprep.subr.bf16.mxu0 %v1978
    %7750 = vmatpush1.bf16.msra.mxu0 %v1977
    %7751 = vmatprep.subr.bf16.mxu0 %v1982
    %7752 = vmatpush1.bf16.msra.mxu0 %v1981
    %7753 = vmatprep.subr.bf16.mxu0 %v1986
    %7754 = vmatpush1.bf16.msra.mxu0 %v1985
    %7755 = vmatprep.subr.bf16.mxu0 %v1990
    %7756 = vmatpush1.bf16.msra.mxu0 %v1989
    %7757 = vmatprep.subr.bf16.mxu0 %v1994
    %7758 = vmatpush1.bf16.msra.mxu0 %v1993
    %7759 = vmatprep.subr.bf16.mxu0 %v1998
    %7760 = vmatpush1.bf16.msra.mxu0 %v1997
    %7761 = vmatprep.subr.bf16.mxu0 %v2002
    %7762 = vmatpush1.bf16.msra.mxu0 %v2001
    %7763 = vmatprep.subr.bf16.mxu0 %v2006
    %7764 = vmatpush1.bf16.msra.mxu0 %v2005
    %7765 = vmatprep.subr.bf16.mxu0 %v2010
    %7766 = vmatpush1.bf16.msra.mxu0 %v2009
    %7767 = vmatprep.subr.bf16.mxu0 %v2014
    %7768 = vmatpush1.bf16.msra.mxu0 %v2013
    %7769 = vmatprep.subr.bf16.mxu0 %v2018
    %7770 = vmatpush1.bf16.msra.mxu0 %v2017
    %7771 = vmatprep.subr.bf16.mxu0 %v2022
    %7772 = vmatpush1.bf16.msra.mxu0 %v2021
    %7773 = vmatprep.subr.bf16.mxu0 %v2026
    %7774 = vmatpush1.bf16.msra.mxu0 %v2025
    %7775 = vmatprep.subr.bf16.mxu0 %v2030
    %7776 = vmatpush1.bf16.msra.mxu0 %v2029
    %7777 = vmatprep.subr.bf16.mxu0 %v2034
    %7778 = vmatpush1.bf16.msra.mxu0 %v2033
    %7779 = vmatprep.subr.bf16.mxu0 %v2038
    %7780 = vmatpush1.bf16.msra.mxu0 %v2037
    %7781 = vmatprep.mubr.bf16.mxu0 %v7354
    %7782 = vmatmul.mubr.bf16.gmra.mrb[0].mxu0 %v7353
    %v7783 = vpop.f32.mrb[0].mxu0
    %v7784 = vadd.f32 0.0, %v7783
    %v7785 = vpop.f32.mrb[0].mxu0
    %v7786 = vadd.f32 0.0, %v7785
    %v7787 = vpop.f32.mrb[0].mxu0
    %v7788 = vpop.f32.mrb[0].mxu0
    %7789 = vdwg.mxu0
    %7790 = vmatprep.subr.bf16.mxu0 %v2042
    %7791 = vmatpush1.bf16.msra.mxu0 %v2041
    %7792 = vmatprep.subr.bf16.mxu0 %v2046
    %7793 = vmatpush1.bf16.msra.mxu0 %v2045
    %7794 = vmatprep.subr.bf16.mxu0 %v2050
    %7795 = vmatpush1.bf16.msra.mxu0 %v2049
    %7796 = vmatprep.subr.bf16.mxu0 %v2054
    %7797 = vmatpush1.bf16.msra.mxu0 %v2053
    %7798 = vmatprep.subr.bf16.mxu0 %v2058
    %7799 = vmatpush1.bf16.msra.mxu0 %v2057
    %7800 = vmatprep.subr.bf16.mxu0 %v2062
    %7801 = vmatpush1.bf16.msra.mxu0 %v2061
    %7802 = vmatprep.subr.bf16.mxu0 %v2066
    %7803 = vmatpush1.bf16.msra.mxu0 %v2065
    %7804 = vmatprep.subr.bf16.mxu0 %v2070
    %7805 = vmatpush1.bf16.msra.mxu0 %v2069
    %7806 = vmatprep.subr.bf16.mxu0 %v2074
    %7807 = vmatpush1.bf16.msra.mxu0 %v2073
    %7808 = vmatprep.subr.bf16.mxu0 %v2078
    %7809 = vmatpush1.bf16.msra.mxu0 %v2077
    %7810 = vmatprep.subr.bf16.mxu0 %v2082
    %7811 = vmatpush1.bf16.msra.mxu0 %v2081
    %7812 = vmatprep.subr.bf16.mxu0 %v2086
    %7813 = vmatpush1.bf16.msra.mxu0 %v2085
    %7814 = vmatprep.subr.bf16.mxu0 %v2090
    %7815 = vmatpush1.bf16.msra.mxu0 %v2089
    %7816 = vmatprep.subr.bf16.mxu0 %v2094
    %7817 = vmatpush1.bf16.msra.mxu0 %v2093
    %7818 = vmatprep.subr.bf16.mxu0 %v2098
    %7819 = vmatpush1.bf16.msra.mxu0 %v2097
    %7820 = vmatprep.subr.bf16.mxu0 %v2102
    %7821 = vmatpush1.bf16.msra.mxu0 %v2101
    %7822 = vmatprep.mubr.bf16.mxu0 %v7356
    %7823 = vmatmul.mubr.bf16.gmra.mrb[0].mxu0 %v7355
    %v7824 = vpop.f32.mrb[0].mxu0
    %v7825 = vadd.f32 %v7784, %v7824
    %v7826 = vpop.f32.mrb[0].mxu0
    %v7827 = vadd.f32 %v7786, %v7826
    %v7828 = vpop.f32.mrb[0].mxu0
    %v7829 = vpop.f32.mrb[0].mxu0
    %7830 = vdwg.mxu0
    %7831 = vmatprep.subr.bf16.mxu0 %v1980
    %7832 = vmatpush1.bf16.msra.mxu0 %v1979
    %7833 = vmatprep.subr.bf16.mxu0 %v1984
    %7834 = vmatpush1.bf16.msra.mxu0 %v1983
    %7835 = vmatprep.subr.bf16.mxu0 %v1988
    %7836 = vmatpush1.bf16.msra.mxu0 %v1987
    %7837 = vmatprep.subr.bf16.mxu0 %v1992
    %7838 = vmatpush1.bf16.msra.mxu0 %v1991
    %7839 = vmatprep.subr.bf16.mxu0 %v1996
    %7840 = vmatpush1.bf16.msra.mxu0 %v1995
    %7841 = vmatprep.subr.bf16.mxu0 %v2000
    %7842 = vmatpush1.bf16.msra.mxu0 %v1999
    %7843 = vmatprep.subr.bf16.mxu0 %v2004
    %7844 = vmatpush1.bf16.msra.mxu0 %v2003
    %7845 = vmatprep.subr.bf16.mxu0 %v2008
    %7846 = vmatpush1.bf16.msra.mxu0 %v2007
    %7847 = vmatprep.subr.bf16.mxu0 %v2012
    %7848 = vmatpush1.bf16.msra.mxu0 %v2011
    %7849 = vmatprep.subr.bf16.mxu0 %v2016
    %7850 = vmatpush1.bf16.msra.mxu0 %v2015
    %7851 = vmatprep.subr.bf16.mxu0 %v2020
    %7852 = vmatpush1.bf16.msra.mxu0 %v2019
    %7853 = vmatprep.subr.bf16.mxu0 %v2024
    %7854 = vmatpush1.bf16.msra.mxu0 %v2023
    %7855 = vmatprep.subr.bf16.mxu0 %v2028
    %7856 = vmatpush1.bf16.msra.mxu0 %v2027
    %7857 = vmatprep.subr.bf16.mxu0 %v2032
    %7858 = vmatpush1.bf16.msra.mxu0 %v2031
    %7859 = vmatprep.subr.bf16.mxu0 %v2036
    %7860 = vmatpush1.bf16.msra.mxu0 %v2035
    %7861 = vmatprep.subr.bf16.mxu0 %v2040
    %7862 = vmatpush1.bf16.msra.mxu0 %v2039
    %7863 = vmatprep.mubr.bf16.mxu0 %v7354
    %7864 = vmatmul.mubr.bf16.gmra.mrb[0].mxu0 %v7353
    %v7865 = vpop.f32.mrb[0].mxu0
    %v7866 = vadd.f32 0.0, %v7865
    %v7867 = vpop.f32.mrb[0].mxu0
    %v7868 = vadd.f32 0.0, %v7867
    %v7869 = vpop.f32.mrb[0].mxu0
    %v7870 = vpop.f32.mrb[0].mxu0
    %7871 = vdwg.mxu0
    %7872 = vmatprep.subr.bf16.mxu0 %v2044
    %7873 = vmatpush1.bf16.msra.mxu0 %v2043
    %7874 = vmatprep.subr.bf16.mxu0 %v2048
    %7875 = vmatpush1.bf16.msra.mxu0 %v2047
    %7876 = vmatprep.subr.bf16.mxu0 %v2052
    %7877 = vmatpush1.bf16.msra.mxu0 %v2051
    %7878 = vmatprep.subr.bf16.mxu0 %v2056
    %7879 = vmatpush1.bf16.msra.mxu0 %v2055
    %7880 = vmatprep.subr.bf16.mxu0 %v2060
    %7881 = vmatpush1.bf16.msra.mxu0 %v2059
    %7882 = vmatprep.subr.bf16.mxu0 %v2064
    %7883 = vmatpush1.bf16.msra.mxu0 %v2063
    %7884 = vmatprep.subr.bf16.mxu0 %v2068
    %7885 = vmatpush1.bf16.msra.mxu0 %v2067
    %7886 = vmatprep.subr.bf16.mxu0 %v2072
    %7887 = vmatpush1.bf16.msra.mxu0 %v2071
    %7888 = vmatprep.subr.bf16.mxu0 %v2076
    %7889 = vmatpush1.bf16.msra.mxu0 %v2075
    %7890 = vmatprep.subr.bf16.mxu0 %v2080
    %7891 = vmatpush1.bf16.msra.mxu0 %v2079
    %7892 = vmatprep.subr.bf16.mxu0 %v2084
    %7893 = vmatpush1.bf16.msra.mxu0 %v2083
    %7894 = vmatprep.subr.bf16.mxu0 %v2088
    %7895 = vmatpush1.bf16.msra.mxu0 %v2087
    %7896 = vmatprep.subr.bf16.mxu0 %v2092
    %7897 = vmatpush1.bf16.msra.mxu0 %v2091
    %7898 = vmatprep.subr.bf16.mxu0 %v2096
    %7899 = vmatpush1.bf16.msra.mxu0 %v2095
    %7900 = vmatprep.subr.bf16.mxu0 %v2100
    %7901 = vmatpush1.bf16.msra.mxu0 %v2099
    %7902 = vmatprep.subr.bf16.mxu0 %v2104
    %7903 = vmatpush1.bf16.msra.mxu0 %v2103
    %7904 = vmatprep.mubr.bf16.mxu0 %v7356
    %7905 = vmatmul.mubr.bf16.gmra.mrb[0].mxu0 %v7355
    %v7906 = vpop.f32.mrb[0].mxu0
    %v7907 = vadd.f32 %v7866, %v7906
    %v7908 = vpop.f32.mrb[0].mxu0
    %v7909 = vadd.f32 %v7868, %v7908
    %v7910 = vpop.f32.mrb[0].mxu0
    %v7911 = vpop.f32.mrb[0].mxu0
    %7912 = vdwg.mxu0
    %v7913 = vld [vmem:[#allocation3 + $0x3c0] sm:$0xff]
    %v7914 = vld [vmem:[#allocation3 + $0x3c8] sm:$0xff]
    %v7915 = vld [vmem:[#allocation3 + $0x3d0] sm:$0xff]
    %v7916 = vld [vmem:[#allocation3 + $0x3d8] sm:$0xff]
    %v7917 = vadd.f32 %v7913, %v7825
    %v7918 = vadd.f32 %v7914, %v7827
    %v7919 = vadd.f32 %v7915, %v7907
    %v7920 = vadd.f32 %v7916, %v7909
    %v7921 = vtanh.pop %v7917
    %v7922 = vtanh.pop %v7918
    %v7923 = vtanh.pop %v7919
    %v7924 = vtanh.pop %v7920
    %7925 = vmatprep.subr.bf16.mxu0 %v2282
    %7926 = vmatpush1.bf16.msra.mxu0 %v2281
    %7927 = vmatprep.subr.bf16.mxu0 %v2286
    %7928 = vmatpush1.bf16.msra.mxu0 %v2285
    %7929 = vmatprep.subr.bf16.mxu0 %v2290
    %7930 = vmatpush1.bf16.msra.mxu0 %v2289
    %7931 = vmatprep.subr.bf16.mxu0 %v2294
    %7932 = vmatpush1.bf16.msra.mxu0 %v2293
    %7933 = vmatprep.subr.bf16.mxu0 %v2298
    %7934 = vmatpush1.bf16.msra.mxu0 %v2297
    %7935 = vmatprep.subr.bf16.mxu0 %v2302
    %7936 = vmatpush1.bf16.msra.mxu0 %v2301
    %7937 = vmatprep.subr.bf16.mxu0 %v2306
    %7938 = vmatpush1.bf16.msra.mxu0 %v2305
    %7939 = vmatprep.subr.bf16.mxu0 %v2310
    %7940 = vmatpush1.bf16.msra.mxu0 %v2309
    %7941 = vmatprep.subr.bf16.mxu0 %v2314
    %7942 = vmatpush1.bf16.msra.mxu0 %v2313
    %7943 = vmatprep.subr.bf16.mxu0 %v2318
    %7944 = vmatpush1.bf16.msra.mxu0 %v2317
    %7945 = vmatprep.subr.bf16.mxu0 %v2322
    %7946 = vmatpush1.bf16.msra.mxu0 %v2321
    %7947 = vmatprep.subr.bf16.mxu0 %v2326
    %7948 = vmatpush1.bf16.msra.mxu0 %v2325
    %7949 = vmatprep.subr.bf16.mxu0 %v2330
    %7950 = vmatpush1.bf16.msra.mxu0 %v2329
    %7951 = vmatprep.subr.bf16.mxu0 %v2334
    %7952 = vmatpush1.bf16.msra.mxu0 %v2333
    %7953 = vmatprep.subr.bf16.mxu0 %v2338
    %7954 = vmatpush1.bf16.msra.mxu0 %v2337
    %7955 = vmatprep.subr.bf16.mxu0 %v2342
    %7956 = vmatpush1.bf16.msra.mxu0 %v2341
    %7957 = vmatprep.mubr.bf16.mxu0 %v7354
    %7958 = vmatmul.mubr.bf16.gmra.mrb[0].mxu0 %v7353
    %v7959 = vpop.f32.mrb[0].mxu0
    %v7960 = vadd.f32 0.0, %v7959
    %v7961 = vpop.f32.mrb[0].mxu0
    %v7962 = vadd.f32 0.0, %v7961
    %v7963 = vpop.f32.mrb[0].mxu0
    %v7964 = vpop.f32.mrb[0].mxu0
    %7965 = vdwg.mxu0
    %7966 = vmatprep.subr.bf16.mxu0 %v2346
    %7967 = vmatpush1.bf16.msra.mxu0 %v2345
    %7968 = vmatprep.subr.bf16.mxu0 %v2350
    %7969 = vmatpush1.bf16.msra.mxu0 %v2349
    %7970 = vmatprep.subr.bf16.mxu0 %v2354
    %7971 = vmatpush1.bf16.msra.mxu0 %v2353
    %7972 = vmatprep.subr.bf16.mxu0 %v2358
    %7973 = vmatpush1.bf16.msra.mxu0 %v2357
    %7974 = vmatprep.subr.bf16.mxu0 %v2362
    %7975 = vmatpush1.bf16.msra.mxu0 %v2361
    %7976 = vmatprep.subr.bf16.mxu0 %v2366
    %7977 = vmatpush1.bf16.msra.mxu0 %v2365
    %7978 = vmatprep.subr.bf16.mxu0 %v2370
    %7979 = vmatpush1.bf16.msra.mxu0 %v2369
    %7980 = vmatprep.subr.bf16.mxu0 %v2374
    %7981 = vmatpush1.bf16.msra.mxu0 %v2373
    %7982 = vmatprep.subr.bf16.mxu0 %v2378
    %7983 = vmatpush1.bf16.msra.mxu0 %v2377
    %7984 = vmatprep.subr.bf16.mxu0 %v2382
    %7985 = vmatpush1.bf16.msra.mxu0 %v2381
    %7986 = vmatprep.subr.bf16.mxu0 %v2386
    %7987 = vmatpush1.bf16.msra.mxu0 %v2385
    %7988 = vmatprep.subr.bf16.mxu0 %v2390
    %7989 = vmatpush1.bf16.msra.mxu0 %v2389
    %7990 = vmatprep.subr.bf16.mxu0 %v2394
    %7991 = vmatpush1.bf16.msra.mxu0 %v2393
    %7992 = vmatprep.subr.bf16.mxu0 %v2398
    %7993 = vmatpush1.bf16.msra.mxu0 %v2397
    %7994 = vmatprep.subr.bf16.mxu0 %v2402
    %7995 = vmatpush1.bf16.msra.mxu0 %v2401
    %7996 = vmatprep.subr.bf16.mxu0 %v2406
    %7997 = vmatpush1.bf16.msra.mxu0 %v2405
    %7998 = vmatprep.mubr.bf16.mxu0 %v7356
    %7999 = vmatmul.mubr.bf16.gmra.mrb[0].mxu0 %v7355
    %v8000 = vpop.f32.mrb[0].mxu0
    %v8001 = vadd.f32 %v7960, %v8000
    %v8002 = vpop.f32.mrb[0].mxu0
    %v8003 = vadd.f32 %v7962, %v8002
    %v8004 = vpop.f32.mrb[0].mxu0
    %v8005 = vpop.f32.mrb[0].mxu0
    %8006 = vdwg.mxu0
    %8007 = vmatprep.subr.bf16.mxu0 %v2284
    %8008 = vmatpush1.bf16.msra.mxu0 %v2283
    %8009 = vmatprep.subr.bf16.mxu0 %v2288
    %8010 = vmatpush1.bf16.msra.mxu0 %v2287
    %8011 = vmatprep.subr.bf16.mxu0 %v2292
    %8012 = vmatpush1.bf16.msra.mxu0 %v2291
    %8013 = vmatprep.subr.bf16.mxu0 %v2296
    %8014 = vmatpush1.bf16.msra.mxu0 %v2295
    %8015 = vmatprep.subr.bf16.mxu0 %v2300
    %8016 = vmatpush1.bf16.msra.mxu0 %v2299
    %8017 = vmatprep.subr.bf16.mxu0 %v2304
    %8018 = vmatpush1.bf16.msra.mxu0 %v2303
    %8019 = vmatprep.subr.bf16.mxu0 %v2308
    %8020 = vmatpush1.bf16.msra.mxu0 %v2307
    %8021 = vmatprep.subr.bf16.mxu0 %v2312
    %8022 = vmatpush1.bf16.msra.mxu0 %v2311
    %8023 = vmatprep.subr.bf16.mxu0 %v2316
    %8024 = vmatpush1.bf16.msra.mxu0 %v2315
    %8025 = vmatprep.subr.bf16.mxu0 %v2320
    %8026 = vmatpush1.bf16.msra.mxu0 %v2319
    %8027 = vmatprep.subr.bf16.mxu0 %v2324
    %8028 = vmatpush1.bf16.msra.mxu0 %v2323
    %8029 = vmatprep.subr.bf16.mxu0 %v2328
    %8030 = vmatpush1.bf16.msra.mxu0 %v2327
    %8031 = vmatprep.subr.bf16.mxu0 %v2332
    %8032 = vmatpush1.bf16.msra.mxu0 %v2331
    %8033 = vmatprep.subr.bf16.mxu0 %v2336
    %8034 = vmatpush1.bf16.msra.mxu0 %v2335
    %8035 = vmatprep.subr.bf16.mxu0 %v2340
    %8036 = vmatpush1.bf16.msra.mxu0 %v2339
    %8037 = vmatprep.subr.bf16.mxu0 %v2344
    %8038 = vmatpush1.bf16.msra.mxu0 %v2343
    %8039 = vmatprep.mubr.bf16.mxu0 %v7354
    %8040 = vmatmul.mubr.bf16.gmra.mrb[0].mxu0 %v7353
    %v8041 = vpop.f32.mrb[0].mxu0
    %v8042 = vadd.f32 0.0, %v8041
    %v8043 = vpop.f32.mrb[0].mxu0
    %v8044 = vadd.f32 0.0, %v8043
    %v8045 = vpop.f32.mrb[0].mxu0
    %v8046 = vpop.f32.mrb[0].mxu0
    %8047 = vdwg.mxu0
    %8048 = vmatprep.subr.bf16.mxu0 %v2348
    %8049 = vmatpush1.bf16.msra.mxu0 %v2347
    %8050 = vmatprep.subr.bf16.mxu0 %v2352
    %8051 = vmatpush1.bf16.msra.mxu0 %v2351
    %8052 = vmatprep.subr.bf16.mxu0 %v2356
    %8053 = vmatpush1.bf16.msra.mxu0 %v2355
    %8054 = vmatprep.subr.bf16.mxu0 %v2360
    %8055 = vmatpush1.bf16.msra.mxu0 %v2359
    %8056 = vmatprep.subr.bf16.mxu0 %v2364
    %8057 = vmatpush1.bf16.msra.mxu0 %v2363
    %8058 = vmatprep.subr.bf16.mxu0 %v2368
    %8059 = vmatpush1.bf16.msra.mxu0 %v2367
    %8060 = vmatprep.subr.bf16.mxu0 %v2372
    %8061 = vmatpush1.bf16.msra.mxu0 %v2371
    %8062 = vmatprep.subr.bf16.mxu0 %v2376
    %8063 = vmatpush1.bf16.msra.mxu0 %v2375
    %8064 = vmatprep.subr.bf16.mxu0 %v2380
    %8065 = vmatpush1.bf16.msra.mxu0 %v2379
    %8066 = vmatprep.subr.bf16.mxu0 %v2384
    %8067 = vmatpush1.bf16.msra.mxu0 %v2383
    %8068 = vmatprep.subr.bf16.mxu0 %v2388
    %8069 = vmatpush1.bf16.msra.mxu0 %v2387
    %8070 = vmatprep.subr.bf16.mxu0 %v2392
    %8071 = vmatpush1.bf16.msra.mxu0 %v2391
    %8072 = vmatprep.subr.bf16.mxu0 %v2396
    %8073 = vmatpush1.bf16.msra.mxu0 %v2395
    %8074 = vmatprep.subr.bf16.mxu0 %v2400
    %8075 = vmatpush1.bf16.msra.mxu0 %v2399
    %8076 = vmatprep.subr.bf16.mxu0 %v2404
    %8077 = vmatpush1.bf16.msra.mxu0 %v2403
    %8078 = vmatprep.subr.bf16.mxu0 %v2408
    %8079 = vmatpush1.bf16.msra.mxu0 %v2407
    %8080 = vmatprep.mubr.bf16.mxu0 %v7356
    %8081 = vmatmul.mubr.bf16.gmra.mrb[0].mxu0 %v7355
    %v8082 = vpop.f32.mrb[0].mxu0
    %v8083 = vadd.f32 %v8042, %v8082
    %v8084 = vpop.f32.mrb[0].mxu0
    %v8085 = vadd.f32 %v8044, %v8084
    %v8086 = vpop.f32.mrb[0].mxu0
    %v8087 = vpop.f32.mrb[0].mxu0
    %8088 = vdwg.mxu0
    %v8089 = vld [vmem:[#allocation3 + $0x3e0] sm:$0xff]
    %v8090 = vld [vmem:[#allocation3 + $0x3e8] sm:$0xff]
    %v8091 = vld [vmem:[#allocation3 + $0x3f0] sm:$0xff]
    %v8092 = vld [vmem:[#allocation3 + $0x3f8] sm:$0xff]
    %v8093 = vadd.f32 %v8089, %v8001
    %v8094 = vadd.f32 %v8090, %v8003
    %v8095 = vadd.f32 %v8091, %v8083
    %v8096 = vadd.f32 %v8092, %v8085
    %v8097 = vxor.u32 %v8093, 2147483648
    %v8098 = vxor.u32 %v8094, 2147483648
    %v8099 = vxor.u32 %v8095, 2147483648
    %v8100 = vxor.u32 %v8096, 2147483648
    %v8101 = vmul.f32 %v8097, 1.442695
    %v8102 = vpow.pop %v8101
    %v8103 = vmul.f32 %v8098, 1.442695
    %v8104 = vpow.pop %v8103
    %v8105 = vmul.f32 %v8099, 1.442695
    %v8106 = vpow.pop %v8105
    %v8107 = vmul.f32 %v8100, 1.442695
    %v8108 = vpow.pop %v8107
    %v8109 = vadd.f32 %v8102, 1.0
    %v8110 = vadd.f32 %v8104, 1.0
    %v8111 = vadd.f32 %v8106, 1.0
    %v8112 = vadd.f32 %v8108, 1.0
    %v8113 = vrcp.pop %v8109
    %v8114 = vmul.f32 1.0, %v8113
    %v8115 = vrcp.pop %v8110
    %v8116 = vmul.f32 1.0, %v8115
    %v8117 = vrcp.pop %v8111
    %v8118 = vmul.f32 1.0, %v8117
    %v8119 = vrcp.pop %v8112
    %v8120 = vmul.f32 1.0, %v8119
    %v8121 = vmul.f32 %v7742, %v7341
    %v8122 = vmul.f32 %v7744, %v7342
    %v8123 = vmul.f32 %v7746, %v7343
    %v8124 = vmul.f32 %v7748, %v7344
    %v8125 = vmul.f32 %v7546, %v7921
    %v8126 = vmul.f32 %v7548, %v7922
    %v8127 = vmul.f32 %v7550, %v7923
    %v8128 = vmul.f32 %v7552, %v7924
    %v8129 = vadd.f32 %v8121, %v8125
    %v8130 = vadd.f32 %v8122, %v8126
    %v8131 = vadd.f32 %v8123, %v8127
    %v8132 = vadd.f32 %v8124, %v8128
    %v8133 = vtanh.pop %v8129
    %v8134 = vtanh.pop %v8130
    %v8135 = vtanh.pop %v8131
    %v8136 = vtanh.pop %v8132
    %v8137 = vmul.f32 %v8114, %v8133
    %v8138 = vmul.f32 %v8116, %v8134
    %v8139 = vmul.f32 %v8118, %v8135
    %v8140 = vmul.f32 %v8120, %v8136
    %v8141 = vld [vmem:[#allocation9] sm:$0xff]
    %v8142 = vld [vmem:[#allocation9 + $0x8] sm:$0xff]
    %v8143 = vld [vmem:[#allocation9 + $0x10] sm:$0xff]
    %v8144 = vld [vmem:[#allocation9 + $0x18] sm:$0xff]
    %v8145 = vld [vmem:[#allocation9 + $0x20] sm:$0xff]
    %v8146 = vld [vmem:[#allocation9 + $0x28] sm:$0xff]
    %v8147 = vld [vmem:[#allocation9 + $0x30] sm:$0xff]
    %v8148 = vld [vmem:[#allocation9 + $0x38] sm:$0xff]
    %v8149 = vld [vmem:[#allocation9 + $0x40] sm:$0xff]
    %v8150 = vld [vmem:[#allocation9 + $0x48] sm:$0xff]
    %v8151 = vld [vmem:[#allocation9 + $0x50] sm:$0xff]
    %v8152 = vld [vmem:[#allocation9 + $0x58] sm:$0xff]
    %v8153 = vld [vmem:[#allocation9 + $0x60] sm:$0xff]
    %v8154 = vld [vmem:[#allocation9 + $0x68] sm:$0xff]
    %v8155 = vld [vmem:[#allocation9 + $0x70] sm:$0xff]
    %v8156 = vld [vmem:[#allocation9 + $0x78] sm:$0xff]
    %v8157 = vld [vmem:[#allocation9 + $0x80] sm:$0xff]
    %v8158 = vld [vmem:[#allocation9 + $0x88] sm:$0xff]
    %v8159 = vld [vmem:[#allocation9 + $0x90] sm:$0xff]
    %v8160 = vld [vmem:[#allocation9 + $0x98] sm:$0xff]
    %v8161 = vld [vmem:[#allocation9 + $0xa0] sm:$0xff]
    %v8162 = vld [vmem:[#allocation9 + $0xa8] sm:$0xff]
    %v8163 = vld [vmem:[#allocation9 + $0xb0] sm:$0xff]
    %v8164 = vld [vmem:[#allocation9 + $0xb8] sm:$0xff]
    %v8165 = vld [vmem:[#allocation9 + $0xc0] sm:$0xff]
    %v8166 = vld [vmem:[#allocation9 + $0xc8] sm:$0xff]
    %v8167 = vld [vmem:[#allocation9 + $0xd0] sm:$0xff]
    %v8168 = vld [vmem:[#allocation9 + $0xd8] sm:$0xff]
    %v8169 = vld [vmem:[#allocation9 + $0xe0] sm:$0xff]
    %v8170 = vld [vmem:[#allocation9 + $0xe8] sm:$0xff]
    %v8171 = vld [vmem:[#allocation9 + $0xf0] sm:$0xff]
    %v8172 = vld [vmem:[#allocation9 + $0xf8] sm:$0xff]
    %v8173 = vld [vmem:[#allocation9 + $0x100] sm:$0xff]
    %v8174 = vld [vmem:[#allocation9 + $0x108] sm:$0xff]
    %v8175 = vld [vmem:[#allocation9 + $0x110] sm:$0xff]
    %v8176 = vld [vmem:[#allocation9 + $0x118] sm:$0xff]
    %v8177 = vld [vmem:[#allocation9 + $0x120] sm:$0xff]
    %v8178 = vld [vmem:[#allocation9 + $0x128] sm:$0xff]
    %v8179 = vld [vmem:[#allocation9 + $0x130] sm:$0xff]
    %v8180 = vld [vmem:[#allocation9 + $0x138] sm:$0xff]
    %v8181 = vld [vmem:[#allocation9 + $0x140] sm:$0xff]
    %v8182 = vld [vmem:[#allocation9 + $0x148] sm:$0xff]
    %v8183 = vld [vmem:[#allocation9 + $0x150] sm:$0xff]
    %v8184 = vld [vmem:[#allocation9 + $0x158] sm:$0xff]
    %v8185 = vld [vmem:[#allocation9 + $0x160] sm:$0xff]
    %v8186 = vld [vmem:[#allocation9 + $0x168] sm:$0xff]
    %v8187 = vld [vmem:[#allocation9 + $0x170] sm:$0xff]
    %v8188 = vld [vmem:[#allocation9 + $0x178] sm:$0xff]
    %v8189 = vld [vmem:[#allocation9 + $0x180] sm:$0xff]
    %v8190 = vld [vmem:[#allocation9 + $0x188] sm:$0xff]
    %v8191 = vld [vmem:[#allocation9 + $0x190] sm:$0xff]
    %v8192 = vld [vmem:[#allocation9 + $0x198] sm:$0xff]
    %v8193 = vld [vmem:[#allocation9 + $0x1a0] sm:$0xff]
    %v8194 = vld [vmem:[#allocation9 + $0x1a8] sm:$0xff]
    %v8195 = vld [vmem:[#allocation9 + $0x1b0] sm:$0xff]
    %v8196 = vld [vmem:[#allocation9 + $0x1b8] sm:$0xff]
    %v8197 = vld [vmem:[#allocation9 + $0x1c0] sm:$0xff]
    %v8198 = vld [vmem:[#allocation9 + $0x1c8] sm:$0xff]
    %v8199 = vld [vmem:[#allocation9 + $0x1d0] sm:$0xff]
    %v8200 = vld [vmem:[#allocation9 + $0x1d8] sm:$0xff]
    %v8201 = vld [vmem:[#allocation9 + $0x1e0] sm:$0xff]
    %v8202 = vld [vmem:[#allocation9 + $0x1e8] sm:$0xff]
    %v8203 = vld [vmem:[#allocation9 + $0x1f0] sm:$0xff]
    %v8204 = vld [vmem:[#allocation9 + $0x1f8] sm:$0xff]
    %v8205 = vld [vmem:[#allocation10] sm:$0x1]
    %v8207 = vlaneseq
    %v8208 = vshrl.u32 %v8207, 7
    %v8209 = vsub.s32 0, %v8208
    %v8210 = vrot.slane %v8205, %v8209
    %8212 = vmatprep.subr.mxu0 0.0
    %8213 = vmatpush1.msra.mxu0 %v8141
    %8214 = vmatprep.subr.mxu0 0.0
    %8215 = vmatpush1.msra.mxu0 %v8142
    %8216 = vmatprep.subr.mxu0 0.0
    %8217 = vmatpush1.msra.mxu0 %v8143
    %8218 = vmatprep.subr.mxu0 0.0
    %8219 = vmatpush1.msra.mxu0 %v8144
    %8220 = vmatprep.subr.mxu0 0.0
    %8221 = vmatpush1.msra.mxu0 %v8145
    %8222 = vmatprep.subr.mxu0 0.0
    %8223 = vmatpush1.msra.mxu0 %v8146
    %8224 = vmatprep.subr.mxu0 0.0
    %8225 = vmatpush1.msra.mxu0 %v8147
    %8226 = vmatprep.subr.mxu0 0.0
    %8227 = vmatpush1.msra.mxu0 %v8148
    %8228 = vmatprep.subr.mxu0 0.0
    %8229 = vmatpush1.msra.mxu0 %v8149
    %8230 = vmatprep.subr.mxu0 0.0
    %8231 = vmatpush1.msra.mxu0 %v8150
    %8232 = vmatprep.subr.mxu0 0.0
    %8233 = vmatpush1.msra.mxu0 %v8151
    %8234 = vmatprep.subr.mxu0 0.0
    %8235 = vmatpush1.msra.mxu0 %v8152
    %8236 = vmatprep.subr.mxu0 0.0
    %8237 = vmatpush1.msra.mxu0 %v8153
    %8238 = vmatprep.subr.mxu0 0.0
    %8239 = vmatpush1.msra.mxu0 %v8154
    %8240 = vmatprep.subr.mxu0 0.0
    %8241 = vmatpush1.msra.mxu0 %v8155
    %8242 = vmatprep.subr.mxu0 0.0
    %8243 = vmatpush1.msra.mxu0 %v8156
    %8244 = vmatprep.subr.mxu0 0.0
    %8245 = vmatpush1.msra.mxu0 %v8157
    %8246 = vmatprep.subr.mxu0 0.0
    %8247 = vmatpush1.msra.mxu0 %v8158
    %8248 = vmatprep.subr.mxu0 0.0
    %8249 = vmatpush1.msra.mxu0 %v8159
    %8250 = vmatprep.subr.mxu0 0.0
    %8251 = vmatpush1.msra.mxu0 %v8160
    %8252 = vmatprep.subr.mxu0 0.0
    %8253 = vmatpush1.msra.mxu0 %v8161
    %8254 = vmatprep.subr.mxu0 0.0
    %8255 = vmatpush1.msra.mxu0 %v8162
    %8256 = vmatprep.subr.mxu0 0.0
    %8257 = vmatpush1.msra.mxu0 %v8163
    %8258 = vmatprep.subr.mxu0 0.0
    %8259 = vmatpush1.msra.mxu0 %v8164
    %8260 = vmatprep.subr.mxu0 0.0
    %8261 = vmatpush1.msra.mxu0 %v8165
    %8262 = vmatprep.subr.mxu0 0.0
    %8263 = vmatpush1.msra.mxu0 %v8166
    %8264 = vmatprep.subr.mxu0 0.0
    %8265 = vmatpush1.msra.mxu0 %v8167
    %8266 = vmatprep.subr.mxu0 0.0
    %8267 = vmatpush1.msra.mxu0 %v8168
    %8268 = vmatprep.subr.mxu0 0.0
    %8269 = vmatpush1.msra.mxu0 %v8169
    %8270 = vmatprep.subr.mxu0 0.0
    %8271 = vmatpush1.msra.mxu0 %v8170
    %8272 = vmatprep.subr.mxu0 0.0
    %8273 = vmatpush1.msra.mxu0 %v8171
    %8274 = vmatprep.subr.mxu0 0.0
    %8275 = vmatpush1.msra.mxu0 %v8172
    %8276 = vmatprep.mubr.f32.mxu0 %v8138
    %8277 = vmatmul.mubr.f32.gmra.mrb[0].mxu0 %v8137
    %v8278 = vpop.f32.mrb[0].mxu0
    %v8279 = vadd.f32 %v8210, %v8278
    %v8280 = vpop.f32.mrb[0].mxu0
    %8281 = vdwg.mxu0
    %8282 = vmatprep.subr.mxu0 0.0
    %8283 = vmatpush1.msra.mxu0 %v8173
    %8284 = vmatprep.subr.mxu0 0.0
    %8285 = vmatpush1.msra.mxu0 %v8174
    %8286 = vmatprep.subr.mxu0 0.0
    %8287 = vmatpush1.msra.mxu0 %v8175
    %8288 = vmatprep.subr.mxu0 0.0
    %8289 = vmatpush1.msra.mxu0 %v8176
    %8290 = vmatprep.subr.mxu0 0.0
    %8291 = vmatpush1.msra.mxu0 %v8177
    %8292 = vmatprep.subr.mxu0 0.0
    %8293 = vmatpush1.msra.mxu0 %v8178
    %8294 = vmatprep.subr.mxu0 0.0
    %8295 = vmatpush1.msra.mxu0 %v8179
    %8296 = vmatprep.subr.mxu0 0.0
    %8297 = vmatpush1.msra.mxu0 %v8180
    %8298 = vmatprep.subr.mxu0 0.0
    %8299 = vmatpush1.msra.mxu0 %v8181
    %8300 = vmatprep.subr.mxu0 0.0
    %8301 = vmatpush1.msra.mxu0 %v8182
    %8302 = vmatprep.subr.mxu0 0.0
    %8303 = vmatpush1.msra.mxu0 %v8183
    %8304 = vmatprep.subr.mxu0 0.0
    %8305 = vmatpush1.msra.mxu0 %v8184
    %8306 = vmatprep.subr.mxu0 0.0
    %8307 = vmatpush1.msra.mxu0 %v8185
    %8308 = vmatprep.subr.mxu0 0.0
    %8309 = vmatpush1.msra.mxu0 %v8186
    %8310 = vmatprep.subr.mxu0 0.0
    %8311 = vmatpush1.msra.mxu0 %v8187
    %8312 = vmatprep.subr.mxu0 0.0
    %8313 = vmatpush1.msra.mxu0 %v8188
    %8314 = vmatprep.subr.mxu0 0.0
    %8315 = vmatpush1.msra.mxu0 %v8189
    %8316 = vmatprep.subr.mxu0 0.0
    %8317 = vmatpush1.msra.mxu0 %v8190
    %8318 = vmatprep.subr.mxu0 0.0
    %8319 = vmatpush1.msra.mxu0 %v8191
    %8320 = vmatprep.subr.mxu0 0.0
    %8321 = vmatpush1.msra.mxu0 %v8192
    %8322 = vmatprep.subr.mxu0 0.0
    %8323 = vmatpush1.msra.mxu0 %v8193
    %8324 = vmatprep.subr.mxu0 0.0
    %8325 = vmatpush1.msra.mxu0 %v8194
    %8326 = vmatprep.subr.mxu0 0.0
    %8327 = vmatpush1.msra.mxu0 %v8195
    %8328 = vmatprep.subr.mxu0 0.0
    %8329 = vmatpush1.msra.mxu0 %v8196
    %8330 = vmatprep.subr.mxu0 0.0
    %8331 = vmatpush1.msra.mxu0 %v8197
    %8332 = vmatprep.subr.mxu0 0.0
    %8333 = vmatpush1.msra.mxu0 %v8198
    %8334 = vmatprep.subr.mxu0 0.0
    %8335 = vmatpush1.msra.mxu0 %v8199
    %8336 = vmatprep.subr.mxu0 0.0
    %8337 = vmatpush1.msra.mxu0 %v8200
    %8338 = vmatprep.subr.mxu0 0.0
    %8339 = vmatpush1.msra.mxu0 %v8201
    %8340 = vmatprep.subr.mxu0 0.0
    %8341 = vmatpush1.msra.mxu0 %v8202
    %8342 = vmatprep.subr.mxu0 0.0
    %8343 = vmatpush1.msra.mxu0 %v8203
    %8344 = vmatprep.subr.mxu0 0.0
    %8345 = vmatpush1.msra.mxu0 %v8204
    %8346 = vmatprep.mubr.f32.mxu0 %v8140
    %8347 = vmatmul.mubr.f32.gmra.mrb[0].mxu0 %v8139
    %v8348 = vpop.f32.mrb[0].mxu0
    %v8349 = vadd.f32 %v8279, %v8348
    %v8350 = vpop.f32.mrb[0].mxu0
    %8351 = vdwg.mxu0
    %8352 = vst [vmem:[%s6] sm:$0xff] %v8349
    // Predicated region
    $region38: #{actor_forward.1} parent=1 // pred_check
      _
    $region39: #{actor_forward.1} parent=1 // pred_check_branch
      %8354 = sbr.rel (0) target = $region41
    $region40: #{actor_forward.1} parent=1 // pred_region
      _
    $region41: #{actor_forward.1} parent=1 // pred_fallthru
      _
    // Predicated region
    $region42: #{actor_forward.1} parent=1 // pred_check
      _
    $region43: #{actor_forward.1} parent=1 // pred_check_branch
      %8356 = sbr.rel (0) target = $region45
    $region44: #{actor_forward.1} parent=1 // pred_region
      _
    $region45: #{actor_forward.1} parent=1 // pred_fallthru
      _
    %8357 = vsyncpa [#allocation6], 1
    %8358 = vsyncpa [#allocation8], 1
    %8359 = vsyncpa [#allocation11], 1
  %8360 = vsyncmov [#allocation4]
  %s8361 = vpop.sfrf %8360
  %p8362 = scmp.eq.s32.totalorder %s8361, 0
  %p8363 = pneg %p8362
  %8365 = shalt.err (%p8363)

</llo_original>
